<compile_context>
chip_gen: v5e
topology: v5e:2x2
jax: 0.10.0
libtpu: 0.0.40
codegen_flags: <defaults>
</compile_context>

<pallas_src>
import functools
import math

import jax
import jax.numpy as jnp
import numpy as np
from jax.experimental import pallas as pl
from jax.experimental.pallas import tpu as pltpu


def _round_up(x, m):
    return ((x + m - 1) // m) * m


def _pick_tm(M, max_tile=512):
    # Largest tile dividing M while keeping >= 2 M-tiles (v7x megacore sharding).
    for t in (512, 256, 128, 64, 32, 16, 8):
        if t <= max_tile and M % t == 0 and M // t >= 2:
            return t
    return M


# ---------------------------------------------------------------------------
# Fused GEMM kernels:  O = [silu](X @ W + b) [+ residual]
# ---------------------------------------------------------------------------
def _gemm_k1_kernel(*refs, act, has_bias, has_res):
    """Single K-step path: no accumulator scratch, one pass over the tile."""
    it = iter(refs)
    x_ref = next(it)
    w_ref = next(it)
    b_ref = next(it) if has_bias else None
    r_ref = next(it) if has_res else None
    o_ref = next(it)

    y = jnp.dot(
        x_ref[...].astype(jnp.bfloat16),
        w_ref[...].astype(jnp.bfloat16),
        preferred_element_type=jnp.float32,
    )
    if has_bias:
        y = y + b_ref[...].astype(jnp.float32)
    if act == "silu":
        y = y * jax.nn.sigmoid(y)            # exp hits the EUP slot
    if has_res:
        y = y + r_ref[...].astype(jnp.float32)
    o_ref[...] = y.astype(o_ref.dtype)


def _gemm_acc_kernel(*refs, act, has_bias, has_res):
    """General K-tiled path (kept for K > 512; unused at current shapes)."""
    it = iter(refs)
    x_ref = next(it)
    w_ref = next(it)
    b_ref = next(it) if has_bias else None
    r_ref = next(it) if has_res else None
    o_ref = next(it)
    acc_ref = next(it)

    k = pl.program_id(2)

    @pl.when(k == 0)
    def _():
        acc_ref[...] = jnp.zeros_like(acc_ref)

    acc_ref[...] += jnp.dot(
        x_ref[...].astype(jnp.bfloat16),
        w_ref[...].astype(jnp.bfloat16),
        preferred_element_type=jnp.float32,
    )

    @pl.when(k == pl.num_programs(2) - 1)
    def _():
        y = acc_ref[...]
        if has_bias:
            y = y + b_ref[...].astype(jnp.float32)
        if act == "silu":
            y = y * jax.nn.sigmoid(y)
        if has_res:
            y = y + r_ref[...].astype(jnp.float32)
        o_ref[...] = y.astype(o_ref.dtype)


def fused_linear(x, w, b=None, residual=None, act=None, *, tn=128, tk=512):
    """y = act(x @ w + b) [+ residual] as one tiled Pallas GEMM.

    The caller supplies already lane-padded operands (no per-call pad/slice):
      x: (M, K) with M % 8 == 0, w: (K, N) with N % 128 == 0,
      b: (1, N) or None, residual: (M, N) or None.
    """
    M, K = x.shape
    Kw, N = w.shape
    assert K == Kw and M % 8 == 0 and N % 128 == 0
    tm = _pick_tm(M)
    tn = min(tn, N)

    has_bias = b is not None
    has_res = residual is not None
    inputs = [x, w]

    if K <= tk:
        # single reduction step -> specialized kernel, no accumulator scratch
        in_specs = [
            pl.BlockSpec((tm, K), lambda i, j: (i, 0)),
            pl.BlockSpec((K, tn), lambda i, j: (0, j)),
        ]
        if has_bias:
            inputs.append(b)
            in_specs.append(pl.BlockSpec((1, tn), lambda i, j: (0, j)))
        if has_res:
            inputs.append(residual)
            in_specs.append(pl.BlockSpec((tm, tn), lambda i, j: (i, j)))
        grid = (M // tm, N // tn)
        kernel = functools.partial(
            _gemm_k1_kernel, act=act, has_bias=has_bias, has_res=has_res)
        out_specs = pl.BlockSpec((tm, tn), lambda i, j: (i, j))
        scratch = []
        semantics = ("parallel", "parallel")
    else:
        assert K % tk == 0
        in_specs = [
            pl.BlockSpec((tm, tk), lambda i, j, k: (i, k)),
            pl.BlockSpec((tk, tn), lambda i, j, k: (k, j)),
        ]
        if has_bias:
            inputs.append(b)
            in_specs.append(pl.BlockSpec((1, tn), lambda i, j, k: (0, j)))
        if has_res:
            inputs.append(residual)
            in_specs.append(pl.BlockSpec((tm, tn), lambda i, j, k: (i, j)))
        grid = (M // tm, N // tn, K // tk)
        kernel = functools.partial(
            _gemm_acc_kernel, act=act, has_bias=has_bias, has_res=has_res)
        out_specs = pl.BlockSpec((tm, tn), lambda i, j, k: (i, j))
        scratch = [pltpu.VMEM((tm, tn), jnp.float32)]
        semantics = ("parallel", "parallel", "arbitrary")

    return pl.pallas_call(
        kernel,
        out_shape=jax.ShapeDtypeStruct((M, N), x.dtype),
        grid_spec=pltpu.PrefetchScalarGridSpec(
            num_scalar_prefetch=0,
            grid=grid,
            in_specs=in_specs,
            out_specs=out_specs,
            scratch_shapes=scratch,
        ),
        compiler_params=pltpu.CompilerParams(dimension_semantics=semantics),
    )(*inputs)


# ---------------------------------------------------------------------------
# Per-batch attention kernel: all heads per grid step, lane-dense output
# ---------------------------------------------------------------------------
def _attention_kernel(qkv_ref, o_ref, *, num_heads, head_dim, c, scale):
    qkv = qkv_ref[0]                                       # (S, Cqkv), f32
    S = qkv.shape[0]
    outs = []
    for h in range(num_heads):                             # static unroll
        lo = h * head_dim
        q = (qkv[:, lo:lo + head_dim] * scale).astype(jnp.bfloat16)
        k = qkv[:, c + lo:c + lo + head_dim].astype(jnp.bfloat16)
        v = qkv[:, 2 * c + lo:2 * c + lo + head_dim].astype(jnp.bfloat16)
        # scores (S, S): contract head dim without materialising a transpose
        s = jax.lax.dot_general(
            q, k, (((1,), (1,)), ((), ())), preferred_element_type=jnp.float32)
        m = jnp.max(s, axis=-1, keepdims=True)
        p = jnp.exp(s - m)
        l = jnp.sum(p, axis=-1, keepdims=True)
        o = jnp.dot(p.astype(jnp.bfloat16), v, preferred_element_type=jnp.float32)
        outs.append(o * pl.reciprocal(l, approx=True))     # divide on the EUP
    pad = o_ref.shape[-1] - num_heads * head_dim
    if pad > 0:
        outs.append(jnp.zeros((S, pad), jnp.float32))
    o_ref[0] = jnp.concatenate(outs, axis=-1).astype(o_ref.dtype)  # one dense store


def mha_attention(qkv, *, num_heads, c, out_width):
    """qkv: (B, S, Cqkv) packed [Q | K | V | pad] -> (B, S, out_width)."""
    B, S, Cqkv = qkv.shape
    D = c // num_heads
    scale = 1.0 / math.sqrt(D)
    return pl.pallas_call(
        functools.partial(_attention_kernel, num_heads=num_heads, head_dim=D,
                          c=c, scale=scale),
        out_shape=jax.ShapeDtypeStruct((B, S, out_width), qkv.dtype),
        grid_spec=pltpu.PrefetchScalarGridSpec(
            num_scalar_prefetch=0,
            grid=(B,),
            in_specs=[pl.BlockSpec((1, S, Cqkv), lambda b: (b, 0, 0))],
            out_specs=pl.BlockSpec((1, S, out_width), lambda b: (b, 0, 0)),
        ),
        compiler_params=pltpu.CompilerParams(dimension_semantics=("parallel",)),
    )(qkv)


# ---------------------------------------------------------------------------
# Parameters (PyTorch layout) + folding into padded kernel-friendly matrices
# ---------------------------------------------------------------------------
def init_params(key, c1, c2, num_layers):
    ks = iter(jax.random.split(key, 16 + 16 * num_layers))
    nrm = lambda shape, s: jax.random.normal(next(ks), shape, jnp.float32) * s
    p = {}
    if c1 != c2:
        p["conv_w"] = nrm((c2, c1, 1, 1), 0.3)          # Conv2d(c1, c2, k=1, bias=False)
        p["bn_gamma"] = 1.0 + nrm((c2,), 0.1)
        p["bn_beta"] = nrm((c2,), 0.1)
        p["bn_mean"] = nrm((c2,), 0.1)
        p["bn_var"] = jax.random.uniform(next(ks), (c2,), jnp.float32, 0.5, 1.5)
    p["lin_w"] = nrm((c2, c2), 0.1)                      # nn.Linear(c2, c2)
    p["lin_b"] = nrm((c2,), 0.1)
    p["layers"] = []
    for _ in range(num_layers):
        p["layers"].append({
            "q_w": nrm((c2, c2), 0.1),                   # bias-free q/k/v Linears
            "k_w": nrm((c2, c2), 0.1),
            "v_w": nrm((c2, c2), 0.1),
            "in_proj_w": nrm((3 * c2, c2), 0.1),         # MHA in-projection
            "in_proj_b": nrm((3 * c2,), 0.1),
            "out_w": nrm((c2, c2), 0.1),                 # MHA out-projection
            "out_b": nrm((c2,), 0.1),
            "fc1_w": nrm((c2, c2), 0.1),                 # bias-free fc1/fc2
            "fc2_w": nrm((c2, c2), 0.1),
        })
    return p


def fold_params(p, c2, eps=1e-5):
    """Fold BN into conv, q/k/v Linears into the MHA in-projection (fused into
    one packed matrix) and fc1*fc2 into one matrix; pad everything ONCE to
    lane-dense widths; cast weight matrices to bf16 (MXU operands)."""
    cp = _round_up(c2, 128)
    cqkv = _round_up(3 * c2, 128)

    def pad_w(w, rows, cols):
        return jnp.pad(w, ((0, rows - w.shape[0]),
                           (0, cols - w.shape[1]))).astype(jnp.bfloat16)

    def pad_b(b, cols):
        return jnp.pad(b, (0, cols - b.shape[0])).reshape(1, cols).astype(jnp.float32)

    f = {"layers": []}
    if "conv_w" in p:
        scale = p["bn_gamma"] / jnp.sqrt(p["bn_var"] + eps)           # (c2,)
        w = p["conv_w"][:, :, 0, 0]                                    # (c2, c1)
        f["conv_w"] = pad_w((w * scale[:, None]).T, w.shape[1], cp)    # (c1, cp)
        f["conv_b"] = pad_b(p["bn_beta"] - p["bn_mean"] * scale, cp)
    f["lin_w"] = pad_w(p["lin_w"].T, cp, cp)
    f["lin_b"] = pad_b(p["lin_b"], cp)
    for lp in p["layers"]:
        wq_m, wk_m, wv_m = (lp["in_proj_w"][:c2],
                            lp["in_proj_w"][c2:2 * c2],
                            lp["in_proj_w"][2 * c2:])
        # fold q/k/v Linear into the MHA in-projection (exact) and concatenate:
        #   x -> [ x (Wq_mha Wq_lin)^T + bq | ...K... | ...V... ]
        w_qkv = jnp.concatenate(
            [(wq_m @ lp["q_w"]).T, (wk_m @ lp["k_w"]).T, (wv_m @ lp["v_w"]).T],
            axis=1)                                                    # (c2, 3*c2)
        f["layers"].append({
            "w_qkv": pad_w(w_qkv, cp, cqkv),
            "b_qkv": pad_b(lp["in_proj_b"], cqkv),
            "wo": pad_w(lp["out_w"].T, cp, cp),
            "bo": pad_b(lp["out_b"], cp),
            # fc2(fc1(x)) == x @ (fc1^T fc2^T): fold exactly (no activation between)
            "w12": pad_w(lp["fc1_w"].T @ lp["fc2_w"].T, cp, cp),
        })
    return f


# ---------------------------------------------------------------------------
# TransformerBlock forward (Pallas path)
# ---------------------------------------------------------------------------
def transformer_block_forward(x_nchw, fp, c2, num_heads):
    B, _, H, W = x_nchw.shape
    S = H * W
    M = B * S
    cp = _round_up(c2, 128)

    # single NCHW -> token-major transpose at the model boundary (XLA)
    tok = jnp.transpose(x_nchw, (0, 2, 3, 1)).reshape(M, -1)

    if "conv_w" in fp:
        # 1x1 Conv + folded BN + SiLU == one fused GEMM into the padded layout
        h = fused_linear(tok, fp["conv_w"], fp["conv_b"], act="silu")
    else:
        h = jnp.pad(tok, ((0, 0), (0, cp - c2)))     # one-time lane padding

    # p + self.linear(p)
    h = fused_linear(h, fp["lin_w"], fp["lin_b"], residual=h)

    for fl in fp["layers"]:
        # fused q/k/v (+ in-proj) projection -> packed [Q | K | V | pad]
        qkv = fused_linear(h, fl["w_qkv"], fl["b_qkv"])
        a = mha_attention(qkv.reshape(B, S, -1), num_heads=num_heads, c=c2,
                          out_width=cp)
        a = a.reshape(M, cp)
        # out-projection + residual in one epilogue
        h = fused_linear(a, fl["wo"], fl["bo"], residual=h)
        # fc2(fc1(h)) + h with fc1*fc2 folded into one weight
        h = fused_linear(h, fl["w12"], residual=h)

    return h[:, :c2].reshape(B, H, W, c2).transpose(0, 3, 1, 2)


# ---------------------------------------------------------------------------
# Pure-JAX reference (mirrors the PyTorch module, unfolded, f32)
# ---------------------------------------------------------------------------
def reference_forward(x_nchw, p, c2, num_heads, eps=1e-5):
    B, _, H, W = x_nchw.shape
    S = H * W
    D = c2 // num_heads
    x = x_nchw
    if "conv_w" in p:
        w = p["conv_w"][:, :, 0, 0]
        y = jnp.einsum("bchw,oc->bohw", x, w)
        y = (y - p["bn_mean"][None, :, None, None]) / jnp.sqrt(
            p["bn_var"] + eps)[None, :, None, None]
        y = y * p["bn_gamma"][None, :, None, None] + p["bn_beta"][None, :, None, None]
        x = y * jax.nn.sigmoid(y)
    pseq = jnp.transpose(x.reshape(B, c2, S), (2, 0, 1))          # (S, B, C)
    h = pseq + (pseq @ p["lin_w"].T + p["lin_b"])
    for lp in p["layers"]:
        q_in, k_in, v_in = h @ lp["q_w"].T, h @ lp["k_w"].T, h @ lp["v_w"].T
        wq, wk, wv = (lp["in_proj_w"][:c2], lp["in_proj_w"][c2:2 * c2],
                      lp["in_proj_w"][2 * c2:])
        bq, bk, bv = (lp["in_proj_b"][:c2], lp["in_proj_b"][c2:2 * c2],
                      lp["in_proj_b"][2 * c2:])
        Q, K, V = q_in @ wq.T + bq, k_in @ wk.T + bk, v_in @ wv.T + bv

        def sh(t):
            return jnp.transpose(t.reshape(S, B, num_heads, D), (1, 2, 0, 3))

        Qh, Kh, Vh = sh(Q), sh(K), sh(V)
        scores = jnp.einsum("bhsd,bhtd->bhst", Qh, Kh) / math.sqrt(D)
        attn = jax.nn.softmax(scores, axis=-1)
        Oh = jnp.einsum("bhst,bhtd->bhsd", attn, Vh)
        O = jnp.transpose(Oh, (2, 0, 1, 3)).reshape(S, B, c2)
        O = O @ lp["out_w"].T + lp["out_b"]
        h = O + h
        h = (h @ lp["fc1_w"].T) @ lp["fc2_w"].T + h
    return jnp.transpose(h, (1, 2, 0)).reshape(B, c2, H, W)


if __name__ == "__main__":
    B, C1, C2 = 2, 4, 32
    H, W = 16, 16
    NUM_HEADS, NUM_LAYERS = 4, 2

    key = jax.random.PRNGKey(0)
    kx, kp = jax.random.split(key)
    x = jax.random.normal(kx, (B, C1, H, W), jnp.float32)

    params = init_params(kp, C1, C2, NUM_LAYERS)
    folded = fold_params(params, C2)

    fwd = jax.jit(functools.partial(
        transformer_block_forward, c2=C2, num_heads=NUM_HEADS))
    out = jax.block_until_ready(fwd(x, folded))

    ref = jax.block_until_ready(reference_forward(x, params, C2, NUM_HEADS))

    err = float(jnp.max(jnp.abs(out - ref)))
    if not np.isfinite(err) or err > 5e-2:
        raise AssertionError(f"mismatch vs reference: max abs err = {err}")
    print("KERNEL_OK")
</pallas_src>

<mosaic_0001>
module attributes {stable_mosaic.version = 11 : i64} {
  func.func @_gemm_k1_kernel(%arg0: i32, %arg1: i32, %arg2: memref<256x128xf32, #tpu.memory_space<vmem>>, %arg3: memref<128x128xbf16, #tpu.memory_space<vmem>>, %arg4: memref<1x128xf32, #tpu.memory_space<vmem>>, %arg5: memref<256x128xf32, #tpu.memory_space<vmem>>, %arg6: memref<256x128xf32, #tpu.memory_space<vmem>>) attributes {dimension_semantics = [#tpu.dimension_semantics<parallel>, #tpu.dimension_semantics<parallel>], iteration_bounds = array<i64: 2, 1>, scalar_prefetch = 0 : i64, scratch_operands = 0 : i64, tpu.core_type = #tpu.core_type<tc>, window_params = [{transform_indices = @transform_0, window_bounds = array<i64: 256, 128>}, {transform_indices = @transform_1, window_bounds = array<i64: 128, 128>}, {transform_indices = @transform_2, window_bounds = array<i64: 1, 128>}, {transform_indices = @transform_3, window_bounds = array<i64: 256, 128>}, {transform_indices = @transform_4, window_bounds = array<i64: 256, 128>}]} {
    %c0 = arith.constant 0 : index
    %c0_0 = arith.constant 0 : index
    %0 = vector.load %arg2[%c0, %c0_0] : memref<256x128xf32, #tpu.memory_space<vmem>>, vector<256x128xf32>
    %1 = arith.truncf %0 : vector<256x128xf32> to vector<256x128xbf16>
    %c0_1 = arith.constant 0 : index
    %c0_2 = arith.constant 0 : index
    %2 = vector.load %arg3[%c0_1, %c0_2] : memref<128x128xbf16, #tpu.memory_space<vmem>>, vector<128x128xbf16>
    %cst = arith.constant dense<0.000000e+00> : vector<256x128xf32>
    %3 = tpu.matmul %1, %2, %cst {dimension_numbers = #tpu.dot_dimension_numbers<[1], [0], [0], [1], [0, 0, 1, 1], [], []>} : vector<256x128xbf16>, vector<128x128xbf16>, vector<256x128xf32> -> vector<256x128xf32>
    %c0_3 = arith.constant 0 : index
    %c0_4 = arith.constant 0 : index
    %4 = vector.load %arg4[%c0_3, %c0_4] : memref<1x128xf32, #tpu.memory_space<vmem>>, vector<1x128xf32>
    %5 = vector.broadcast %4 : vector<1x128xf32> to vector<256x128xf32>
    %6 = arith.addf %3, %5 : vector<256x128xf32>
    %c0_5 = arith.constant 0 : index
    %c0_6 = arith.constant 0 : index
    %7 = vector.load %arg5[%c0_5, %c0_6] : memref<256x128xf32, #tpu.memory_space<vmem>>, vector<256x128xf32>
    %8 = arith.addf %6, %7 : vector<256x128xf32>
    %c0_7 = arith.constant 0 : index
    %c0_8 = arith.constant 0 : index
    %9 = vector.load %arg6[%c0_7, %c0_8] : memref<256x128xf32, #tpu.memory_space<vmem>>, vector<256x128xf32>
    tpu.vector_store %arg6[%c0_7, %c0_8], %8 {strides = array<i32>} : memref<256x128xf32, #tpu.memory_space<vmem>>, vector<256x128xf32>,
    return
  }
  func.func @transform_0(%arg0: i32, %arg1: i32) -> (i32, i32) {
    %c0_i32 = arith.constant 0 : i32
    %c0_i32_0 = arith.constant 0 : i32
    return %arg0, %c0_i32 : i32, i32
  }
  func.func @transform_1(%arg0: i32, %arg1: i32) -> (i32, i32) {
    %c0_i32 = arith.constant 0 : i32
    %c0_i32_0 = arith.constant 0 : i32
    return %c0_i32, %arg1 : i32, i32
  }
  func.func @transform_2(%arg0: i32, %arg1: i32) -> (i32, i32) {
    %c0_i32 = arith.constant 0 : i32
    %c0_i32_0 = arith.constant 0 : i32
    return %c0_i32, %arg1 : i32, i32
  }
  func.func @transform_3(%arg0: i32, %arg1: i32) -> (i32, i32) {
    %c0_i32 = arith.constant 0 : i32
    return %arg0, %arg1 : i32, i32
  }
  func.func @transform_4(%arg0: i32, %arg1: i32) -> (i32, i32) {
    %c0_i32 = arith.constant 0 : i32
    return %arg0, %arg1 : i32, i32
  }
}

module attributes {stable_mosaic.version = 11 : i64} {
  func.func @_gemm_k1_kernel(%arg0: i32, %arg1: i32, %arg2: memref<256x128xf32, #tpu.memory_space<vmem>>, %arg3: memref<128x128xbf16, #tpu.memory_space<vmem>>, %arg4: memref<1x128xf32, #tpu.memory_space<vmem>>, %arg5: memref<256x128xf32, #tpu.memory_space<vmem>>) attributes {dimension_semantics = [#tpu.dimension_semantics<parallel>, #tpu.dimension_semantics<parallel>], iteration_bounds = array<i64: 2, 1>, scalar_prefetch = 0 : i64, scratch_operands = 0 : i64, tpu.core_type = #tpu.core_type<tc>, window_params = [{transform_indices = @transform_0, window_bounds = array<i64: 256, 128>}, {transform_indices = @transform_1, window_bounds = array<i64: 128, 128>}, {transform_indices = @transform_2, window_bounds = array<i64: 1, 128>}, {transform_indices = @transform_3, window_bounds = array<i64: 256, 128>}]} {
    %c0 = arith.constant 0 : index
    %c0_0 = arith.constant 0 : index
    %0 = vector.load %arg2[%c0, %c0_0] : memref<256x128xf32, #tpu.memory_space<vmem>>, vector<256x128xf32>
    %1 = arith.truncf %0 : vector<256x128xf32> to vector<256x128xbf16>
    %c0_1 = arith.constant 0 : index
    %c0_2 = arith.constant 0 : index
    %2 = vector.load %arg3[%c0_1, %c0_2] : memref<128x128xbf16, #tpu.memory_space<vmem>>, vector<128x128xbf16>
    %cst = arith.constant dense<0.000000e+00> : vector<256x128xf32>
    %3 = tpu.matmul %1, %2, %cst {dimension_numbers = #tpu.dot_dimension_numbers<[1], [0], [0], [1], [0, 0, 1, 1], [], []>} : vector<256x128xbf16>, vector<128x128xbf16>, vector<256x128xf32> -> vector<256x128xf32>
    %c0_3 = arith.constant 0 : index
    %c0_4 = arith.constant 0 : index
    %4 = vector.load %arg4[%c0_3, %c0_4] : memref<1x128xf32, #tpu.memory_space<vmem>>, vector<1x128xf32>
    %5 = vector.broadcast %4 : vector<1x128xf32> to vector<256x128xf32>
    %6 = arith.addf %3, %5 : vector<256x128xf32>
    %c0_5 = arith.constant 0 : index
    %c0_6 = arith.constant 0 : index
    %7 = vector.load %arg5[%c0_5, %c0_6] : memref<256x128xf32, #tpu.memory_space<vmem>>, vector<256x128xf32>
    tpu.vector_store %arg5[%c0_5, %c0_6], %6 {strides = array<i32>} : memref<256x128xf32, #tpu.memory_space<vmem>>, vector<256x128xf32>,
    return
  }
  func.func @transform_0(%arg0: i32, %arg1: i32) -> (i32, i32) {
    %c0_i32 = arith.constant 0 : i32
    %c0_i32_0 = arith.constant 0 : i32
    return %arg0, %c0_i32 : i32, i32
  }
  func.func @transform_1(%arg0: i32, %arg1: i32) -> (i32, i32) {
    %c0_i32 = arith.constant 0 : i32
    %c0_i32_0 = arith.constant 0 : i32
    return %c0_i32, %arg1 : i32, i32
  }
  func.func @transform_2(%arg0: i32, %arg1: i32) -> (i32, i32) {
    %c0_i32 = arith.constant 0 : i32
    %c0_i32_0 = arith.constant 0 : i32
    return %c0_i32, %arg1 : i32, i32
  }
  func.func @transform_3(%arg0: i32, %arg1: i32) -> (i32, i32) {
    %c0_i32 = arith.constant 0 : i32
    return %arg0, %arg1 : i32, i32
  }
}

module attributes {stable_mosaic.version = 11 : i64} {
  func.func @_gemm_k1_kernel(%arg0: i32, %arg1: i32, %arg2: memref<256x4xf32, #tpu.memory_space<vmem>>, %arg3: memref<4x128xbf16, #tpu.memory_space<vmem>>, %arg4: memref<1x128xf32, #tpu.memory_space<vmem>>, %arg5: memref<256x128xf32, #tpu.memory_space<vmem>>) attributes {dimension_semantics = [#tpu.dimension_semantics<parallel>, #tpu.dimension_semantics<parallel>], iteration_bounds = array<i64: 2, 1>, scalar_prefetch = 0 : i64, scratch_operands = 0 : i64, tpu.core_type = #tpu.core_type<tc>, window_params = [{transform_indices = @transform_0, window_bounds = array<i64: 256, 4>}, {transform_indices = @transform_1, window_bounds = array<i64: 4, 128>}, {transform_indices = @transform_2, window_bounds = array<i64: 1, 128>}, {transform_indices = @transform_3, window_bounds = array<i64: 256, 128>}]} {
    %c0 = arith.constant 0 : index
    %c0_0 = arith.constant 0 : index
    %0 = vector.load %arg2[%c0, %c0_0] : memref<256x4xf32, #tpu.memory_space<vmem>>, vector<256x4xf32>
    %1 = arith.truncf %0 : vector<256x4xf32> to vector<256x4xbf16>
    %c0_1 = arith.constant 0 : index
    %c0_2 = arith.constant 0 : index
    %2 = vector.load %arg3[%c0_1, %c0_2] : memref<4x128xbf16, #tpu.memory_space<vmem>>, vector<4x128xbf16>
    %cst = arith.constant dense<0.000000e+00> : vector<256x128xf32>
    %3 = tpu.matmul %1, %2, %cst {dimension_numbers = #tpu.dot_dimension_numbers<[1], [0], [0], [1], [0, 0, 1, 1], [], []>} : vector<256x4xbf16>, vector<4x128xbf16>, vector<256x128xf32> -> vector<256x128xf32>
    %c0_3 = arith.constant 0 : index
    %c0_4 = arith.constant 0 : index
    %4 = vector.load %arg4[%c0_3, %c0_4] : memref<1x128xf32, #tpu.memory_space<vmem>>, vector<1x128xf32>
    %5 = vector.broadcast %4 : vector<1x128xf32> to vector<256x128xf32>
    %6 = arith.addf %3, %5 : vector<256x128xf32>
    %7 = arith.negf %6 : vector<256x128xf32>
    %8 = math.exp %7 : vector<256x128xf32>
    %cst_5 = arith.constant 1.000000e+00 : f32
    %9 = vector.broadcast %cst_5 : f32 to vector<256x128xf32>
    %10 = arith.addf %9, %8 : vector<256x128xf32>
    %11 = arith.divf %9, %10 : vector<256x128xf32>
    %12 = arith.mulf %6, %11 : vector<256x128xf32>
    %c0_6 = arith.constant 0 : index
    %c0_7 = arith.constant 0 : index
    %13 = vector.load %arg5[%c0_6, %c0_7] : memref<256x128xf32, #tpu.memory_space<vmem>>, vector<256x128xf32>
    tpu.vector_store %arg5[%c0_6, %c0_7], %12 {strides = array<i32>} : memref<256x128xf32, #tpu.memory_space<vmem>>, vector<256x128xf32>,
    return
  }
  func.func @transform_0(%arg0: i32, %arg1: i32) -> (i32, i32) {
    %c0_i32 = arith.constant 0 : i32
    %c0_i32_0 = arith.constant 0 : i32
    return %arg0, %c0_i32 : i32, i32
  }
  func.func @transform_1(%arg0: i32, %arg1: i32) -> (i32, i32) {
    %c0_i32 = arith.constant 0 : i32
    %c0_i32_0 = arith.constant 0 : i32
    return %c0_i32, %arg1 : i32, i32
  }
  func.func @transform_2(%arg0: i32, %arg1: i32) -> (i32, i32) {
    %c0_i32 = arith.constant 0 : i32
    %c0_i32_0 = arith.constant 0 : i32
    return %c0_i32, %arg1 : i32, i32
  }
  func.func @transform_3(%arg0: i32, %arg1: i32) -> (i32, i32) {
    %c0_i32 = arith.constant 0 : i32
    return %arg0, %arg1 : i32, i32
  }
}

module attributes {stable_mosaic.version = 11 : i64} {
  func.func @_attention_kernel(%arg0: i32, %arg1: memref<1x256x128xf32, #tpu.memory_space<vmem>>, %arg2: memref<1x256x128xf32, #tpu.memory_space<vmem>>) attributes {dimension_semantics = [#tpu.dimension_semantics<parallel>], iteration_bounds = array<i64: 2>, scalar_prefetch = 0 : i64, scratch_operands = 0 : i64, tpu.core_type = #tpu.core_type<tc>, window_params = [{transform_indices = @transform_0, window_bounds = array<i64: 1, 256, 128>}, {transform_indices = @transform_1, window_bounds = array<i64: 1, 256, 128>}]} {
    %c0 = arith.constant 0 : index
    %c0_0 = arith.constant 0 : index
    %c0_1 = arith.constant 0 : index
    %0 = vector.load %arg1[%c0, %c0_0, %c0_1] : memref<1x256x128xf32, #tpu.memory_space<vmem>>, vector<1x256x128xf32>
    %1 = vector.shape_cast %0 : vector<1x256x128xf32> to vector<256x128xf32>
    %2 = vector.extract_strided_slice %1 {offsets = [0, 0], sizes = [256, 8], strides = [1, 1]} : vector<256x128xf32> to vector<256x8xf32>
    %cst = arith.constant 0.353553385 : f32
    %3 = vector.broadcast %cst : f32 to vector<256x8xf32>
    %4 = arith.mulf %2, %3 : vector<256x8xf32>
    %5 = arith.truncf %4 : vector<256x8xf32> to vector<256x8xbf16>
    %6 = vector.extract_strided_slice %1 {offsets = [0, 32], sizes = [256, 8], strides = [1, 1]} : vector<256x128xf32> to vector<256x8xf32>
    %7 = arith.truncf %6 : vector<256x8xf32> to vector<256x8xbf16>
    %8 = vector.extract_strided_slice %1 {offsets = [0, 64], sizes = [256, 8], strides = [1, 1]} : vector<256x128xf32> to vector<256x8xf32>
    %9 = arith.truncf %8 : vector<256x8xf32> to vector<256x8xbf16>
    %cst_2 = arith.constant dense<0.000000e+00> : vector<256x256xf32>
    %10 = tpu.matmul %5, %7, %cst_2 {dimension_numbers = #tpu.dot_dimension_numbers<[1], [1], [0], [0], [0, 0, 1, 0], [], []>} : vector<256x8xbf16>, vector<256x8xbf16>, vector<256x256xf32> -> vector<256x256xf32>
    %cst_3 = arith.constant dense<0xFF800000> : vector<256xf32>
    %11 = vector.multi_reduction <maximumf>, %10, %cst_3 [1] : vector<256x256xf32> to vector<256xf32>
    %12 = vector.shape_cast %11 : vector<256xf32> to vector<256x1xf32>
    %13 = vector.broadcast %12 : vector<256x1xf32> to vector<256x256xf32>
    %14 = arith.subf %10, %13 : vector<256x256xf32>
    %15 = math.exp %14 : vector<256x256xf32>
    %cst_4 = arith.constant dense<0.000000e+00> : vector<256xf32>
    %16 = vector.multi_reduction <add>, %15, %cst_4 [1] : vector<256x256xf32> to vector<256xf32>
    %17 = vector.shape_cast %16 : vector<256xf32> to vector<256x1xf32>
    %18 = arith.truncf %15 : vector<256x256xf32> to vector<256x256xbf16>
    %cst_5 = arith.constant dense<0.000000e+00> : vector<256x8xf32>
    %19 = tpu.matmul %18, %9, %cst_5 {dimension_numbers = #tpu.dot_dimension_numbers<[1], [0], [0], [1], [0, 0, 1, 1], [], []>} : vector<256x256xbf16>, vector<256x8xbf16>, vector<256x8xf32> -> vector<256x8xf32>
    %20 = tpu.reciprocal %17 {approx = true} : vector<256x1xf32> -> vector<256x1xf32>
    %21 = vector.broadcast %20 : vector<256x1xf32> to vector<256x8xf32>
    %22 = arith.mulf %19, %21 : vector<256x8xf32>
    %23 = vector.extract_strided_slice %1 {offsets = [0, 8], sizes = [256, 8], strides = [1, 1]} : vector<256x128xf32> to vector<256x8xf32>
    %cst_6 = arith.constant 0.353553385 : f32
    %24 = vector.broadcast %cst_6 : f32 to vector<256x8xf32>
    %25 = arith.mulf %23, %24 : vector<256x8xf32>
    %26 = arith.truncf %25 : vector<256x8xf32> to vector<256x8xbf16>
    %27 = vector.extract_strided_slice %1 {offsets = [0, 40], sizes = [256, 8], strides = [1, 1]} : vector<256x128xf32> to vector<256x8xf32>
    %28 = arith.truncf %27 : vector<256x8xf32> to vector<256x8xbf16>
    %29 = vector.extract_strided_slice %1 {offsets = [0, 72], sizes = [256, 8], strides = [1, 1]} : vector<256x128xf32> to vector<256x8xf32>
    %30 = arith.truncf %29 : vector<256x8xf32> to vector<256x8xbf16>
    %cst_7 = arith.constant dense<0.000000e+00> : vector<256x256xf32>
    %31 = tpu.matmul %26, %28, %cst_7 {dimension_numbers = #tpu.dot_dimension_numbers<[1], [1], [0], [0], [0, 0, 1, 0], [], []>} : vector<256x8xbf16>, vector<256x8xbf16>, vector<256x256xf32> -> vector<256x256xf32>
    %cst_8 = arith.constant dense<0xFF800000> : vector<256xf32>
    %32 = vector.multi_reduction <maximumf>, %31, %cst_8 [1] : vector<256x256xf32> to vector<256xf32>
    %33 = vector.shape_cast %32 : vector<256xf32> to vector<256x1xf32>
    %34 = vector.broadcast %33 : vector<256x1xf32> to vector<256x256xf32>
    %35 = arith.subf %31, %34 : vector<256x256xf32>
    %36 = math.exp %35 : vector<256x256xf32>
    %cst_9 = arith.constant dense<0.000000e+00> : vector<256xf32>
    %37 = vector.multi_reduction <add>, %36, %cst_9 [1] : vector<256x256xf32> to vector<256xf32>
    %38 = vector.shape_cast %37 : vector<256xf32> to vector<256x1xf32>
    %39 = arith.truncf %36 : vector<256x256xf32> to vector<256x256xbf16>
    %cst_10 = arith.constant dense<0.000000e+00> : vector<256x8xf32>
    %40 = tpu.matmul %39, %30, %cst_10 {dimension_numbers = #tpu.dot_dimension_numbers<[1], [0], [0], [1], [0, 0, 1, 1], [], []>} : vector<256x256xbf16>, vector<256x8xbf16>, vector<256x8xf32> -> vector<256x8xf32>
    %41 = tpu.reciprocal %38 {approx = true} : vector<256x1xf32> -> vector<256x1xf32>
    %42 = vector.broadcast %41 : vector<256x1xf32> to vector<256x8xf32>
    %43 = arith.mulf %40, %42 : vector<256x8xf32>
    %44 = vector.extract_strided_slice %1 {offsets = [0, 16], sizes = [256, 8], strides = [1, 1]} : vector<256x128xf32> to vector<256x8xf32>
    %cst_11 = arith.constant 0.353553385 : f32
    %45 = vector.broadcast %cst_11 : f32 to vector<256x8xf32>
    %46 = arith.mulf %44, %45 : vector<256x8xf32>
    %47 = arith.truncf %46 : vector<256x8xf32> to vector<256x8xbf16>
    %48 = vector.extract_strided_slice %1 {offsets = [0, 48], sizes = [256, 8], strides = [1, 1]} : vector<256x128xf32> to vector<256x8xf32>
    %49 = arith.truncf %48 : vector<256x8xf32> to vector<256x8xbf16>
    %50 = vector.extract_strided_slice %1 {offsets = [0, 80], sizes = [256, 8], strides = [1, 1]} : vector<256x128xf32> to vector<256x8xf32>
    %51 = arith.truncf %50 : vector<256x8xf32> to vector<256x8xbf16>
    %cst_12 = arith.constant dense<0.000000e+00> : vector<256x256xf32>
    %52 = tpu.matmul %47, %49, %cst_12 {dimension_numbers = #tpu.dot_dimension_numbers<[1], [1], [0], [0], [0, 0, 1, 0], [], []>} : vector<256x8xbf16>, vector<256x8xbf16>, vector<256x256xf32> -> vector<256x256xf32>
    %cst_13 = arith.constant dense<0xFF800000> : vector<256xf32>
    %53 = vector.multi_reduction <maximumf>, %52, %cst_13 [1] : vector<256x256xf32> to vector<256xf32>
    %54 = vector.shape_cast %53 : vector<256xf32> to vector<256x1xf32>
    %55 = vector.broadcast %54 : vector<256x1xf32> to vector<256x256xf32>
    %56 = arith.subf %52, %55 : vector<256x256xf32>
    %57 = math.exp %56 : vector<256x256xf32>
    %cst_14 = arith.constant dense<0.000000e+00> : vector<256xf32>
    %58 = vector.multi_reduction <add>, %57, %cst_14 [1] : vector<256x256xf32> to vector<256xf32>
    %59 = vector.shape_cast %58 : vector<256xf32> to vector<256x1xf32>
    %60 = arith.truncf %57 : vector<256x256xf32> to vector<256x256xbf16>
    %cst_15 = arith.constant dense<0.000000e+00> : vector<256x8xf32>
    %61 = tpu.matmul %60, %51, %cst_15 {dimension_numbers = #tpu.dot_dimension_numbers<[1], [0], [0], [1], [0, 0, 1, 1], [], []>} : vector<256x256xbf16>, vector<256x8xbf16>, vector<256x8xf32> -> vector<256x8xf32>
    %62 = tpu.reciprocal %59 {approx = true} : vector<256x1xf32> -> vector<256x1xf32>
    %63 = vector.broadcast %62 : vector<256x1xf32> to vector<256x8xf32>
    %64 = arith.mulf %61, %63 : vector<256x8xf32>
    %65 = vector.extract_strided_slice %1 {offsets = [0, 24], sizes = [256, 8], strides = [1, 1]} : vector<256x128xf32> to vector<256x8xf32>
    %cst_16 = arith.constant 0.353553385 : f32
    %66 = vector.broadcast %cst_16 : f32 to vector<256x8xf32>
    %67 = arith.mulf %65, %66 : vector<256x8xf32>
    %68 = arith.truncf %67 : vector<256x8xf32> to vector<256x8xbf16>
    %69 = vector.extract_strided_slice %1 {offsets = [0, 56], sizes = [256, 8], strides = [1, 1]} : vector<256x128xf32> to vector<256x8xf32>
    %70 = arith.truncf %69 : vector<256x8xf32> to vector<256x8xbf16>
    %71 = vector.extract_strided_slice %1 {offsets = [0, 88], sizes = [256, 8], strides = [1, 1]} : vector<256x128xf32> to vector<256x8xf32>
    %72 = arith.truncf %71 : vector<256x8xf32> to vector<256x8xbf16>
    %cst_17 = arith.constant dense<0.000000e+00> : vector<256x256xf32>
    %73 = tpu.matmul %68, %70, %cst_17 {dimension_numbers = #tpu.dot_dimension_numbers<[1], [1], [0], [0], [0, 0, 1, 0], [], []>} : vector<256x8xbf16>, vector<256x8xbf16>, vector<256x256xf32> -> vector<256x256xf32>
    %cst_18 = arith.constant dense<0xFF800000> : vector<256xf32>
    %74 = vector.multi_reduction <maximumf>, %73, %cst_18 [1] : vector<256x256xf32> to vector<256xf32>
    %75 = vector.shape_cast %74 : vector<256xf32> to vector<256x1xf32>
    %76 = vector.broadcast %75 : vector<256x1xf32> to vector<256x256xf32>
    %77 = arith.subf %73, %76 : vector<256x256xf32>
    %78 = math.exp %77 : vector<256x256xf32>
    %cst_19 = arith.constant dense<0.000000e+00> : vector<256xf32>
    %79 = vector.multi_reduction <add>, %78, %cst_19 [1] : vector<256x256xf32> to vector<256xf32>
    %80 = vector.shape_cast %79 : vector<256xf32> to vector<256x1xf32>
    %81 = arith.truncf %78 : vector<256x256xf32> to vector<256x256xbf16>
    %cst_20 = arith.constant dense<0.000000e+00> : vector<256x8xf32>
    %82 = tpu.matmul %81, %72, %cst_20 {dimension_numbers = #tpu.dot_dimension_numbers<[1], [0], [0], [1], [0, 0, 1, 1], [], []>} : vector<256x256xbf16>, vector<256x8xbf16>, vector<256x8xf32> -> vector<256x8xf32>
    %83 = tpu.reciprocal %80 {approx = true} : vector<256x1xf32> -> vector<256x1xf32>
    %84 = vector.broadcast %83 : vector<256x1xf32> to vector<256x8xf32>
    %85 = arith.mulf %82, %84 : vector<256x8xf32>
    %cst_21 = arith.constant 0.000000e+00 : f32
    %86 = vector.broadcast %cst_21 : f32 to vector<256x96xf32>
    %87 = tpu.concatenate %22, %43, %64, %85, %86 in 1 : vector<256x8xf32>, vector<256x8xf32>, vector<256x8xf32>, vector<256x8xf32>, vector<256x96xf32> -> vector<256x128xf32>
    %c0_22 = arith.constant 0 : index
    %c0_23 = arith.constant 0 : index
    %c0_24 = arith.constant 0 : index
    %88 = vector.load %arg2[%c0_22, %c0_23, %c0_24] : memref<1x256x128xf32, #tpu.memory_space<vmem>>, vector<1x256x128xf32>
    %89 = vector.shape_cast %88 : vector<1x256x128xf32> to vector<256x128xf32>
    %90 = vector.shape_cast %87 : vector<256x128xf32> to vector<1x256x128xf32>
    tpu.vector_store %arg2[%c0_22, %c0_23, %c0_24], %90 {strides = array<i32>} : memref<1x256x128xf32, #tpu.memory_space<vmem>>, vector<1x256x128xf32>,
    return
  }
  func.func @transform_0(%arg0: i32) -> (i32, i32, i32) {
    %c0_i32 = arith.constant 0 : i32
    %c0_i32_0 = arith.constant 0 : i32
    %c0_i32_1 = arith.constant 0 : i32
    return %arg0, %c0_i32, %c0_i32_0 : i32, i32, i32
  }
  func.func @transform_1(%arg0: i32) -> (i32, i32, i32) {
    %c0_i32 = arith.constant 0 : i32
    %c0_i32_0 = arith.constant 0 : i32
    %c0_i32_1 = arith.constant 0 : i32
    return %arg0, %c0_i32, %c0_i32_0 : i32, i32, i32
  }
}

module attributes {stable_mosaic.version = 11 : i64} {
  func.func @_gemm_k1_kernel(%arg0: i32, %arg1: i32, %arg2: memref<256x128xf32, #tpu.memory_space<vmem>>, %arg3: memref<128x128xbf16, #tpu.memory_space<vmem>>, %arg4: memref<256x128xf32, #tpu.memory_space<vmem>>, %arg5: memref<256x128xf32, #tpu.memory_space<vmem>>) attributes {dimension_semantics = [#tpu.dimension_semantics<parallel>, #tpu.dimension_semantics<parallel>], iteration_bounds = array<i64: 2, 1>, scalar_prefetch = 0 : i64, scratch_operands = 0 : i64, tpu.core_type = #tpu.core_type<tc>, window_params = [{transform_indices = @transform_0, window_bounds = array<i64: 256, 128>}, {transform_indices = @transform_1, window_bounds = array<i64: 128, 128>}, {transform_indices = @transform_2, window_bounds = array<i64: 256, 128>}, {transform_indices = @transform_3, window_bounds = array<i64: 256, 128>}]} {
    %c0 = arith.constant 0 : index
    %c0_0 = arith.constant 0 : index
    %0 = vector.load %arg2[%c0, %c0_0] : memref<256x128xf32, #tpu.memory_space<vmem>>, vector<256x128xf32>
    %1 = arith.truncf %0 : vector<256x128xf32> to vector<256x128xbf16>
    %c0_1 = arith.constant 0 : index
    %c0_2 = arith.constant 0 : index
    %2 = vector.load %arg3[%c0_1, %c0_2] : memref<128x128xbf16, #tpu.memory_space<vmem>>, vector<128x128xbf16>
    %cst = arith.constant dense<0.000000e+00> : vector<256x128xf32>
    %3 = tpu.matmul %1, %2, %cst {dimension_numbers = #tpu.dot_dimension_numbers<[1], [0], [0], [1], [0, 0, 1, 1], [], []>} : vector<256x128xbf16>, vector<128x128xbf16>, vector<256x128xf32> -> vector<256x128xf32>
    %c0_3 = arith.constant 0 : index
    %c0_4 = arith.constant 0 : index
    %4 = vector.load %arg4[%c0_3, %c0_4] : memref<256x128xf32, #tpu.memory_space<vmem>>, vector<256x128xf32>
    %5 = arith.addf %3, %4 : vector<256x128xf32>
    %c0_5 = arith.constant 0 : index
    %c0_6 = arith.constant 0 : index
    %6 = vector.load %arg5[%c0_5, %c0_6] : memref<256x128xf32, #tpu.memory_space<vmem>>, vector<256x128xf32>
    tpu.vector_store %arg5[%c0_5, %c0_6], %5 {strides = array<i32>} : memref<256x128xf32, #tpu.memory_space<vmem>>, vector<256x128xf32>,
    return
  }
  func.func @transform_0(%arg0: i32, %arg1: i32) -> (i32, i32) {
    %c0_i32 = arith.constant 0 : i32
    %c0_i32_0 = arith.constant 0 : i32
    return %arg0, %c0_i32 : i32, i32
  }
  func.func @transform_1(%arg0: i32, %arg1: i32) -> (i32, i32) {
    %c0_i32 = arith.constant 0 : i32
    %c0_i32_0 = arith.constant 0 : i32
    return %c0_i32, %arg1 : i32, i32
  }
  func.func @transform_2(%arg0: i32, %arg1: i32) -> (i32, i32) {
    %c0_i32 = arith.constant 0 : i32
    return %arg0, %arg1 : i32, i32
  }
  func.func @transform_3(%arg0: i32, %arg1: i32) -> (i32, i32) {
    %c0_i32 = arith.constant 0 : i32
    return %arg0, %arg1 : i32, i32
  }
}

module attributes {stable_mosaic.version = 11 : i64} {
  func.func @_gemm_k1_kernel(%arg0: i32, %arg1: i32, %arg2: memref<256x128xf32, #tpu.memory_space<vmem>>, %arg3: memref<128x128xbf16, #tpu.memory_space<vmem>>, %arg4: memref<256x128xf32, #tpu.memory_space<vmem>>, %arg5: memref<256x128xf32, #tpu.memory_space<vmem>>) attributes {dimension_semantics = [#tpu.dimension_semantics<parallel>, #tpu.dimension_semantics<parallel>], iteration_bounds = array<i64: 2, 1>, scalar_prefetch = 0 : i64, scratch_operands = 0 : i64, tpu.core_type = #tpu.core_type<tc>, window_params = [{transform_indices = @transform_0, window_bounds = array<i64: 256, 128>}, {transform_indices = @transform_1, window_bounds = array<i64: 128, 128>}, {transform_indices = @transform_2, window_bounds = array<i64: 256, 128>}, {transform_indices = @transform_3, window_bounds = array<i64: 256, 128>}]} {
    %c0 = arith.constant 0 : index
    %c0_0 = arith.constant 0 : index
    %0 = vector.load %arg2[%c0, %c0_0] : memref<256x128xf32, #tpu.memory_space<vmem>>, vector<256x128xf32>
    %1 = arith.truncf %0 : vector<256x128xf32> to vector<256x128xbf16>
    %c0_1 = arith.constant 0 : index
    %c0_2 = arith.constant 0 : index
    %2 = vector.load %arg3[%c0_1, %c0_2] : memref<128x128xbf16, #tpu.memory_space<vmem>>, vector<128x128xbf16>
    %cst = arith.constant dense<0.000000e+00> : vector<256x128xf32>
    %3 = tpu.matmul %1, %2, %cst {dimension_numbers = #tpu.dot_dimension_numbers<[1], [0], [0], [1], [0, 0, 1, 1], [], []>} : vector<256x128xbf16>, vector<128x128xbf16>, vector<256x128xf32> -> vector<256x128xf32>
    %c0_3 = arith.constant 0 : index
    %c0_4 = arith.constant 0 : index
    %4 = vector.load %arg4[%c0_3, %c0_4] : memref<256x128xf32, #tpu.memory_space<vmem>>, vector<256x128xf32>
    %5 = arith.addf %3, %4 : vector<256x128xf32>
    %c0_5 = arith.constant 0 : index
    %c0_6 = arith.constant 0 : index
    %6 = vector.load %arg5[%c0_5, %c0_6] : memref<256x128xf32, #tpu.memory_space<vmem>>, vector<256x128xf32>
    tpu.vector_store %arg5[%c0_5, %c0_6], %5 {strides = array<i32>} : memref<256x128xf32, #tpu.memory_space<vmem>>, vector<256x128xf32>,
    return
  }
  func.func @transform_0(%arg0: i32, %arg1: i32) -> (i32, i32) {
    %c0_i32 = arith.constant 0 : i32
    %c0_i32_0 = arith.constant 0 : i32
    return %arg0, %c0_i32 : i32, i32
  }
  func.func @transform_1(%arg0: i32, %arg1: i32) -> (i32, i32) {
    %c0_i32 = arith.constant 0 : i32
    %c0_i32_0 = arith.constant 0 : i32
    return %c0_i32, %arg1 : i32, i32
  }
  func.func @transform_2(%arg0: i32, %arg1: i32) -> (i32, i32) {
    %c0_i32 = arith.constant 0 : i32
    return %arg0, %arg1 : i32, i32
  }
  func.func @transform_3(%arg0: i32, %arg1: i32) -> (i32, i32) {
    %c0_i32 = arith.constant 0 : i32
    return %arg0, %arg1 : i32, i32
  }
}

</mosaic_0001>

<llo_original>
// kernel: transformer_block_forward.12
$region0: #{transformer_block_forward.12}
  #allocation0 [shape = 'u32[]', space=smem, size = 0x4, offset = 0x4, fixed_abs, tag = 'smem constant byte address 0x4 - core index']
  #allocation1 [shape = 'u32[72,128]{1,0:T(1,128)}', space=vmem, size = 0x9000, scoped, tag = 'internal scratch']
  %s0 = inlined_call_operand.vmem [shape: f32[512,128], index: 0, kind: input, shape index: {}]
  %s1 = inlined_call_operand.vmem [shape: bf16[128,128], index: 1, kind: input, shape index: {}]
  %s2 = inlined_call_operand.vmem [shape: f32[1,128], index: 2, kind: input, shape index: {}]
  %s3 = inlined_call_operand.vmem [shape: f32[512,128], index: 3, kind: output, shape index: {}]
  %s4 = sld [smem:[#allocation0]]
  $region45: #{transformer_block_forward.12} parent=0
    _
  %s6 = ssub.s32 1, %s4
  %s7 = scalar_select 0, %s6, %s4
  loop: start=0, step=1, limit=4
  $region2: #{transformer_block_forward.12} parent=0 // loop_pre_header
    _
  $region3: #{transformer_block_forward.12} parent=0 // loop_header
    %s9 = sphi 0, %s13
    %p10 = scmp.ge.s32.totalorder %s9, 4
    %s16 = sphi 0, %s28
    %s17 = sphi 0, %s24
    %s18 = sphi 0, %s16
    %s19 = sphi 0, %s17
    %s20 = sphi 0, %s18
    %s21 = sphi 0, %s19
    %s31 = sphi 0, %s33
    %s34 = sphi 0, %s31
    %s35 = sphi 0, %s34
    %s51 = sphi 0, %s35
    %s57 = sphi 0, %s59
    %s60 = sphi 0, %s57
    %s61 = sphi 0, %s60
    %s77 = sphi 0, %s61
    %s83 = sphi 0, %s85
    %s86 = sphi 0, %s83
    %s87 = sphi 0, %s86
    %s103 = sphi 0, %s87
    %s111 = sphi 0, %s113
    %s114 = sphi 0, %s111
    %s115 = sphi 0, %s114
    %s131 = sphi 0, %s115
  $region4: #{transformer_block_forward.12} parent=0 // loop_header_branch
    %12 = sbr.rel (%p10) target = $region8
  $region5: #{transformer_block_forward.12} parent=0 // loop_body
    %s14 = ssub.s32 %s9, 1
    %s15 = ssub.s32 %s9, 2
    %s22 = sadd.s32 1, %s17
    %p23 = scmp.ge.s32.totalorder %s22, 1
    %s24 = scalar_select %p23, 0, %s22
    %s25 = sadd.s32 1, %s16
    %s26 = scalar_select %p23, %s25, %s16
    %p27 = scmp.ge.s32.totalorder %s26, 2
    %s28 = scalar_select %p27, 0, %s26
    %s29 = ssub.s32 %s16, %s28
    %p30 = scmp.eq.s32.totalorder %s29, 0
    %s32 = sadd.s32 %s31, 1
    %s33 = scalar_select %p30, %s31, %s32
    %p36 = pneg %p30
    %p37 = scmp.eq.s32.totalorder %s9, 1
    %p38 = por %p36, %p37
    %p39 = scmp.ne.s32.totalorder %s31, %s34
    %p40 = scmp.eq.s32.totalorder %s9, 0
    %p41 = por %p39, %p40
    %p42 = scmp.ne.s32.totalorder %s31, %s34
    %p43 = scmp.eq.s32.totalorder %s14, 1
    %p44 = por %p42, %p43
    %p45 = scmp.ne.s32.totalorder %s34, %s35
    %p46 = scmp.eq.s32.totalorder %s14, 0
    %p47 = por %p45, %p46
    %p48 = scmp.ne.s32.totalorder %s34, %s35
    %p49 = scmp.eq.s32.totalorder %s15, 1
    %p50 = por %p48, %p49
    %p52 = scmp.ne.s32.totalorder %s35, %s51
    %p53 = scmp.eq.s32.totalorder %s15, 0
    %p54 = por %p52, %p53
    %s55 = ssub.s32 %s17, %s24
    %p56 = scmp.eq.s32.totalorder %s55, 0
    %s58 = sadd.s32 %s57, 1
    %s59 = scalar_select %p56, %s57, %s58
    %p62 = pneg %p56
    %p63 = scmp.eq.s32.totalorder %s9, 1
    %p64 = por %p62, %p63
    %p65 = scmp.ne.s32.totalorder %s57, %s60
    %p66 = scmp.eq.s32.totalorder %s9, 0
    %p67 = por %p65, %p66
    %p68 = scmp.ne.s32.totalorder %s57, %s60
    %p69 = scmp.eq.s32.totalorder %s14, 1
    %p70 = por %p68, %p69
    %p71 = scmp.ne.s32.totalorder %s60, %s61
    %p72 = scmp.eq.s32.totalorder %s14, 0
    %p73 = por %p71, %p72
    %p74 = scmp.ne.s32.totalorder %s60, %s61
    %p75 = scmp.eq.s32.totalorder %s15, 1
    %p76 = por %p74, %p75
    %p78 = scmp.ne.s32.totalorder %s61, %s77
    %p79 = scmp.eq.s32.totalorder %s15, 0
    %p80 = por %p78, %p79
    %s81 = ssub.s32 %s17, %s24
    %p82 = scmp.eq.s32.totalorder %s81, 0
    %s84 = sadd.s32 %s83, 1
    %s85 = scalar_select %p82, %s83, %s84
    %p88 = pneg %p82
    %p89 = scmp.eq.s32.totalorder %s9, 1
    %p90 = por %p88, %p89
    %p91 = scmp.ne.s32.totalorder %s83, %s86
    %p92 = scmp.eq.s32.totalorder %s9, 0
    %p93 = por %p91, %p92
    %p94 = scmp.ne.s32.totalorder %s83, %s86
    %p95 = scmp.eq.s32.totalorder %s14, 1
    %p96 = por %p94, %p95
    %p97 = scmp.ne.s32.totalorder %s86, %s87
    %p98 = scmp.eq.s32.totalorder %s14, 0
    %p99 = por %p97, %p98
    %p100 = scmp.ne.s32.totalorder %s86, %s87
    %p101 = scmp.eq.s32.totalorder %s15, 1
    %p102 = por %p100, %p101
    %p104 = scmp.ne.s32.totalorder %s87, %s103
    %p105 = scmp.eq.s32.totalorder %s15, 0
    %p106 = por %p104, %p105
    %s107 = ssub.s32 %s16, %s28
    %s108 = ssub.s32 %s17, %s24
    %s109 = sor.u32 %s107, %s108
    %p110 = scmp.eq.s32.totalorder %s109, 0
    %s112 = sadd.s32 %s111, 1
    %s113 = scalar_select %p110, %s111, %s112
    %p116 = pneg %p110
    %p117 = scmp.eq.s32.totalorder %s9, 1
    %p118 = por %p116, %p117
    %p119 = scmp.ne.s32.totalorder %s111, %s114
    %p120 = scmp.eq.s32.totalorder %s9, 0
    %p121 = por %p119, %p120
    %p122 = scmp.ne.s32.totalorder %s111, %s114
    %p123 = scmp.eq.s32.totalorder %s14, 1
    %p124 = por %p122, %p123
    %p125 = scmp.ne.s32.totalorder %s114, %s115
    %p126 = scmp.eq.s32.totalorder %s14, 0
    %p127 = por %p125, %p126
    %p128 = scmp.ne.s32.totalorder %s114, %s115
    %p129 = scmp.eq.s32.totalorder %s15, 1
    %p130 = por %p128, %p129
    %p132 = scmp.ne.s32.totalorder %s115, %s131
    %p133 = scmp.eq.s32.totalorder %s15, 0
    %p134 = por %p132, %p133
    %p135 = scmp.le.s32.totalorder 1, %s9
    %p136 = scmp.lt.s32.totalorder %s9, 3
    %p137 = pnand %p135, %p136
    %p138 = pneg %p137
    // Predicated region
    $region9: #{transformer_block_forward.12} parent=5 // pred_check
      _
    $region10: #{transformer_block_forward.12} parent=5 // pred_check_branch
      %140 = sbr.rel (%p137) target = $region12
    $region11: #{transformer_block_forward.12} parent=5 // pred_region
      %s141 = ssub.s32 %s9, 1
      // Predicated region
      $region13: #{transformer_block_forward.12} parent=11 // pred_check
        %p142 = pneg %p73
      $region14: #{transformer_block_forward.12} parent=11 // pred_check_branch
        %144 = sbr.rel (%p142) target = $region16
      $region15: #{transformer_block_forward.12} parent=11 // pred_region
        %p145 = scmp.lt.s32.totalorder %s19, 0
        %s146 = scalar_select %p145, %s19, 0
        %s147 = smul.addr %s146, 4
        %s148 = scalar_lea.vmem %s1, %s147
      $region16: #{transformer_block_forward.12} parent=11 // pred_fallthru
        _
      // Predicated region
      $region17: #{transformer_block_forward.12} parent=11 // pred_check
        %p149 = pneg %p99
      $region18: #{transformer_block_forward.12} parent=11 // pred_check_branch
        %151 = sbr.rel (%p149) target = $region20
      $region19: #{transformer_block_forward.12} parent=11 // pred_region
        %p152 = scmp.lt.s32.totalorder %s19, 0
        %s153 = scalar_select %p152, %s19, 0
        %s154 = scalar_lea.vmem %s2, %s153
      $region20: #{transformer_block_forward.12} parent=11 // pred_fallthru
        _
    $region12: #{transformer_block_forward.12} parent=5 // pred_fallthru
      _
    %p155 = scmp.lt.s32.totalorder %s9, 2
    // Predicated region
    $region21: #{transformer_block_forward.12} parent=5 // pred_check
      %p156 = pneg %p155
    $region22: #{transformer_block_forward.12} parent=5 // pred_check_branch
      %158 = sbr.rel (%p156) target = $region24
    $region23: #{transformer_block_forward.12} parent=5 // pred_region
      // Predicated region
      $region25: #{transformer_block_forward.12} parent=23 // pred_check
        %p159 = pneg %p41
      $region26: #{transformer_block_forward.12} parent=23 // pred_check_branch
        %161 = sbr.rel (%p159) target = $region28
      $region27: #{transformer_block_forward.12} parent=23 // pred_region
        %s162 = smul.u32 32, %s16
        %p163 = scmp.lt.s32.totalorder %s162, 63
        %s164 = scalar_select %p163, %s162, 63
        %s165 = smul.addr %s164, 8
        %s166 = scalar_lea.vmem %s0, %s165
        %s167 = smul.u32 32, %s16
      $region28: #{transformer_block_forward.12} parent=23 // pred_fallthru
        _
    $region24: #{transformer_block_forward.12} parent=5 // pred_fallthru
      _
    %p168 = scmp.le.s32.totalorder 1, %s9
    %p169 = scmp.lt.s32.totalorder %s9, 3
    %p170 = pnand %p168, %p169
    %p171 = pneg %p170
    // Predicated region
    $region29: #{transformer_block_forward.12} parent=5 // pred_check
      _
    $region30: #{transformer_block_forward.12} parent=5 // pred_check_branch
      %173 = sbr.rel (%p170) target = $region32
    $region31: #{transformer_block_forward.12} parent=5 // pred_region
      %s174 = ssub.s32 %s9, 1
      %s175 = smul.u32 32, %s18
      %p176 = scmp.lt.s32.totalorder %s175, 63
      %s177 = scalar_select %p176, %s175, 63
      %s178 = smul.addr %s177, 8
      %s179 = scalar_lea.vmem %s0, %s178
      %p180 = pneg %p47
      %p181 = pneg %p44
      %p182 = scmp.lt.s32.totalorder %s19, 0
      %s183 = scalar_select %p182, %s19, 0
      %s184 = smul.addr %s183, 4
      %s185 = scalar_lea.vmem %s1, %s184
      %p186 = pneg %p73
      %p187 = pneg %p70
      %p188 = scmp.lt.s32.totalorder %s19, 0
      %s189 = scalar_select %p188, %s19, 0
      %s190 = scalar_lea.vmem %s2, %s189
      %p191 = pneg %p99
      %p192 = pneg %p96
      %p193 = pneg %p127
      %p194 = pneg %p124
      %s195 = smul.u32 32, %s18
      %p196 = scmp.lt.s32.totalorder %s195, 63
      %s197 = scalar_select %p196, %s195, 63
      %p198 = scmp.lt.s32.totalorder %s19, 0
      %s199 = scalar_select %p198, %s19, 0
      %s200 = sadd.s32 %s199, %s197
      %s201 = smul.addr %s200, 8
      %s202 = scalar_lea.vmem %s3, %s201
      %s203 = smul.u32 32, %s18
      %p204 = scmp.lt.s32.totalorder %s203, 63
      %s205 = scalar_select %p204, %s203, 63
      %s206 = smul.addr %s205, 8
      %s207 = scalar_lea.vmem %s0, %s206
      %s208 = smul.u32 32, %s18
      %p209 = scmp.lt.s32.totalorder %s19, 0
      %s210 = scalar_select %p209, %s19, 0
      %s211 = smul.addr %s210, 4
      %s212 = scalar_lea.vmem %s1, %s211
      %p213 = scmp.lt.s32.totalorder %s19, 0
      %s214 = scalar_select %p213, %s19, 0
      %s215 = scalar_lea.vmem %s2, %s214
      %s216 = smul.u32 32, %s18
      %p217 = scmp.lt.s32.totalorder %s216, 63
      %s218 = scalar_select %p217, %s216, 63
      %p219 = scmp.lt.s32.totalorder %s19, 0
      %s220 = scalar_select %p219, %s19, 0
      %s221 = sadd.s32 %s220, %s218
      %s222 = smul.addr %s221, 8
      %s223 = scalar_lea.vmem %s3, %s222
      %s224 = smul.u32 32, %s18
      %v225 = vld [vmem:[%s207] sm:$0xff]
      %v226 = vld [vmem:[%s207 + $0x8] sm:$0xff]
      %v227 = vld [vmem:[%s207 + $0x10] sm:$0xff]
      %v228 = vld [vmem:[%s207 + $0x18] sm:$0xff]
      %v229 = vld [vmem:[%s207 + $0x20] sm:$0xff]
      %v230 = vld [vmem:[%s207 + $0x28] sm:$0xff]
      %v231 = vld [vmem:[%s207 + $0x30] sm:$0xff]
      %v232 = vld [vmem:[%s207 + $0x38] sm:$0xff]
      %v233 = vld [vmem:[%s207 + $0x40] sm:$0xff]
      %v234 = vld [vmem:[%s207 + $0x48] sm:$0xff]
      %v235 = vld [vmem:[%s207 + $0x50] sm:$0xff]
      %v236 = vld [vmem:[%s207 + $0x58] sm:$0xff]
      %v237 = vld [vmem:[%s207 + $0x60] sm:$0xff]
      %v238 = vld [vmem:[%s207 + $0x68] sm:$0xff]
      %v239 = vld [vmem:[%s207 + $0x70] sm:$0xff]
      %v240 = vld [vmem:[%s207 + $0x78] sm:$0xff]
      %v241 = vld [vmem:[%s207 + $0x80] sm:$0xff]
      %v242 = vld [vmem:[%s207 + $0x88] sm:$0xff]
      %v243 = vld [vmem:[%s207 + $0x90] sm:$0xff]
      %v244 = vld [vmem:[%s207 + $0x98] sm:$0xff]
      %v245 = vld [vmem:[%s207 + $0xa0] sm:$0xff]
      %v246 = vld [vmem:[%s207 + $0xa8] sm:$0xff]
      %v247 = vld [vmem:[%s207 + $0xb0] sm:$0xff]
      %v248 = vld [vmem:[%s207 + $0xb8] sm:$0xff]
      %v249 = vld [vmem:[%s207 + $0xc0] sm:$0xff]
      %v250 = vld [vmem:[%s207 + $0xc8] sm:$0xff]
      %v251 = vld [vmem:[%s207 + $0xd0] sm:$0xff]
      %v252 = vld [vmem:[%s207 + $0xd8] sm:$0xff]
      %v253 = vld [vmem:[%s207 + $0xe0] sm:$0xff]
      %v254 = vld [vmem:[%s207 + $0xe8] sm:$0xff]
      %v255 = vld [vmem:[%s207 + $0xf0] sm:$0xff]
      %v256 = vld [vmem:[%s207 + $0xf8] sm:$0xff]
      %v257 = vpack.c.bf16 %v226, %v225
      %v258 = vpack.c.bf16 %v228, %v227
      %v259 = vpack.c.bf16 %v230, %v229
      %v260 = vpack.c.bf16 %v232, %v231
      %v261 = vpack.c.bf16 %v234, %v233
      %v262 = vpack.c.bf16 %v236, %v235
      %v263 = vpack.c.bf16 %v238, %v237
      %v264 = vpack.c.bf16 %v240, %v239
      %v265 = vpack.c.bf16 %v242, %v241
      %v266 = vpack.c.bf16 %v244, %v243
      %v267 = vpack.c.bf16 %v246, %v245
      %v268 = vpack.c.bf16 %v248, %v247
      %v269 = vpack.c.bf16 %v250, %v249
      %v270 = vpack.c.bf16 %v252, %v251
      %v271 = vpack.c.bf16 %v254, %v253
      %v272 = vpack.c.bf16 %v256, %v255
      %v273 = vld [vmem:[%s212] sm:$0xf]
      %v274 = vld [vmem:[%s212 + $0x4] sm:$0xf]
      %v275 = vld [vmem:[%s212 + $0x8] sm:$0xf]
      %v276 = vld [vmem:[%s212 + $0xc] sm:$0xf]
      %v277 = vld [vmem:[%s212 + $0x10] sm:$0xf]
      %v278 = vld [vmem:[%s212 + $0x14] sm:$0xf]
      %v279 = vld [vmem:[%s212 + $0x18] sm:$0xf]
      %v280 = vld [vmem:[%s212 + $0x1c] sm:$0xf]
      %v281 = vld [vmem:[%s212 + $0x20] sm:$0xf]
      %v282 = vld [vmem:[%s212 + $0x24] sm:$0xf]
      %v283 = vld [vmem:[%s212 + $0x28] sm:$0xf]
      %v284 = vld [vmem:[%s212 + $0x2c] sm:$0xf]
      %v285 = vld [vmem:[%s212 + $0x30] sm:$0xf]
      %v286 = vld [vmem:[%s212 + $0x34] sm:$0xf]
      %v287 = vld [vmem:[%s212 + $0x38] sm:$0xf]
      %v288 = vld [vmem:[%s212 + $0x3c] sm:$0xf]
      %v289 = vld [vmem:[%s215] sm:$0x1]
      %v291 = vperm.slane %v289, 0
      %v309 = vunpack.c.l.b16 %v273
      %v310 = vunpack.c.l.b16 %v274
      %v311 = vunpack.c.l.b16 %v275
      %v312 = vunpack.c.l.b16 %v276
      %v313 = vunpack.c.l.b16 %v277
      %v314 = vunpack.c.l.b16 %v278
      %v315 = vunpack.c.l.b16 %v279
      %v316 = vunpack.c.l.b16 %v280
      %v317 = vunpack.c.l.b16 %v281
      %v318 = vunpack.c.l.b16 %v282
      %v319 = vunpack.c.l.b16 %v283
      %v320 = vunpack.c.l.b16 %v284
      %v321 = vunpack.c.l.b16 %v285
      %v322 = vunpack.c.l.b16 %v286
      %v323 = vunpack.c.l.b16 %v287
      %v324 = vunpack.c.l.b16 %v288
      %v325 = vpack.c.b16 %v310, %v309
      %v326 = vpack.c.b16 %v312, %v311
      %v327 = vpack.c.b16 %v314, %v313
      %v328 = vpack.c.b16 %v316, %v315
      %v329 = vpack.c.b16 %v318, %v317
      %v330 = vpack.c.b16 %v320, %v319
      %v331 = vpack.c.b16 %v322, %v321
      %v332 = vpack.c.b16 %v324, %v323
      %341 = vmatpush.bf16.msra.mxu0 %v332
      %342 = vmatpush.bf16.msra.mxu0 %v331
      %343 = vmatpush.bf16.msra.mxu0 %v330
      %344 = vmatpush.bf16.msra.mxu0 %v329
      %345 = vmatpush.bf16.msra.mxu0 %v328
      %346 = vmatpush.bf16.msra.mxu0 %v327
      %347 = vmatpush.bf16.msra.mxu0 %v326
      %348 = vmatpush.bf16.msra.mxu0 %v325
      %349 = vmatmul.bf16.gmra.mxu0 %v257
      %v350 = vpop.f32.mrf.mxu0
      %v351 = vadd.f32 %v291, %v350
      %v352 = vpop.f32.mrf.mxu0
      %v353 = vadd.f32 %v291, %v352
      %354 = vmatmul.bf16.gmra.mxu0 %v258
      %v355 = vpop.f32.mrf.mxu0
      %v356 = vadd.f32 %v291, %v355
      %v357 = vpop.f32.mrf.mxu0
      %v358 = vadd.f32 %v291, %v357
      %359 = vmatmul.bf16.gmra.mxu0 %v259
      %v360 = vpop.f32.mrf.mxu0
      %v361 = vadd.f32 %v291, %v360
      %v362 = vpop.f32.mrf.mxu0
      %v363 = vadd.f32 %v291, %v362
      %364 = vmatmul.bf16.gmra.mxu0 %v260
      %v365 = vpop.f32.mrf.mxu0
      %v366 = vadd.f32 %v291, %v365
      %v367 = vpop.f32.mrf.mxu0
      %v368 = vadd.f32 %v291, %v367
      %369 = vmatmul.bf16.gmra.mxu0 %v261
      %v370 = vpop.f32.mrf.mxu0
      %v371 = vadd.f32 %v291, %v370
      %v372 = vpop.f32.mrf.mxu0
      %v373 = vadd.f32 %v291, %v372
      %374 = vmatmul.bf16.gmra.mxu0 %v262
      %v375 = vpop.f32.mrf.mxu0
      %v376 = vadd.f32 %v291, %v375
      %v377 = vpop.f32.mrf.mxu0
      %v378 = vadd.f32 %v291, %v377
      %379 = vmatmul.bf16.gmra.mxu0 %v263
      %v380 = vpop.f32.mrf.mxu0
      %v381 = vadd.f32 %v291, %v380
      %v382 = vpop.f32.mrf.mxu0
      %v383 = vadd.f32 %v291, %v382
      %384 = vmatmul.bf16.gmra.mxu0 %v264
      %v385 = vpop.f32.mrf.mxu0
      %v386 = vadd.f32 %v291, %v385
      %v387 = vpop.f32.mrf.mxu0
      %v388 = vadd.f32 %v291, %v387
      %389 = vmatmul.bf16.gmra.mxu0 %v265
      %v390 = vpop.f32.mrf.mxu0
      %v391 = vadd.f32 %v291, %v390
      %v392 = vpop.f32.mrf.mxu0
      %v393 = vadd.f32 %v291, %v392
      %394 = vmatmul.bf16.gmra.mxu0 %v266
      %v395 = vpop.f32.mrf.mxu0
      %v396 = vadd.f32 %v291, %v395
      %v397 = vpop.f32.mrf.mxu0
      %v398 = vadd.f32 %v291, %v397
      %399 = vmatmul.bf16.gmra.mxu0 %v267
      %v400 = vpop.f32.mrf.mxu0
      %v401 = vadd.f32 %v291, %v400
      %v402 = vpop.f32.mrf.mxu0
      %v403 = vadd.f32 %v291, %v402
      %404 = vmatmul.bf16.gmra.mxu0 %v268
      %v405 = vpop.f32.mrf.mxu0
      %v406 = vadd.f32 %v291, %v405
      %v407 = vpop.f32.mrf.mxu0
      %v408 = vadd.f32 %v291, %v407
      %409 = vmatmul.bf16.gmra.mxu0 %v269
      %v410 = vpop.f32.mrf.mxu0
      %v411 = vadd.f32 %v291, %v410
      %v412 = vpop.f32.mrf.mxu0
      %v413 = vadd.f32 %v291, %v412
      %414 = vmatmul.bf16.gmra.mxu0 %v270
      %v415 = vpop.f32.mrf.mxu0
      %v416 = vadd.f32 %v291, %v415
      %v417 = vpop.f32.mrf.mxu0
      %v418 = vadd.f32 %v291, %v417
      %419 = vmatmul.bf16.gmra.mxu0 %v271
      %v420 = vpop.f32.mrf.mxu0
      %v421 = vadd.f32 %v291, %v420
      %v422 = vpop.f32.mrf.mxu0
      %v423 = vadd.f32 %v291, %v422
      %424 = vmatmul.bf16.gmra.mxu0 %v272
      %v425 = vpop.f32.mrf.mxu0
      %v426 = vadd.f32 %v291, %v425
      %v427 = vpop.f32.mrf.mxu0
      %v428 = vadd.f32 %v291, %v427
      %429 = vdwg.mxu0
      %430 = vst [vmem:[%s223] sm:$0xff] %v351
      %431 = vst [vmem:[%s223 + $0x8] sm:$0xff] %v353
      %432 = vst [vmem:[%s223 + $0x10] sm:$0xff] %v356
      %433 = vst [vmem:[%s223 + $0x18] sm:$0xff] %v358
      %434 = vst [vmem:[%s223 + $0x20] sm:$0xff] %v361
      %435 = vst [vmem:[%s223 + $0x28] sm:$0xff] %v363
      %436 = vst [vmem:[%s223 + $0x30] sm:$0xff] %v366
      %437 = vst [vmem:[%s223 + $0x38] sm:$0xff] %v368
      %438 = vst [vmem:[%s223 + $0x40] sm:$0xff] %v371
      %439 = vst [vmem:[%s223 + $0x48] sm:$0xff] %v373
      %440 = vst [vmem:[%s223 + $0x50] sm:$0xff] %v376
      %441 = vst [vmem:[%s223 + $0x58] sm:$0xff] %v378
      %442 = vst [vmem:[%s223 + $0x60] sm:$0xff] %v381
      %443 = vst [vmem:[%s223 + $0x68] sm:$0xff] %v383
      %444 = vst [vmem:[%s223 + $0x70] sm:$0xff] %v386
      %445 = vst [vmem:[%s223 + $0x78] sm:$0xff] %v388
      %446 = vst [vmem:[%s223 + $0x80] sm:$0xff] %v391
      %447 = vst [vmem:[%s223 + $0x88] sm:$0xff] %v393
      %448 = vst [vmem:[%s223 + $0x90] sm:$0xff] %v396
      %449 = vst [vmem:[%s223 + $0x98] sm:$0xff] %v398
      %450 = vst [vmem:[%s223 + $0xa0] sm:$0xff] %v401
      %451 = vst [vmem:[%s223 + $0xa8] sm:$0xff] %v403
      %452 = vst [vmem:[%s223 + $0xb0] sm:$0xff] %v406
      %453 = vst [vmem:[%s223 + $0xb8] sm:$0xff] %v408
      %454 = vst [vmem:[%s223 + $0xc0] sm:$0xff] %v411
      %455 = vst [vmem:[%s223 + $0xc8] sm:$0xff] %v413
      %456 = vst [vmem:[%s223 + $0xd0] sm:$0xff] %v416
      %457 = vst [vmem:[%s223 + $0xd8] sm:$0xff] %v418
      %458 = vst [vmem:[%s223 + $0xe0] sm:$0xff] %v421
      %459 = vst [vmem:[%s223 + $0xe8] sm:$0xff] %v423
      %460 = vst [vmem:[%s223 + $0xf0] sm:$0xff] %v426
      %461 = vst [vmem:[%s223 + $0xf8] sm:$0xff] %v428
      %s462 = smul.u32 32, %s18
      %p463 = scmp.lt.s32.totalorder %s462, 63
      %s464 = scalar_select %p463, %s462, 63
      %p465 = scmp.lt.s32.totalorder %s19, 0
      %s466 = scalar_select %p465, %s19, 0
      %s467 = sadd.s32 %s466, %s464
      %s468 = smul.addr %s467, 8
      %s469 = scalar_lea.vmem %s3, %s468
      // Predicated region
      $region33: #{transformer_block_forward.12} parent=31 // pred_check
        %p470 = pneg %p124
      $region34: #{transformer_block_forward.12} parent=31 // pred_check_branch
        %472 = sbr.rel (%p470) target = $region36
      $region35: #{transformer_block_forward.12} parent=31 // pred_region
        %s473 = smul.u32 32, %s18
      $region36: #{transformer_block_forward.12} parent=31 // pred_fallthru
        _
    $region32: #{transformer_block_forward.12} parent=5 // pred_fallthru
      _
    %p474 = scmp.le.s32.totalorder 2, %s9
    // Predicated region
    $region37: #{transformer_block_forward.12} parent=5 // pred_check
      %p475 = pneg %p474
    $region38: #{transformer_block_forward.12} parent=5 // pred_check_branch
      %477 = sbr.rel (%p475) target = $region40
    $region39: #{transformer_block_forward.12} parent=5 // pred_region
      %s478 = ssub.s32 %s9, 2
      // Predicated region
      $region41: #{transformer_block_forward.12} parent=39 // pred_check
        %p479 = pneg %p130
      $region42: #{transformer_block_forward.12} parent=39 // pred_check_branch
        %481 = sbr.rel (%p479) target = $region44
      $region43: #{transformer_block_forward.12} parent=39 // pred_region
        %s482 = smul.u32 32, %s20
        %p483 = scmp.lt.s32.totalorder %s482, 63
        %s484 = scalar_select %p483, %s482, 63
        %p485 = scmp.lt.s32.totalorder %s21, 0
        %s486 = scalar_select %p485, %s21, 0
        %s487 = sadd.s32 %s486, %s484
        %s488 = smul.addr %s487, 8
        %s489 = scalar_lea.vmem %s3, %s488
      $region44: #{transformer_block_forward.12} parent=39 // pred_fallthru
        _
    $region40: #{transformer_block_forward.12} parent=5 // pred_fallthru
      _
  $region6: #{transformer_block_forward.12} parent=0 // loop_footer
    %s13 = sadd.s32 1, %s9
  $region7: #{transformer_block_forward.12} parent=0 // loop_footer_branch
    %8 = sbr.rel target = $region3
  $region8: #{transformer_block_forward.12} parent=0 // loop_exit
    _

// kernel: transformer_block_forward.11
$region0: #{transformer_block_forward.11}
  #allocation0 [shape = 'u32[]', space=smem, size = 0x4, offset = 0x4, fixed_abs, tag = 'smem constant byte address 0x4 - core index']
  #allocation1 [shape = 'u32[72,128]{1,0:T(1,128)}', space=vmem, size = 0x9000, scoped, tag = 'internal scratch']
  %s0 = inlined_call_operand.vmem [shape: f32[512,128], index: 0, kind: input, shape index: {}, may-alias: {0,3}]
  %s1 = inlined_call_operand.vmem [shape: bf16[128,128], index: 1, kind: input, shape index: {}]
  %s2 = inlined_call_operand.vmem [shape: f32[1,128], index: 2, kind: input, shape index: {}]
  %s3 = inlined_call_operand.vmem [shape: f32[512,128], index: 3, kind: input, shape index: {}, may-alias: {0,3}]
  %s4 = inlined_call_operand.vmem [shape: f32[512,128], index: 4, kind: output, shape index: {}]
  %s5 = sld [smem:[#allocation0]]
  $region49: #{transformer_block_forward.11} parent=0
    _
  %s7 = ssub.s32 1, %s5
  %s8 = scalar_select 0, %s7, %s5
  loop: start=0, step=1, limit=4
  $region2: #{transformer_block_forward.11} parent=0 // loop_pre_header
    _
  $region3: #{transformer_block_forward.11} parent=0 // loop_header
    %s10 = sphi 0, %s14
    %p11 = scmp.ge.s32.totalorder %s10, 4
    %s17 = sphi 0, %s29
    %s18 = sphi 0, %s25
    %s19 = sphi 0, %s17
    %s20 = sphi 0, %s18
    %s21 = sphi 0, %s19
    %s22 = sphi 0, %s20
    %s32 = sphi 0, %s34
    %s35 = sphi 0, %s32
    %s36 = sphi 0, %s35
    %s52 = sphi 0, %s36
    %s58 = sphi 0, %s60
    %s61 = sphi 0, %s58
    %s62 = sphi 0, %s61
    %s78 = sphi 0, %s62
    %s84 = sphi 0, %s86
    %s87 = sphi 0, %s84
    %s88 = sphi 0, %s87
    %s104 = sphi 0, %s88
    %s112 = sphi 0, %s114
    %s115 = sphi 0, %s112
    %s116 = sphi 0, %s115
    %s132 = sphi 0, %s116
    %s140 = sphi 0, %s142
    %s143 = sphi 0, %s140
    %s144 = sphi 0, %s143
    %s160 = sphi 0, %s144
  $region4: #{transformer_block_forward.11} parent=0 // loop_header_branch
    %13 = sbr.rel (%p11) target = $region8
  $region5: #{transformer_block_forward.11} parent=0 // loop_body
    %s15 = ssub.s32 %s10, 1
    %s16 = ssub.s32 %s10, 2
    %s23 = sadd.s32 1, %s18
    %p24 = scmp.ge.s32.totalorder %s23, 1
    %s25 = scalar_select %p24, 0, %s23
    %s26 = sadd.s32 1, %s17
    %s27 = scalar_select %p24, %s26, %s17
    %p28 = scmp.ge.s32.totalorder %s27, 2
    %s29 = scalar_select %p28, 0, %s27
    %s30 = ssub.s32 %s17, %s29
    %p31 = scmp.eq.s32.totalorder %s30, 0
    %s33 = sadd.s32 %s32, 1
    %s34 = scalar_select %p31, %s32, %s33
    %p37 = pneg %p31
    %p38 = scmp.eq.s32.totalorder %s10, 1
    %p39 = por %p37, %p38
    %p40 = scmp.ne.s32.totalorder %s32, %s35
    %p41 = scmp.eq.s32.totalorder %s10, 0
    %p42 = por %p40, %p41
    %p43 = scmp.ne.s32.totalorder %s32, %s35
    %p44 = scmp.eq.s32.totalorder %s15, 1
    %p45 = por %p43, %p44
    %p46 = scmp.ne.s32.totalorder %s35, %s36
    %p47 = scmp.eq.s32.totalorder %s15, 0
    %p48 = por %p46, %p47
    %p49 = scmp.ne.s32.totalorder %s35, %s36
    %p50 = scmp.eq.s32.totalorder %s16, 1
    %p51 = por %p49, %p50
    %p53 = scmp.ne.s32.totalorder %s36, %s52
    %p54 = scmp.eq.s32.totalorder %s16, 0
    %p55 = por %p53, %p54
    %s56 = ssub.s32 %s18, %s25
    %p57 = scmp.eq.s32.totalorder %s56, 0
    %s59 = sadd.s32 %s58, 1
    %s60 = scalar_select %p57, %s58, %s59
    %p63 = pneg %p57
    %p64 = scmp.eq.s32.totalorder %s10, 1
    %p65 = por %p63, %p64
    %p66 = scmp.ne.s32.totalorder %s58, %s61
    %p67 = scmp.eq.s32.totalorder %s10, 0
    %p68 = por %p66, %p67
    %p69 = scmp.ne.s32.totalorder %s58, %s61
    %p70 = scmp.eq.s32.totalorder %s15, 1
    %p71 = por %p69, %p70
    %p72 = scmp.ne.s32.totalorder %s61, %s62
    %p73 = scmp.eq.s32.totalorder %s15, 0
    %p74 = por %p72, %p73
    %p75 = scmp.ne.s32.totalorder %s61, %s62
    %p76 = scmp.eq.s32.totalorder %s16, 1
    %p77 = por %p75, %p76
    %p79 = scmp.ne.s32.totalorder %s62, %s78
    %p80 = scmp.eq.s32.totalorder %s16, 0
    %p81 = por %p79, %p80
    %s82 = ssub.s32 %s18, %s25
    %p83 = scmp.eq.s32.totalorder %s82, 0
    %s85 = sadd.s32 %s84, 1
    %s86 = scalar_select %p83, %s84, %s85
    %p89 = pneg %p83
    %p90 = scmp.eq.s32.totalorder %s10, 1
    %p91 = por %p89, %p90
    %p92 = scmp.ne.s32.totalorder %s84, %s87
    %p93 = scmp.eq.s32.totalorder %s10, 0
    %p94 = por %p92, %p93
    %p95 = scmp.ne.s32.totalorder %s84, %s87
    %p96 = scmp.eq.s32.totalorder %s15, 1
    %p97 = por %p95, %p96
    %p98 = scmp.ne.s32.totalorder %s87, %s88
    %p99 = scmp.eq.s32.totalorder %s15, 0
    %p100 = por %p98, %p99
    %p101 = scmp.ne.s32.totalorder %s87, %s88
    %p102 = scmp.eq.s32.totalorder %s16, 1
    %p103 = por %p101, %p102
    %p105 = scmp.ne.s32.totalorder %s88, %s104
    %p106 = scmp.eq.s32.totalorder %s16, 0
    %p107 = por %p105, %p106
    %s108 = ssub.s32 %s17, %s29
    %s109 = ssub.s32 %s18, %s25
    %s110 = sor.u32 %s108, %s109
    %p111 = scmp.eq.s32.totalorder %s110, 0
    %s113 = sadd.s32 %s112, 1
    %s114 = scalar_select %p111, %s112, %s113
    %p117 = pneg %p111
    %p118 = scmp.eq.s32.totalorder %s10, 1
    %p119 = por %p117, %p118
    %p120 = scmp.ne.s32.totalorder %s112, %s115
    %p121 = scmp.eq.s32.totalorder %s10, 0
    %p122 = por %p120, %p121
    %p123 = scmp.ne.s32.totalorder %s112, %s115
    %p124 = scmp.eq.s32.totalorder %s15, 1
    %p125 = por %p123, %p124
    %p126 = scmp.ne.s32.totalorder %s115, %s116
    %p127 = scmp.eq.s32.totalorder %s15, 0
    %p128 = por %p126, %p127
    %p129 = scmp.ne.s32.totalorder %s115, %s116
    %p130 = scmp.eq.s32.totalorder %s16, 1
    %p131 = por %p129, %p130
    %p133 = scmp.ne.s32.totalorder %s116, %s132
    %p134 = scmp.eq.s32.totalorder %s16, 0
    %p135 = por %p133, %p134
    %s136 = ssub.s32 %s17, %s29
    %s137 = ssub.s32 %s18, %s25
    %s138 = sor.u32 %s136, %s137
    %p139 = scmp.eq.s32.totalorder %s138, 0
    %s141 = sadd.s32 %s140, 1
    %s142 = scalar_select %p139, %s140, %s141
    %p145 = pneg %p139
    %p146 = scmp.eq.s32.totalorder %s10, 1
    %p147 = por %p145, %p146
    %p148 = scmp.ne.s32.totalorder %s140, %s143
    %p149 = scmp.eq.s32.totalorder %s10, 0
    %p150 = por %p148, %p149
    %p151 = scmp.ne.s32.totalorder %s140, %s143
    %p152 = scmp.eq.s32.totalorder %s15, 1
    %p153 = por %p151, %p152
    %p154 = scmp.ne.s32.totalorder %s143, %s144
    %p155 = scmp.eq.s32.totalorder %s15, 0
    %p156 = por %p154, %p155
    %p157 = scmp.ne.s32.totalorder %s143, %s144
    %p158 = scmp.eq.s32.totalorder %s16, 1
    %p159 = por %p157, %p158
    %p161 = scmp.ne.s32.totalorder %s144, %s160
    %p162 = scmp.eq.s32.totalorder %s16, 0
    %p163 = por %p161, %p162
    %p164 = scmp.le.s32.totalorder 1, %s10
    %p165 = scmp.lt.s32.totalorder %s10, 3
    %p166 = pnand %p164, %p165
    %p167 = pneg %p166
    // Predicated region
    $region9: #{transformer_block_forward.11} parent=5 // pred_check
      _
    $region10: #{transformer_block_forward.11} parent=5 // pred_check_branch
      %169 = sbr.rel (%p166) target = $region12
    $region11: #{transformer_block_forward.11} parent=5 // pred_region
      %s170 = ssub.s32 %s10, 1
      // Predicated region
      $region13: #{transformer_block_forward.11} parent=11 // pred_check
        %p171 = pneg %p74
      $region14: #{transformer_block_forward.11} parent=11 // pred_check_branch
        %173 = sbr.rel (%p171) target = $region16
      $region15: #{transformer_block_forward.11} parent=11 // pred_region
        %p174 = scmp.lt.s32.totalorder %s20, 0
        %s175 = scalar_select %p174, %s20, 0
        %s176 = smul.addr %s175, 4
        %s177 = scalar_lea.vmem %s1, %s176
      $region16: #{transformer_block_forward.11} parent=11 // pred_fallthru
        _
      // Predicated region
      $region17: #{transformer_block_forward.11} parent=11 // pred_check
        %p178 = pneg %p100
      $region18: #{transformer_block_forward.11} parent=11 // pred_check_branch
        %180 = sbr.rel (%p178) target = $region20
      $region19: #{transformer_block_forward.11} parent=11 // pred_region
        %p181 = scmp.lt.s32.totalorder %s20, 0
        %s182 = scalar_select %p181, %s20, 0
        %s183 = scalar_lea.vmem %s2, %s182
      $region20: #{transformer_block_forward.11} parent=11 // pred_fallthru
        _
    $region12: #{transformer_block_forward.11} parent=5 // pred_fallthru
      _
    %p184 = scmp.lt.s32.totalorder %s10, 2
    // Predicated region
    $region21: #{transformer_block_forward.11} parent=5 // pred_check
      %p185 = pneg %p184
    $region22: #{transformer_block_forward.11} parent=5 // pred_check_branch
      %187 = sbr.rel (%p185) target = $region24
    $region23: #{transformer_block_forward.11} parent=5 // pred_region
      // Predicated region
      $region25: #{transformer_block_forward.11} parent=23 // pred_check
        %p188 = pneg %p42
      $region26: #{transformer_block_forward.11} parent=23 // pred_check_branch
        %190 = sbr.rel (%p188) target = $region28
      $region27: #{transformer_block_forward.11} parent=23 // pred_region
        %s191 = smul.u32 32, %s17
        %p192 = scmp.lt.s32.totalorder %s191, 63
        %s193 = scalar_select %p192, %s191, 63
        %s194 = smul.addr %s193, 8
        %s195 = scalar_lea.vmem %s0, %s194
        %s196 = smul.u32 32, %s17
      $region28: #{transformer_block_forward.11} parent=23 // pred_fallthru
        _
      // Predicated region
      $region29: #{transformer_block_forward.11} parent=23 // pred_check
        %p197 = pneg %p122
      $region30: #{transformer_block_forward.11} parent=23 // pred_check_branch
        %199 = sbr.rel (%p197) target = $region32
      $region31: #{transformer_block_forward.11} parent=23 // pred_region
        %s200 = smul.u32 32, %s17
        %p201 = scmp.lt.s32.totalorder %s200, 63
        %s202 = scalar_select %p201, %s200, 63
        %p203 = scmp.lt.s32.totalorder %s18, 0
        %s204 = scalar_select %p203, %s18, 0
        %s205 = sadd.s32 %s204, %s202
        %s206 = smul.addr %s205, 8
        %s207 = scalar_lea.vmem %s3, %s206
        %s208 = smul.u32 32, %s17
      $region32: #{transformer_block_forward.11} parent=23 // pred_fallthru
        _
    $region24: #{transformer_block_forward.11} parent=5 // pred_fallthru
      _
    %p209 = scmp.le.s32.totalorder 1, %s10
    %p210 = scmp.lt.s32.totalorder %s10, 3
    %p211 = pnand %p209, %p210
    %p212 = pneg %p211
    // Predicated region
    $region33: #{transformer_block_forward.11} parent=5 // pred_check
      _
    $region34: #{transformer_block_forward.11} parent=5 // pred_check_branch
      %214 = sbr.rel (%p211) target = $region36
    $region35: #{transformer_block_forward.11} parent=5 // pred_region
      %s215 = ssub.s32 %s10, 1
      %s216 = smul.u32 32, %s19
      %p217 = scmp.lt.s32.totalorder %s216, 63
      %s218 = scalar_select %p217, %s216, 63
      %s219 = smul.addr %s218, 8
      %s220 = scalar_lea.vmem %s0, %s219
      %p221 = pneg %p48
      %p222 = pneg %p45
      %p223 = scmp.lt.s32.totalorder %s20, 0
      %s224 = scalar_select %p223, %s20, 0
      %s225 = smul.addr %s224, 4
      %s226 = scalar_lea.vmem %s1, %s225
      %p227 = pneg %p74
      %p228 = pneg %p71
      %p229 = scmp.lt.s32.totalorder %s20, 0
      %s230 = scalar_select %p229, %s20, 0
      %s231 = scalar_lea.vmem %s2, %s230
      %p232 = pneg %p100
      %p233 = pneg %p97
      %s234 = smul.u32 32, %s19
      %p235 = scmp.lt.s32.totalorder %s234, 63
      %s236 = scalar_select %p235, %s234, 63
      %p237 = scmp.lt.s32.totalorder %s20, 0
      %s238 = scalar_select %p237, %s20, 0
      %s239 = sadd.s32 %s238, %s236
      %s240 = smul.addr %s239, 8
      %s241 = scalar_lea.vmem %s3, %s240
      %p242 = pneg %p128
      %p243 = pneg %p125
      %p244 = pneg %p156
      %p245 = pneg %p153
      %s246 = smul.u32 32, %s19
      %p247 = scmp.lt.s32.totalorder %s246, 63
      %s248 = scalar_select %p247, %s246, 63
      %p249 = scmp.lt.s32.totalorder %s20, 0
      %s250 = scalar_select %p249, %s20, 0
      %s251 = sadd.s32 %s250, %s248
      %s252 = smul.addr %s251, 8
      %s253 = scalar_lea.vmem %s4, %s252
      %s254 = smul.u32 32, %s19
      %p255 = scmp.lt.s32.totalorder %s254, 63
      %s256 = scalar_select %p255, %s254, 63
      %s257 = smul.addr %s256, 8
      %s258 = scalar_lea.vmem %s0, %s257
      %s259 = smul.u32 32, %s19
      %p260 = scmp.lt.s32.totalorder %s20, 0
      %s261 = scalar_select %p260, %s20, 0
      %s262 = smul.addr %s261, 4
      %s263 = scalar_lea.vmem %s1, %s262
      %p264 = scmp.lt.s32.totalorder %s20, 0
      %s265 = scalar_select %p264, %s20, 0
      %s266 = scalar_lea.vmem %s2, %s265
      %s267 = smul.u32 32, %s19
      %p268 = scmp.lt.s32.totalorder %s267, 63
      %s269 = scalar_select %p268, %s267, 63
      %p270 = scmp.lt.s32.totalorder %s20, 0
      %s271 = scalar_select %p270, %s20, 0
      %s272 = sadd.s32 %s271, %s269
      %s273 = smul.addr %s272, 8
      %s274 = scalar_lea.vmem %s3, %s273
      %s275 = smul.u32 32, %s19
      %s276 = smul.u32 32, %s19
      %p277 = scmp.lt.s32.totalorder %s276, 63
      %s278 = scalar_select %p277, %s276, 63
      %p279 = scmp.lt.s32.totalorder %s20, 0
      %s280 = scalar_select %p279, %s20, 0
      %s281 = sadd.s32 %s280, %s278
      %s282 = smul.addr %s281, 8
      %s283 = scalar_lea.vmem %s4, %s282
      %s284 = smul.u32 32, %s19
      %v285 = vld [vmem:[%s258] sm:$0xff]
      %v286 = vld [vmem:[%s258 + $0x8] sm:$0xff]
      %v287 = vld [vmem:[%s258 + $0x10] sm:$0xff]
      %v288 = vld [vmem:[%s258 + $0x18] sm:$0xff]
      %v289 = vld [vmem:[%s258 + $0x20] sm:$0xff]
      %v290 = vld [vmem:[%s258 + $0x28] sm:$0xff]
      %v291 = vld [vmem:[%s258 + $0x30] sm:$0xff]
      %v292 = vld [vmem:[%s258 + $0x38] sm:$0xff]
      %v293 = vld [vmem:[%s258 + $0x40] sm:$0xff]
      %v294 = vld [vmem:[%s258 + $0x48] sm:$0xff]
      %v295 = vld [vmem:[%s258 + $0x50] sm:$0xff]
      %v296 = vld [vmem:[%s258 + $0x58] sm:$0xff]
      %v297 = vld [vmem:[%s258 + $0x60] sm:$0xff]
      %v298 = vld [vmem:[%s258 + $0x68] sm:$0xff]
      %v299 = vld [vmem:[%s258 + $0x70] sm:$0xff]
      %v300 = vld [vmem:[%s258 + $0x78] sm:$0xff]
      %v301 = vld [vmem:[%s258 + $0x80] sm:$0xff]
      %v302 = vld [vmem:[%s258 + $0x88] sm:$0xff]
      %v303 = vld [vmem:[%s258 + $0x90] sm:$0xff]
      %v304 = vld [vmem:[%s258 + $0x98] sm:$0xff]
      %v305 = vld [vmem:[%s258 + $0xa0] sm:$0xff]
      %v306 = vld [vmem:[%s258 + $0xa8] sm:$0xff]
      %v307 = vld [vmem:[%s258 + $0xb0] sm:$0xff]
      %v308 = vld [vmem:[%s258 + $0xb8] sm:$0xff]
      %v309 = vld [vmem:[%s258 + $0xc0] sm:$0xff]
      %v310 = vld [vmem:[%s258 + $0xc8] sm:$0xff]
      %v311 = vld [vmem:[%s258 + $0xd0] sm:$0xff]
      %v312 = vld [vmem:[%s258 + $0xd8] sm:$0xff]
      %v313 = vld [vmem:[%s258 + $0xe0] sm:$0xff]
      %v314 = vld [vmem:[%s258 + $0xe8] sm:$0xff]
      %v315 = vld [vmem:[%s258 + $0xf0] sm:$0xff]
      %v316 = vld [vmem:[%s258 + $0xf8] sm:$0xff]
      %v317 = vpack.c.bf16 %v286, %v285
      %v318 = vpack.c.bf16 %v288, %v287
      %v319 = vpack.c.bf16 %v290, %v289
      %v320 = vpack.c.bf16 %v292, %v291
      %v321 = vpack.c.bf16 %v294, %v293
      %v322 = vpack.c.bf16 %v296, %v295
      %v323 = vpack.c.bf16 %v298, %v297
      %v324 = vpack.c.bf16 %v300, %v299
      %v325 = vpack.c.bf16 %v302, %v301
      %v326 = vpack.c.bf16 %v304, %v303
      %v327 = vpack.c.bf16 %v306, %v305
      %v328 = vpack.c.bf16 %v308, %v307
      %v329 = vpack.c.bf16 %v310, %v309
      %v330 = vpack.c.bf16 %v312, %v311
      %v331 = vpack.c.bf16 %v314, %v313
      %v332 = vpack.c.bf16 %v316, %v315
      %v333 = vld [vmem:[%s263] sm:$0xf]
      %v334 = vld [vmem:[%s263 + $0x4] sm:$0xf]
      %v335 = vld [vmem:[%s263 + $0x8] sm:$0xf]
      %v336 = vld [vmem:[%s263 + $0xc] sm:$0xf]
      %v337 = vld [vmem:[%s263 + $0x10] sm:$0xf]
      %v338 = vld [vmem:[%s263 + $0x14] sm:$0xf]
      %v339 = vld [vmem:[%s263 + $0x18] sm:$0xf]
      %v340 = vld [vmem:[%s263 + $0x1c] sm:$0xf]
      %v341 = vld [vmem:[%s263 + $0x20] sm:$0xf]
      %v342 = vld [vmem:[%s263 + $0x24] sm:$0xf]
      %v343 = vld [vmem:[%s263 + $0x28] sm:$0xf]
      %v344 = vld [vmem:[%s263 + $0x2c] sm:$0xf]
      %v345 = vld [vmem:[%s263 + $0x30] sm:$0xf]
      %v346 = vld [vmem:[%s263 + $0x34] sm:$0xf]
      %v347 = vld [vmem:[%s263 + $0x38] sm:$0xf]
      %v348 = vld [vmem:[%s263 + $0x3c] sm:$0xf]
      %v349 = vld [vmem:[%s266] sm:$0x1]
      %v351 = vperm.slane %v349, 0
      %v369 = vunpack.c.l.b16 %v333
      %v370 = vunpack.c.l.b16 %v334
      %v371 = vunpack.c.l.b16 %v335
      %v372 = vunpack.c.l.b16 %v336
      %v373 = vunpack.c.l.b16 %v337
      %v374 = vunpack.c.l.b16 %v338
      %v375 = vunpack.c.l.b16 %v339
      %v376 = vunpack.c.l.b16 %v340
      %v377 = vunpack.c.l.b16 %v341
      %v378 = vunpack.c.l.b16 %v342
      %v379 = vunpack.c.l.b16 %v343
      %v380 = vunpack.c.l.b16 %v344
      %v381 = vunpack.c.l.b16 %v345
      %v382 = vunpack.c.l.b16 %v346
      %v383 = vunpack.c.l.b16 %v347
      %v384 = vunpack.c.l.b16 %v348
      %v385 = vpack.c.b16 %v370, %v369
      %v386 = vpack.c.b16 %v372, %v371
      %v387 = vpack.c.b16 %v374, %v373
      %v388 = vpack.c.b16 %v376, %v375
      %v389 = vpack.c.b16 %v378, %v377
      %v390 = vpack.c.b16 %v380, %v379
      %v391 = vpack.c.b16 %v382, %v381
      %v392 = vpack.c.b16 %v384, %v383
      %401 = vmatpush.bf16.msra.mxu0 %v392
      %402 = vmatpush.bf16.msra.mxu0 %v391
      %403 = vmatpush.bf16.msra.mxu0 %v390
      %404 = vmatpush.bf16.msra.mxu0 %v389
      %405 = vmatpush.bf16.msra.mxu0 %v388
      %406 = vmatpush.bf16.msra.mxu0 %v387
      %407 = vmatpush.bf16.msra.mxu0 %v386
      %408 = vmatpush.bf16.msra.mxu0 %v385
      %409 = vmatmul.bf16.gmra.mxu0 %v317
      %v410 = vpop.f32.mrf.mxu0
      %v411 = vadd.f32 %v351, %v410
      %v412 = vpop.f32.mrf.mxu0
      %v413 = vadd.f32 %v351, %v412
      %414 = vmatmul.bf16.gmra.mxu0 %v318
      %v415 = vpop.f32.mrf.mxu0
      %v416 = vadd.f32 %v351, %v415
      %v417 = vpop.f32.mrf.mxu0
      %v418 = vadd.f32 %v351, %v417
      %419 = vmatmul.bf16.gmra.mxu0 %v319
      %v420 = vpop.f32.mrf.mxu0
      %v421 = vadd.f32 %v351, %v420
      %v422 = vpop.f32.mrf.mxu0
      %v423 = vadd.f32 %v351, %v422
      %424 = vmatmul.bf16.gmra.mxu0 %v320
      %v425 = vpop.f32.mrf.mxu0
      %v426 = vadd.f32 %v351, %v425
      %v427 = vpop.f32.mrf.mxu0
      %v428 = vadd.f32 %v351, %v427
      %429 = vmatmul.bf16.gmra.mxu0 %v321
      %v430 = vpop.f32.mrf.mxu0
      %v431 = vadd.f32 %v351, %v430
      %v432 = vpop.f32.mrf.mxu0
      %v433 = vadd.f32 %v351, %v432
      %434 = vmatmul.bf16.gmra.mxu0 %v322
      %v435 = vpop.f32.mrf.mxu0
      %v436 = vadd.f32 %v351, %v435
      %v437 = vpop.f32.mrf.mxu0
      %v438 = vadd.f32 %v351, %v437
      %439 = vmatmul.bf16.gmra.mxu0 %v323
      %v440 = vpop.f32.mrf.mxu0
      %v441 = vadd.f32 %v351, %v440
      %v442 = vpop.f32.mrf.mxu0
      %v443 = vadd.f32 %v351, %v442
      %444 = vmatmul.bf16.gmra.mxu0 %v324
      %v445 = vpop.f32.mrf.mxu0
      %v446 = vadd.f32 %v351, %v445
      %v447 = vpop.f32.mrf.mxu0
      %v448 = vadd.f32 %v351, %v447
      %449 = vmatmul.bf16.gmra.mxu0 %v325
      %v450 = vpop.f32.mrf.mxu0
      %v451 = vadd.f32 %v351, %v450
      %v452 = vpop.f32.mrf.mxu0
      %v453 = vadd.f32 %v351, %v452
      %454 = vmatmul.bf16.gmra.mxu0 %v326
      %v455 = vpop.f32.mrf.mxu0
      %v456 = vadd.f32 %v351, %v455
      %v457 = vpop.f32.mrf.mxu0
      %v458 = vadd.f32 %v351, %v457
      %459 = vmatmul.bf16.gmra.mxu0 %v327
      %v460 = vpop.f32.mrf.mxu0
      %v461 = vadd.f32 %v351, %v460
      %v462 = vpop.f32.mrf.mxu0
      %v463 = vadd.f32 %v351, %v462
      %464 = vmatmul.bf16.gmra.mxu0 %v328
      %v465 = vpop.f32.mrf.mxu0
      %v466 = vadd.f32 %v351, %v465
      %v467 = vpop.f32.mrf.mxu0
      %v468 = vadd.f32 %v351, %v467
      %469 = vmatmul.bf16.gmra.mxu0 %v329
      %v470 = vpop.f32.mrf.mxu0
      %v471 = vadd.f32 %v351, %v470
      %v472 = vpop.f32.mrf.mxu0
      %v473 = vadd.f32 %v351, %v472
      %474 = vmatmul.bf16.gmra.mxu0 %v330
      %v475 = vpop.f32.mrf.mxu0
      %v476 = vadd.f32 %v351, %v475
      %v477 = vpop.f32.mrf.mxu0
      %v478 = vadd.f32 %v351, %v477
      %479 = vmatmul.bf16.gmra.mxu0 %v331
      %v480 = vpop.f32.mrf.mxu0
      %v481 = vadd.f32 %v351, %v480
      %v482 = vpop.f32.mrf.mxu0
      %v483 = vadd.f32 %v351, %v482
      %484 = vmatmul.bf16.gmra.mxu0 %v332
      %v485 = vpop.f32.mrf.mxu0
      %v486 = vadd.f32 %v351, %v485
      %v487 = vpop.f32.mrf.mxu0
      %v488 = vadd.f32 %v351, %v487
      %489 = vdwg.mxu0
      %v490 = vld [vmem:[%s274] sm:$0xff]
      %v491 = vld [vmem:[%s274 + $0x8] sm:$0xff]
      %v492 = vld [vmem:[%s274 + $0x10] sm:$0xff]
      %v493 = vld [vmem:[%s274 + $0x18] sm:$0xff]
      %v494 = vld [vmem:[%s274 + $0x20] sm:$0xff]
      %v495 = vld [vmem:[%s274 + $0x28] sm:$0xff]
      %v496 = vld [vmem:[%s274 + $0x30] sm:$0xff]
      %v497 = vld [vmem:[%s274 + $0x38] sm:$0xff]
      %v498 = vld [vmem:[%s274 + $0x40] sm:$0xff]
      %v499 = vld [vmem:[%s274 + $0x48] sm:$0xff]
      %v500 = vld [vmem:[%s274 + $0x50] sm:$0xff]
      %v501 = vld [vmem:[%s274 + $0x58] sm:$0xff]
      %v502 = vld [vmem:[%s274 + $0x60] sm:$0xff]
      %v503 = vld [vmem:[%s274 + $0x68] sm:$0xff]
      %v504 = vld [vmem:[%s274 + $0x70] sm:$0xff]
      %v505 = vld [vmem:[%s274 + $0x78] sm:$0xff]
      %v506 = vld [vmem:[%s274 + $0x80] sm:$0xff]
      %v507 = vld [vmem:[%s274 + $0x88] sm:$0xff]
      %v508 = vld [vmem:[%s274 + $0x90] sm:$0xff]
      %v509 = vld [vmem:[%s274 + $0x98] sm:$0xff]
      %v510 = vld [vmem:[%s274 + $0xa0] sm:$0xff]
      %v511 = vld [vmem:[%s274 + $0xa8] sm:$0xff]
      %v512 = vld [vmem:[%s274 + $0xb0] sm:$0xff]
      %v513 = vld [vmem:[%s274 + $0xb8] sm:$0xff]
      %v514 = vld [vmem:[%s274 + $0xc0] sm:$0xff]
      %v515 = vld [vmem:[%s274 + $0xc8] sm:$0xff]
      %v516 = vld [vmem:[%s274 + $0xd0] sm:$0xff]
      %v517 = vld [vmem:[%s274 + $0xd8] sm:$0xff]
      %v518 = vld [vmem:[%s274 + $0xe0] sm:$0xff]
      %v519 = vld [vmem:[%s274 + $0xe8] sm:$0xff]
      %v520 = vld [vmem:[%s274 + $0xf0] sm:$0xff]
      %v521 = vld [vmem:[%s274 + $0xf8] sm:$0xff]
      %v522 = vadd.f32 %v411, %v490
      %v523 = vadd.f32 %v413, %v491
      %v524 = vadd.f32 %v416, %v492
      %v525 = vadd.f32 %v418, %v493
      %v526 = vadd.f32 %v421, %v494
      %v527 = vadd.f32 %v423, %v495
      %v528 = vadd.f32 %v426, %v496
      %v529 = vadd.f32 %v428, %v497
      %v530 = vadd.f32 %v431, %v498
      %v531 = vadd.f32 %v433, %v499
      %v532 = vadd.f32 %v436, %v500
      %v533 = vadd.f32 %v438, %v501
      %v534 = vadd.f32 %v441, %v502
      %v535 = vadd.f32 %v443, %v503
      %v536 = vadd.f32 %v446, %v504
      %v537 = vadd.f32 %v448, %v505
      %v538 = vadd.f32 %v451, %v506
      %v539 = vadd.f32 %v453, %v507
      %v540 = vadd.f32 %v456, %v508
      %v541 = vadd.f32 %v458, %v509
      %v542 = vadd.f32 %v461, %v510
      %v543 = vadd.f32 %v463, %v511
      %v544 = vadd.f32 %v466, %v512
      %v545 = vadd.f32 %v468, %v513
      %v546 = vadd.f32 %v471, %v514
      %v547 = vadd.f32 %v473, %v515
      %v548 = vadd.f32 %v476, %v516
      %v549 = vadd.f32 %v478, %v517
      %v550 = vadd.f32 %v481, %v518
      %v551 = vadd.f32 %v483, %v519
      %v552 = vadd.f32 %v486, %v520
      %v553 = vadd.f32 %v488, %v521
      %554 = vst [vmem:[%s283] sm:$0xff] %v522
      %555 = vst [vmem:[%s283 + $0x8] sm:$0xff] %v523
      %556 = vst [vmem:[%s283 + $0x10] sm:$0xff] %v524
      %557 = vst [vmem:[%s283 + $0x18] sm:$0xff] %v525
      %558 = vst [vmem:[%s283 + $0x20] sm:$0xff] %v526
      %559 = vst [vmem:[%s283 + $0x28] sm:$0xff] %v527
      %560 = vst [vmem:[%s283 + $0x30] sm:$0xff] %v528
      %561 = vst [vmem:[%s283 + $0x38] sm:$0xff] %v529
      %562 = vst [vmem:[%s283 + $0x40] sm:$0xff] %v530
      %563 = vst [vmem:[%s283 + $0x48] sm:$0xff] %v531
      %564 = vst [vmem:[%s283 + $0x50] sm:$0xff] %v532
      %565 = vst [vmem:[%s283 + $0x58] sm:$0xff] %v533
      %566 = vst [vmem:[%s283 + $0x60] sm:$0xff] %v534
      %567 = vst [vmem:[%s283 + $0x68] sm:$0xff] %v535
      %568 = vst [vmem:[%s283 + $0x70] sm:$0xff] %v536
      %569 = vst [vmem:[%s283 + $0x78] sm:$0xff] %v537
      %570 = vst [vmem:[%s283 + $0x80] sm:$0xff] %v538
      %571 = vst [vmem:[%s283 + $0x88] sm:$0xff] %v539
      %572 = vst [vmem:[%s283 + $0x90] sm:$0xff] %v540
      %573 = vst [vmem:[%s283 + $0x98] sm:$0xff] %v541
      %574 = vst [vmem:[%s283 + $0xa0] sm:$0xff] %v542
      %575 = vst [vmem:[%s283 + $0xa8] sm:$0xff] %v543
      %576 = vst [vmem:[%s283 + $0xb0] sm:$0xff] %v544
      %577 = vst [vmem:[%s283 + $0xb8] sm:$0xff] %v545
      %578 = vst [vmem:[%s283 + $0xc0] sm:$0xff] %v546
      %579 = vst [vmem:[%s283 + $0xc8] sm:$0xff] %v547
      %580 = vst [vmem:[%s283 + $0xd0] sm:$0xff] %v548
      %581 = vst [vmem:[%s283 + $0xd8] sm:$0xff] %v549
      %582 = vst [vmem:[%s283 + $0xe0] sm:$0xff] %v550
      %583 = vst [vmem:[%s283 + $0xe8] sm:$0xff] %v551
      %584 = vst [vmem:[%s283 + $0xf0] sm:$0xff] %v552
      %585 = vst [vmem:[%s283 + $0xf8] sm:$0xff] %v553
      %s586 = smul.u32 32, %s19
      %p587 = scmp.lt.s32.totalorder %s586, 63
      %s588 = scalar_select %p587, %s586, 63
      %p589 = scmp.lt.s32.totalorder %s20, 0
      %s590 = scalar_select %p589, %s20, 0
      %s591 = sadd.s32 %s590, %s588
      %s592 = smul.addr %s591, 8
      %s593 = scalar_lea.vmem %s4, %s592
      // Predicated region
      $region37: #{transformer_block_forward.11} parent=35 // pred_check
        %p594 = pneg %p153
      $region38: #{transformer_block_forward.11} parent=35 // pred_check_branch
        %596 = sbr.rel (%p594) target = $region40
      $region39: #{transformer_block_forward.11} parent=35 // pred_region
        %s597 = smul.u32 32, %s19
      $region40: #{transformer_block_forward.11} parent=35 // pred_fallthru
        _
    $region36: #{transformer_block_forward.11} parent=5 // pred_fallthru
      _
    %p598 = scmp.le.s32.totalorder 2, %s10
    // Predicated region
    $region41: #{transformer_block_forward.11} parent=5 // pred_check
      %p599 = pneg %p598
    $region42: #{transformer_block_forward.11} parent=5 // pred_check_branch
      %601 = sbr.rel (%p599) target = $region44
    $region43: #{transformer_block_forward.11} parent=5 // pred_region
      %s602 = ssub.s32 %s10, 2
      // Predicated region
      $region45: #{transformer_block_forward.11} parent=43 // pred_check
        %p603 = pneg %p159
      $region46: #{transformer_block_forward.11} parent=43 // pred_check_branch
        %605 = sbr.rel (%p603) target = $region48
      $region47: #{transformer_block_forward.11} parent=43 // pred_region
        %s606 = smul.u32 32, %s21
        %p607 = scmp.lt.s32.totalorder %s606, 63
        %s608 = scalar_select %p607, %s606, 63
        %p609 = scmp.lt.s32.totalorder %s22, 0
        %s610 = scalar_select %p609, %s22, 0
        %s611 = sadd.s32 %s610, %s608
        %s612 = smul.addr %s611, 8
        %s613 = scalar_lea.vmem %s4, %s612
      $region48: #{transformer_block_forward.11} parent=43 // pred_fallthru
        _
    $region44: #{transformer_block_forward.11} parent=5 // pred_fallthru
      _
  $region6: #{transformer_block_forward.11} parent=0 // loop_footer
    %s14 = sadd.s32 1, %s10
  $region7: #{transformer_block_forward.11} parent=0 // loop_footer_branch
    %9 = sbr.rel target = $region3
  $region8: #{transformer_block_forward.11} parent=0 // loop_exit
    _

// kernel: transformer_block_forward.10
$region0: #{transformer_block_forward.10}
  #allocation0 [shape = 'u32[]', space=smem, size = 0x4, offset = 0x4, fixed_abs, tag = 'smem constant byte address 0x4 - core index']
  #allocation1 [shape = 'u32[72,128]{1,0:T(1,128)}', space=vmem, size = 0x9000, scoped, tag = 'internal scratch']
  %s0 = inlined_call_operand.vmem [shape: f32[512,4], index: 0, kind: input, shape index: {}]
  %s1 = inlined_call_operand.vmem [shape: bf16[4,128], index: 1, kind: input, shape index: {}]
  %s2 = inlined_call_operand.vmem [shape: f32[1,128], index: 2, kind: input, shape index: {}]
  %s3 = inlined_call_operand.vmem [shape: f32[512,128], index: 3, kind: output, shape index: {}]
  %s4 = sld [smem:[#allocation0]]
  $region45: #{transformer_block_forward.10} parent=0
    _
  %s6 = ssub.s32 1, %s4
  %s7 = scalar_select 0, %s6, %s4
  loop: start=0, step=1, limit=4
  $region2: #{transformer_block_forward.10} parent=0 // loop_pre_header
    _
  $region3: #{transformer_block_forward.10} parent=0 // loop_header
    %s9 = sphi 0, %s13
    %p10 = scmp.ge.s32.totalorder %s9, 4
    %s16 = sphi 0, %s28
    %s17 = sphi 0, %s24
    %s18 = sphi 0, %s16
    %s19 = sphi 0, %s17
    %s20 = sphi 0, %s18
    %s21 = sphi 0, %s19
    %s31 = sphi 0, %s33
    %s34 = sphi 0, %s31
    %s35 = sphi 0, %s34
    %s51 = sphi 0, %s35
    %s57 = sphi 0, %s59
    %s60 = sphi 0, %s57
    %s61 = sphi 0, %s60
    %s77 = sphi 0, %s61
    %s83 = sphi 0, %s85
    %s86 = sphi 0, %s83
    %s87 = sphi 0, %s86
    %s103 = sphi 0, %s87
    %s111 = sphi 0, %s113
    %s114 = sphi 0, %s111
    %s115 = sphi 0, %s114
    %s131 = sphi 0, %s115
  $region4: #{transformer_block_forward.10} parent=0 // loop_header_branch
    %12 = sbr.rel (%p10) target = $region8
  $region5: #{transformer_block_forward.10} parent=0 // loop_body
    %s14 = ssub.s32 %s9, 1
    %s15 = ssub.s32 %s9, 2
    %s22 = sadd.s32 1, %s17
    %p23 = scmp.ge.s32.totalorder %s22, 1
    %s24 = scalar_select %p23, 0, %s22
    %s25 = sadd.s32 1, %s16
    %s26 = scalar_select %p23, %s25, %s16
    %p27 = scmp.ge.s32.totalorder %s26, 2
    %s28 = scalar_select %p27, 0, %s26
    %s29 = ssub.s32 %s16, %s28
    %p30 = scmp.eq.s32.totalorder %s29, 0
    %s32 = sadd.s32 %s31, 1
    %s33 = scalar_select %p30, %s31, %s32
    %p36 = pneg %p30
    %p37 = scmp.eq.s32.totalorder %s9, 1
    %p38 = por %p36, %p37
    %p39 = scmp.ne.s32.totalorder %s31, %s34
    %p40 = scmp.eq.s32.totalorder %s9, 0
    %p41 = por %p39, %p40
    %p42 = scmp.ne.s32.totalorder %s31, %s34
    %p43 = scmp.eq.s32.totalorder %s14, 1
    %p44 = por %p42, %p43
    %p45 = scmp.ne.s32.totalorder %s34, %s35
    %p46 = scmp.eq.s32.totalorder %s14, 0
    %p47 = por %p45, %p46
    %p48 = scmp.ne.s32.totalorder %s34, %s35
    %p49 = scmp.eq.s32.totalorder %s15, 1
    %p50 = por %p48, %p49
    %p52 = scmp.ne.s32.totalorder %s35, %s51
    %p53 = scmp.eq.s32.totalorder %s15, 0
    %p54 = por %p52, %p53
    %s55 = ssub.s32 %s17, %s24
    %p56 = scmp.eq.s32.totalorder %s55, 0
    %s58 = sadd.s32 %s57, 1
    %s59 = scalar_select %p56, %s57, %s58
    %p62 = pneg %p56
    %p63 = scmp.eq.s32.totalorder %s9, 1
    %p64 = por %p62, %p63
    %p65 = scmp.ne.s32.totalorder %s57, %s60
    %p66 = scmp.eq.s32.totalorder %s9, 0
    %p67 = por %p65, %p66
    %p68 = scmp.ne.s32.totalorder %s57, %s60
    %p69 = scmp.eq.s32.totalorder %s14, 1
    %p70 = por %p68, %p69
    %p71 = scmp.ne.s32.totalorder %s60, %s61
    %p72 = scmp.eq.s32.totalorder %s14, 0
    %p73 = por %p71, %p72
    %p74 = scmp.ne.s32.totalorder %s60, %s61
    %p75 = scmp.eq.s32.totalorder %s15, 1
    %p76 = por %p74, %p75
    %p78 = scmp.ne.s32.totalorder %s61, %s77
    %p79 = scmp.eq.s32.totalorder %s15, 0
    %p80 = por %p78, %p79
    %s81 = ssub.s32 %s17, %s24
    %p82 = scmp.eq.s32.totalorder %s81, 0
    %s84 = sadd.s32 %s83, 1
    %s85 = scalar_select %p82, %s83, %s84
    %p88 = pneg %p82
    %p89 = scmp.eq.s32.totalorder %s9, 1
    %p90 = por %p88, %p89
    %p91 = scmp.ne.s32.totalorder %s83, %s86
    %p92 = scmp.eq.s32.totalorder %s9, 0
    %p93 = por %p91, %p92
    %p94 = scmp.ne.s32.totalorder %s83, %s86
    %p95 = scmp.eq.s32.totalorder %s14, 1
    %p96 = por %p94, %p95
    %p97 = scmp.ne.s32.totalorder %s86, %s87
    %p98 = scmp.eq.s32.totalorder %s14, 0
    %p99 = por %p97, %p98
    %p100 = scmp.ne.s32.totalorder %s86, %s87
    %p101 = scmp.eq.s32.totalorder %s15, 1
    %p102 = por %p100, %p101
    %p104 = scmp.ne.s32.totalorder %s87, %s103
    %p105 = scmp.eq.s32.totalorder %s15, 0
    %p106 = por %p104, %p105
    %s107 = ssub.s32 %s16, %s28
    %s108 = ssub.s32 %s17, %s24
    %s109 = sor.u32 %s107, %s108
    %p110 = scmp.eq.s32.totalorder %s109, 0
    %s112 = sadd.s32 %s111, 1
    %s113 = scalar_select %p110, %s111, %s112
    %p116 = pneg %p110
    %p117 = scmp.eq.s32.totalorder %s9, 1
    %p118 = por %p116, %p117
    %p119 = scmp.ne.s32.totalorder %s111, %s114
    %p120 = scmp.eq.s32.totalorder %s9, 0
    %p121 = por %p119, %p120
    %p122 = scmp.ne.s32.totalorder %s111, %s114
    %p123 = scmp.eq.s32.totalorder %s14, 1
    %p124 = por %p122, %p123
    %p125 = scmp.ne.s32.totalorder %s114, %s115
    %p126 = scmp.eq.s32.totalorder %s14, 0
    %p127 = por %p125, %p126
    %p128 = scmp.ne.s32.totalorder %s114, %s115
    %p129 = scmp.eq.s32.totalorder %s15, 1
    %p130 = por %p128, %p129
    %p132 = scmp.ne.s32.totalorder %s115, %s131
    %p133 = scmp.eq.s32.totalorder %s15, 0
    %p134 = por %p132, %p133
    %p135 = scmp.le.s32.totalorder 1, %s9
    %p136 = scmp.lt.s32.totalorder %s9, 3
    %p137 = pnand %p135, %p136
    %p138 = pneg %p137
    // Predicated region
    $region9: #{transformer_block_forward.10} parent=5 // pred_check
      _
    $region10: #{transformer_block_forward.10} parent=5 // pred_check_branch
      %140 = sbr.rel (%p137) target = $region12
    $region11: #{transformer_block_forward.10} parent=5 // pred_region
      %s141 = ssub.s32 %s9, 1
      // Predicated region
      $region13: #{transformer_block_forward.10} parent=11 // pred_check
        %p142 = pneg %p73
      $region14: #{transformer_block_forward.10} parent=11 // pred_check_branch
        %144 = sbr.rel (%p142) target = $region16
      $region15: #{transformer_block_forward.10} parent=11 // pred_region
        %p145 = scmp.lt.s32.totalorder %s19, 0
        %s146 = scalar_select %p145, %s19, 0
        %s147 = smul.addr %s146, 2
        %s148 = scalar_lea.vmem %s1, %s147
      $region16: #{transformer_block_forward.10} parent=11 // pred_fallthru
        _
      // Predicated region
      $region17: #{transformer_block_forward.10} parent=11 // pred_check
        %p149 = pneg %p99
      $region18: #{transformer_block_forward.10} parent=11 // pred_check_branch
        %151 = sbr.rel (%p149) target = $region20
      $region19: #{transformer_block_forward.10} parent=11 // pred_region
        %p152 = scmp.lt.s32.totalorder %s19, 0
        %s153 = scalar_select %p152, %s19, 0
        %s154 = scalar_lea.vmem %s2, %s153
      $region20: #{transformer_block_forward.10} parent=11 // pred_fallthru
        _
    $region12: #{transformer_block_forward.10} parent=5 // pred_fallthru
      _
    %p155 = scmp.lt.s32.totalorder %s9, 2
    // Predicated region
    $region21: #{transformer_block_forward.10} parent=5 // pred_check
      %p156 = pneg %p155
    $region22: #{transformer_block_forward.10} parent=5 // pred_check_branch
      %158 = sbr.rel (%p156) target = $region24
    $region23: #{transformer_block_forward.10} parent=5 // pred_region
      // Predicated region
      $region25: #{transformer_block_forward.10} parent=23 // pred_check
        %p159 = pneg %p41
      $region26: #{transformer_block_forward.10} parent=23 // pred_check_branch
        %161 = sbr.rel (%p159) target = $region28
      $region27: #{transformer_block_forward.10} parent=23 // pred_region
        %s162 = smul.u32 32, %s16
        %p163 = scmp.lt.s32.totalorder %s162, 63
        %s164 = scalar_select %p163, %s162, 63
        %s165 = smul.addr %s164, 8
        %s166 = scalar_lea.vmem %s0, %s165
        %s167 = smul.u32 32, %s16
      $region28: #{transformer_block_forward.10} parent=23 // pred_fallthru
        _
    $region24: #{transformer_block_forward.10} parent=5 // pred_fallthru
      _
    %p168 = scmp.le.s32.totalorder 1, %s9
    %p169 = scmp.lt.s32.totalorder %s9, 3
    %p170 = pnand %p168, %p169
    %p171 = pneg %p170
    // Predicated region
    $region29: #{transformer_block_forward.10} parent=5 // pred_check
      _
    $region30: #{transformer_block_forward.10} parent=5 // pred_check_branch
      %173 = sbr.rel (%p170) target = $region32
    $region31: #{transformer_block_forward.10} parent=5 // pred_region
      %s174 = ssub.s32 %s9, 1
      %s175 = smul.u32 32, %s18
      %p176 = scmp.lt.s32.totalorder %s175, 63
      %s177 = scalar_select %p176, %s175, 63
      %s178 = smul.addr %s177, 8
      %s179 = scalar_lea.vmem %s0, %s178
      %p180 = pneg %p47
      %p181 = pneg %p44
      %p182 = scmp.lt.s32.totalorder %s19, 0
      %s183 = scalar_select %p182, %s19, 0
      %s184 = smul.addr %s183, 2
      %s185 = scalar_lea.vmem %s1, %s184
      %p186 = pneg %p73
      %p187 = pneg %p70
      %p188 = scmp.lt.s32.totalorder %s19, 0
      %s189 = scalar_select %p188, %s19, 0
      %s190 = scalar_lea.vmem %s2, %s189
      %p191 = pneg %p99
      %p192 = pneg %p96
      %p193 = pneg %p127
      %p194 = pneg %p124
      %s195 = smul.u32 32, %s18
      %p196 = scmp.lt.s32.totalorder %s195, 63
      %s197 = scalar_select %p196, %s195, 63
      %p198 = scmp.lt.s32.totalorder %s19, 0
      %s199 = scalar_select %p198, %s19, 0
      %s200 = sadd.s32 %s199, %s197
      %s201 = smul.addr %s200, 8
      %s202 = scalar_lea.vmem %s3, %s201
      %s203 = smul.u32 32, %s18
      %p204 = scmp.lt.s32.totalorder %s203, 63
      %s205 = scalar_select %p204, %s203, 63
      %s206 = smul.addr %s205, 8
      %s207 = scalar_lea.vmem %s0, %s206
      %s208 = smul.u32 32, %s18
      %p209 = scmp.lt.s32.totalorder %s19, 0
      %s210 = scalar_select %p209, %s19, 0
      %s211 = smul.addr %s210, 2
      %s212 = scalar_lea.vmem %s1, %s211
      %p213 = scmp.lt.s32.totalorder %s19, 0
      %s214 = scalar_select %p213, %s19, 0
      %s215 = scalar_lea.vmem %s2, %s214
      %s216 = smul.u32 32, %s18
      %p217 = scmp.lt.s32.totalorder %s216, 63
      %s218 = scalar_select %p217, %s216, 63
      %p219 = scmp.lt.s32.totalorder %s19, 0
      %s220 = scalar_select %p219, %s19, 0
      %s221 = sadd.s32 %s220, %s218
      %s222 = smul.addr %s221, 8
      %s223 = scalar_lea.vmem %s3, %s222
      %s224 = smul.u32 32, %s18
      %v226 = vld [vmem:[%s207] sm:$0xff]
      %v227 = vld [vmem:[%s207 + $0x8] sm:$0xff]
      %v228 = vld [vmem:[%s207 + $0x10] sm:$0xff]
      %v229 = vld [vmem:[%s207 + $0x18] sm:$0xff]
      %v230 = vld [vmem:[%s207 + $0x20] sm:$0xff]
      %v231 = vld [vmem:[%s207 + $0x28] sm:$0xff]
      %v232 = vld [vmem:[%s207 + $0x30] sm:$0xff]
      %v233 = vld [vmem:[%s207 + $0x38] sm:$0xff]
      %v234 = vld [vmem:[%s207 + $0x40] sm:$0xff]
      %v235 = vld [vmem:[%s207 + $0x48] sm:$0xff]
      %v236 = vld [vmem:[%s207 + $0x50] sm:$0xff]
      %v237 = vld [vmem:[%s207 + $0x58] sm:$0xff]
      %v238 = vld [vmem:[%s207 + $0x60] sm:$0xff]
      %v239 = vld [vmem:[%s207 + $0x68] sm:$0xff]
      %v240 = vld [vmem:[%s207 + $0x70] sm:$0xff]
      %v241 = vld [vmem:[%s207 + $0x78] sm:$0xff]
      %v242 = vld [vmem:[%s207 + $0x80] sm:$0xff]
      %v243 = vld [vmem:[%s207 + $0x88] sm:$0xff]
      %v244 = vld [vmem:[%s207 + $0x90] sm:$0xff]
      %v245 = vld [vmem:[%s207 + $0x98] sm:$0xff]
      %v246 = vld [vmem:[%s207 + $0xa0] sm:$0xff]
      %v247 = vld [vmem:[%s207 + $0xa8] sm:$0xff]
      %v248 = vld [vmem:[%s207 + $0xb0] sm:$0xff]
      %v249 = vld [vmem:[%s207 + $0xb8] sm:$0xff]
      %v250 = vld [vmem:[%s207 + $0xc0] sm:$0xff]
      %v251 = vld [vmem:[%s207 + $0xc8] sm:$0xff]
      %v252 = vld [vmem:[%s207 + $0xd0] sm:$0xff]
      %v253 = vld [vmem:[%s207 + $0xd8] sm:$0xff]
      %v254 = vld [vmem:[%s207 + $0xe0] sm:$0xff]
      %v255 = vld [vmem:[%s207 + $0xe8] sm:$0xff]
      %v256 = vld [vmem:[%s207 + $0xf0] sm:$0xff]
      %v257 = vld [vmem:[%s207 + $0xf8] sm:$0xff]
      %v258 = vpack.c.bf16 %v227, %v226
      %v259 = vpack.c.bf16 %v229, %v228
      %v260 = vpack.c.bf16 %v231, %v230
      %v261 = vpack.c.bf16 %v233, %v232
      %v262 = vpack.c.bf16 %v235, %v234
      %v263 = vpack.c.bf16 %v237, %v236
      %v264 = vpack.c.bf16 %v239, %v238
      %v265 = vpack.c.bf16 %v241, %v240
      %v266 = vpack.c.bf16 %v243, %v242
      %v267 = vpack.c.bf16 %v245, %v244
      %v268 = vpack.c.bf16 %v247, %v246
      %v269 = vpack.c.bf16 %v249, %v248
      %v270 = vpack.c.bf16 %v251, %v250
      %v271 = vpack.c.bf16 %v253, %v252
      %v272 = vpack.c.bf16 %v255, %v254
      %v273 = vpack.c.bf16 %v257, %v256
      %v274 = vld [vmem:[%s212] sm:$0x3]
      %v275 = vld [vmem:[%s215] sm:$0x1]
      %v277 = vperm.slane %v275, 0
      %vm279 = vcmask 31744
      %v281 = vsel %vm279, %v258, 0
      %v284 = vsel %vm279, %v259, 0
      %v287 = vsel %vm279, %v260, 0
      %v290 = vsel %vm279, %v261, 0
      %v293 = vsel %vm279, %v262, 0
      %v296 = vsel %vm279, %v263, 0
      %v299 = vsel %vm279, %v264, 0
      %v302 = vsel %vm279, %v265, 0
      %v305 = vsel %vm279, %v266, 0
      %v308 = vsel %vm279, %v267, 0
      %v311 = vsel %vm279, %v268, 0
      %v314 = vsel %vm279, %v269, 0
      %v317 = vsel %vm279, %v270, 0
      %v320 = vsel %vm279, %v271, 0
      %v323 = vsel %vm279, %v272, 0
      %v326 = vsel %vm279, %v273, 0
      %vm328 = vcmask 1041408
      %v330 = vsel %vm328, %v274, 0
      %332 = vmatpush.bf16.msra.mxu0 0
      %333 = vmatpush.bf16.msra.mxu0 0
      %334 = vmatpush.bf16.msra.mxu0 0
      %335 = vmatpush.bf16.msra.mxu0 0
      %336 = vmatpush.bf16.msra.mxu0 0
      %337 = vmatpush.bf16.msra.mxu0 0
      %338 = vmatpush.bf16.msra.mxu0 0
      %339 = vmatpush.bf16.msra.mxu0 %v330
      %340 = vmatmul.bf16.gmra.mxu0 %v281
      %v341 = vpop.f32.mrf.mxu0
      %v342 = vadd.f32 %v277, %v341
      %v343 = vpop.f32.mrf.mxu0
      %v344 = vadd.f32 %v277, %v343
      %345 = vmatmul.bf16.gmra.mxu0 %v284
      %v346 = vpop.f32.mrf.mxu0
      %v347 = vadd.f32 %v277, %v346
      %v348 = vpop.f32.mrf.mxu0
      %v349 = vadd.f32 %v277, %v348
      %350 = vmatmul.bf16.gmra.mxu0 %v287
      %v351 = vpop.f32.mrf.mxu0
      %v352 = vadd.f32 %v277, %v351
      %v353 = vpop.f32.mrf.mxu0
      %v354 = vadd.f32 %v277, %v353
      %355 = vmatmul.bf16.gmra.mxu0 %v290
      %v356 = vpop.f32.mrf.mxu0
      %v357 = vadd.f32 %v277, %v356
      %v358 = vpop.f32.mrf.mxu0
      %v359 = vadd.f32 %v277, %v358
      %360 = vmatmul.bf16.gmra.mxu0 %v293
      %v361 = vpop.f32.mrf.mxu0
      %v362 = vadd.f32 %v277, %v361
      %v363 = vpop.f32.mrf.mxu0
      %v364 = vadd.f32 %v277, %v363
      %365 = vmatmul.bf16.gmra.mxu0 %v296
      %v366 = vpop.f32.mrf.mxu0
      %v367 = vadd.f32 %v277, %v366
      %v368 = vpop.f32.mrf.mxu0
      %v369 = vadd.f32 %v277, %v368
      %370 = vmatmul.bf16.gmra.mxu0 %v299
      %v371 = vpop.f32.mrf.mxu0
      %v372 = vadd.f32 %v277, %v371
      %v373 = vpop.f32.mrf.mxu0
      %v374 = vadd.f32 %v277, %v373
      %375 = vmatmul.bf16.gmra.mxu0 %v302
      %v376 = vpop.f32.mrf.mxu0
      %v377 = vadd.f32 %v277, %v376
      %v378 = vpop.f32.mrf.mxu0
      %v379 = vadd.f32 %v277, %v378
      %380 = vmatmul.bf16.gmra.mxu0 %v305
      %v381 = vpop.f32.mrf.mxu0
      %v382 = vadd.f32 %v277, %v381
      %v383 = vpop.f32.mrf.mxu0
      %v384 = vadd.f32 %v277, %v383
      %385 = vmatmul.bf16.gmra.mxu0 %v308
      %v386 = vpop.f32.mrf.mxu0
      %v387 = vadd.f32 %v277, %v386
      %v388 = vpop.f32.mrf.mxu0
      %v389 = vadd.f32 %v277, %v388
      %390 = vmatmul.bf16.gmra.mxu0 %v311
      %v391 = vpop.f32.mrf.mxu0
      %v392 = vadd.f32 %v277, %v391
      %v393 = vpop.f32.mrf.mxu0
      %v394 = vadd.f32 %v277, %v393
      %395 = vmatmul.bf16.gmra.mxu0 %v314
      %v396 = vpop.f32.mrf.mxu0
      %v397 = vadd.f32 %v277, %v396
      %v398 = vpop.f32.mrf.mxu0
      %v399 = vadd.f32 %v277, %v398
      %400 = vmatmul.bf16.gmra.mxu0 %v317
      %v401 = vpop.f32.mrf.mxu0
      %v402 = vadd.f32 %v277, %v401
      %v403 = vpop.f32.mrf.mxu0
      %v404 = vadd.f32 %v277, %v403
      %405 = vmatmul.bf16.gmra.mxu0 %v320
      %v406 = vpop.f32.mrf.mxu0
      %v407 = vadd.f32 %v277, %v406
      %v408 = vpop.f32.mrf.mxu0
      %v409 = vadd.f32 %v277, %v408
      %410 = vmatmul.bf16.gmra.mxu0 %v323
      %v411 = vpop.f32.mrf.mxu0
      %v412 = vadd.f32 %v277, %v411
      %v413 = vpop.f32.mrf.mxu0
      %v414 = vadd.f32 %v277, %v413
      %415 = vmatmul.bf16.gmra.mxu0 %v326
      %v416 = vpop.f32.mrf.mxu0
      %v417 = vadd.f32 %v277, %v416
      %v418 = vpop.f32.mrf.mxu0
      %v419 = vadd.f32 %v277, %v418
      %420 = vdwg.mxu0
      %v421 = vxor.u32 %v342, 2147483648
      %v422 = vxor.u32 %v344, 2147483648
      %v423 = vxor.u32 %v347, 2147483648
      %v424 = vxor.u32 %v349, 2147483648
      %v425 = vxor.u32 %v352, 2147483648
      %v426 = vxor.u32 %v354, 2147483648
      %v427 = vxor.u32 %v357, 2147483648
      %v428 = vxor.u32 %v359, 2147483648
      %v429 = vxor.u32 %v362, 2147483648
      %v430 = vxor.u32 %v364, 2147483648
      %v431 = vxor.u32 %v367, 2147483648
      %v432 = vxor.u32 %v369, 2147483648
      %v433 = vxor.u32 %v372, 2147483648
      %v434 = vxor.u32 %v374, 2147483648
      %v435 = vxor.u32 %v377, 2147483648
      %v436 = vxor.u32 %v379, 2147483648
      %v437 = vxor.u32 %v382, 2147483648
      %v438 = vxor.u32 %v384, 2147483648
      %v439 = vxor.u32 %v387, 2147483648
      %v440 = vxor.u32 %v389, 2147483648
      %v441 = vxor.u32 %v392, 2147483648
      %v442 = vxor.u32 %v394, 2147483648
      %v443 = vxor.u32 %v397, 2147483648
      %v444 = vxor.u32 %v399, 2147483648
      %v445 = vxor.u32 %v402, 2147483648
      %v446 = vxor.u32 %v404, 2147483648
      %v447 = vxor.u32 %v407, 2147483648
      %v448 = vxor.u32 %v409, 2147483648
      %v449 = vxor.u32 %v412, 2147483648
      %v450 = vxor.u32 %v414, 2147483648
      %v451 = vxor.u32 %v417, 2147483648
      %v452 = vxor.u32 %v419, 2147483648
      %v453 = vmul.f32 %v421, 1.442695
      %v454 = vpow.pop %v453
      %v455 = vmul.f32 %v422, 1.442695
      %v456 = vpow.pop %v455
      %v457 = vmul.f32 %v423, 1.442695
      %v458 = vpow.pop %v457
      %v459 = vmul.f32 %v424, 1.442695
      %v460 = vpow.pop %v459
      %v461 = vmul.f32 %v425, 1.442695
      %v462 = vpow.pop %v461
      %v463 = vmul.f32 %v426, 1.442695
      %v464 = vpow.pop %v463
      %v465 = vmul.f32 %v427, 1.442695
      %v466 = vpow.pop %v465
      %v467 = vmul.f32 %v428, 1.442695
      %v468 = vpow.pop %v467
      %v469 = vmul.f32 %v429, 1.442695
      %v470 = vpow.pop %v469
      %v471 = vmul.f32 %v430, 1.442695
      %v472 = vpow.pop %v471
      %v473 = vmul.f32 %v431, 1.442695
      %v474 = vpow.pop %v473
      %v475 = vmul.f32 %v432, 1.442695
      %v476 = vpow.pop %v475
      %v477 = vmul.f32 %v433, 1.442695
      %v478 = vpow.pop %v477
      %v479 = vmul.f32 %v434, 1.442695
      %v480 = vpow.pop %v479
      %v481 = vmul.f32 %v435, 1.442695
      %v482 = vpow.pop %v481
      %v483 = vmul.f32 %v436, 1.442695
      %v484 = vpow.pop %v483
      %v485 = vmul.f32 %v437, 1.442695
      %v486 = vpow.pop %v485
      %v487 = vmul.f32 %v438, 1.442695
      %v488 = vpow.pop %v487
      %v489 = vmul.f32 %v439, 1.442695
      %v490 = vpow.pop %v489
      %v491 = vmul.f32 %v440, 1.442695
      %v492 = vpow.pop %v491
      %v493 = vmul.f32 %v441, 1.442695
      %v494 = vpow.pop %v493
      %v495 = vmul.f32 %v442, 1.442695
      %v496 = vpow.pop %v495
      %v497 = vmul.f32 %v443, 1.442695
      %v498 = vpow.pop %v497
      %v499 = vmul.f32 %v444, 1.442695
      %v500 = vpow.pop %v499
      %v501 = vmul.f32 %v445, 1.442695
      %v502 = vpow.pop %v501
      %v503 = vmul.f32 %v446, 1.442695
      %v504 = vpow.pop %v503
      %v505 = vmul.f32 %v447, 1.442695
      %v506 = vpow.pop %v505
      %v507 = vmul.f32 %v448, 1.442695
      %v508 = vpow.pop %v507
      %v509 = vmul.f32 %v449, 1.442695
      %v510 = vpow.pop %v509
      %v511 = vmul.f32 %v450, 1.442695
      %v512 = vpow.pop %v511
      %v513 = vmul.f32 %v451, 1.442695
      %v514 = vpow.pop %v513
      %v515 = vmul.f32 %v452, 1.442695
      %v516 = vpow.pop %v515
      %v517 = vadd.f32 %v454, 1.0
      %v518 = vadd.f32 %v456, 1.0
      %v519 = vadd.f32 %v458, 1.0
      %v520 = vadd.f32 %v460, 1.0
      %v521 = vadd.f32 %v462, 1.0
      %v522 = vadd.f32 %v464, 1.0
      %v523 = vadd.f32 %v466, 1.0
      %v524 = vadd.f32 %v468, 1.0
      %v525 = vadd.f32 %v470, 1.0
      %v526 = vadd.f32 %v472, 1.0
      %v527 = vadd.f32 %v474, 1.0
      %v528 = vadd.f32 %v476, 1.0
      %v529 = vadd.f32 %v478, 1.0
      %v530 = vadd.f32 %v480, 1.0
      %v531 = vadd.f32 %v482, 1.0
      %v532 = vadd.f32 %v484, 1.0
      %v533 = vadd.f32 %v486, 1.0
      %v534 = vadd.f32 %v488, 1.0
      %v535 = vadd.f32 %v490, 1.0
      %v536 = vadd.f32 %v492, 1.0
      %v537 = vadd.f32 %v494, 1.0
      %v538 = vadd.f32 %v496, 1.0
      %v539 = vadd.f32 %v498, 1.0
      %v540 = vadd.f32 %v500, 1.0
      %v541 = vadd.f32 %v502, 1.0
      %v542 = vadd.f32 %v504, 1.0
      %v543 = vadd.f32 %v506, 1.0
      %v544 = vadd.f32 %v508, 1.0
      %v545 = vadd.f32 %v510, 1.0
      %v546 = vadd.f32 %v512, 1.0
      %v547 = vadd.f32 %v514, 1.0
      %v548 = vadd.f32 %v516, 1.0
      %v549 = vrcp.pop %v517
      %v550 = vmul.f32 %v517, %v549
      %v551 = vsub.f32 1.0, %v550
      %v552 = vmul.f32 %v549, %v551
      %v553 = vadd.f32 %v549, %v552
      %vm554 = vweird.f32 %v517
      %vm555 = vweird.f32 %v549
      %vm556 = vmor %vm554, %vm555
      %v557 = vsel %vm556, %v549, %v553
      %v558 = vand.u32 2147483647, %v517
      %vm559 = vcmp.eq.f32.partialorder %v558, 8.507059e+37
      %v560 = vand.u32 %v517, 2147483648
      %v561 = vor.u32 1.1754944e-38, %v560
      %v562 = vsel %vm559, %v561, %v557
      %v563 = vmul.f32 1.0, %v562
      %v564 = vrcp.pop %v518
      %v565 = vmul.f32 %v518, %v564
      %v566 = vsub.f32 1.0, %v565
      %v567 = vmul.f32 %v564, %v566
      %v568 = vadd.f32 %v564, %v567
      %vm569 = vweird.f32 %v518
      %vm570 = vweird.f32 %v564
      %vm571 = vmor %vm569, %vm570
      %v572 = vsel %vm571, %v564, %v568
      %v573 = vand.u32 2147483647, %v518
      %vm574 = vcmp.eq.f32.partialorder %v573, 8.507059e+37
      %v575 = vand.u32 %v518, 2147483648
      %v576 = vor.u32 1.1754944e-38, %v575
      %v577 = vsel %vm574, %v576, %v572
      %v578 = vmul.f32 1.0, %v577
      %v579 = vrcp.pop %v519
      %v580 = vmul.f32 %v519, %v579
      %v581 = vsub.f32 1.0, %v580
      %v582 = vmul.f32 %v579, %v581
      %v583 = vadd.f32 %v579, %v582
      %vm584 = vweird.f32 %v519
      %vm585 = vweird.f32 %v579
      %vm586 = vmor %vm584, %vm585
      %v587 = vsel %vm586, %v579, %v583
      %v588 = vand.u32 2147483647, %v519
      %vm589 = vcmp.eq.f32.partialorder %v588, 8.507059e+37
      %v590 = vand.u32 %v519, 2147483648
      %v591 = vor.u32 1.1754944e-38, %v590
      %v592 = vsel %vm589, %v591, %v587
      %v593 = vmul.f32 1.0, %v592
      %v594 = vrcp.pop %v520
      %v595 = vmul.f32 %v520, %v594
      %v596 = vsub.f32 1.0, %v595
      %v597 = vmul.f32 %v594, %v596
      %v598 = vadd.f32 %v594, %v597
      %vm599 = vweird.f32 %v520
      %vm600 = vweird.f32 %v594
      %vm601 = vmor %vm599, %vm600
      %v602 = vsel %vm601, %v594, %v598
      %v603 = vand.u32 2147483647, %v520
      %vm604 = vcmp.eq.f32.partialorder %v603, 8.507059e+37
      %v605 = vand.u32 %v520, 2147483648
      %v606 = vor.u32 1.1754944e-38, %v605
      %v607 = vsel %vm604, %v606, %v602
      %v608 = vmul.f32 1.0, %v607
      %v609 = vrcp.pop %v521
      %v610 = vmul.f32 %v521, %v609
      %v611 = vsub.f32 1.0, %v610
      %v612 = vmul.f32 %v609, %v611
      %v613 = vadd.f32 %v609, %v612
      %vm614 = vweird.f32 %v521
      %vm615 = vweird.f32 %v609
      %vm616 = vmor %vm614, %vm615
      %v617 = vsel %vm616, %v609, %v613
      %v618 = vand.u32 2147483647, %v521
      %vm619 = vcmp.eq.f32.partialorder %v618, 8.507059e+37
      %v620 = vand.u32 %v521, 2147483648
      %v621 = vor.u32 1.1754944e-38, %v620
      %v622 = vsel %vm619, %v621, %v617
      %v623 = vmul.f32 1.0, %v622
      %v624 = vrcp.pop %v522
      %v625 = vmul.f32 %v522, %v624
      %v626 = vsub.f32 1.0, %v625
      %v627 = vmul.f32 %v624, %v626
      %v628 = vadd.f32 %v624, %v627
      %vm629 = vweird.f32 %v522
      %vm630 = vweird.f32 %v624
      %vm631 = vmor %vm629, %vm630
      %v632 = vsel %vm631, %v624, %v628
      %v633 = vand.u32 2147483647, %v522
      %vm634 = vcmp.eq.f32.partialorder %v633, 8.507059e+37
      %v635 = vand.u32 %v522, 2147483648
      %v636 = vor.u32 1.1754944e-38, %v635
      %v637 = vsel %vm634, %v636, %v632
      %v638 = vmul.f32 1.0, %v637
      %v639 = vrcp.pop %v523
      %v640 = vmul.f32 %v523, %v639
      %v641 = vsub.f32 1.0, %v640
      %v642 = vmul.f32 %v639, %v641
      %v643 = vadd.f32 %v639, %v642
      %vm644 = vweird.f32 %v523
      %vm645 = vweird.f32 %v639
      %vm646 = vmor %vm644, %vm645
      %v647 = vsel %vm646, %v639, %v643
      %v648 = vand.u32 2147483647, %v523
      %vm649 = vcmp.eq.f32.partialorder %v648, 8.507059e+37
      %v650 = vand.u32 %v523, 2147483648
      %v651 = vor.u32 1.1754944e-38, %v650
      %v652 = vsel %vm649, %v651, %v647
      %v653 = vmul.f32 1.0, %v652
      %v654 = vrcp.pop %v524
      %v655 = vmul.f32 %v524, %v654
      %v656 = vsub.f32 1.0, %v655
      %v657 = vmul.f32 %v654, %v656
      %v658 = vadd.f32 %v654, %v657
      %vm659 = vweird.f32 %v524
      %vm660 = vweird.f32 %v654
      %vm661 = vmor %vm659, %vm660
      %v662 = vsel %vm661, %v654, %v658
      %v663 = vand.u32 2147483647, %v524
      %vm664 = vcmp.eq.f32.partialorder %v663, 8.507059e+37
      %v665 = vand.u32 %v524, 2147483648
      %v666 = vor.u32 1.1754944e-38, %v665
      %v667 = vsel %vm664, %v666, %v662
      %v668 = vmul.f32 1.0, %v667
      %v669 = vrcp.pop %v525
      %v670 = vmul.f32 %v525, %v669
      %v671 = vsub.f32 1.0, %v670
      %v672 = vmul.f32 %v669, %v671
      %v673 = vadd.f32 %v669, %v672
      %vm674 = vweird.f32 %v525
      %vm675 = vweird.f32 %v669
      %vm676 = vmor %vm674, %vm675
      %v677 = vsel %vm676, %v669, %v673
      %v678 = vand.u32 2147483647, %v525
      %vm679 = vcmp.eq.f32.partialorder %v678, 8.507059e+37
      %v680 = vand.u32 %v525, 2147483648
      %v681 = vor.u32 1.1754944e-38, %v680
      %v682 = vsel %vm679, %v681, %v677
      %v683 = vmul.f32 1.0, %v682
      %v684 = vrcp.pop %v526
      %v685 = vmul.f32 %v526, %v684
      %v686 = vsub.f32 1.0, %v685
      %v687 = vmul.f32 %v684, %v686
      %v688 = vadd.f32 %v684, %v687
      %vm689 = vweird.f32 %v526
      %vm690 = vweird.f32 %v684
      %vm691 = vmor %vm689, %vm690
      %v692 = vsel %vm691, %v684, %v688
      %v693 = vand.u32 2147483647, %v526
      %vm694 = vcmp.eq.f32.partialorder %v693, 8.507059e+37
      %v695 = vand.u32 %v526, 2147483648
      %v696 = vor.u32 1.1754944e-38, %v695
      %v697 = vsel %vm694, %v696, %v692
      %v698 = vmul.f32 1.0, %v697
      %v699 = vrcp.pop %v527
      %v700 = vmul.f32 %v527, %v699
      %v701 = vsub.f32 1.0, %v700
      %v702 = vmul.f32 %v699, %v701
      %v703 = vadd.f32 %v699, %v702
      %vm704 = vweird.f32 %v527
      %vm705 = vweird.f32 %v699
      %vm706 = vmor %vm704, %vm705
      %v707 = vsel %vm706, %v699, %v703
      %v708 = vand.u32 2147483647, %v527
      %vm709 = vcmp.eq.f32.partialorder %v708, 8.507059e+37
      %v710 = vand.u32 %v527, 2147483648
      %v711 = vor.u32 1.1754944e-38, %v710
      %v712 = vsel %vm709, %v711, %v707
      %v713 = vmul.f32 1.0, %v712
      %v714 = vrcp.pop %v528
      %v715 = vmul.f32 %v528, %v714
      %v716 = vsub.f32 1.0, %v715
      %v717 = vmul.f32 %v714, %v716
      %v718 = vadd.f32 %v714, %v717
      %vm719 = vweird.f32 %v528
      %vm720 = vweird.f32 %v714
      %vm721 = vmor %vm719, %vm720
      %v722 = vsel %vm721, %v714, %v718
      %v723 = vand.u32 2147483647, %v528
      %vm724 = vcmp.eq.f32.partialorder %v723, 8.507059e+37
      %v725 = vand.u32 %v528, 2147483648
      %v726 = vor.u32 1.1754944e-38, %v725
      %v727 = vsel %vm724, %v726, %v722
      %v728 = vmul.f32 1.0, %v727
      %v729 = vrcp.pop %v529
      %v730 = vmul.f32 %v529, %v729
      %v731 = vsub.f32 1.0, %v730
      %v732 = vmul.f32 %v729, %v731
      %v733 = vadd.f32 %v729, %v732
      %vm734 = vweird.f32 %v529
      %vm735 = vweird.f32 %v729
      %vm736 = vmor %vm734, %vm735
      %v737 = vsel %vm736, %v729, %v733
      %v738 = vand.u32 2147483647, %v529
      %vm739 = vcmp.eq.f32.partialorder %v738, 8.507059e+37
      %v740 = vand.u32 %v529, 2147483648
      %v741 = vor.u32 1.1754944e-38, %v740
      %v742 = vsel %vm739, %v741, %v737
      %v743 = vmul.f32 1.0, %v742
      %v744 = vrcp.pop %v530
      %v745 = vmul.f32 %v530, %v744
      %v746 = vsub.f32 1.0, %v745
      %v747 = vmul.f32 %v744, %v746
      %v748 = vadd.f32 %v744, %v747
      %vm749 = vweird.f32 %v530
      %vm750 = vweird.f32 %v744
      %vm751 = vmor %vm749, %vm750
      %v752 = vsel %vm751, %v744, %v748
      %v753 = vand.u32 2147483647, %v530
      %vm754 = vcmp.eq.f32.partialorder %v753, 8.507059e+37
      %v755 = vand.u32 %v530, 2147483648
      %v756 = vor.u32 1.1754944e-38, %v755
      %v757 = vsel %vm754, %v756, %v752
      %v758 = vmul.f32 1.0, %v757
      %v759 = vrcp.pop %v531
      %v760 = vmul.f32 %v531, %v759
      %v761 = vsub.f32 1.0, %v760
      %v762 = vmul.f32 %v759, %v761
      %v763 = vadd.f32 %v759, %v762
      %vm764 = vweird.f32 %v531
      %vm765 = vweird.f32 %v759
      %vm766 = vmor %vm764, %vm765
      %v767 = vsel %vm766, %v759, %v763
      %v768 = vand.u32 2147483647, %v531
      %vm769 = vcmp.eq.f32.partialorder %v768, 8.507059e+37
      %v770 = vand.u32 %v531, 2147483648
      %v771 = vor.u32 1.1754944e-38, %v770
      %v772 = vsel %vm769, %v771, %v767
      %v773 = vmul.f32 1.0, %v772
      %v774 = vrcp.pop %v532
      %v775 = vmul.f32 %v532, %v774
      %v776 = vsub.f32 1.0, %v775
      %v777 = vmul.f32 %v774, %v776
      %v778 = vadd.f32 %v774, %v777
      %vm779 = vweird.f32 %v532
      %vm780 = vweird.f32 %v774
      %vm781 = vmor %vm779, %vm780
      %v782 = vsel %vm781, %v774, %v778
      %v783 = vand.u32 2147483647, %v532
      %vm784 = vcmp.eq.f32.partialorder %v783, 8.507059e+37
      %v785 = vand.u32 %v532, 2147483648
      %v786 = vor.u32 1.1754944e-38, %v785
      %v787 = vsel %vm784, %v786, %v782
      %v788 = vmul.f32 1.0, %v787
      %v789 = vrcp.pop %v533
      %v790 = vmul.f32 %v533, %v789
      %v791 = vsub.f32 1.0, %v790
      %v792 = vmul.f32 %v789, %v791
      %v793 = vadd.f32 %v789, %v792
      %vm794 = vweird.f32 %v533
      %vm795 = vweird.f32 %v789
      %vm796 = vmor %vm794, %vm795
      %v797 = vsel %vm796, %v789, %v793
      %v798 = vand.u32 2147483647, %v533
      %vm799 = vcmp.eq.f32.partialorder %v798, 8.507059e+37
      %v800 = vand.u32 %v533, 2147483648
      %v801 = vor.u32 1.1754944e-38, %v800
      %v802 = vsel %vm799, %v801, %v797
      %v803 = vmul.f32 1.0, %v802
      %v804 = vrcp.pop %v534
      %v805 = vmul.f32 %v534, %v804
      %v806 = vsub.f32 1.0, %v805
      %v807 = vmul.f32 %v804, %v806
      %v808 = vadd.f32 %v804, %v807
      %vm809 = vweird.f32 %v534
      %vm810 = vweird.f32 %v804
      %vm811 = vmor %vm809, %vm810
      %v812 = vsel %vm811, %v804, %v808
      %v813 = vand.u32 2147483647, %v534
      %vm814 = vcmp.eq.f32.partialorder %v813, 8.507059e+37
      %v815 = vand.u32 %v534, 2147483648
      %v816 = vor.u32 1.1754944e-38, %v815
      %v817 = vsel %vm814, %v816, %v812
      %v818 = vmul.f32 1.0, %v817
      %v819 = vrcp.pop %v535
      %v820 = vmul.f32 %v535, %v819
      %v821 = vsub.f32 1.0, %v820
      %v822 = vmul.f32 %v819, %v821
      %v823 = vadd.f32 %v819, %v822
      %vm824 = vweird.f32 %v535
      %vm825 = vweird.f32 %v819
      %vm826 = vmor %vm824, %vm825
      %v827 = vsel %vm826, %v819, %v823
      %v828 = vand.u32 2147483647, %v535
      %vm829 = vcmp.eq.f32.partialorder %v828, 8.507059e+37
      %v830 = vand.u32 %v535, 2147483648
      %v831 = vor.u32 1.1754944e-38, %v830
      %v832 = vsel %vm829, %v831, %v827
      %v833 = vmul.f32 1.0, %v832
      %v834 = vrcp.pop %v536
      %v835 = vmul.f32 %v536, %v834
      %v836 = vsub.f32 1.0, %v835
      %v837 = vmul.f32 %v834, %v836
      %v838 = vadd.f32 %v834, %v837
      %vm839 = vweird.f32 %v536
      %vm840 = vweird.f32 %v834
      %vm841 = vmor %vm839, %vm840
      %v842 = vsel %vm841, %v834, %v838
      %v843 = vand.u32 2147483647, %v536
      %vm844 = vcmp.eq.f32.partialorder %v843, 8.507059e+37
      %v845 = vand.u32 %v536, 2147483648
      %v846 = vor.u32 1.1754944e-38, %v845
      %v847 = vsel %vm844, %v846, %v842
      %v848 = vmul.f32 1.0, %v847
      %v849 = vrcp.pop %v537
      %v850 = vmul.f32 %v537, %v849
      %v851 = vsub.f32 1.0, %v850
      %v852 = vmul.f32 %v849, %v851
      %v853 = vadd.f32 %v849, %v852
      %vm854 = vweird.f32 %v537
      %vm855 = vweird.f32 %v849
      %vm856 = vmor %vm854, %vm855
      %v857 = vsel %vm856, %v849, %v853
      %v858 = vand.u32 2147483647, %v537
      %vm859 = vcmp.eq.f32.partialorder %v858, 8.507059e+37
      %v860 = vand.u32 %v537, 2147483648
      %v861 = vor.u32 1.1754944e-38, %v860
      %v862 = vsel %vm859, %v861, %v857
      %v863 = vmul.f32 1.0, %v862
      %v864 = vrcp.pop %v538
      %v865 = vmul.f32 %v538, %v864
      %v866 = vsub.f32 1.0, %v865
      %v867 = vmul.f32 %v864, %v866
      %v868 = vadd.f32 %v864, %v867
      %vm869 = vweird.f32 %v538
      %vm870 = vweird.f32 %v864
      %vm871 = vmor %vm869, %vm870
      %v872 = vsel %vm871, %v864, %v868
      %v873 = vand.u32 2147483647, %v538
      %vm874 = vcmp.eq.f32.partialorder %v873, 8.507059e+37
      %v875 = vand.u32 %v538, 2147483648
      %v876 = vor.u32 1.1754944e-38, %v875
      %v877 = vsel %vm874, %v876, %v872
      %v878 = vmul.f32 1.0, %v877
      %v879 = vrcp.pop %v539
      %v880 = vmul.f32 %v539, %v879
      %v881 = vsub.f32 1.0, %v880
      %v882 = vmul.f32 %v879, %v881
      %v883 = vadd.f32 %v879, %v882
      %vm884 = vweird.f32 %v539
      %vm885 = vweird.f32 %v879
      %vm886 = vmor %vm884, %vm885
      %v887 = vsel %vm886, %v879, %v883
      %v888 = vand.u32 2147483647, %v539
      %vm889 = vcmp.eq.f32.partialorder %v888, 8.507059e+37
      %v890 = vand.u32 %v539, 2147483648
      %v891 = vor.u32 1.1754944e-38, %v890
      %v892 = vsel %vm889, %v891, %v887
      %v893 = vmul.f32 1.0, %v892
      %v894 = vrcp.pop %v540
      %v895 = vmul.f32 %v540, %v894
      %v896 = vsub.f32 1.0, %v895
      %v897 = vmul.f32 %v894, %v896
      %v898 = vadd.f32 %v894, %v897
      %vm899 = vweird.f32 %v540
      %vm900 = vweird.f32 %v894
      %vm901 = vmor %vm899, %vm900
      %v902 = vsel %vm901, %v894, %v898
      %v903 = vand.u32 2147483647, %v540
      %vm904 = vcmp.eq.f32.partialorder %v903, 8.507059e+37
      %v905 = vand.u32 %v540, 2147483648
      %v906 = vor.u32 1.1754944e-38, %v905
      %v907 = vsel %vm904, %v906, %v902
      %v908 = vmul.f32 1.0, %v907
      %v909 = vrcp.pop %v541
      %v910 = vmul.f32 %v541, %v909
      %v911 = vsub.f32 1.0, %v910
      %v912 = vmul.f32 %v909, %v911
      %v913 = vadd.f32 %v909, %v912
      %vm914 = vweird.f32 %v541
      %vm915 = vweird.f32 %v909
      %vm916 = vmor %vm914, %vm915
      %v917 = vsel %vm916, %v909, %v913
      %v918 = vand.u32 2147483647, %v541
      %vm919 = vcmp.eq.f32.partialorder %v918, 8.507059e+37
      %v920 = vand.u32 %v541, 2147483648
      %v921 = vor.u32 1.1754944e-38, %v920
      %v922 = vsel %vm919, %v921, %v917
      %v923 = vmul.f32 1.0, %v922
      %v924 = vrcp.pop %v542
      %v925 = vmul.f32 %v542, %v924
      %v926 = vsub.f32 1.0, %v925
      %v927 = vmul.f32 %v924, %v926
      %v928 = vadd.f32 %v924, %v927
      %vm929 = vweird.f32 %v542
      %vm930 = vweird.f32 %v924
      %vm931 = vmor %vm929, %vm930
      %v932 = vsel %vm931, %v924, %v928
      %v933 = vand.u32 2147483647, %v542
      %vm934 = vcmp.eq.f32.partialorder %v933, 8.507059e+37
      %v935 = vand.u32 %v542, 2147483648
      %v936 = vor.u32 1.1754944e-38, %v935
      %v937 = vsel %vm934, %v936, %v932
      %v938 = vmul.f32 1.0, %v937
      %v939 = vrcp.pop %v543
      %v940 = vmul.f32 %v543, %v939
      %v941 = vsub.f32 1.0, %v940
      %v942 = vmul.f32 %v939, %v941
      %v943 = vadd.f32 %v939, %v942
      %vm944 = vweird.f32 %v543
      %vm945 = vweird.f32 %v939
      %vm946 = vmor %vm944, %vm945
      %v947 = vsel %vm946, %v939, %v943
      %v948 = vand.u32 2147483647, %v543
      %vm949 = vcmp.eq.f32.partialorder %v948, 8.507059e+37
      %v950 = vand.u32 %v543, 2147483648
      %v951 = vor.u32 1.1754944e-38, %v950
      %v952 = vsel %vm949, %v951, %v947
      %v953 = vmul.f32 1.0, %v952
      %v954 = vrcp.pop %v544
      %v955 = vmul.f32 %v544, %v954
      %v956 = vsub.f32 1.0, %v955
      %v957 = vmul.f32 %v954, %v956
      %v958 = vadd.f32 %v954, %v957
      %vm959 = vweird.f32 %v544
      %vm960 = vweird.f32 %v954
      %vm961 = vmor %vm959, %vm960
      %v962 = vsel %vm961, %v954, %v958
      %v963 = vand.u32 2147483647, %v544
      %vm964 = vcmp.eq.f32.partialorder %v963, 8.507059e+37
      %v965 = vand.u32 %v544, 2147483648
      %v966 = vor.u32 1.1754944e-38, %v965
      %v967 = vsel %vm964, %v966, %v962
      %v968 = vmul.f32 1.0, %v967
      %v969 = vrcp.pop %v545
      %v970 = vmul.f32 %v545, %v969
      %v971 = vsub.f32 1.0, %v970
      %v972 = vmul.f32 %v969, %v971
      %v973 = vadd.f32 %v969, %v972
      %vm974 = vweird.f32 %v545
      %vm975 = vweird.f32 %v969
      %vm976 = vmor %vm974, %vm975
      %v977 = vsel %vm976, %v969, %v973
      %v978 = vand.u32 2147483647, %v545
      %vm979 = vcmp.eq.f32.partialorder %v978, 8.507059e+37
      %v980 = vand.u32 %v545, 2147483648
      %v981 = vor.u32 1.1754944e-38, %v980
      %v982 = vsel %vm979, %v981, %v977
      %v983 = vmul.f32 1.0, %v982
      %v984 = vrcp.pop %v546
      %v985 = vmul.f32 %v546, %v984
      %v986 = vsub.f32 1.0, %v985
      %v987 = vmul.f32 %v984, %v986
      %v988 = vadd.f32 %v984, %v987
      %vm989 = vweird.f32 %v546
      %vm990 = vweird.f32 %v984
      %vm991 = vmor %vm989, %vm990
      %v992 = vsel %vm991, %v984, %v988
      %v993 = vand.u32 2147483647, %v546
      %vm994 = vcmp.eq.f32.partialorder %v993, 8.507059e+37
      %v995 = vand.u32 %v546, 2147483648
      %v996 = vor.u32 1.1754944e-38, %v995
      %v997 = vsel %vm994, %v996, %v992
      %v998 = vmul.f32 1.0, %v997
      %v999 = vrcp.pop %v547
      %v1000 = vmul.f32 %v547, %v999
      %v1001 = vsub.f32 1.0, %v1000
      %v1002 = vmul.f32 %v999, %v1001
      %v1003 = vadd.f32 %v999, %v1002
      %vm1004 = vweird.f32 %v547
      %vm1005 = vweird.f32 %v999
      %vm1006 = vmor %vm1004, %vm1005
      %v1007 = vsel %vm1006, %v999, %v1003
      %v1008 = vand.u32 2147483647, %v547
      %vm1009 = vcmp.eq.f32.partialorder %v1008, 8.507059e+37
      %v1010 = vand.u32 %v547, 2147483648
      %v1011 = vor.u32 1.1754944e-38, %v1010
      %v1012 = vsel %vm1009, %v1011, %v1007
      %v1013 = vmul.f32 1.0, %v1012
      %v1014 = vrcp.pop %v548
      %v1015 = vmul.f32 %v548, %v1014
      %v1016 = vsub.f32 1.0, %v1015
      %v1017 = vmul.f32 %v1014, %v1016
      %v1018 = vadd.f32 %v1014, %v1017
      %vm1019 = vweird.f32 %v548
      %vm1020 = vweird.f32 %v1014
      %vm1021 = vmor %vm1019, %vm1020
      %v1022 = vsel %vm1021, %v1014, %v1018
      %v1023 = vand.u32 2147483647, %v548
      %vm1024 = vcmp.eq.f32.partialorder %v1023, 8.507059e+37
      %v1025 = vand.u32 %v548, 2147483648
      %v1026 = vor.u32 1.1754944e-38, %v1025
      %v1027 = vsel %vm1024, %v1026, %v1022
      %v1028 = vmul.f32 1.0, %v1027
      %v1029 = vmul.f32 %v342, %v563
      %v1030 = vmul.f32 %v344, %v578
      %v1031 = vmul.f32 %v347, %v593
      %v1032 = vmul.f32 %v349, %v608
      %v1033 = vmul.f32 %v352, %v623
      %v1034 = vmul.f32 %v354, %v638
      %v1035 = vmul.f32 %v357, %v653
      %v1036 = vmul.f32 %v359, %v668
      %v1037 = vmul.f32 %v362, %v683
      %v1038 = vmul.f32 %v364, %v698
      %v1039 = vmul.f32 %v367, %v713
      %v1040 = vmul.f32 %v369, %v728
      %v1041 = vmul.f32 %v372, %v743
      %v1042 = vmul.f32 %v374, %v758
      %v1043 = vmul.f32 %v377, %v773
      %v1044 = vmul.f32 %v379, %v788
      %v1045 = vmul.f32 %v382, %v803
      %v1046 = vmul.f32 %v384, %v818
      %v1047 = vmul.f32 %v387, %v833
      %v1048 = vmul.f32 %v389, %v848
      %v1049 = vmul.f32 %v392, %v863
      %v1050 = vmul.f32 %v394, %v878
      %v1051 = vmul.f32 %v397, %v893
      %v1052 = vmul.f32 %v399, %v908
      %v1053 = vmul.f32 %v402, %v923
      %v1054 = vmul.f32 %v404, %v938
      %v1055 = vmul.f32 %v407, %v953
      %v1056 = vmul.f32 %v409, %v968
      %v1057 = vmul.f32 %v412, %v983
      %v1058 = vmul.f32 %v414, %v998
      %v1059 = vmul.f32 %v417, %v1013
      %v1060 = vmul.f32 %v419, %v1028
      %1061 = vst [vmem:[%s223] sm:$0xff] %v1029
      %1062 = vst [vmem:[%s223 + $0x8] sm:$0xff] %v1030
      %1063 = vst [vmem:[%s223 + $0x10] sm:$0xff] %v1031
      %1064 = vst [vmem:[%s223 + $0x18] sm:$0xff] %v1032
      %1065 = vst [vmem:[%s223 + $0x20] sm:$0xff] %v1033
      %1066 = vst [vmem:[%s223 + $0x28] sm:$0xff] %v1034
      %1067 = vst [vmem:[%s223 + $0x30] sm:$0xff] %v1035
      %1068 = vst [vmem:[%s223 + $0x38] sm:$0xff] %v1036
      %1069 = vst [vmem:[%s223 + $0x40] sm:$0xff] %v1037
      %1070 = vst [vmem:[%s223 + $0x48] sm:$0xff] %v1038
      %1071 = vst [vmem:[%s223 + $0x50] sm:$0xff] %v1039
      %1072 = vst [vmem:[%s223 + $0x58] sm:$0xff] %v1040
      %1073 = vst [vmem:[%s223 + $0x60] sm:$0xff] %v1041
      %1074 = vst [vmem:[%s223 + $0x68] sm:$0xff] %v1042
      %1075 = vst [vmem:[%s223 + $0x70] sm:$0xff] %v1043
      %1076 = vst [vmem:[%s223 + $0x78] sm:$0xff] %v1044
      %1077 = vst [vmem:[%s223 + $0x80] sm:$0xff] %v1045
      %1078 = vst [vmem:[%s223 + $0x88] sm:$0xff] %v1046
      %1079 = vst [vmem:[%s223 + $0x90] sm:$0xff] %v1047
      %1080 = vst [vmem:[%s223 + $0x98] sm:$0xff] %v1048
      %1081 = vst [vmem:[%s223 + $0xa0] sm:$0xff] %v1049
      %1082 = vst [vmem:[%s223 + $0xa8] sm:$0xff] %v1050
      %1083 = vst [vmem:[%s223 + $0xb0] sm:$0xff] %v1051
      %1084 = vst [vmem:[%s223 + $0xb8] sm:$0xff] %v1052
      %1085 = vst [vmem:[%s223 + $0xc0] sm:$0xff] %v1053
      %1086 = vst [vmem:[%s223 + $0xc8] sm:$0xff] %v1054
      %1087 = vst [vmem:[%s223 + $0xd0] sm:$0xff] %v1055
      %1088 = vst [vmem:[%s223 + $0xd8] sm:$0xff] %v1056
      %1089 = vst [vmem:[%s223 + $0xe0] sm:$0xff] %v1057
      %1090 = vst [vmem:[%s223 + $0xe8] sm:$0xff] %v1058
      %1091 = vst [vmem:[%s223 + $0xf0] sm:$0xff] %v1059
      %1092 = vst [vmem:[%s223 + $0xf8] sm:$0xff] %v1060
      %s1093 = smul.u32 32, %s18
      %p1094 = scmp.lt.s32.totalorder %s1093, 63
      %s1095 = scalar_select %p1094, %s1093, 63
      %p1096 = scmp.lt.s32.totalorder %s19, 0
      %s1097 = scalar_select %p1096, %s19, 0
      %s1098 = sadd.s32 %s1097, %s1095
      %s1099 = smul.addr %s1098, 8
      %s1100 = scalar_lea.vmem %s3, %s1099
      // Predicated region
      $region33: #{transformer_block_forward.10} parent=31 // pred_check
        %p1101 = pneg %p124
      $region34: #{transformer_block_forward.10} parent=31 // pred_check_branch
        %1103 = sbr.rel (%p1101) target = $region36
      $region35: #{transformer_block_forward.10} parent=31 // pred_region
        %s1104 = smul.u32 32, %s18
      $region36: #{transformer_block_forward.10} parent=31 // pred_fallthru
        _
    $region32: #{transformer_block_forward.10} parent=5 // pred_fallthru
      _
    %p1105 = scmp.le.s32.totalorder 2, %s9
    // Predicated region
    $region37: #{transformer_block_forward.10} parent=5 // pred_check
      %p1106 = pneg %p1105
    $region38: #{transformer_block_forward.10} parent=5 // pred_check_branch
      %1108 = sbr.rel (%p1106) target = $region40
    $region39: #{transformer_block_forward.10} parent=5 // pred_region
      %s1109 = ssub.s32 %s9, 2
      // Predicated region
      $region41: #{transformer_block_forward.10} parent=39 // pred_check
        %p1110 = pneg %p130
      $region42: #{transformer_block_forward.10} parent=39 // pred_check_branch
        %1112 = sbr.rel (%p1110) target = $region44
      $region43: #{transformer_block_forward.10} parent=39 // pred_region
        %s1113 = smul.u32 32, %s20
        %p1114 = scmp.lt.s32.totalorder %s1113, 63
        %s1115 = scalar_select %p1114, %s1113, 63
        %p1116 = scmp.lt.s32.totalorder %s21, 0
        %s1117 = scalar_select %p1116, %s21, 0
        %s1118 = sadd.s32 %s1117, %s1115
        %s1119 = smul.addr %s1118, 8
        %s1120 = scalar_lea.vmem %s3, %s1119
      $region44: #{transformer_block_forward.10} parent=39 // pred_fallthru
        _
    $region40: #{transformer_block_forward.10} parent=5 // pred_fallthru
      _
  $region6: #{transformer_block_forward.10} parent=0 // loop_footer
    %s13 = sadd.s32 1, %s9
  $region7: #{transformer_block_forward.10} parent=0 // loop_footer_branch
    %8 = sbr.rel target = $region3
  $region8: #{transformer_block_forward.10} parent=0 // loop_exit
    _

// kernel: transformer_block_forward.19
$region0: #{transformer_block_forward.19}
  #allocation0 [shape = 'u32[]', space=smem, size = 0x4, offset = 0x4, fixed_abs, tag = 'smem constant byte address 0x4 - core index']
  #allocation1 [shape = 'u32[72,128]{1,0:T(1,128)}', space=vmem, size = 0x9000, scoped, tag = 'internal scratch']
  %s0 = inlined_call_operand.vmem [shape: f32[512,128], index: 0, kind: input, shape index: {}, may-alias: {0,2}]
  %s1 = inlined_call_operand.vmem [shape: bf16[128,128], index: 1, kind: input, shape index: {}]
  %s2 = inlined_call_operand.vmem [shape: f32[512,128], index: 2, kind: input, shape index: {}, may-alias: {0,2}]
  %s3 = inlined_call_operand.hbm [shape: f32[512,128], index: 3, kind: output, shape index: {}]
  %s4 = sld [smem:[#allocation0]]
  $region45: #{transformer_block_forward.19} parent=0
    _
  %s6 = ssub.s32 1, %s4
  %s7 = scalar_select 0, %s6, %s4
  $region1: #{transformer_block_forward.19} parent=0
    #allocation2 [shape = 'u8[262144]{0}', space=vmem, size = 0x40000, scoped, tag = 'output window, operand 0']
    #allocation3 [shape = 's32[2]{0}', space=sflag, size = 0x8, scoped, tag = 'scoped memory for transformer_block_forward.19']
    %8 = vsyncpa [#allocation3], 0
    %s9 = scalar_lea.sflag [#allocation3], 1
    %10 = vsyncpa %s9, 0
    loop: start=0, step=1, limit=4
    $region2: #{transformer_block_forward.19} parent=1 // loop_pre_header
      _
    $region3: #{transformer_block_forward.19} parent=1 // loop_header
      %s12 = sphi 0, %s16
      %p13 = scmp.ge.s32.totalorder %s12, 4
      %s19 = sphi 0, %s31
      %s20 = sphi 0, %s27
      %s21 = sphi 0, %s19
      %s22 = sphi 0, %s20
      %s23 = sphi 0, %s21
      %s24 = sphi 0, %s22
      %s34 = sphi 0, %s36
      %s37 = sphi 0, %s34
      %s38 = sphi 0, %s37
      %s54 = sphi 0, %s38
      %s60 = sphi 0, %s62
      %s63 = sphi 0, %s60
      %s64 = sphi 0, %s63
      %s80 = sphi 0, %s64
      %s88 = sphi 0, %s90
      %s91 = sphi 0, %s88
      %s92 = sphi 0, %s91
      %s108 = sphi 0, %s92
      %s116 = sphi 0, %s118
      %s119 = sphi 0, %s116
      %s120 = sphi 0, %s119
      %s136 = sphi 0, %s120
    $region4: #{transformer_block_forward.19} parent=1 // loop_header_branch
      %15 = sbr.rel (%p13) target = $region8
    $region5: #{transformer_block_forward.19} parent=1 // loop_body
      %s17 = ssub.s32 %s12, 1
      %s18 = ssub.s32 %s12, 2
      %s25 = sadd.s32 1, %s20
      %p26 = scmp.ge.s32.totalorder %s25, 1
      %s27 = scalar_select %p26, 0, %s25
      %s28 = sadd.s32 1, %s19
      %s29 = scalar_select %p26, %s28, %s19
      %p30 = scmp.ge.s32.totalorder %s29, 2
      %s31 = scalar_select %p30, 0, %s29
      %s32 = ssub.s32 %s19, %s31
      %p33 = scmp.eq.s32.totalorder %s32, 0
      %s35 = sadd.s32 %s34, 1
      %s36 = scalar_select %p33, %s34, %s35
      %p39 = pneg %p33
      %p40 = scmp.eq.s32.totalorder %s12, 1
      %p41 = por %p39, %p40
      %p42 = scmp.ne.s32.totalorder %s34, %s37
      %p43 = scmp.eq.s32.totalorder %s12, 0
      %p44 = por %p42, %p43
      %p45 = scmp.ne.s32.totalorder %s34, %s37
      %p46 = scmp.eq.s32.totalorder %s17, 1
      %p47 = por %p45, %p46
      %p48 = scmp.ne.s32.totalorder %s37, %s38
      %p49 = scmp.eq.s32.totalorder %s17, 0
      %p50 = por %p48, %p49
      %p51 = scmp.ne.s32.totalorder %s37, %s38
      %p52 = scmp.eq.s32.totalorder %s18, 1
      %p53 = por %p51, %p52
      %p55 = scmp.ne.s32.totalorder %s38, %s54
      %p56 = scmp.eq.s32.totalorder %s18, 0
      %p57 = por %p55, %p56
      %s58 = ssub.s32 %s20, %s27
      %p59 = scmp.eq.s32.totalorder %s58, 0
      %s61 = sadd.s32 %s60, 1
      %s62 = scalar_select %p59, %s60, %s61
      %p65 = pneg %p59
      %p66 = scmp.eq.s32.totalorder %s12, 1
      %p67 = por %p65, %p66
      %p68 = scmp.ne.s32.totalorder %s60, %s63
      %p69 = scmp.eq.s32.totalorder %s12, 0
      %p70 = por %p68, %p69
      %p71 = scmp.ne.s32.totalorder %s60, %s63
      %p72 = scmp.eq.s32.totalorder %s17, 1
      %p73 = por %p71, %p72
      %p74 = scmp.ne.s32.totalorder %s63, %s64
      %p75 = scmp.eq.s32.totalorder %s17, 0
      %p76 = por %p74, %p75
      %p77 = scmp.ne.s32.totalorder %s63, %s64
      %p78 = scmp.eq.s32.totalorder %s18, 1
      %p79 = por %p77, %p78
      %p81 = scmp.ne.s32.totalorder %s64, %s80
      %p82 = scmp.eq.s32.totalorder %s18, 0
      %p83 = por %p81, %p82
      %s84 = ssub.s32 %s19, %s31
      %s85 = ssub.s32 %s20, %s27
      %s86 = sor.u32 %s84, %s85
      %p87 = scmp.eq.s32.totalorder %s86, 0
      %s89 = sadd.s32 %s88, 1
      %s90 = scalar_select %p87, %s88, %s89
      %p93 = pneg %p87
      %p94 = scmp.eq.s32.totalorder %s12, 1
      %p95 = por %p93, %p94
      %p96 = scmp.ne.s32.totalorder %s88, %s91
      %p97 = scmp.eq.s32.totalorder %s12, 0
      %p98 = por %p96, %p97
      %p99 = scmp.ne.s32.totalorder %s88, %s91
      %p100 = scmp.eq.s32.totalorder %s17, 1
      %p101 = por %p99, %p100
      %p102 = scmp.ne.s32.totalorder %s91, %s92
      %p103 = scmp.eq.s32.totalorder %s17, 0
      %p104 = por %p102, %p103
      %p105 = scmp.ne.s32.totalorder %s91, %s92
      %p106 = scmp.eq.s32.totalorder %s18, 1
      %p107 = por %p105, %p106
      %p109 = scmp.ne.s32.totalorder %s92, %s108
      %p110 = scmp.eq.s32.totalorder %s18, 0
      %p111 = por %p109, %p110
      %s112 = ssub.s32 %s19, %s31
      %s113 = ssub.s32 %s20, %s27
      %s114 = sor.u32 %s112, %s113
      %p115 = scmp.eq.s32.totalorder %s114, 0
      %s117 = sadd.s32 %s116, 1
      %s118 = scalar_select %p115, %s116, %s117
      %p121 = pneg %p115
      %p122 = scmp.eq.s32.totalorder %s12, 1
      %p123 = por %p121, %p122
      %p124 = scmp.ne.s32.totalorder %s116, %s119
      %p125 = scmp.eq.s32.totalorder %s12, 0
      %p126 = por %p124, %p125
      %p127 = scmp.ne.s32.totalorder %s116, %s119
      %p128 = scmp.eq.s32.totalorder %s17, 1
      %p129 = por %p127, %p128
      %p130 = scmp.ne.s32.totalorder %s119, %s120
      %p131 = scmp.eq.s32.totalorder %s17, 0
      %p132 = por %p130, %p131
      %p133 = scmp.ne.s32.totalorder %s119, %s120
      %p134 = scmp.eq.s32.totalorder %s18, 1
      %p135 = por %p133, %p134
      %p137 = scmp.ne.s32.totalorder %s120, %s136
      %p138 = scmp.eq.s32.totalorder %s18, 0
      %p139 = por %p137, %p138
      %p140 = scmp.le.s32.totalorder 1, %s12
      %p141 = scmp.lt.s32.totalorder %s12, 3
      %p142 = pnand %p140, %p141
      %p143 = pneg %p142
      // Predicated region
      $region9: #{transformer_block_forward.19} parent=5 // pred_check
        _
      $region10: #{transformer_block_forward.19} parent=5 // pred_check_branch
        %145 = sbr.rel (%p142) target = $region12
      $region11: #{transformer_block_forward.19} parent=5 // pred_region
        %s146 = ssub.s32 %s12, 1
        // Predicated region
        $region13: #{transformer_block_forward.19} parent=11 // pred_check
          %p147 = pneg %p76
        $region14: #{transformer_block_forward.19} parent=11 // pred_check_branch
          %149 = sbr.rel (%p147) target = $region16
        $region15: #{transformer_block_forward.19} parent=11 // pred_region
          %p150 = scmp.lt.s32.totalorder %s22, 0
          %s151 = scalar_select %p150, %s22, 0
          %s152 = smul.addr %s151, 4
          %s153 = scalar_lea.vmem %s1, %s152
        $region16: #{transformer_block_forward.19} parent=11 // pred_fallthru
          _
      $region12: #{transformer_block_forward.19} parent=5 // pred_fallthru
        _
      %p154 = scmp.lt.s32.totalorder %s12, 2
      // Predicated region
      $region17: #{transformer_block_forward.19} parent=5 // pred_check
        %p155 = pneg %p154
      $region18: #{transformer_block_forward.19} parent=5 // pred_check_branch
        %157 = sbr.rel (%p155) target = $region20
      $region19: #{transformer_block_forward.19} parent=5 // pred_region
        // Predicated region
        $region21: #{transformer_block_forward.19} parent=19 // pred_check
          %p158 = pneg %p44
        $region22: #{transformer_block_forward.19} parent=19 // pred_check_branch
          %160 = sbr.rel (%p158) target = $region24
        $region23: #{transformer_block_forward.19} parent=19 // pred_region
          %s161 = smul.u32 32, %s19
          %p162 = scmp.lt.s32.totalorder %s161, 63
          %s163 = scalar_select %p162, %s161, 63
          %s164 = smul.addr %s163, 8
          %s165 = scalar_lea.vmem %s0, %s164
          %s166 = smul.u32 32, %s19
        $region24: #{transformer_block_forward.19} parent=19 // pred_fallthru
          _
        // Predicated region
        $region25: #{transformer_block_forward.19} parent=19 // pred_check
          %p167 = pneg %p98
        $region26: #{transformer_block_forward.19} parent=19 // pred_check_branch
          %169 = sbr.rel (%p167) target = $region28
        $region27: #{transformer_block_forward.19} parent=19 // pred_region
          %s170 = smul.u32 32, %s19
          %p171 = scmp.lt.s32.totalorder %s170, 63
          %s172 = scalar_select %p171, %s170, 63
          %p173 = scmp.lt.s32.totalorder %s20, 0
          %s174 = scalar_select %p173, %s20, 0
          %s175 = sadd.s32 %s174, %s172
          %s176 = smul.addr %s175, 8
          %s177 = scalar_lea.vmem %s2, %s176
          %s178 = smul.u32 32, %s19
        $region28: #{transformer_block_forward.19} parent=19 // pred_fallthru
          _
      $region20: #{transformer_block_forward.19} parent=5 // pred_fallthru
        _
      %p179 = scmp.le.s32.totalorder 1, %s12
      %p180 = scmp.lt.s32.totalorder %s12, 3
      %p181 = pnand %p179, %p180
      %p182 = pneg %p181
      // Predicated region
      $region29: #{transformer_block_forward.19} parent=5 // pred_check
        _
      $region30: #{transformer_block_forward.19} parent=5 // pred_check_branch
        %184 = sbr.rel (%p181) target = $region32
      $region31: #{transformer_block_forward.19} parent=5 // pred_region
        %s185 = ssub.s32 %s12, 1
        %s186 = smul.u32 32, %s21
        %p187 = scmp.lt.s32.totalorder %s186, 63
        %s188 = scalar_select %p187, %s186, 63
        %s189 = smul.addr %s188, 8
        %s190 = scalar_lea.vmem %s0, %s189
        %p191 = pneg %p50
        %p192 = pneg %p47
        %p193 = scmp.lt.s32.totalorder %s22, 0
        %s194 = scalar_select %p193, %s22, 0
        %s195 = smul.addr %s194, 4
        %s196 = scalar_lea.vmem %s1, %s195
        %p197 = pneg %p76
        %p198 = pneg %p73
        %s199 = smul.u32 32, %s21
        %p200 = scmp.lt.s32.totalorder %s199, 63
        %s201 = scalar_select %p200, %s199, 63
        %p202 = scmp.lt.s32.totalorder %s22, 0
        %s203 = scalar_select %p202, %s22, 0
        %s204 = sadd.s32 %s203, %s201
        %s205 = smul.addr %s204, 8
        %s206 = scalar_lea.vmem %s2, %s205
        %p207 = pneg %p104
        %p208 = pneg %p101
        %p209 = pneg %p132
        %p210 = pneg %p129
        %s211 = sand.u32 %s119, 1
        %s212 = scalar_lea.sflag [#allocation3], %s211
        %s213 = sand.u32 %s119, 1
        %s214 = smul.addr %s213, 256
        %s215 = scalar_lea.vmem [#allocation2], %s214
        %s216 = smul.u32 32, %s21
        %p217 = scmp.lt.s32.totalorder %s216, 63
        %s218 = scalar_select %p217, %s216, 63
        %s219 = smul.addr %s218, 8
        %s220 = scalar_lea.vmem %s0, %s219
        %s221 = smul.u32 32, %s21
        %p222 = scmp.lt.s32.totalorder %s22, 0
        %s223 = scalar_select %p222, %s22, 0
        %s224 = smul.addr %s223, 4
        %s225 = scalar_lea.vmem %s1, %s224
        %s226 = smul.u32 32, %s21
        %p227 = scmp.lt.s32.totalorder %s226, 63
        %s228 = scalar_select %p227, %s226, 63
        %p229 = scmp.lt.s32.totalorder %s22, 0
        %s230 = scalar_select %p229, %s22, 0
        %s231 = sadd.s32 %s230, %s228
        %s232 = smul.addr %s231, 8
        %s233 = scalar_lea.vmem %s2, %s232
        %s234 = smul.u32 32, %s21
        %s235 = smul.u32 32, %s21
        %v236 = vld [vmem:[%s220] sm:$0xff]
        %v237 = vld [vmem:[%s220 + $0x8] sm:$0xff]
        %v238 = vld [vmem:[%s220 + $0x10] sm:$0xff]
        %v239 = vld [vmem:[%s220 + $0x18] sm:$0xff]
        %v240 = vld [vmem:[%s220 + $0x20] sm:$0xff]
        %v241 = vld [vmem:[%s220 + $0x28] sm:$0xff]
        %v242 = vld [vmem:[%s220 + $0x30] sm:$0xff]
        %v243 = vld [vmem:[%s220 + $0x38] sm:$0xff]
        %v244 = vld [vmem:[%s220 + $0x40] sm:$0xff]
        %v245 = vld [vmem:[%s220 + $0x48] sm:$0xff]
        %v246 = vld [vmem:[%s220 + $0x50] sm:$0xff]
        %v247 = vld [vmem:[%s220 + $0x58] sm:$0xff]
        %v248 = vld [vmem:[%s220 + $0x60] sm:$0xff]
        %v249 = vld [vmem:[%s220 + $0x68] sm:$0xff]
        %v250 = vld [vmem:[%s220 + $0x70] sm:$0xff]
        %v251 = vld [vmem:[%s220 + $0x78] sm:$0xff]
        %v252 = vld [vmem:[%s220 + $0x80] sm:$0xff]
        %v253 = vld [vmem:[%s220 + $0x88] sm:$0xff]
        %v254 = vld [vmem:[%s220 + $0x90] sm:$0xff]
        %v255 = vld [vmem:[%s220 + $0x98] sm:$0xff]
        %v256 = vld [vmem:[%s220 + $0xa0] sm:$0xff]
        %v257 = vld [vmem:[%s220 + $0xa8] sm:$0xff]
        %v258 = vld [vmem:[%s220 + $0xb0] sm:$0xff]
        %v259 = vld [vmem:[%s220 + $0xb8] sm:$0xff]
        %v260 = vld [vmem:[%s220 + $0xc0] sm:$0xff]
        %v261 = vld [vmem:[%s220 + $0xc8] sm:$0xff]
        %v262 = vld [vmem:[%s220 + $0xd0] sm:$0xff]
        %v263 = vld [vmem:[%s220 + $0xd8] sm:$0xff]
        %v264 = vld [vmem:[%s220 + $0xe0] sm:$0xff]
        %v265 = vld [vmem:[%s220 + $0xe8] sm:$0xff]
        %v266 = vld [vmem:[%s220 + $0xf0] sm:$0xff]
        %v267 = vld [vmem:[%s220 + $0xf8] sm:$0xff]
        %v268 = vpack.c.bf16 %v237, %v236
        %v269 = vpack.c.bf16 %v239, %v238
        %v270 = vpack.c.bf16 %v241, %v240
        %v271 = vpack.c.bf16 %v243, %v242
        %v272 = vpack.c.bf16 %v245, %v244
        %v273 = vpack.c.bf16 %v247, %v246
        %v274 = vpack.c.bf16 %v249, %v248
        %v275 = vpack.c.bf16 %v251, %v250
        %v276 = vpack.c.bf16 %v253, %v252
        %v277 = vpack.c.bf16 %v255, %v254
        %v278 = vpack.c.bf16 %v257, %v256
        %v279 = vpack.c.bf16 %v259, %v258
        %v280 = vpack.c.bf16 %v261, %v260
        %v281 = vpack.c.bf16 %v263, %v262
        %v282 = vpack.c.bf16 %v265, %v264
        %v283 = vpack.c.bf16 %v267, %v266
        %v284 = vld [vmem:[%s225] sm:$0xf]
        %v285 = vld [vmem:[%s225 + $0x4] sm:$0xf]
        %v286 = vld [vmem:[%s225 + $0x8] sm:$0xf]
        %v287 = vld [vmem:[%s225 + $0xc] sm:$0xf]
        %v288 = vld [vmem:[%s225 + $0x10] sm:$0xf]
        %v289 = vld [vmem:[%s225 + $0x14] sm:$0xf]
        %v290 = vld [vmem:[%s225 + $0x18] sm:$0xf]
        %v291 = vld [vmem:[%s225 + $0x1c] sm:$0xf]
        %v292 = vld [vmem:[%s225 + $0x20] sm:$0xf]
        %v293 = vld [vmem:[%s225 + $0x24] sm:$0xf]
        %v294 = vld [vmem:[%s225 + $0x28] sm:$0xf]
        %v295 = vld [vmem:[%s225 + $0x2c] sm:$0xf]
        %v296 = vld [vmem:[%s225 + $0x30] sm:$0xf]
        %v297 = vld [vmem:[%s225 + $0x34] sm:$0xf]
        %v298 = vld [vmem:[%s225 + $0x38] sm:$0xf]
        %v299 = vld [vmem:[%s225 + $0x3c] sm:$0xf]
        %v300 = vld [vmem:[%s233] sm:$0xff]
        %v301 = vld [vmem:[%s233 + $0x8] sm:$0xff]
        %v302 = vld [vmem:[%s233 + $0x10] sm:$0xff]
        %v303 = vld [vmem:[%s233 + $0x18] sm:$0xff]
        %v304 = vld [vmem:[%s233 + $0x20] sm:$0xff]
        %v305 = vld [vmem:[%s233 + $0x28] sm:$0xff]
        %v306 = vld [vmem:[%s233 + $0x30] sm:$0xff]
        %v307 = vld [vmem:[%s233 + $0x38] sm:$0xff]
        %v308 = vld [vmem:[%s233 + $0x40] sm:$0xff]
        %v309 = vld [vmem:[%s233 + $0x48] sm:$0xff]
        %v310 = vld [vmem:[%s233 + $0x50] sm:$0xff]
        %v311 = vld [vmem:[%s233 + $0x58] sm:$0xff]
        %v312 = vld [vmem:[%s233 + $0x60] sm:$0xff]
        %v313 = vld [vmem:[%s233 + $0x68] sm:$0xff]
        %v314 = vld [vmem:[%s233 + $0x70] sm:$0xff]
        %v315 = vld [vmem:[%s233 + $0x78] sm:$0xff]
        %v316 = vld [vmem:[%s233 + $0x80] sm:$0xff]
        %v317 = vld [vmem:[%s233 + $0x88] sm:$0xff]
        %v318 = vld [vmem:[%s233 + $0x90] sm:$0xff]
        %v319 = vld [vmem:[%s233 + $0x98] sm:$0xff]
        %v320 = vld [vmem:[%s233 + $0xa0] sm:$0xff]
        %v321 = vld [vmem:[%s233 + $0xa8] sm:$0xff]
        %v322 = vld [vmem:[%s233 + $0xb0] sm:$0xff]
        %v323 = vld [vmem:[%s233 + $0xb8] sm:$0xff]
        %v324 = vld [vmem:[%s233 + $0xc0] sm:$0xff]
        %v325 = vld [vmem:[%s233 + $0xc8] sm:$0xff]
        %v326 = vld [vmem:[%s233 + $0xd0] sm:$0xff]
        %v327 = vld [vmem:[%s233 + $0xd8] sm:$0xff]
        %v328 = vld [vmem:[%s233 + $0xe0] sm:$0xff]
        %v329 = vld [vmem:[%s233 + $0xe8] sm:$0xff]
        %v330 = vld [vmem:[%s233 + $0xf0] sm:$0xff]
        %v331 = vld [vmem:[%s233 + $0xf8] sm:$0xff]
        %v348 = vunpack.c.l.b16 %v284
        %v349 = vunpack.c.l.b16 %v285
        %v350 = vunpack.c.l.b16 %v286
        %v351 = vunpack.c.l.b16 %v287
        %v352 = vunpack.c.l.b16 %v288
        %v353 = vunpack.c.l.b16 %v289
        %v354 = vunpack.c.l.b16 %v290
        %v355 = vunpack.c.l.b16 %v291
        %v356 = vunpack.c.l.b16 %v292
        %v357 = vunpack.c.l.b16 %v293
        %v358 = vunpack.c.l.b16 %v294
        %v359 = vunpack.c.l.b16 %v295
        %v360 = vunpack.c.l.b16 %v296
        %v361 = vunpack.c.l.b16 %v297
        %v362 = vunpack.c.l.b16 %v298
        %v363 = vunpack.c.l.b16 %v299
        %v364 = vpack.c.b16 %v349, %v348
        %v365 = vpack.c.b16 %v351, %v350
        %v366 = vpack.c.b16 %v353, %v352
        %v367 = vpack.c.b16 %v355, %v354
        %v368 = vpack.c.b16 %v357, %v356
        %v369 = vpack.c.b16 %v359, %v358
        %v370 = vpack.c.b16 %v361, %v360
        %v371 = vpack.c.b16 %v363, %v362
        %380 = vmatpush.bf16.msra.mxu0 %v371
        %381 = vmatpush.bf16.msra.mxu0 %v370
        %382 = vmatpush.bf16.msra.mxu0 %v369
        %383 = vmatpush.bf16.msra.mxu0 %v368
        %384 = vmatpush.bf16.msra.mxu0 %v367
        %385 = vmatpush.bf16.msra.mxu0 %v366
        %386 = vmatpush.bf16.msra.mxu0 %v365
        %387 = vmatpush.bf16.msra.mxu0 %v364
        %388 = vmatmul.bf16.gmra.mxu0 %v268
        %v389 = vpop.f32.mrf.mxu0
        %v390 = vadd.f32 %v300, %v389
        %v391 = vpop.f32.mrf.mxu0
        %v392 = vadd.f32 %v301, %v391
        %393 = vmatmul.bf16.gmra.mxu0 %v269
        %v394 = vpop.f32.mrf.mxu0
        %v395 = vadd.f32 %v302, %v394
        %v396 = vpop.f32.mrf.mxu0
        %v397 = vadd.f32 %v303, %v396
        %398 = vmatmul.bf16.gmra.mxu0 %v270
        %v399 = vpop.f32.mrf.mxu0
        %v400 = vadd.f32 %v304, %v399
        %v401 = vpop.f32.mrf.mxu0
        %v402 = vadd.f32 %v305, %v401
        %403 = vmatmul.bf16.gmra.mxu0 %v271
        %v404 = vpop.f32.mrf.mxu0
        %v405 = vadd.f32 %v306, %v404
        %v406 = vpop.f32.mrf.mxu0
        %v407 = vadd.f32 %v307, %v406
        %408 = vmatmul.bf16.gmra.mxu0 %v272
        %v409 = vpop.f32.mrf.mxu0
        %v410 = vadd.f32 %v308, %v409
        %v411 = vpop.f32.mrf.mxu0
        %v412 = vadd.f32 %v309, %v411
        %413 = vmatmul.bf16.gmra.mxu0 %v273
        %v414 = vpop.f32.mrf.mxu0
        %v415 = vadd.f32 %v310, %v414
        %v416 = vpop.f32.mrf.mxu0
        %v417 = vadd.f32 %v311, %v416
        %418 = vmatmul.bf16.gmra.mxu0 %v274
        %v419 = vpop.f32.mrf.mxu0
        %v420 = vadd.f32 %v312, %v419
        %v421 = vpop.f32.mrf.mxu0
        %v422 = vadd.f32 %v313, %v421
        %423 = vmatmul.bf16.gmra.mxu0 %v275
        %v424 = vpop.f32.mrf.mxu0
        %v425 = vadd.f32 %v314, %v424
        %v426 = vpop.f32.mrf.mxu0
        %v427 = vadd.f32 %v315, %v426
        %428 = vmatmul.bf16.gmra.mxu0 %v276
        %v429 = vpop.f32.mrf.mxu0
        %v430 = vadd.f32 %v316, %v429
        %v431 = vpop.f32.mrf.mxu0
        %v432 = vadd.f32 %v317, %v431
        %433 = vmatmul.bf16.gmra.mxu0 %v277
        %v434 = vpop.f32.mrf.mxu0
        %v435 = vadd.f32 %v318, %v434
        %v436 = vpop.f32.mrf.mxu0
        %v437 = vadd.f32 %v319, %v436
        %438 = vmatmul.bf16.gmra.mxu0 %v278
        %v439 = vpop.f32.mrf.mxu0
        %v440 = vadd.f32 %v320, %v439
        %v441 = vpop.f32.mrf.mxu0
        %v442 = vadd.f32 %v321, %v441
        %443 = vmatmul.bf16.gmra.mxu0 %v279
        %v444 = vpop.f32.mrf.mxu0
        %v445 = vadd.f32 %v322, %v444
        %v446 = vpop.f32.mrf.mxu0
        %v447 = vadd.f32 %v323, %v446
        %448 = vmatmul.bf16.gmra.mxu0 %v280
        %v449 = vpop.f32.mrf.mxu0
        %v450 = vadd.f32 %v324, %v449
        %v451 = vpop.f32.mrf.mxu0
        %v452 = vadd.f32 %v325, %v451
        %453 = vmatmul.bf16.gmra.mxu0 %v281
        %v454 = vpop.f32.mrf.mxu0
        %v455 = vadd.f32 %v326, %v454
        %v456 = vpop.f32.mrf.mxu0
        %v457 = vadd.f32 %v327, %v456
        %458 = vmatmul.bf16.gmra.mxu0 %v282
        %v459 = vpop.f32.mrf.mxu0
        %v460 = vadd.f32 %v328, %v459
        %v461 = vpop.f32.mrf.mxu0
        %v462 = vadd.f32 %v329, %v461
        %463 = vmatmul.bf16.gmra.mxu0 %v283
        %v464 = vpop.f32.mrf.mxu0
        %v465 = vadd.f32 %v330, %v464
        %v466 = vpop.f32.mrf.mxu0
        %v467 = vadd.f32 %v331, %v466
        %468 = vdwg.mxu0
        %469 = vst [vmem:[%s215] sm:$0xff] %v390
        %470 = vst [vmem:[%s215 + $0x8] sm:$0xff] %v392
        %471 = vst [vmem:[%s215 + $0x10] sm:$0xff] %v395
        %472 = vst [vmem:[%s215 + $0x18] sm:$0xff] %v397
        %473 = vst [vmem:[%s215 + $0x20] sm:$0xff] %v400
        %474 = vst [vmem:[%s215 + $0x28] sm:$0xff] %v402
        %475 = vst [vmem:[%s215 + $0x30] sm:$0xff] %v405
        %476 = vst [vmem:[%s215 + $0x38] sm:$0xff] %v407
        %477 = vst [vmem:[%s215 + $0x40] sm:$0xff] %v410
        %478 = vst [vmem:[%s215 + $0x48] sm:$0xff] %v412
        %479 = vst [vmem:[%s215 + $0x50] sm:$0xff] %v415
        %480 = vst [vmem:[%s215 + $0x58] sm:$0xff] %v417
        %481 = vst [vmem:[%s215 + $0x60] sm:$0xff] %v420
        %482 = vst [vmem:[%s215 + $0x68] sm:$0xff] %v422
        %483 = vst [vmem:[%s215 + $0x70] sm:$0xff] %v425
        %484 = vst [vmem:[%s215 + $0x78] sm:$0xff] %v427
        %485 = vst [vmem:[%s215 + $0x80] sm:$0xff] %v430
        %486 = vst [vmem:[%s215 + $0x88] sm:$0xff] %v432
        %487 = vst [vmem:[%s215 + $0x90] sm:$0xff] %v435
        %488 = vst [vmem:[%s215 + $0x98] sm:$0xff] %v437
        %489 = vst [vmem:[%s215 + $0xa0] sm:$0xff] %v440
        %490 = vst [vmem:[%s215 + $0xa8] sm:$0xff] %v442
        %491 = vst [vmem:[%s215 + $0xb0] sm:$0xff] %v445
        %492 = vst [vmem:[%s215 + $0xb8] sm:$0xff] %v447
        %493 = vst [vmem:[%s215 + $0xc0] sm:$0xff] %v450
        %494 = vst [vmem:[%s215 + $0xc8] sm:$0xff] %v452
        %495 = vst [vmem:[%s215 + $0xd0] sm:$0xff] %v455
        %496 = vst [vmem:[%s215 + $0xd8] sm:$0xff] %v457
        %497 = vst [vmem:[%s215 + $0xe0] sm:$0xff] %v460
        %498 = vst [vmem:[%s215 + $0xe8] sm:$0xff] %v462
        %499 = vst [vmem:[%s215 + $0xf0] sm:$0xff] %v465
        %500 = vst [vmem:[%s215 + $0xf8] sm:$0xff] %v467
        %s501 = sand.u32 %s119, 1
        %s502 = scalar_lea.sflag [#allocation3], %s501
        %s503 = sand.u32 %s119, 1
        %s504 = smul.addr %s503, 256
        %s505 = scalar_lea.vmem [#allocation2], %s504
        // Predicated region
        $region33: #{transformer_block_forward.19} parent=31 // pred_check
          %p506 = pneg %p129
        $region34: #{transformer_block_forward.19} parent=31 // pred_check_branch
          %508 = sbr.rel (%p506) target = $region36
        $region35: #{transformer_block_forward.19} parent=31 // pred_region
          %s509 = smul.u32 32, %s21
          %511 = vsyncadd %s502, 0
          %s512 = sadd.s32 %s22, %s509
          %s513 = smul.addr %s512, 8
          %s514 = scalar_lea.hbm %s3, %s513
          %s515 = sshll.u32 %s505, 4
          %s516 = int_to_ptr.vmem [resolvable:$true] %s515
          %s517 = sshll.u32 %s514, 4
          %s518 = int_to_ptr.hbm [resolvable:$true] %s517
          %523 = dma.vmem_to_hbm [thread:$0]  %s516, 4096, %s518, %s502, 128, 128, 8
        $region36: #{transformer_block_forward.19} parent=31 // pred_fallthru
          _
      $region32: #{transformer_block_forward.19} parent=5 // pred_fallthru
        _
      %p524 = scmp.le.s32.totalorder 2, %s12
      // Predicated region
      $region37: #{transformer_block_forward.19} parent=5 // pred_check
        %p525 = pneg %p524
      $region38: #{transformer_block_forward.19} parent=5 // pred_check_branch
        %527 = sbr.rel (%p525) target = $region40
      $region39: #{transformer_block_forward.19} parent=5 // pred_region
        %s528 = ssub.s32 %s12, 2
        // Predicated region
        $region41: #{transformer_block_forward.19} parent=39 // pred_check
          %p529 = pneg %p135
        $region42: #{transformer_block_forward.19} parent=39 // pred_check_branch
          %531 = sbr.rel (%p529) target = $region44
        $region43: #{transformer_block_forward.19} parent=39 // pred_region
          %s532 = sand.u32 %s120, 1
          %s533 = scalar_lea.sflag [#allocation3], %s532
          %s534 = sand.u32 %s120, 1
          %s535 = smul.addr %s534, 256
          %s536 = scalar_lea.vmem [#allocation2], %s535
          %538 = dma.done %s533, 4096
        $region44: #{transformer_block_forward.19} parent=39 // pred_fallthru
          _
      $region40: #{transformer_block_forward.19} parent=5 // pred_fallthru
        _
    $region6: #{transformer_block_forward.19} parent=1 // loop_footer
      %s16 = sadd.s32 1, %s12
    $region7: #{transformer_block_forward.19} parent=1 // loop_footer_branch
      %11 = sbr.rel target = $region3
    $region8: #{transformer_block_forward.19} parent=1 // loop_exit
      _
    %539 = vsyncpa [#allocation3], 1
    %s540 = scalar_lea.sflag [#allocation3], 1
    %541 = vsyncpa %s540, 1

// kernel: transformer_block_forward.15
$region0: #{transformer_block_forward.15}
  #allocation0 [shape = 'u32[]', space=smem, size = 0x4, offset = 0x4, fixed_abs, tag = 'smem constant byte address 0x4 - core index']
  #allocation1 [shape = 'u32[72,128]{1,0:T(1,128)}', space=vmem, size = 0x9000, scoped, tag = 'internal scratch']
  %s0 = inlined_call_operand.vmem [shape: f32[512,128], index: 0, kind: input, shape index: {}, may-alias: {0,2}]
  %s1 = inlined_call_operand.vmem [shape: bf16[128,128], index: 1, kind: input, shape index: {}]
  %s2 = inlined_call_operand.vmem [shape: f32[512,128], index: 2, kind: input, shape index: {}, may-alias: {0,2}]
  %s3 = inlined_call_operand.vmem [shape: f32[512,128], index: 3, kind: output, shape index: {}]
  %s4 = sld [smem:[#allocation0]]
  $region45: #{transformer_block_forward.15} parent=0
    _
  %s6 = ssub.s32 1, %s4
  %s7 = scalar_select 0, %s6, %s4
  loop: start=0, step=1, limit=4
  $region2: #{transformer_block_forward.15} parent=0 // loop_pre_header
    _
  $region3: #{transformer_block_forward.15} parent=0 // loop_header
    %s9 = sphi 0, %s13
    %p10 = scmp.ge.s32.totalorder %s9, 4
    %s16 = sphi 0, %s28
    %s17 = sphi 0, %s24
    %s18 = sphi 0, %s16
    %s19 = sphi 0, %s17
    %s20 = sphi 0, %s18
    %s21 = sphi 0, %s19
    %s31 = sphi 0, %s33
    %s34 = sphi 0, %s31
    %s35 = sphi 0, %s34
    %s51 = sphi 0, %s35
    %s57 = sphi 0, %s59
    %s60 = sphi 0, %s57
    %s61 = sphi 0, %s60
    %s77 = sphi 0, %s61
    %s85 = sphi 0, %s87
    %s88 = sphi 0, %s85
    %s89 = sphi 0, %s88
    %s105 = sphi 0, %s89
    %s113 = sphi 0, %s115
    %s116 = sphi 0, %s113
    %s117 = sphi 0, %s116
    %s133 = sphi 0, %s117
  $region4: #{transformer_block_forward.15} parent=0 // loop_header_branch
    %12 = sbr.rel (%p10) target = $region8
  $region5: #{transformer_block_forward.15} parent=0 // loop_body
    %s14 = ssub.s32 %s9, 1
    %s15 = ssub.s32 %s9, 2
    %s22 = sadd.s32 1, %s17
    %p23 = scmp.ge.s32.totalorder %s22, 1
    %s24 = scalar_select %p23, 0, %s22
    %s25 = sadd.s32 1, %s16
    %s26 = scalar_select %p23, %s25, %s16
    %p27 = scmp.ge.s32.totalorder %s26, 2
    %s28 = scalar_select %p27, 0, %s26
    %s29 = ssub.s32 %s16, %s28
    %p30 = scmp.eq.s32.totalorder %s29, 0
    %s32 = sadd.s32 %s31, 1
    %s33 = scalar_select %p30, %s31, %s32
    %p36 = pneg %p30
    %p37 = scmp.eq.s32.totalorder %s9, 1
    %p38 = por %p36, %p37
    %p39 = scmp.ne.s32.totalorder %s31, %s34
    %p40 = scmp.eq.s32.totalorder %s9, 0
    %p41 = por %p39, %p40
    %p42 = scmp.ne.s32.totalorder %s31, %s34
    %p43 = scmp.eq.s32.totalorder %s14, 1
    %p44 = por %p42, %p43
    %p45 = scmp.ne.s32.totalorder %s34, %s35
    %p46 = scmp.eq.s32.totalorder %s14, 0
    %p47 = por %p45, %p46
    %p48 = scmp.ne.s32.totalorder %s34, %s35
    %p49 = scmp.eq.s32.totalorder %s15, 1
    %p50 = por %p48, %p49
    %p52 = scmp.ne.s32.totalorder %s35, %s51
    %p53 = scmp.eq.s32.totalorder %s15, 0
    %p54 = por %p52, %p53
    %s55 = ssub.s32 %s17, %s24
    %p56 = scmp.eq.s32.totalorder %s55, 0
    %s58 = sadd.s32 %s57, 1
    %s59 = scalar_select %p56, %s57, %s58
    %p62 = pneg %p56
    %p63 = scmp.eq.s32.totalorder %s9, 1
    %p64 = por %p62, %p63
    %p65 = scmp.ne.s32.totalorder %s57, %s60
    %p66 = scmp.eq.s32.totalorder %s9, 0
    %p67 = por %p65, %p66
    %p68 = scmp.ne.s32.totalorder %s57, %s60
    %p69 = scmp.eq.s32.totalorder %s14, 1
    %p70 = por %p68, %p69
    %p71 = scmp.ne.s32.totalorder %s60, %s61
    %p72 = scmp.eq.s32.totalorder %s14, 0
    %p73 = por %p71, %p72
    %p74 = scmp.ne.s32.totalorder %s60, %s61
    %p75 = scmp.eq.s32.totalorder %s15, 1
    %p76 = por %p74, %p75
    %p78 = scmp.ne.s32.totalorder %s61, %s77
    %p79 = scmp.eq.s32.totalorder %s15, 0
    %p80 = por %p78, %p79
    %s81 = ssub.s32 %s16, %s28
    %s82 = ssub.s32 %s17, %s24
    %s83 = sor.u32 %s81, %s82
    %p84 = scmp.eq.s32.totalorder %s83, 0
    %s86 = sadd.s32 %s85, 1
    %s87 = scalar_select %p84, %s85, %s86
    %p90 = pneg %p84
    %p91 = scmp.eq.s32.totalorder %s9, 1
    %p92 = por %p90, %p91
    %p93 = scmp.ne.s32.totalorder %s85, %s88
    %p94 = scmp.eq.s32.totalorder %s9, 0
    %p95 = por %p93, %p94
    %p96 = scmp.ne.s32.totalorder %s85, %s88
    %p97 = scmp.eq.s32.totalorder %s14, 1
    %p98 = por %p96, %p97
    %p99 = scmp.ne.s32.totalorder %s88, %s89
    %p100 = scmp.eq.s32.totalorder %s14, 0
    %p101 = por %p99, %p100
    %p102 = scmp.ne.s32.totalorder %s88, %s89
    %p103 = scmp.eq.s32.totalorder %s15, 1
    %p104 = por %p102, %p103
    %p106 = scmp.ne.s32.totalorder %s89, %s105
    %p107 = scmp.eq.s32.totalorder %s15, 0
    %p108 = por %p106, %p107
    %s109 = ssub.s32 %s16, %s28
    %s110 = ssub.s32 %s17, %s24
    %s111 = sor.u32 %s109, %s110
    %p112 = scmp.eq.s32.totalorder %s111, 0
    %s114 = sadd.s32 %s113, 1
    %s115 = scalar_select %p112, %s113, %s114
    %p118 = pneg %p112
    %p119 = scmp.eq.s32.totalorder %s9, 1
    %p120 = por %p118, %p119
    %p121 = scmp.ne.s32.totalorder %s113, %s116
    %p122 = scmp.eq.s32.totalorder %s9, 0
    %p123 = por %p121, %p122
    %p124 = scmp.ne.s32.totalorder %s113, %s116
    %p125 = scmp.eq.s32.totalorder %s14, 1
    %p126 = por %p124, %p125
    %p127 = scmp.ne.s32.totalorder %s116, %s117
    %p128 = scmp.eq.s32.totalorder %s14, 0
    %p129 = por %p127, %p128
    %p130 = scmp.ne.s32.totalorder %s116, %s117
    %p131 = scmp.eq.s32.totalorder %s15, 1
    %p132 = por %p130, %p131
    %p134 = scmp.ne.s32.totalorder %s117, %s133
    %p135 = scmp.eq.s32.totalorder %s15, 0
    %p136 = por %p134, %p135
    %p137 = scmp.le.s32.totalorder 1, %s9
    %p138 = scmp.lt.s32.totalorder %s9, 3
    %p139 = pnand %p137, %p138
    %p140 = pneg %p139
    // Predicated region
    $region9: #{transformer_block_forward.15} parent=5 // pred_check
      _
    $region10: #{transformer_block_forward.15} parent=5 // pred_check_branch
      %142 = sbr.rel (%p139) target = $region12
    $region11: #{transformer_block_forward.15} parent=5 // pred_region
      %s143 = ssub.s32 %s9, 1
      // Predicated region
      $region13: #{transformer_block_forward.15} parent=11 // pred_check
        %p144 = pneg %p73
      $region14: #{transformer_block_forward.15} parent=11 // pred_check_branch
        %146 = sbr.rel (%p144) target = $region16
      $region15: #{transformer_block_forward.15} parent=11 // pred_region
        %p147 = scmp.lt.s32.totalorder %s19, 0
        %s148 = scalar_select %p147, %s19, 0
        %s149 = smul.addr %s148, 4
        %s150 = scalar_lea.vmem %s1, %s149
      $region16: #{transformer_block_forward.15} parent=11 // pred_fallthru
        _
    $region12: #{transformer_block_forward.15} parent=5 // pred_fallthru
      _
    %p151 = scmp.lt.s32.totalorder %s9, 2
    // Predicated region
    $region17: #{transformer_block_forward.15} parent=5 // pred_check
      %p152 = pneg %p151
    $region18: #{transformer_block_forward.15} parent=5 // pred_check_branch
      %154 = sbr.rel (%p152) target = $region20
    $region19: #{transformer_block_forward.15} parent=5 // pred_region
      // Predicated region
      $region21: #{transformer_block_forward.15} parent=19 // pred_check
        %p155 = pneg %p41
      $region22: #{transformer_block_forward.15} parent=19 // pred_check_branch
        %157 = sbr.rel (%p155) target = $region24
      $region23: #{transformer_block_forward.15} parent=19 // pred_region
        %s158 = smul.u32 32, %s16
        %p159 = scmp.lt.s32.totalorder %s158, 63
        %s160 = scalar_select %p159, %s158, 63
        %s161 = smul.addr %s160, 8
        %s162 = scalar_lea.vmem %s0, %s161
        %s163 = smul.u32 32, %s16
      $region24: #{transformer_block_forward.15} parent=19 // pred_fallthru
        _
      // Predicated region
      $region25: #{transformer_block_forward.15} parent=19 // pred_check
        %p164 = pneg %p95
      $region26: #{transformer_block_forward.15} parent=19 // pred_check_branch
        %166 = sbr.rel (%p164) target = $region28
      $region27: #{transformer_block_forward.15} parent=19 // pred_region
        %s167 = smul.u32 32, %s16
        %p168 = scmp.lt.s32.totalorder %s167, 63
        %s169 = scalar_select %p168, %s167, 63
        %p170 = scmp.lt.s32.totalorder %s17, 0
        %s171 = scalar_select %p170, %s17, 0
        %s172 = sadd.s32 %s171, %s169
        %s173 = smul.addr %s172, 8
        %s174 = scalar_lea.vmem %s2, %s173
        %s175 = smul.u32 32, %s16
      $region28: #{transformer_block_forward.15} parent=19 // pred_fallthru
        _
    $region20: #{transformer_block_forward.15} parent=5 // pred_fallthru
      _
    %p176 = scmp.le.s32.totalorder 1, %s9
    %p177 = scmp.lt.s32.totalorder %s9, 3
    %p178 = pnand %p176, %p177
    %p179 = pneg %p178
    // Predicated region
    $region29: #{transformer_block_forward.15} parent=5 // pred_check
      _
    $region30: #{transformer_block_forward.15} parent=5 // pred_check_branch
      %181 = sbr.rel (%p178) target = $region32
    $region31: #{transformer_block_forward.15} parent=5 // pred_region
      %s182 = ssub.s32 %s9, 1
      %s183 = smul.u32 32, %s18
      %p184 = scmp.lt.s32.totalorder %s183, 63
      %s185 = scalar_select %p184, %s183, 63
      %s186 = smul.addr %s185, 8
      %s187 = scalar_lea.vmem %s0, %s186
      %p188 = pneg %p47
      %p189 = pneg %p44
      %p190 = scmp.lt.s32.totalorder %s19, 0
      %s191 = scalar_select %p190, %s19, 0
      %s192 = smul.addr %s191, 4
      %s193 = scalar_lea.vmem %s1, %s192
      %p194 = pneg %p73
      %p195 = pneg %p70
      %s196 = smul.u32 32, %s18
      %p197 = scmp.lt.s32.totalorder %s196, 63
      %s198 = scalar_select %p197, %s196, 63
      %p199 = scmp.lt.s32.totalorder %s19, 0
      %s200 = scalar_select %p199, %s19, 0
      %s201 = sadd.s32 %s200, %s198
      %s202 = smul.addr %s201, 8
      %s203 = scalar_lea.vmem %s2, %s202
      %p204 = pneg %p101
      %p205 = pneg %p98
      %p206 = pneg %p129
      %p207 = pneg %p126
      %s208 = smul.u32 32, %s18
      %p209 = scmp.lt.s32.totalorder %s208, 63
      %s210 = scalar_select %p209, %s208, 63
      %p211 = scmp.lt.s32.totalorder %s19, 0
      %s212 = scalar_select %p211, %s19, 0
      %s213 = sadd.s32 %s212, %s210
      %s214 = smul.addr %s213, 8
      %s215 = scalar_lea.vmem %s3, %s214
      %s216 = smul.u32 32, %s18
      %p217 = scmp.lt.s32.totalorder %s216, 63
      %s218 = scalar_select %p217, %s216, 63
      %s219 = smul.addr %s218, 8
      %s220 = scalar_lea.vmem %s0, %s219
      %s221 = smul.u32 32, %s18
      %p222 = scmp.lt.s32.totalorder %s19, 0
      %s223 = scalar_select %p222, %s19, 0
      %s224 = smul.addr %s223, 4
      %s225 = scalar_lea.vmem %s1, %s224
      %s226 = smul.u32 32, %s18
      %p227 = scmp.lt.s32.totalorder %s226, 63
      %s228 = scalar_select %p227, %s226, 63
      %p229 = scmp.lt.s32.totalorder %s19, 0
      %s230 = scalar_select %p229, %s19, 0
      %s231 = sadd.s32 %s230, %s228
      %s232 = smul.addr %s231, 8
      %s233 = scalar_lea.vmem %s2, %s232
      %s234 = smul.u32 32, %s18
      %s235 = smul.u32 32, %s18
      %p236 = scmp.lt.s32.totalorder %s235, 63
      %s237 = scalar_select %p236, %s235, 63
      %p238 = scmp.lt.s32.totalorder %s19, 0
      %s239 = scalar_select %p238, %s19, 0
      %s240 = sadd.s32 %s239, %s237
      %s241 = smul.addr %s240, 8
      %s242 = scalar_lea.vmem %s3, %s241
      %s243 = smul.u32 32, %s18
      %v244 = vld [vmem:[%s220] sm:$0xff]
      %v245 = vld [vmem:[%s220 + $0x8] sm:$0xff]
      %v246 = vld [vmem:[%s220 + $0x10] sm:$0xff]
      %v247 = vld [vmem:[%s220 + $0x18] sm:$0xff]
      %v248 = vld [vmem:[%s220 + $0x20] sm:$0xff]
      %v249 = vld [vmem:[%s220 + $0x28] sm:$0xff]
      %v250 = vld [vmem:[%s220 + $0x30] sm:$0xff]
      %v251 = vld [vmem:[%s220 + $0x38] sm:$0xff]
      %v252 = vld [vmem:[%s220 + $0x40] sm:$0xff]
      %v253 = vld [vmem:[%s220 + $0x48] sm:$0xff]
      %v254 = vld [vmem:[%s220 + $0x50] sm:$0xff]
      %v255 = vld [vmem:[%s220 + $0x58] sm:$0xff]
      %v256 = vld [vmem:[%s220 + $0x60] sm:$0xff]
      %v257 = vld [vmem:[%s220 + $0x68] sm:$0xff]
      %v258 = vld [vmem:[%s220 + $0x70] sm:$0xff]
      %v259 = vld [vmem:[%s220 + $0x78] sm:$0xff]
      %v260 = vld [vmem:[%s220 + $0x80] sm:$0xff]
      %v261 = vld [vmem:[%s220 + $0x88] sm:$0xff]
      %v262 = vld [vmem:[%s220 + $0x90] sm:$0xff]
      %v263 = vld [vmem:[%s220 + $0x98] sm:$0xff]
      %v264 = vld [vmem:[%s220 + $0xa0] sm:$0xff]
      %v265 = vld [vmem:[%s220 + $0xa8] sm:$0xff]
      %v266 = vld [vmem:[%s220 + $0xb0] sm:$0xff]
      %v267 = vld [vmem:[%s220 + $0xb8] sm:$0xff]
      %v268 = vld [vmem:[%s220 + $0xc0] sm:$0xff]
      %v269 = vld [vmem:[%s220 + $0xc8] sm:$0xff]
      %v270 = vld [vmem:[%s220 + $0xd0] sm:$0xff]
      %v271 = vld [vmem:[%s220 + $0xd8] sm:$0xff]
      %v272 = vld [vmem:[%s220 + $0xe0] sm:$0xff]
      %v273 = vld [vmem:[%s220 + $0xe8] sm:$0xff]
      %v274 = vld [vmem:[%s220 + $0xf0] sm:$0xff]
      %v275 = vld [vmem:[%s220 + $0xf8] sm:$0xff]
      %v276 = vpack.c.bf16 %v245, %v244
      %v277 = vpack.c.bf16 %v247, %v246
      %v278 = vpack.c.bf16 %v249, %v248
      %v279 = vpack.c.bf16 %v251, %v250
      %v280 = vpack.c.bf16 %v253, %v252
      %v281 = vpack.c.bf16 %v255, %v254
      %v282 = vpack.c.bf16 %v257, %v256
      %v283 = vpack.c.bf16 %v259, %v258
      %v284 = vpack.c.bf16 %v261, %v260
      %v285 = vpack.c.bf16 %v263, %v262
      %v286 = vpack.c.bf16 %v265, %v264
      %v287 = vpack.c.bf16 %v267, %v266
      %v288 = vpack.c.bf16 %v269, %v268
      %v289 = vpack.c.bf16 %v271, %v270
      %v290 = vpack.c.bf16 %v273, %v272
      %v291 = vpack.c.bf16 %v275, %v274
      %v292 = vld [vmem:[%s225] sm:$0xf]
      %v293 = vld [vmem:[%s225 + $0x4] sm:$0xf]
      %v294 = vld [vmem:[%s225 + $0x8] sm:$0xf]
      %v295 = vld [vmem:[%s225 + $0xc] sm:$0xf]
      %v296 = vld [vmem:[%s225 + $0x10] sm:$0xf]
      %v297 = vld [vmem:[%s225 + $0x14] sm:$0xf]
      %v298 = vld [vmem:[%s225 + $0x18] sm:$0xf]
      %v299 = vld [vmem:[%s225 + $0x1c] sm:$0xf]
      %v300 = vld [vmem:[%s225 + $0x20] sm:$0xf]
      %v301 = vld [vmem:[%s225 + $0x24] sm:$0xf]
      %v302 = vld [vmem:[%s225 + $0x28] sm:$0xf]
      %v303 = vld [vmem:[%s225 + $0x2c] sm:$0xf]
      %v304 = vld [vmem:[%s225 + $0x30] sm:$0xf]
      %v305 = vld [vmem:[%s225 + $0x34] sm:$0xf]
      %v306 = vld [vmem:[%s225 + $0x38] sm:$0xf]
      %v307 = vld [vmem:[%s225 + $0x3c] sm:$0xf]
      %v308 = vld [vmem:[%s233] sm:$0xff]
      %v309 = vld [vmem:[%s233 + $0x8] sm:$0xff]
      %v310 = vld [vmem:[%s233 + $0x10] sm:$0xff]
      %v311 = vld [vmem:[%s233 + $0x18] sm:$0xff]
      %v312 = vld [vmem:[%s233 + $0x20] sm:$0xff]
      %v313 = vld [vmem:[%s233 + $0x28] sm:$0xff]
      %v314 = vld [vmem:[%s233 + $0x30] sm:$0xff]
      %v315 = vld [vmem:[%s233 + $0x38] sm:$0xff]
      %v316 = vld [vmem:[%s233 + $0x40] sm:$0xff]
      %v317 = vld [vmem:[%s233 + $0x48] sm:$0xff]
      %v318 = vld [vmem:[%s233 + $0x50] sm:$0xff]
      %v319 = vld [vmem:[%s233 + $0x58] sm:$0xff]
      %v320 = vld [vmem:[%s233 + $0x60] sm:$0xff]
      %v321 = vld [vmem:[%s233 + $0x68] sm:$0xff]
      %v322 = vld [vmem:[%s233 + $0x70] sm:$0xff]
      %v323 = vld [vmem:[%s233 + $0x78] sm:$0xff]
      %v324 = vld [vmem:[%s233 + $0x80] sm:$0xff]
      %v325 = vld [vmem:[%s233 + $0x88] sm:$0xff]
      %v326 = vld [vmem:[%s233 + $0x90] sm:$0xff]
      %v327 = vld [vmem:[%s233 + $0x98] sm:$0xff]
      %v328 = vld [vmem:[%s233 + $0xa0] sm:$0xff]
      %v329 = vld [vmem:[%s233 + $0xa8] sm:$0xff]
      %v330 = vld [vmem:[%s233 + $0xb0] sm:$0xff]
      %v331 = vld [vmem:[%s233 + $0xb8] sm:$0xff]
      %v332 = vld [vmem:[%s233 + $0xc0] sm:$0xff]
      %v333 = vld [vmem:[%s233 + $0xc8] sm:$0xff]
      %v334 = vld [vmem:[%s233 + $0xd0] sm:$0xff]
      %v335 = vld [vmem:[%s233 + $0xd8] sm:$0xff]
      %v336 = vld [vmem:[%s233 + $0xe0] sm:$0xff]
      %v337 = vld [vmem:[%s233 + $0xe8] sm:$0xff]
      %v338 = vld [vmem:[%s233 + $0xf0] sm:$0xff]
      %v339 = vld [vmem:[%s233 + $0xf8] sm:$0xff]
      %v356 = vunpack.c.l.b16 %v292
      %v357 = vunpack.c.l.b16 %v293
      %v358 = vunpack.c.l.b16 %v294
      %v359 = vunpack.c.l.b16 %v295
      %v360 = vunpack.c.l.b16 %v296
      %v361 = vunpack.c.l.b16 %v297
      %v362 = vunpack.c.l.b16 %v298
      %v363 = vunpack.c.l.b16 %v299
      %v364 = vunpack.c.l.b16 %v300
      %v365 = vunpack.c.l.b16 %v301
      %v366 = vunpack.c.l.b16 %v302
      %v367 = vunpack.c.l.b16 %v303
      %v368 = vunpack.c.l.b16 %v304
      %v369 = vunpack.c.l.b16 %v305
      %v370 = vunpack.c.l.b16 %v306
      %v371 = vunpack.c.l.b16 %v307
      %v372 = vpack.c.b16 %v357, %v356
      %v373 = vpack.c.b16 %v359, %v358
      %v374 = vpack.c.b16 %v361, %v360
      %v375 = vpack.c.b16 %v363, %v362
      %v376 = vpack.c.b16 %v365, %v364
      %v377 = vpack.c.b16 %v367, %v366
      %v378 = vpack.c.b16 %v369, %v368
      %v379 = vpack.c.b16 %v371, %v370
      %388 = vmatpush.bf16.msra.mxu0 %v379
      %389 = vmatpush.bf16.msra.mxu0 %v378
      %390 = vmatpush.bf16.msra.mxu0 %v377
      %391 = vmatpush.bf16.msra.mxu0 %v376
      %392 = vmatpush.bf16.msra.mxu0 %v375
      %393 = vmatpush.bf16.msra.mxu0 %v374
      %394 = vmatpush.bf16.msra.mxu0 %v373
      %395 = vmatpush.bf16.msra.mxu0 %v372
      %396 = vmatmul.bf16.gmra.mxu0 %v276
      %v397 = vpop.f32.mrf.mxu0
      %v398 = vadd.f32 %v308, %v397
      %v399 = vpop.f32.mrf.mxu0
      %v400 = vadd.f32 %v309, %v399
      %401 = vmatmul.bf16.gmra.mxu0 %v277
      %v402 = vpop.f32.mrf.mxu0
      %v403 = vadd.f32 %v310, %v402
      %v404 = vpop.f32.mrf.mxu0
      %v405 = vadd.f32 %v311, %v404
      %406 = vmatmul.bf16.gmra.mxu0 %v278
      %v407 = vpop.f32.mrf.mxu0
      %v408 = vadd.f32 %v312, %v407
      %v409 = vpop.f32.mrf.mxu0
      %v410 = vadd.f32 %v313, %v409
      %411 = vmatmul.bf16.gmra.mxu0 %v279
      %v412 = vpop.f32.mrf.mxu0
      %v413 = vadd.f32 %v314, %v412
      %v414 = vpop.f32.mrf.mxu0
      %v415 = vadd.f32 %v315, %v414
      %416 = vmatmul.bf16.gmra.mxu0 %v280
      %v417 = vpop.f32.mrf.mxu0
      %v418 = vadd.f32 %v316, %v417
      %v419 = vpop.f32.mrf.mxu0
      %v420 = vadd.f32 %v317, %v419
      %421 = vmatmul.bf16.gmra.mxu0 %v281
      %v422 = vpop.f32.mrf.mxu0
      %v423 = vadd.f32 %v318, %v422
      %v424 = vpop.f32.mrf.mxu0
      %v425 = vadd.f32 %v319, %v424
      %426 = vmatmul.bf16.gmra.mxu0 %v282
      %v427 = vpop.f32.mrf.mxu0
      %v428 = vadd.f32 %v320, %v427
      %v429 = vpop.f32.mrf.mxu0
      %v430 = vadd.f32 %v321, %v429
      %431 = vmatmul.bf16.gmra.mxu0 %v283
      %v432 = vpop.f32.mrf.mxu0
      %v433 = vadd.f32 %v322, %v432
      %v434 = vpop.f32.mrf.mxu0
      %v435 = vadd.f32 %v323, %v434
      %436 = vmatmul.bf16.gmra.mxu0 %v284
      %v437 = vpop.f32.mrf.mxu0
      %v438 = vadd.f32 %v324, %v437
      %v439 = vpop.f32.mrf.mxu0
      %v440 = vadd.f32 %v325, %v439
      %441 = vmatmul.bf16.gmra.mxu0 %v285
      %v442 = vpop.f32.mrf.mxu0
      %v443 = vadd.f32 %v326, %v442
      %v444 = vpop.f32.mrf.mxu0
      %v445 = vadd.f32 %v327, %v444
      %446 = vmatmul.bf16.gmra.mxu0 %v286
      %v447 = vpop.f32.mrf.mxu0
      %v448 = vadd.f32 %v328, %v447
      %v449 = vpop.f32.mrf.mxu0
      %v450 = vadd.f32 %v329, %v449
      %451 = vmatmul.bf16.gmra.mxu0 %v287
      %v452 = vpop.f32.mrf.mxu0
      %v453 = vadd.f32 %v330, %v452
      %v454 = vpop.f32.mrf.mxu0
      %v455 = vadd.f32 %v331, %v454
      %456 = vmatmul.bf16.gmra.mxu0 %v288
      %v457 = vpop.f32.mrf.mxu0
      %v458 = vadd.f32 %v332, %v457
      %v459 = vpop.f32.mrf.mxu0
      %v460 = vadd.f32 %v333, %v459
      %461 = vmatmul.bf16.gmra.mxu0 %v289
      %v462 = vpop.f32.mrf.mxu0
      %v463 = vadd.f32 %v334, %v462
      %v464 = vpop.f32.mrf.mxu0
      %v465 = vadd.f32 %v335, %v464
      %466 = vmatmul.bf16.gmra.mxu0 %v290
      %v467 = vpop.f32.mrf.mxu0
      %v468 = vadd.f32 %v336, %v467
      %v469 = vpop.f32.mrf.mxu0
      %v470 = vadd.f32 %v337, %v469
      %471 = vmatmul.bf16.gmra.mxu0 %v291
      %v472 = vpop.f32.mrf.mxu0
      %v473 = vadd.f32 %v338, %v472
      %v474 = vpop.f32.mrf.mxu0
      %v475 = vadd.f32 %v339, %v474
      %476 = vdwg.mxu0
      %477 = vst [vmem:[%s242] sm:$0xff] %v398
      %478 = vst [vmem:[%s242 + $0x8] sm:$0xff] %v400
      %479 = vst [vmem:[%s242 + $0x10] sm:$0xff] %v403
      %480 = vst [vmem:[%s242 + $0x18] sm:$0xff] %v405
      %481 = vst [vmem:[%s242 + $0x20] sm:$0xff] %v408
      %482 = vst [vmem:[%s242 + $0x28] sm:$0xff] %v410
      %483 = vst [vmem:[%s242 + $0x30] sm:$0xff] %v413
      %484 = vst [vmem:[%s242 + $0x38] sm:$0xff] %v415
      %485 = vst [vmem:[%s242 + $0x40] sm:$0xff] %v418
      %486 = vst [vmem:[%s242 + $0x48] sm:$0xff] %v420
      %487 = vst [vmem:[%s242 + $0x50] sm:$0xff] %v423
      %488 = vst [vmem:[%s242 + $0x58] sm:$0xff] %v425
      %489 = vst [vmem:[%s242 + $0x60] sm:$0xff] %v428
      %490 = vst [vmem:[%s242 + $0x68] sm:$0xff] %v430
      %491 = vst [vmem:[%s242 + $0x70] sm:$0xff] %v433
      %492 = vst [vmem:[%s242 + $0x78] sm:$0xff] %v435
      %493 = vst [vmem:[%s242 + $0x80] sm:$0xff] %v438
      %494 = vst [vmem:[%s242 + $0x88] sm:$0xff] %v440
      %495 = vst [vmem:[%s242 + $0x90] sm:$0xff] %v443
      %496 = vst [vmem:[%s242 + $0x98] sm:$0xff] %v445
      %497 = vst [vmem:[%s242 + $0xa0] sm:$0xff] %v448
      %498 = vst [vmem:[%s242 + $0xa8] sm:$0xff] %v450
      %499 = vst [vmem:[%s242 + $0xb0] sm:$0xff] %v453
      %500 = vst [vmem:[%s242 + $0xb8] sm:$0xff] %v455
      %501 = vst [vmem:[%s242 + $0xc0] sm:$0xff] %v458
      %502 = vst [vmem:[%s242 + $0xc8] sm:$0xff] %v460
      %503 = vst [vmem:[%s242 + $0xd0] sm:$0xff] %v463
      %504 = vst [vmem:[%s242 + $0xd8] sm:$0xff] %v465
      %505 = vst [vmem:[%s242 + $0xe0] sm:$0xff] %v468
      %506 = vst [vmem:[%s242 + $0xe8] sm:$0xff] %v470
      %507 = vst [vmem:[%s242 + $0xf0] sm:$0xff] %v473
      %508 = vst [vmem:[%s242 + $0xf8] sm:$0xff] %v475
      %s509 = smul.u32 32, %s18
      %p510 = scmp.lt.s32.totalorder %s509, 63
      %s511 = scalar_select %p510, %s509, 63
      %p512 = scmp.lt.s32.totalorder %s19, 0
      %s513 = scalar_select %p512, %s19, 0
      %s514 = sadd.s32 %s513, %s511
      %s515 = smul.addr %s514, 8
      %s516 = scalar_lea.vmem %s3, %s515
      // Predicated region
      $region33: #{transformer_block_forward.15} parent=31 // pred_check
        %p517 = pneg %p126
      $region34: #{transformer_block_forward.15} parent=31 // pred_check_branch
        %519 = sbr.rel (%p517) target = $region36
      $region35: #{transformer_block_forward.15} parent=31 // pred_region
        %s520 = smul.u32 32, %s18
      $region36: #{transformer_block_forward.15} parent=31 // pred_fallthru
        _
    $region32: #{transformer_block_forward.15} parent=5 // pred_fallthru
      _
    %p521 = scmp.le.s32.totalorder 2, %s9
    // Predicated region
    $region37: #{transformer_block_forward.15} parent=5 // pred_check
      %p522 = pneg %p521
    $region38: #{transformer_block_forward.15} parent=5 // pred_check_branch
      %524 = sbr.rel (%p522) target = $region40
    $region39: #{transformer_block_forward.15} parent=5 // pred_region
      %s525 = ssub.s32 %s9, 2
      // Predicated region
      $region41: #{transformer_block_forward.15} parent=39 // pred_check
        %p526 = pneg %p132
      $region42: #{transformer_block_forward.15} parent=39 // pred_check_branch
        %528 = sbr.rel (%p526) target = $region44
      $region43: #{transformer_block_forward.15} parent=39 // pred_region
        %s529 = smul.u32 32, %s20
        %p530 = scmp.lt.s32.totalorder %s529, 63
        %s531 = scalar_select %p530, %s529, 63
        %p532 = scmp.lt.s32.totalorder %s21, 0
        %s533 = scalar_select %p532, %s21, 0
        %s534 = sadd.s32 %s533, %s531
        %s535 = smul.addr %s534, 8
        %s536 = scalar_lea.vmem %s3, %s535
      $region44: #{transformer_block_forward.15} parent=39 // pred_fallthru
        _
    $region40: #{transformer_block_forward.15} parent=5 // pred_fallthru
      _
  $region6: #{transformer_block_forward.15} parent=0 // loop_footer
    %s13 = sadd.s32 1, %s9
  $region7: #{transformer_block_forward.15} parent=0 // loop_footer_branch
    %8 = sbr.rel target = $region3
  $region8: #{transformer_block_forward.15} parent=0 // loop_exit
    _

// kernel: transformer_block_forward.13
$region0: #{transformer_block_forward.13}
  #allocation0 [shape = 'u32[]', space=smem, size = 0x4, offset = 0x4, fixed_abs, tag = 'smem constant byte address 0x4 - core index']
  #allocation1 [shape = 'u32[72,128]{1,0:T(1,128)}', space=vmem, size = 0x9000, scoped, tag = 'internal scratch']
  %s0 = inlined_call_operand.vmem [shape: f32[2,256,128], index: 0, kind: input, shape index: {}]
  %s1 = inlined_call_operand.vmem [shape: f32[2,256,128], index: 1, kind: output, shape index: {}]
  %s2 = sld [smem:[#allocation0]]
  $region37: #{transformer_block_forward.13} parent=0
    _
  %s4 = ssub.s32 1, %s2
  %s5 = scalar_select 0, %s4, %s2
  loop: start=0, step=1, limit=4
  $region2: #{transformer_block_forward.13} parent=0 // loop_pre_header
    _
  $region3: #{transformer_block_forward.13} parent=0 // loop_header
    %s7 = sphi 0, %s11
    %p8 = scmp.ge.s32.totalorder %s7, 4
    %s17 = sphi 0, %s19
    %s20 = sphi 0, %s17
    %s21 = sphi 0, %s20
    %s37 = sphi 0, %s21
    %s43 = sphi 0, %s45
    %s46 = sphi 0, %s43
    %s47 = sphi 0, %s46
    %s63 = sphi 0, %s47
  $region4: #{transformer_block_forward.13} parent=0 // loop_header_branch
    %10 = sbr.rel (%p8) target = $region8
  $region5: #{transformer_block_forward.13} parent=0 // loop_body
    %s12 = ssub.s32 %s7, 1
    %s13 = ssub.s32 %s7, 2
    %s14 = sadd.s32 %s7, 1
    %s15 = ssub.s32 %s7, %s14
    %p16 = scmp.eq.s32.totalorder %s15, 0
    %s18 = sadd.s32 %s17, 1
    %s19 = scalar_select %p16, %s17, %s18
    %p22 = pneg %p16
    %p23 = scmp.eq.s32.totalorder %s7, 1
    %p24 = por %p22, %p23
    %p25 = scmp.ne.s32.totalorder %s17, %s20
    %p26 = scmp.eq.s32.totalorder %s7, 0
    %p27 = por %p25, %p26
    %p28 = scmp.ne.s32.totalorder %s17, %s20
    %p29 = scmp.eq.s32.totalorder %s12, 1
    %p30 = por %p28, %p29
    %p31 = scmp.ne.s32.totalorder %s20, %s21
    %p32 = scmp.eq.s32.totalorder %s12, 0
    %p33 = por %p31, %p32
    %p34 = scmp.ne.s32.totalorder %s20, %s21
    %p35 = scmp.eq.s32.totalorder %s13, 1
    %p36 = por %p34, %p35
    %p38 = scmp.ne.s32.totalorder %s21, %s37
    %p39 = scmp.eq.s32.totalorder %s13, 0
    %p40 = por %p38, %p39
    %s41 = ssub.s32 %s7, %s14
    %p42 = scmp.eq.s32.totalorder %s41, 0
    %s44 = sadd.s32 %s43, 1
    %s45 = scalar_select %p42, %s43, %s44
    %p48 = pneg %p42
    %p49 = scmp.eq.s32.totalorder %s7, 1
    %p50 = por %p48, %p49
    %p51 = scmp.ne.s32.totalorder %s43, %s46
    %p52 = scmp.eq.s32.totalorder %s7, 0
    %p53 = por %p51, %p52
    %p54 = scmp.ne.s32.totalorder %s43, %s46
    %p55 = scmp.eq.s32.totalorder %s12, 1
    %p56 = por %p54, %p55
    %p57 = scmp.ne.s32.totalorder %s46, %s47
    %p58 = scmp.eq.s32.totalorder %s12, 0
    %p59 = por %p57, %p58
    %p60 = scmp.ne.s32.totalorder %s46, %s47
    %p61 = scmp.eq.s32.totalorder %s13, 1
    %p62 = por %p60, %p61
    %p64 = scmp.ne.s32.totalorder %s47, %s63
    %p65 = scmp.eq.s32.totalorder %s13, 0
    %p66 = por %p64, %p65
    %p67 = scmp.le.s32.totalorder 1, %s7
    %p68 = scmp.lt.s32.totalorder %s7, 3
    %p69 = pnand %p67, %p68
    %p70 = pneg %p69
    // Predicated region
    $region9: #{transformer_block_forward.13} parent=5 // pred_check
      _
    $region10: #{transformer_block_forward.13} parent=5 // pred_check_branch
      %72 = sbr.rel (%p69) target = $region12
    $region11: #{transformer_block_forward.13} parent=5 // pred_region
      %s73 = ssub.s32 %s7, 1
    $region12: #{transformer_block_forward.13} parent=5 // pred_fallthru
      _
    %p74 = scmp.lt.s32.totalorder %s7, 2
    // Predicated region
    $region13: #{transformer_block_forward.13} parent=5 // pred_check
      %p75 = pneg %p74
    $region14: #{transformer_block_forward.13} parent=5 // pred_check_branch
      %77 = sbr.rel (%p75) target = $region16
    $region15: #{transformer_block_forward.13} parent=5 // pred_region
      // Predicated region
      $region17: #{transformer_block_forward.13} parent=15 // pred_check
        %p78 = pneg %p27
      $region18: #{transformer_block_forward.13} parent=15 // pred_check_branch
        %80 = sbr.rel (%p78) target = $region20
      $region19: #{transformer_block_forward.13} parent=15 // pred_region
        %p81 = scmp.lt.s32.totalorder %s7, 1
        %s82 = scalar_select %p81, %s7, 1
        %s83 = smul.addr %s82, 32
        %s84 = smul.addr %s83, 8
        %s85 = scalar_lea.vmem %s0, %s84
      $region20: #{transformer_block_forward.13} parent=15 // pred_fallthru
        _
    $region16: #{transformer_block_forward.13} parent=5 // pred_fallthru
      _
    %p86 = scmp.le.s32.totalorder 1, %s7
    %p87 = scmp.lt.s32.totalorder %s7, 3
    %p88 = pnand %p86, %p87
    %p89 = pneg %p88
    // Predicated region
    $region21: #{transformer_block_forward.13} parent=5 // pred_check
      _
    $region22: #{transformer_block_forward.13} parent=5 // pred_check_branch
      %91 = sbr.rel (%p88) target = $region24
    $region23: #{transformer_block_forward.13} parent=5 // pred_region
      %s92 = ssub.s32 %s7, 1
      %p93 = scmp.lt.s32.totalorder %s12, 1
      %s94 = scalar_select %p93, %s12, 1
      %s95 = smul.addr %s94, 32
      %s96 = smul.addr %s95, 8
      %s97 = scalar_lea.vmem %s0, %s96
      %p98 = pneg %p33
      %p99 = pneg %p30
      %p100 = pneg %p59
      %p101 = pneg %p56
      %p102 = scmp.lt.s32.totalorder %s12, 1
      %s103 = scalar_select %p102, %s12, 1
      %s104 = smul.addr %s103, 32
      %s105 = smul.addr %s104, 8
      %s106 = scalar_lea.vmem %s1, %s105
      %p107 = scmp.lt.s32.totalorder %s12, 1
      %s108 = scalar_select %p107, %s12, 1
      %s109 = smul.addr %s108, 32
      %s110 = smul.addr %s109, 8
      %s111 = scalar_lea.vmem %s0, %s110
      %p112 = scmp.lt.s32.totalorder %s12, 1
      %s113 = scalar_select %p112, %s12, 1
      %s114 = smul.addr %s113, 32
      %s115 = smul.addr %s114, 8
      %s116 = scalar_lea.vmem %s1, %s115
      %v117 = vld [vmem:[%s111] sm:$0xff]
      %v118 = vld [vmem:[%s111 + $0x8] sm:$0xff]
      %v119 = vld [vmem:[%s111 + $0x10] sm:$0xff]
      %v120 = vld [vmem:[%s111 + $0x18] sm:$0xff]
      %v121 = vld [vmem:[%s111 + $0x20] sm:$0xff]
      %v122 = vld [vmem:[%s111 + $0x28] sm:$0xff]
      %v123 = vld [vmem:[%s111 + $0x30] sm:$0xff]
      %v124 = vld [vmem:[%s111 + $0x38] sm:$0xff]
      %v125 = vld [vmem:[%s111 + $0x40] sm:$0xff]
      %v126 = vld [vmem:[%s111 + $0x48] sm:$0xff]
      %v127 = vld [vmem:[%s111 + $0x50] sm:$0xff]
      %v128 = vld [vmem:[%s111 + $0x58] sm:$0xff]
      %v129 = vld [vmem:[%s111 + $0x60] sm:$0xff]
      %v130 = vld [vmem:[%s111 + $0x68] sm:$0xff]
      %v131 = vld [vmem:[%s111 + $0x70] sm:$0xff]
      %v132 = vld [vmem:[%s111 + $0x78] sm:$0xff]
      %v133 = vld [vmem:[%s111 + $0x80] sm:$0xff]
      %v134 = vld [vmem:[%s111 + $0x88] sm:$0xff]
      %v135 = vld [vmem:[%s111 + $0x90] sm:$0xff]
      %v136 = vld [vmem:[%s111 + $0x98] sm:$0xff]
      %v137 = vld [vmem:[%s111 + $0xa0] sm:$0xff]
      %v138 = vld [vmem:[%s111 + $0xa8] sm:$0xff]
      %v139 = vld [vmem:[%s111 + $0xb0] sm:$0xff]
      %v140 = vld [vmem:[%s111 + $0xb8] sm:$0xff]
      %v141 = vld [vmem:[%s111 + $0xc0] sm:$0xff]
      %v142 = vld [vmem:[%s111 + $0xc8] sm:$0xff]
      %v143 = vld [vmem:[%s111 + $0xd0] sm:$0xff]
      %v144 = vld [vmem:[%s111 + $0xd8] sm:$0xff]
      %v145 = vld [vmem:[%s111 + $0xe0] sm:$0xff]
      %v146 = vld [vmem:[%s111 + $0xe8] sm:$0xff]
      %v147 = vld [vmem:[%s111 + $0xf0] sm:$0xff]
      %v148 = vld [vmem:[%s111 + $0xf8] sm:$0xff]
      %v149 = vmul.f32 %v117, 0.35355338
      %v150 = vmul.f32 %v118, 0.35355338
      %v151 = vmul.f32 %v119, 0.35355338
      %v152 = vmul.f32 %v120, 0.35355338
      %v153 = vmul.f32 %v121, 0.35355338
      %v154 = vmul.f32 %v122, 0.35355338
      %v155 = vmul.f32 %v123, 0.35355338
      %v156 = vmul.f32 %v124, 0.35355338
      %v157 = vmul.f32 %v125, 0.35355338
      %v158 = vmul.f32 %v126, 0.35355338
      %v159 = vmul.f32 %v127, 0.35355338
      %v160 = vmul.f32 %v128, 0.35355338
      %v161 = vmul.f32 %v129, 0.35355338
      %v162 = vmul.f32 %v130, 0.35355338
      %v163 = vmul.f32 %v131, 0.35355338
      %v164 = vmul.f32 %v132, 0.35355338
      %v165 = vmul.f32 %v133, 0.35355338
      %v166 = vmul.f32 %v134, 0.35355338
      %v167 = vmul.f32 %v135, 0.35355338
      %v168 = vmul.f32 %v136, 0.35355338
      %v169 = vmul.f32 %v137, 0.35355338
      %v170 = vmul.f32 %v138, 0.35355338
      %v171 = vmul.f32 %v139, 0.35355338
      %v172 = vmul.f32 %v140, 0.35355338
      %v173 = vmul.f32 %v141, 0.35355338
      %v174 = vmul.f32 %v142, 0.35355338
      %v175 = vmul.f32 %v143, 0.35355338
      %v176 = vmul.f32 %v144, 0.35355338
      %v177 = vmul.f32 %v145, 0.35355338
      %v178 = vmul.f32 %v146, 0.35355338
      %v179 = vmul.f32 %v147, 0.35355338
      %v180 = vmul.f32 %v148, 0.35355338
      %v181 = vpack.c.bf16 %v150, %v149
      %v182 = vpack.c.bf16 %v152, %v151
      %v183 = vpack.c.bf16 %v154, %v153
      %v184 = vpack.c.bf16 %v156, %v155
      %v185 = vpack.c.bf16 %v158, %v157
      %v186 = vpack.c.bf16 %v160, %v159
      %v187 = vpack.c.bf16 %v162, %v161
      %v188 = vpack.c.bf16 %v164, %v163
      %v189 = vpack.c.bf16 %v166, %v165
      %v190 = vpack.c.bf16 %v168, %v167
      %v191 = vpack.c.bf16 %v170, %v169
      %v192 = vpack.c.bf16 %v172, %v171
      %v193 = vpack.c.bf16 %v174, %v173
      %v194 = vpack.c.bf16 %v176, %v175
      %v195 = vpack.c.bf16 %v178, %v177
      %v196 = vpack.c.bf16 %v180, %v179
      %v197 = vpack.c.bf16 %v118, %v117
      %v198 = vpack.c.bf16 %v120, %v119
      %v199 = vpack.c.bf16 %v122, %v121
      %v200 = vpack.c.bf16 %v124, %v123
      %v201 = vpack.c.bf16 %v126, %v125
      %v202 = vpack.c.bf16 %v128, %v127
      %v203 = vpack.c.bf16 %v130, %v129
      %v204 = vpack.c.bf16 %v132, %v131
      %v205 = vpack.c.bf16 %v134, %v133
      %v206 = vpack.c.bf16 %v136, %v135
      %v207 = vpack.c.bf16 %v138, %v137
      %v208 = vpack.c.bf16 %v140, %v139
      %v209 = vpack.c.bf16 %v142, %v141
      %v210 = vpack.c.bf16 %v144, %v143
      %v211 = vpack.c.bf16 %v146, %v145
      %v212 = vpack.c.bf16 %v148, %v147
      %229 = vrot.lane.b32.xlu0 %v197, 96
      %v230 = vpop.permute.xlu0 %229
      %231 = vrot.lane.b32.xlu0 %v198, 96
      %v232 = vpop.permute.xlu0 %231
      %233 = vrot.lane.b32.xlu0 %v199, 96
      %v234 = vpop.permute.xlu0 %233
      %235 = vrot.lane.b32.xlu0 %v200, 96
      %v236 = vpop.permute.xlu0 %235
      %237 = vrot.lane.b32.xlu0 %v201, 96
      %v238 = vpop.permute.xlu0 %237
      %239 = vrot.lane.b32.xlu0 %v202, 96
      %v240 = vpop.permute.xlu0 %239
      %241 = vrot.lane.b32.xlu0 %v203, 96
      %v242 = vpop.permute.xlu0 %241
      %243 = vrot.lane.b32.xlu0 %v204, 96
      %v244 = vpop.permute.xlu0 %243
      %245 = vrot.lane.b32.xlu0 %v205, 96
      %v246 = vpop.permute.xlu0 %245
      %247 = vrot.lane.b32.xlu0 %v206, 96
      %v248 = vpop.permute.xlu0 %247
      %249 = vrot.lane.b32.xlu0 %v207, 96
      %v250 = vpop.permute.xlu0 %249
      %251 = vrot.lane.b32.xlu0 %v208, 96
      %v252 = vpop.permute.xlu0 %251
      %253 = vrot.lane.b32.xlu0 %v209, 96
      %v254 = vpop.permute.xlu0 %253
      %255 = vrot.lane.b32.xlu0 %v210, 96
      %v256 = vpop.permute.xlu0 %255
      %257 = vrot.lane.b32.xlu0 %v211, 96
      %v258 = vpop.permute.xlu0 %257
      %259 = vrot.lane.b32.xlu0 %v212, 96
      %v260 = vpop.permute.xlu0 %259
      %vm261 = vcmask 64512
      %v263 = vsel %vm261, %v181, 0
      %v266 = vsel %vm261, %v182, 0
      %v269 = vsel %vm261, %v183, 0
      %v272 = vsel %vm261, %v184, 0
      %v275 = vsel %vm261, %v185, 0
      %v278 = vsel %vm261, %v186, 0
      %v281 = vsel %vm261, %v187, 0
      %v284 = vsel %vm261, %v188, 0
      %v287 = vsel %vm261, %v189, 0
      %v290 = vsel %vm261, %v190, 0
      %v293 = vsel %vm261, %v191, 0
      %v296 = vsel %vm261, %v192, 0
      %v299 = vsel %vm261, %v193, 0
      %v302 = vsel %vm261, %v194, 0
      %v305 = vsel %vm261, %v195, 0
      %v308 = vsel %vm261, %v196, 0
      %v311 = vsel %vm261, %v230, 0
      %v314 = vsel %vm261, %v232, 0
      %v317 = vsel %vm261, %v234, 0
      %v320 = vsel %vm261, %v236, 0
      %v323 = vsel %vm261, %v238, 0
      %v326 = vsel %vm261, %v240, 0
      %v329 = vsel %vm261, %v242, 0
      %v332 = vsel %vm261, %v244, 0
      %v335 = vsel %vm261, %v246, 0
      %v338 = vsel %vm261, %v248, 0
      %v341 = vsel %vm261, %v250, 0
      %v344 = vsel %vm261, %v252, 0
      %v347 = vsel %vm261, %v254, 0
      %v350 = vsel %vm261, %v256, 0
      %v353 = vsel %vm261, %v258, 0
      %v356 = vsel %vm261, %v260, 0
      %358 = vmatpush.bf16.xpose.msra.mxu0 %v332
      %359 = vmatpush.bf16.xpose.msra.mxu0 %v329
      %360 = vmatpush.bf16.xpose.msra.mxu0 %v326
      %361 = vmatpush.bf16.xpose.msra.mxu0 %v323
      %362 = vmatpush.bf16.xpose.msra.mxu0 %v320
      %363 = vmatpush.bf16.xpose.msra.mxu0 %v317
      %364 = vmatpush.bf16.xpose.msra.mxu0 %v314
      %365 = vmatpush.bf16.xpose.msra.mxu0 %v311
      %366 = vmatmul.bf16.gmra.mxu0 %v263
      %v367 = vpop.f32.mrf.mxu0
      %v368 = vadd.f32 0.0, %v367
      %v369 = vpop.f32.mrf.mxu0
      %v370 = vadd.f32 0.0, %v369
      %371 = vmatmul.bf16.gmra.mxu0 %v266
      %v372 = vpop.f32.mrf.mxu0
      %v373 = vadd.f32 0.0, %v372
      %v374 = vpop.f32.mrf.mxu0
      %v375 = vadd.f32 0.0, %v374
      %376 = vmatmul.bf16.gmra.mxu0 %v269
      %v377 = vpop.f32.mrf.mxu0
      %v378 = vadd.f32 0.0, %v377
      %v379 = vpop.f32.mrf.mxu0
      %v380 = vadd.f32 0.0, %v379
      %381 = vmatmul.bf16.gmra.mxu0 %v272
      %v382 = vpop.f32.mrf.mxu0
      %v383 = vadd.f32 0.0, %v382
      %v384 = vpop.f32.mrf.mxu0
      %v385 = vadd.f32 0.0, %v384
      %386 = vmatmul.bf16.gmra.mxu0 %v275
      %v387 = vpop.f32.mrf.mxu0
      %v388 = vadd.f32 0.0, %v387
      %v389 = vpop.f32.mrf.mxu0
      %v390 = vadd.f32 0.0, %v389
      %391 = vmatmul.bf16.gmra.mxu0 %v278
      %v392 = vpop.f32.mrf.mxu0
      %v393 = vadd.f32 0.0, %v392
      %v394 = vpop.f32.mrf.mxu0
      %v395 = vadd.f32 0.0, %v394
      %396 = vmatmul.bf16.gmra.mxu0 %v281
      %v397 = vpop.f32.mrf.mxu0
      %v398 = vadd.f32 0.0, %v397
      %v399 = vpop.f32.mrf.mxu0
      %v400 = vadd.f32 0.0, %v399
      %401 = vmatmul.bf16.gmra.mxu0 %v284
      %v402 = vpop.f32.mrf.mxu0
      %v403 = vadd.f32 0.0, %v402
      %v404 = vpop.f32.mrf.mxu0
      %v405 = vadd.f32 0.0, %v404
      %406 = vmatmul.bf16.gmra.mxu0 %v287
      %v407 = vpop.f32.mrf.mxu0
      %v408 = vadd.f32 0.0, %v407
      %v409 = vpop.f32.mrf.mxu0
      %v410 = vadd.f32 0.0, %v409
      %411 = vmatmul.bf16.gmra.mxu0 %v290
      %v412 = vpop.f32.mrf.mxu0
      %v413 = vadd.f32 0.0, %v412
      %v414 = vpop.f32.mrf.mxu0
      %v415 = vadd.f32 0.0, %v414
      %416 = vmatmul.bf16.gmra.mxu0 %v293
      %v417 = vpop.f32.mrf.mxu0
      %v418 = vadd.f32 0.0, %v417
      %v419 = vpop.f32.mrf.mxu0
      %v420 = vadd.f32 0.0, %v419
      %421 = vmatmul.bf16.gmra.mxu0 %v296
      %v422 = vpop.f32.mrf.mxu0
      %v423 = vadd.f32 0.0, %v422
      %v424 = vpop.f32.mrf.mxu0
      %v425 = vadd.f32 0.0, %v424
      %426 = vmatmul.bf16.gmra.mxu0 %v299
      %v427 = vpop.f32.mrf.mxu0
      %v428 = vadd.f32 0.0, %v427
      %v429 = vpop.f32.mrf.mxu0
      %v430 = vadd.f32 0.0, %v429
      %431 = vmatmul.bf16.gmra.mxu0 %v302
      %v432 = vpop.f32.mrf.mxu0
      %v433 = vadd.f32 0.0, %v432
      %v434 = vpop.f32.mrf.mxu0
      %v435 = vadd.f32 0.0, %v434
      %436 = vmatmul.bf16.gmra.mxu0 %v305
      %v437 = vpop.f32.mrf.mxu0
      %v438 = vadd.f32 0.0, %v437
      %v439 = vpop.f32.mrf.mxu0
      %v440 = vadd.f32 0.0, %v439
      %441 = vmatmul.bf16.gmra.mxu0 %v308
      %v442 = vpop.f32.mrf.mxu0
      %v443 = vadd.f32 0.0, %v442
      %v444 = vpop.f32.mrf.mxu0
      %v445 = vadd.f32 0.0, %v444
      %446 = vdwg.mxu0
      %447 = vmatpush.bf16.xpose.msra.mxu0 %v356
      %448 = vmatpush.bf16.xpose.msra.mxu0 %v353
      %449 = vmatpush.bf16.xpose.msra.mxu0 %v350
      %450 = vmatpush.bf16.xpose.msra.mxu0 %v347
      %451 = vmatpush.bf16.xpose.msra.mxu0 %v344
      %452 = vmatpush.bf16.xpose.msra.mxu0 %v341
      %453 = vmatpush.bf16.xpose.msra.mxu0 %v338
      %454 = vmatpush.bf16.xpose.msra.mxu0 %v335
      %455 = vmatmul.bf16.gmra.mxu0 %v263
      %v456 = vpop.f32.mrf.mxu0
      %v457 = vadd.f32 0.0, %v456
      %v458 = vpop.f32.mrf.mxu0
      %v459 = vadd.f32 0.0, %v458
      %460 = vmatmul.bf16.gmra.mxu0 %v266
      %v461 = vpop.f32.mrf.mxu0
      %v462 = vadd.f32 0.0, %v461
      %v463 = vpop.f32.mrf.mxu0
      %v464 = vadd.f32 0.0, %v463
      %465 = vmatmul.bf16.gmra.mxu0 %v269
      %v466 = vpop.f32.mrf.mxu0
      %v467 = vadd.f32 0.0, %v466
      %v468 = vpop.f32.mrf.mxu0
      %v469 = vadd.f32 0.0, %v468
      %470 = vmatmul.bf16.gmra.mxu0 %v272
      %v471 = vpop.f32.mrf.mxu0
      %v472 = vadd.f32 0.0, %v471
      %v473 = vpop.f32.mrf.mxu0
      %v474 = vadd.f32 0.0, %v473
      %475 = vmatmul.bf16.gmra.mxu0 %v275
      %v476 = vpop.f32.mrf.mxu0
      %v477 = vadd.f32 0.0, %v476
      %v478 = vpop.f32.mrf.mxu0
      %v479 = vadd.f32 0.0, %v478
      %480 = vmatmul.bf16.gmra.mxu0 %v278
      %v481 = vpop.f32.mrf.mxu0
      %v482 = vadd.f32 0.0, %v481
      %v483 = vpop.f32.mrf.mxu0
      %v484 = vadd.f32 0.0, %v483
      %485 = vmatmul.bf16.gmra.mxu0 %v281
      %v486 = vpop.f32.mrf.mxu0
      %v487 = vadd.f32 0.0, %v486
      %v488 = vpop.f32.mrf.mxu0
      %v489 = vadd.f32 0.0, %v488
      %490 = vmatmul.bf16.gmra.mxu0 %v284
      %v491 = vpop.f32.mrf.mxu0
      %v492 = vadd.f32 0.0, %v491
      %v493 = vpop.f32.mrf.mxu0
      %v494 = vadd.f32 0.0, %v493
      %495 = vmatmul.bf16.gmra.mxu0 %v287
      %v496 = vpop.f32.mrf.mxu0
      %v497 = vadd.f32 0.0, %v496
      %v498 = vpop.f32.mrf.mxu0
      %v499 = vadd.f32 0.0, %v498
      %500 = vmatmul.bf16.gmra.mxu0 %v290
      %v501 = vpop.f32.mrf.mxu0
      %v502 = vadd.f32 0.0, %v501
      %v503 = vpop.f32.mrf.mxu0
      %v504 = vadd.f32 0.0, %v503
      %505 = vmatmul.bf16.gmra.mxu0 %v293
      %v506 = vpop.f32.mrf.mxu0
      %v507 = vadd.f32 0.0, %v506
      %v508 = vpop.f32.mrf.mxu0
      %v509 = vadd.f32 0.0, %v508
      %510 = vmatmul.bf16.gmra.mxu0 %v296
      %v511 = vpop.f32.mrf.mxu0
      %v512 = vadd.f32 0.0, %v511
      %v513 = vpop.f32.mrf.mxu0
      %v514 = vadd.f32 0.0, %v513
      %515 = vmatmul.bf16.gmra.mxu0 %v299
      %v516 = vpop.f32.mrf.mxu0
      %v517 = vadd.f32 0.0, %v516
      %v518 = vpop.f32.mrf.mxu0
      %v519 = vadd.f32 0.0, %v518
      %520 = vmatmul.bf16.gmra.mxu0 %v302
      %v521 = vpop.f32.mrf.mxu0
      %v522 = vadd.f32 0.0, %v521
      %v523 = vpop.f32.mrf.mxu0
      %v524 = vadd.f32 0.0, %v523
      %525 = vmatmul.bf16.gmra.mxu0 %v305
      %v526 = vpop.f32.mrf.mxu0
      %v527 = vadd.f32 0.0, %v526
      %v528 = vpop.f32.mrf.mxu0
      %v529 = vadd.f32 0.0, %v528
      %530 = vmatmul.bf16.gmra.mxu0 %v308
      %v531 = vpop.f32.mrf.mxu0
      %v532 = vadd.f32 0.0, %v531
      %v533 = vpop.f32.mrf.mxu0
      %v534 = vadd.f32 0.0, %v533
      %535 = vdwg.mxu0
      %v536 = vmax.f32 %v368, %v457
      %537 = vmax.xlane.f32.xlu0 %v536
      %v538 = vpop.xlane.xlu0 %537
      %v539 = vmax.f32 %v370, %v459
      %540 = vmax.xlane.f32.xlu0 %v539
      %v541 = vpop.xlane.xlu0 %540
      %v542 = vmax.f32 %v373, %v462
      %543 = vmax.xlane.f32.xlu0 %v542
      %v544 = vpop.xlane.xlu0 %543
      %v545 = vmax.f32 %v375, %v464
      %546 = vmax.xlane.f32.xlu0 %v545
      %v547 = vpop.xlane.xlu0 %546
      %v548 = vmax.f32 %v378, %v467
      %549 = vmax.xlane.f32.xlu0 %v548
      %v550 = vpop.xlane.xlu0 %549
      %v551 = vmax.f32 %v380, %v469
      %552 = vmax.xlane.f32.xlu0 %v551
      %v553 = vpop.xlane.xlu0 %552
      %v554 = vmax.f32 %v383, %v472
      %555 = vmax.xlane.f32.xlu0 %v554
      %v556 = vpop.xlane.xlu0 %555
      %v557 = vmax.f32 %v385, %v474
      %558 = vmax.xlane.f32.xlu0 %v557
      %v559 = vpop.xlane.xlu0 %558
      %v560 = vmax.f32 %v388, %v477
      %561 = vmax.xlane.f32.xlu0 %v560
      %v562 = vpop.xlane.xlu0 %561
      %v563 = vmax.f32 %v390, %v479
      %564 = vmax.xlane.f32.xlu0 %v563
      %v565 = vpop.xlane.xlu0 %564
      %v566 = vmax.f32 %v393, %v482
      %567 = vmax.xlane.f32.xlu0 %v566
      %v568 = vpop.xlane.xlu0 %567
      %v569 = vmax.f32 %v395, %v484
      %570 = vmax.xlane.f32.xlu0 %v569
      %v571 = vpop.xlane.xlu0 %570
      %v572 = vmax.f32 %v398, %v487
      %573 = vmax.xlane.f32.xlu0 %v572
      %v574 = vpop.xlane.xlu0 %573
      %v575 = vmax.f32 %v400, %v489
      %576 = vmax.xlane.f32.xlu0 %v575
      %v577 = vpop.xlane.xlu0 %576
      %v578 = vmax.f32 %v403, %v492
      %579 = vmax.xlane.f32.xlu0 %v578
      %v580 = vpop.xlane.xlu0 %579
      %v581 = vmax.f32 %v405, %v494
      %582 = vmax.xlane.f32.xlu0 %v581
      %v583 = vpop.xlane.xlu0 %582
      %v584 = vmax.f32 %v408, %v497
      %585 = vmax.xlane.f32.xlu0 %v584
      %v586 = vpop.xlane.xlu0 %585
      %v587 = vmax.f32 %v410, %v499
      %588 = vmax.xlane.f32.xlu0 %v587
      %v589 = vpop.xlane.xlu0 %588
      %v590 = vmax.f32 %v413, %v502
      %591 = vmax.xlane.f32.xlu0 %v590
      %v592 = vpop.xlane.xlu0 %591
      %v593 = vmax.f32 %v415, %v504
      %594 = vmax.xlane.f32.xlu0 %v593
      %v595 = vpop.xlane.xlu0 %594
      %v596 = vmax.f32 %v418, %v507
      %597 = vmax.xlane.f32.xlu0 %v596
      %v598 = vpop.xlane.xlu0 %597
      %v599 = vmax.f32 %v420, %v509
      %600 = vmax.xlane.f32.xlu0 %v599
      %v601 = vpop.xlane.xlu0 %600
      %v602 = vmax.f32 %v423, %v512
      %603 = vmax.xlane.f32.xlu0 %v602
      %v604 = vpop.xlane.xlu0 %603
      %v605 = vmax.f32 %v425, %v514
      %606 = vmax.xlane.f32.xlu0 %v605
      %v607 = vpop.xlane.xlu0 %606
      %v608 = vmax.f32 %v428, %v517
      %609 = vmax.xlane.f32.xlu0 %v608
      %v610 = vpop.xlane.xlu0 %609
      %v611 = vmax.f32 %v430, %v519
      %612 = vmax.xlane.f32.xlu0 %v611
      %v613 = vpop.xlane.xlu0 %612
      %v614 = vmax.f32 %v433, %v522
      %615 = vmax.xlane.f32.xlu0 %v614
      %v616 = vpop.xlane.xlu0 %615
      %v617 = vmax.f32 %v435, %v524
      %618 = vmax.xlane.f32.xlu0 %v617
      %v619 = vpop.xlane.xlu0 %618
      %v620 = vmax.f32 %v438, %v527
      %621 = vmax.xlane.f32.xlu0 %v620
      %v622 = vpop.xlane.xlu0 %621
      %v623 = vmax.f32 %v440, %v529
      %624 = vmax.xlane.f32.xlu0 %v623
      %v625 = vpop.xlane.xlu0 %624
      %v626 = vmax.f32 %v443, %v532
      %627 = vmax.xlane.f32.xlu0 %v626
      %v628 = vpop.xlane.xlu0 %627
      %v629 = vmax.f32 %v445, %v534
      %630 = vmax.xlane.f32.xlu0 %v629
      %v631 = vpop.xlane.xlu0 %630
      %v632 = vsub.f32 %v368, %v538
      %v633 = vsub.f32 %v457, %v538
      %v634 = vsub.f32 %v370, %v541
      %v635 = vsub.f32 %v459, %v541
      %v636 = vsub.f32 %v373, %v544
      %v637 = vsub.f32 %v462, %v544
      %v638 = vsub.f32 %v375, %v547
      %v639 = vsub.f32 %v464, %v547
      %v640 = vsub.f32 %v378, %v550
      %v641 = vsub.f32 %v467, %v550
      %v642 = vsub.f32 %v380, %v553
      %v643 = vsub.f32 %v469, %v553
      %v644 = vsub.f32 %v383, %v556
      %v645 = vsub.f32 %v472, %v556
      %v646 = vsub.f32 %v385, %v559
      %v647 = vsub.f32 %v474, %v559
      %v648 = vsub.f32 %v388, %v562
      %v649 = vsub.f32 %v477, %v562
      %v650 = vsub.f32 %v390, %v565
      %v651 = vsub.f32 %v479, %v565
      %v652 = vsub.f32 %v393, %v568
      %v653 = vsub.f32 %v482, %v568
      %v654 = vsub.f32 %v395, %v571
      %v655 = vsub.f32 %v484, %v571
      %v656 = vsub.f32 %v398, %v574
      %v657 = vsub.f32 %v487, %v574
      %v658 = vsub.f32 %v400, %v577
      %v659 = vsub.f32 %v489, %v577
      %v660 = vsub.f32 %v403, %v580
      %v661 = vsub.f32 %v492, %v580
      %v662 = vsub.f32 %v405, %v583
      %v663 = vsub.f32 %v494, %v583
      %v664 = vsub.f32 %v408, %v586
      %v665 = vsub.f32 %v497, %v586
      %v666 = vsub.f32 %v410, %v589
      %v667 = vsub.f32 %v499, %v589
      %v668 = vsub.f32 %v413, %v592
      %v669 = vsub.f32 %v502, %v592
      %v670 = vsub.f32 %v415, %v595
      %v671 = vsub.f32 %v504, %v595
      %v672 = vsub.f32 %v418, %v598
      %v673 = vsub.f32 %v507, %v598
      %v674 = vsub.f32 %v420, %v601
      %v675 = vsub.f32 %v509, %v601
      %v676 = vsub.f32 %v423, %v604
      %v677 = vsub.f32 %v512, %v604
      %v678 = vsub.f32 %v425, %v607
      %v679 = vsub.f32 %v514, %v607
      %v680 = vsub.f32 %v428, %v610
      %v681 = vsub.f32 %v517, %v610
      %v682 = vsub.f32 %v430, %v613
      %v683 = vsub.f32 %v519, %v613
      %v684 = vsub.f32 %v433, %v616
      %v685 = vsub.f32 %v522, %v616
      %v686 = vsub.f32 %v435, %v619
      %v687 = vsub.f32 %v524, %v619
      %v688 = vsub.f32 %v438, %v622
      %v689 = vsub.f32 %v527, %v622
      %v690 = vsub.f32 %v440, %v625
      %v691 = vsub.f32 %v529, %v625
      %v692 = vsub.f32 %v443, %v628
      %v693 = vsub.f32 %v532, %v628
      %v694 = vsub.f32 %v445, %v631
      %v695 = vsub.f32 %v534, %v631
      %v696 = vmul.f32 %v632, 1.442695
      %v697 = vpow.pop %v696
      %v698 = vmul.f32 %v633, 1.442695
      %v699 = vpow.pop %v698
      %v700 = vmul.f32 %v634, 1.442695
      %v701 = vpow.pop %v700
      %v702 = vmul.f32 %v635, 1.442695
      %v703 = vpow.pop %v702
      %v704 = vmul.f32 %v636, 1.442695
      %v705 = vpow.pop %v704
      %v706 = vmul.f32 %v637, 1.442695
      %v707 = vpow.pop %v706
      %v708 = vmul.f32 %v638, 1.442695
      %v709 = vpow.pop %v708
      %v710 = vmul.f32 %v639, 1.442695
      %v711 = vpow.pop %v710
      %v712 = vmul.f32 %v640, 1.442695
      %v713 = vpow.pop %v712
      %v714 = vmul.f32 %v641, 1.442695
      %v715 = vpow.pop %v714
      %v716 = vmul.f32 %v642, 1.442695
      %v717 = vpow.pop %v716
      %v718 = vmul.f32 %v643, 1.442695
      %v719 = vpow.pop %v718
      %v720 = vmul.f32 %v644, 1.442695
      %v721 = vpow.pop %v720
      %v722 = vmul.f32 %v645, 1.442695
      %v723 = vpow.pop %v722
      %v724 = vmul.f32 %v646, 1.442695
      %v725 = vpow.pop %v724
      %v726 = vmul.f32 %v647, 1.442695
      %v727 = vpow.pop %v726
      %v728 = vmul.f32 %v648, 1.442695
      %v729 = vpow.pop %v728
      %v730 = vmul.f32 %v649, 1.442695
      %v731 = vpow.pop %v730
      %v732 = vmul.f32 %v650, 1.442695
      %v733 = vpow.pop %v732
      %v734 = vmul.f32 %v651, 1.442695
      %v735 = vpow.pop %v734
      %v736 = vmul.f32 %v652, 1.442695
      %v737 = vpow.pop %v736
      %v738 = vmul.f32 %v653, 1.442695
      %v739 = vpow.pop %v738
      %v740 = vmul.f32 %v654, 1.442695
      %v741 = vpow.pop %v740
      %v742 = vmul.f32 %v655, 1.442695
      %v743 = vpow.pop %v742
      %v744 = vmul.f32 %v656, 1.442695
      %v745 = vpow.pop %v744
      %v746 = vmul.f32 %v657, 1.442695
      %v747 = vpow.pop %v746
      %v748 = vmul.f32 %v658, 1.442695
      %v749 = vpow.pop %v748
      %v750 = vmul.f32 %v659, 1.442695
      %v751 = vpow.pop %v750
      %v752 = vmul.f32 %v660, 1.442695
      %v753 = vpow.pop %v752
      %v754 = vmul.f32 %v661, 1.442695
      %v755 = vpow.pop %v754
      %v756 = vmul.f32 %v662, 1.442695
      %v757 = vpow.pop %v756
      %v758 = vmul.f32 %v663, 1.442695
      %v759 = vpow.pop %v758
      %v760 = vmul.f32 %v664, 1.442695
      %v761 = vpow.pop %v760
      %v762 = vmul.f32 %v665, 1.442695
      %v763 = vpow.pop %v762
      %v764 = vmul.f32 %v666, 1.442695
      %v765 = vpow.pop %v764
      %v766 = vmul.f32 %v667, 1.442695
      %v767 = vpow.pop %v766
      %v768 = vmul.f32 %v668, 1.442695
      %v769 = vpow.pop %v768
      %v770 = vmul.f32 %v669, 1.442695
      %v771 = vpow.pop %v770
      %v772 = vmul.f32 %v670, 1.442695
      %v773 = vpow.pop %v772
      %v774 = vmul.f32 %v671, 1.442695
      %v775 = vpow.pop %v774
      %v776 = vmul.f32 %v672, 1.442695
      %v777 = vpow.pop %v776
      %v778 = vmul.f32 %v673, 1.442695
      %v779 = vpow.pop %v778
      %v780 = vmul.f32 %v674, 1.442695
      %v781 = vpow.pop %v780
      %v782 = vmul.f32 %v675, 1.442695
      %v783 = vpow.pop %v782
      %v784 = vmul.f32 %v676, 1.442695
      %v785 = vpow.pop %v784
      %v786 = vmul.f32 %v677, 1.442695
      %v787 = vpow.pop %v786
      %v788 = vmul.f32 %v678, 1.442695
      %v789 = vpow.pop %v788
      %v790 = vmul.f32 %v679, 1.442695
      %v791 = vpow.pop %v790
      %v792 = vmul.f32 %v680, 1.442695
      %v793 = vpow.pop %v792
      %v794 = vmul.f32 %v681, 1.442695
      %v795 = vpow.pop %v794
      %v796 = vmul.f32 %v682, 1.442695
      %v797 = vpow.pop %v796
      %v798 = vmul.f32 %v683, 1.442695
      %v799 = vpow.pop %v798
      %v800 = vmul.f32 %v684, 1.442695
      %v801 = vpow.pop %v800
      %v802 = vmul.f32 %v685, 1.442695
      %v803 = vpow.pop %v802
      %v804 = vmul.f32 %v686, 1.442695
      %v805 = vpow.pop %v804
      %v806 = vmul.f32 %v687, 1.442695
      %v807 = vpow.pop %v806
      %v808 = vmul.f32 %v688, 1.442695
      %v809 = vpow.pop %v808
      %v810 = vmul.f32 %v689, 1.442695
      %v811 = vpow.pop %v810
      %v812 = vmul.f32 %v690, 1.442695
      %v813 = vpow.pop %v812
      %v814 = vmul.f32 %v691, 1.442695
      %v815 = vpow.pop %v814
      %v816 = vmul.f32 %v692, 1.442695
      %v817 = vpow.pop %v816
      %v818 = vmul.f32 %v693, 1.442695
      %v819 = vpow.pop %v818
      %v820 = vmul.f32 %v694, 1.442695
      %v821 = vpow.pop %v820
      %v822 = vmul.f32 %v695, 1.442695
      %v823 = vpow.pop %v822
      %v824 = vadd.f32 %v697, %v699
      %825 = vadd.xlane.f32.xlu0 %v824
      %v826 = vpop.xlane.xlu0 %825
      %v827 = vadd.f32 %v701, %v703
      %828 = vadd.xlane.f32.xlu0 %v827
      %v829 = vpop.xlane.xlu0 %828
      %v830 = vadd.f32 %v705, %v707
      %831 = vadd.xlane.f32.xlu0 %v830
      %v832 = vpop.xlane.xlu0 %831
      %v833 = vadd.f32 %v709, %v711
      %834 = vadd.xlane.f32.xlu0 %v833
      %v835 = vpop.xlane.xlu0 %834
      %v836 = vadd.f32 %v713, %v715
      %837 = vadd.xlane.f32.xlu0 %v836
      %v838 = vpop.xlane.xlu0 %837
      %v839 = vadd.f32 %v717, %v719
      %840 = vadd.xlane.f32.xlu0 %v839
      %v841 = vpop.xlane.xlu0 %840
      %v842 = vadd.f32 %v721, %v723
      %843 = vadd.xlane.f32.xlu0 %v842
      %v844 = vpop.xlane.xlu0 %843
      %v845 = vadd.f32 %v725, %v727
      %846 = vadd.xlane.f32.xlu0 %v845
      %v847 = vpop.xlane.xlu0 %846
      %v848 = vadd.f32 %v729, %v731
      %849 = vadd.xlane.f32.xlu0 %v848
      %v850 = vpop.xlane.xlu0 %849
      %v851 = vadd.f32 %v733, %v735
      %852 = vadd.xlane.f32.xlu0 %v851
      %v853 = vpop.xlane.xlu0 %852
      %v854 = vadd.f32 %v737, %v739
      %855 = vadd.xlane.f32.xlu0 %v854
      %v856 = vpop.xlane.xlu0 %855
      %v857 = vadd.f32 %v741, %v743
      %858 = vadd.xlane.f32.xlu0 %v857
      %v859 = vpop.xlane.xlu0 %858
      %v860 = vadd.f32 %v745, %v747
      %861 = vadd.xlane.f32.xlu0 %v860
      %v862 = vpop.xlane.xlu0 %861
      %v863 = vadd.f32 %v749, %v751
      %864 = vadd.xlane.f32.xlu0 %v863
      %v865 = vpop.xlane.xlu0 %864
      %v866 = vadd.f32 %v753, %v755
      %867 = vadd.xlane.f32.xlu0 %v866
      %v868 = vpop.xlane.xlu0 %867
      %v869 = vadd.f32 %v757, %v759
      %870 = vadd.xlane.f32.xlu0 %v869
      %v871 = vpop.xlane.xlu0 %870
      %v872 = vadd.f32 %v761, %v763
      %873 = vadd.xlane.f32.xlu0 %v872
      %v874 = vpop.xlane.xlu0 %873
      %v875 = vadd.f32 %v765, %v767
      %876 = vadd.xlane.f32.xlu0 %v875
      %v877 = vpop.xlane.xlu0 %876
      %v878 = vadd.f32 %v769, %v771
      %879 = vadd.xlane.f32.xlu0 %v878
      %v880 = vpop.xlane.xlu0 %879
      %v881 = vadd.f32 %v773, %v775
      %882 = vadd.xlane.f32.xlu0 %v881
      %v883 = vpop.xlane.xlu0 %882
      %v884 = vadd.f32 %v777, %v779
      %885 = vadd.xlane.f32.xlu0 %v884
      %v886 = vpop.xlane.xlu0 %885
      %v887 = vadd.f32 %v781, %v783
      %888 = vadd.xlane.f32.xlu0 %v887
      %v889 = vpop.xlane.xlu0 %888
      %v890 = vadd.f32 %v785, %v787
      %891 = vadd.xlane.f32.xlu0 %v890
      %v892 = vpop.xlane.xlu0 %891
      %v893 = vadd.f32 %v789, %v791
      %894 = vadd.xlane.f32.xlu0 %v893
      %v895 = vpop.xlane.xlu0 %894
      %v896 = vadd.f32 %v793, %v795
      %897 = vadd.xlane.f32.xlu0 %v896
      %v898 = vpop.xlane.xlu0 %897
      %v899 = vadd.f32 %v797, %v799
      %900 = vadd.xlane.f32.xlu0 %v899
      %v901 = vpop.xlane.xlu0 %900
      %v902 = vadd.f32 %v801, %v803
      %903 = vadd.xlane.f32.xlu0 %v902
      %v904 = vpop.xlane.xlu0 %903
      %v905 = vadd.f32 %v805, %v807
      %906 = vadd.xlane.f32.xlu0 %v905
      %v907 = vpop.xlane.xlu0 %906
      %v908 = vadd.f32 %v809, %v811
      %909 = vadd.xlane.f32.xlu0 %v908
      %v910 = vpop.xlane.xlu0 %909
      %v911 = vadd.f32 %v813, %v815
      %912 = vadd.xlane.f32.xlu0 %v911
      %v913 = vpop.xlane.xlu0 %912
      %v914 = vadd.f32 %v817, %v819
      %915 = vadd.xlane.f32.xlu0 %v914
      %v916 = vpop.xlane.xlu0 %915
      %v917 = vadd.f32 %v821, %v823
      %918 = vadd.xlane.f32.xlu0 %v917
      %v919 = vpop.xlane.xlu0 %918
      %v920 = vpack.c.bf16 %v701, %v697
      %v921 = vpack.c.bf16 %v703, %v699
      %v922 = vpack.c.bf16 %v709, %v705
      %v923 = vpack.c.bf16 %v711, %v707
      %v924 = vpack.c.bf16 %v717, %v713
      %v925 = vpack.c.bf16 %v719, %v715
      %v926 = vpack.c.bf16 %v725, %v721
      %v927 = vpack.c.bf16 %v727, %v723
      %v928 = vpack.c.bf16 %v733, %v729
      %v929 = vpack.c.bf16 %v735, %v731
      %v930 = vpack.c.bf16 %v741, %v737
      %v931 = vpack.c.bf16 %v743, %v739
      %v932 = vpack.c.bf16 %v749, %v745
      %v933 = vpack.c.bf16 %v751, %v747
      %v934 = vpack.c.bf16 %v757, %v753
      %v935 = vpack.c.bf16 %v759, %v755
      %v936 = vpack.c.bf16 %v765, %v761
      %v937 = vpack.c.bf16 %v767, %v763
      %v938 = vpack.c.bf16 %v773, %v769
      %v939 = vpack.c.bf16 %v775, %v771
      %v940 = vpack.c.bf16 %v781, %v777
      %v941 = vpack.c.bf16 %v783, %v779
      %v942 = vpack.c.bf16 %v789, %v785
      %v943 = vpack.c.bf16 %v791, %v787
      %v944 = vpack.c.bf16 %v797, %v793
      %v945 = vpack.c.bf16 %v799, %v795
      %v946 = vpack.c.bf16 %v805, %v801
      %v947 = vpack.c.bf16 %v807, %v803
      %v948 = vpack.c.bf16 %v813, %v809
      %v949 = vpack.c.bf16 %v815, %v811
      %v950 = vpack.c.bf16 %v821, %v817
      %v951 = vpack.c.bf16 %v823, %v819
      %952 = vrot.lane.b32.xlu0 %v197, 64
      %v953 = vpop.permute.xlu0 %952
      %954 = vrot.lane.b32.xlu0 %v198, 64
      %v955 = vpop.permute.xlu0 %954
      %956 = vrot.lane.b32.xlu0 %v199, 64
      %v957 = vpop.permute.xlu0 %956
      %958 = vrot.lane.b32.xlu0 %v200, 64
      %v959 = vpop.permute.xlu0 %958
      %960 = vrot.lane.b32.xlu0 %v201, 64
      %v961 = vpop.permute.xlu0 %960
      %962 = vrot.lane.b32.xlu0 %v202, 64
      %v963 = vpop.permute.xlu0 %962
      %964 = vrot.lane.b32.xlu0 %v203, 64
      %v965 = vpop.permute.xlu0 %964
      %966 = vrot.lane.b32.xlu0 %v204, 64
      %v967 = vpop.permute.xlu0 %966
      %968 = vrot.lane.b32.xlu0 %v205, 64
      %v969 = vpop.permute.xlu0 %968
      %970 = vrot.lane.b32.xlu0 %v206, 64
      %v971 = vpop.permute.xlu0 %970
      %972 = vrot.lane.b32.xlu0 %v207, 64
      %v973 = vpop.permute.xlu0 %972
      %974 = vrot.lane.b32.xlu0 %v208, 64
      %v975 = vpop.permute.xlu0 %974
      %976 = vrot.lane.b32.xlu0 %v209, 64
      %v977 = vpop.permute.xlu0 %976
      %978 = vrot.lane.b32.xlu0 %v210, 64
      %v979 = vpop.permute.xlu0 %978
      %980 = vrot.lane.b32.xlu0 %v211, 64
      %v981 = vpop.permute.xlu0 %980
      %982 = vrot.lane.b32.xlu0 %v212, 64
      %v983 = vpop.permute.xlu0 %982
      %1000 = vmatpush.bf16.msra.mxu0 %v967
      %1001 = vmatpush.bf16.msra.mxu0 %v965
      %1002 = vmatpush.bf16.msra.mxu0 %v963
      %1003 = vmatpush.bf16.msra.mxu0 %v961
      %1004 = vmatpush.bf16.msra.mxu0 %v959
      %1005 = vmatpush.bf16.msra.mxu0 %v957
      %1006 = vmatpush.bf16.msra.mxu0 %v955
      %1007 = vmatpush.bf16.msra.mxu0 %v953
      %1008 = vmatmul.bf16.gmra.mxu0 %v920
      %v1009 = vpop.f32.mrf.mxu0
      %v1010 = vadd.f32 0.0, %v1009
      %v1011 = vpop.f32.mrf.mxu0
      %v1012 = vadd.f32 0.0, %v1011
      %1013 = vmatmul.bf16.gmra.mxu0 %v922
      %v1014 = vpop.f32.mrf.mxu0
      %v1015 = vadd.f32 0.0, %v1014
      %v1016 = vpop.f32.mrf.mxu0
      %v1017 = vadd.f32 0.0, %v1016
      %1018 = vmatmul.bf16.gmra.mxu0 %v924
      %v1019 = vpop.f32.mrf.mxu0
      %v1020 = vadd.f32 0.0, %v1019
      %v1021 = vpop.f32.mrf.mxu0
      %v1022 = vadd.f32 0.0, %v1021
      %1023 = vmatmul.bf16.gmra.mxu0 %v926
      %v1024 = vpop.f32.mrf.mxu0
      %v1025 = vadd.f32 0.0, %v1024
      %v1026 = vpop.f32.mrf.mxu0
      %v1027 = vadd.f32 0.0, %v1026
      %1028 = vmatmul.bf16.gmra.mxu0 %v928
      %v1029 = vpop.f32.mrf.mxu0
      %v1030 = vadd.f32 0.0, %v1029
      %v1031 = vpop.f32.mrf.mxu0
      %v1032 = vadd.f32 0.0, %v1031
      %1033 = vmatmul.bf16.gmra.mxu0 %v930
      %v1034 = vpop.f32.mrf.mxu0
      %v1035 = vadd.f32 0.0, %v1034
      %v1036 = vpop.f32.mrf.mxu0
      %v1037 = vadd.f32 0.0, %v1036
      %1038 = vmatmul.bf16.gmra.mxu0 %v932
      %v1039 = vpop.f32.mrf.mxu0
      %v1040 = vadd.f32 0.0, %v1039
      %v1041 = vpop.f32.mrf.mxu0
      %v1042 = vadd.f32 0.0, %v1041
      %1043 = vmatmul.bf16.gmra.mxu0 %v934
      %v1044 = vpop.f32.mrf.mxu0
      %v1045 = vadd.f32 0.0, %v1044
      %v1046 = vpop.f32.mrf.mxu0
      %v1047 = vadd.f32 0.0, %v1046
      %1048 = vmatmul.bf16.gmra.mxu0 %v936
      %v1049 = vpop.f32.mrf.mxu0
      %v1050 = vadd.f32 0.0, %v1049
      %v1051 = vpop.f32.mrf.mxu0
      %v1052 = vadd.f32 0.0, %v1051
      %1053 = vmatmul.bf16.gmra.mxu0 %v938
      %v1054 = vpop.f32.mrf.mxu0
      %v1055 = vadd.f32 0.0, %v1054
      %v1056 = vpop.f32.mrf.mxu0
      %v1057 = vadd.f32 0.0, %v1056
      %1058 = vmatmul.bf16.gmra.mxu0 %v940
      %v1059 = vpop.f32.mrf.mxu0
      %v1060 = vadd.f32 0.0, %v1059
      %v1061 = vpop.f32.mrf.mxu0
      %v1062 = vadd.f32 0.0, %v1061
      %1063 = vmatmul.bf16.gmra.mxu0 %v942
      %v1064 = vpop.f32.mrf.mxu0
      %v1065 = vadd.f32 0.0, %v1064
      %v1066 = vpop.f32.mrf.mxu0
      %v1067 = vadd.f32 0.0, %v1066
      %1068 = vmatmul.bf16.gmra.mxu0 %v944
      %v1069 = vpop.f32.mrf.mxu0
      %v1070 = vadd.f32 0.0, %v1069
      %v1071 = vpop.f32.mrf.mxu0
      %v1072 = vadd.f32 0.0, %v1071
      %1073 = vmatmul.bf16.gmra.mxu0 %v946
      %v1074 = vpop.f32.mrf.mxu0
      %v1075 = vadd.f32 0.0, %v1074
      %v1076 = vpop.f32.mrf.mxu0
      %v1077 = vadd.f32 0.0, %v1076
      %1078 = vmatmul.bf16.gmra.mxu0 %v948
      %v1079 = vpop.f32.mrf.mxu0
      %v1080 = vadd.f32 0.0, %v1079
      %v1081 = vpop.f32.mrf.mxu0
      %v1082 = vadd.f32 0.0, %v1081
      %1083 = vmatmul.bf16.gmra.mxu0 %v950
      %v1084 = vpop.f32.mrf.mxu0
      %v1085 = vadd.f32 0.0, %v1084
      %v1086 = vpop.f32.mrf.mxu0
      %v1087 = vadd.f32 0.0, %v1086
      %1088 = vdwg.mxu0
      %1089 = vmatpush.bf16.msra.mxu0 %v983
      %1090 = vmatpush.bf16.msra.mxu0 %v981
      %1091 = vmatpush.bf16.msra.mxu0 %v979
      %1092 = vmatpush.bf16.msra.mxu0 %v977
      %1093 = vmatpush.bf16.msra.mxu0 %v975
      %1094 = vmatpush.bf16.msra.mxu0 %v973
      %1095 = vmatpush.bf16.msra.mxu0 %v971
      %1096 = vmatpush.bf16.msra.mxu0 %v969
      %1097 = vmatmul.bf16.gmra.mxu0 %v921
      %v1098 = vpop.f32.mrf.mxu0
      %v1099 = vadd.f32 %v1010, %v1098
      %v1100 = vpop.f32.mrf.mxu0
      %v1101 = vadd.f32 %v1012, %v1100
      %1102 = vmatmul.bf16.gmra.mxu0 %v923
      %v1103 = vpop.f32.mrf.mxu0
      %v1104 = vadd.f32 %v1015, %v1103
      %v1105 = vpop.f32.mrf.mxu0
      %v1106 = vadd.f32 %v1017, %v1105
      %1107 = vmatmul.bf16.gmra.mxu0 %v925
      %v1108 = vpop.f32.mrf.mxu0
      %v1109 = vadd.f32 %v1020, %v1108
      %v1110 = vpop.f32.mrf.mxu0
      %v1111 = vadd.f32 %v1022, %v1110
      %1112 = vmatmul.bf16.gmra.mxu0 %v927
      %v1113 = vpop.f32.mrf.mxu0
      %v1114 = vadd.f32 %v1025, %v1113
      %v1115 = vpop.f32.mrf.mxu0
      %v1116 = vadd.f32 %v1027, %v1115
      %1117 = vmatmul.bf16.gmra.mxu0 %v929
      %v1118 = vpop.f32.mrf.mxu0
      %v1119 = vadd.f32 %v1030, %v1118
      %v1120 = vpop.f32.mrf.mxu0
      %v1121 = vadd.f32 %v1032, %v1120
      %1122 = vmatmul.bf16.gmra.mxu0 %v931
      %v1123 = vpop.f32.mrf.mxu0
      %v1124 = vadd.f32 %v1035, %v1123
      %v1125 = vpop.f32.mrf.mxu0
      %v1126 = vadd.f32 %v1037, %v1125
      %1127 = vmatmul.bf16.gmra.mxu0 %v933
      %v1128 = vpop.f32.mrf.mxu0
      %v1129 = vadd.f32 %v1040, %v1128
      %v1130 = vpop.f32.mrf.mxu0
      %v1131 = vadd.f32 %v1042, %v1130
      %1132 = vmatmul.bf16.gmra.mxu0 %v935
      %v1133 = vpop.f32.mrf.mxu0
      %v1134 = vadd.f32 %v1045, %v1133
      %v1135 = vpop.f32.mrf.mxu0
      %v1136 = vadd.f32 %v1047, %v1135
      %1137 = vmatmul.bf16.gmra.mxu0 %v937
      %v1138 = vpop.f32.mrf.mxu0
      %v1139 = vadd.f32 %v1050, %v1138
      %v1140 = vpop.f32.mrf.mxu0
      %v1141 = vadd.f32 %v1052, %v1140
      %1142 = vmatmul.bf16.gmra.mxu0 %v939
      %v1143 = vpop.f32.mrf.mxu0
      %v1144 = vadd.f32 %v1055, %v1143
      %v1145 = vpop.f32.mrf.mxu0
      %v1146 = vadd.f32 %v1057, %v1145
      %1147 = vmatmul.bf16.gmra.mxu0 %v941
      %v1148 = vpop.f32.mrf.mxu0
      %v1149 = vadd.f32 %v1060, %v1148
      %v1150 = vpop.f32.mrf.mxu0
      %v1151 = vadd.f32 %v1062, %v1150
      %1152 = vmatmul.bf16.gmra.mxu0 %v943
      %v1153 = vpop.f32.mrf.mxu0
      %v1154 = vadd.f32 %v1065, %v1153
      %v1155 = vpop.f32.mrf.mxu0
      %v1156 = vadd.f32 %v1067, %v1155
      %1157 = vmatmul.bf16.gmra.mxu0 %v945
      %v1158 = vpop.f32.mrf.mxu0
      %v1159 = vadd.f32 %v1070, %v1158
      %v1160 = vpop.f32.mrf.mxu0
      %v1161 = vadd.f32 %v1072, %v1160
      %1162 = vmatmul.bf16.gmra.mxu0 %v947
      %v1163 = vpop.f32.mrf.mxu0
      %v1164 = vadd.f32 %v1075, %v1163
      %v1165 = vpop.f32.mrf.mxu0
      %v1166 = vadd.f32 %v1077, %v1165
      %1167 = vmatmul.bf16.gmra.mxu0 %v949
      %v1168 = vpop.f32.mrf.mxu0
      %v1169 = vadd.f32 %v1080, %v1168
      %v1170 = vpop.f32.mrf.mxu0
      %v1171 = vadd.f32 %v1082, %v1170
      %1172 = vmatmul.bf16.gmra.mxu0 %v951
      %v1173 = vpop.f32.mrf.mxu0
      %v1174 = vadd.f32 %v1085, %v1173
      %v1175 = vpop.f32.mrf.mxu0
      %v1176 = vadd.f32 %v1087, %v1175
      %1177 = vdwg.mxu0
      %v1178 = vrcp.pop %v826
      %v1179 = vrcp.pop %v829
      %v1180 = vrcp.pop %v832
      %v1181 = vrcp.pop %v835
      %v1182 = vrcp.pop %v838
      %v1183 = vrcp.pop %v841
      %v1184 = vrcp.pop %v844
      %v1185 = vrcp.pop %v847
      %v1186 = vrcp.pop %v850
      %v1187 = vrcp.pop %v853
      %v1188 = vrcp.pop %v856
      %v1189 = vrcp.pop %v859
      %v1190 = vrcp.pop %v862
      %v1191 = vrcp.pop %v865
      %v1192 = vrcp.pop %v868
      %v1193 = vrcp.pop %v871
      %v1194 = vrcp.pop %v874
      %v1195 = vrcp.pop %v877
      %v1196 = vrcp.pop %v880
      %v1197 = vrcp.pop %v883
      %v1198 = vrcp.pop %v886
      %v1199 = vrcp.pop %v889
      %v1200 = vrcp.pop %v892
      %v1201 = vrcp.pop %v895
      %v1202 = vrcp.pop %v898
      %v1203 = vrcp.pop %v901
      %v1204 = vrcp.pop %v904
      %v1205 = vrcp.pop %v907
      %v1206 = vrcp.pop %v910
      %v1207 = vrcp.pop %v913
      %v1208 = vrcp.pop %v916
      %v1209 = vrcp.pop %v919
      %v1210 = vmul.f32 %v1099, %v1178
      %v1211 = vmul.f32 %v1101, %v1179
      %v1212 = vmul.f32 %v1104, %v1180
      %v1213 = vmul.f32 %v1106, %v1181
      %v1214 = vmul.f32 %v1109, %v1182
      %v1215 = vmul.f32 %v1111, %v1183
      %v1216 = vmul.f32 %v1114, %v1184
      %v1217 = vmul.f32 %v1116, %v1185
      %v1218 = vmul.f32 %v1119, %v1186
      %v1219 = vmul.f32 %v1121, %v1187
      %v1220 = vmul.f32 %v1124, %v1188
      %v1221 = vmul.f32 %v1126, %v1189
      %v1222 = vmul.f32 %v1129, %v1190
      %v1223 = vmul.f32 %v1131, %v1191
      %v1224 = vmul.f32 %v1134, %v1192
      %v1225 = vmul.f32 %v1136, %v1193
      %v1226 = vmul.f32 %v1139, %v1194
      %v1227 = vmul.f32 %v1141, %v1195
      %v1228 = vmul.f32 %v1144, %v1196
      %v1229 = vmul.f32 %v1146, %v1197
      %v1230 = vmul.f32 %v1149, %v1198
      %v1231 = vmul.f32 %v1151, %v1199
      %v1232 = vmul.f32 %v1154, %v1200
      %v1233 = vmul.f32 %v1156, %v1201
      %v1234 = vmul.f32 %v1159, %v1202
      %v1235 = vmul.f32 %v1161, %v1203
      %v1236 = vmul.f32 %v1164, %v1204
      %v1237 = vmul.f32 %v1166, %v1205
      %v1238 = vmul.f32 %v1169, %v1206
      %v1239 = vmul.f32 %v1171, %v1207
      %v1240 = vmul.f32 %v1174, %v1208
      %v1241 = vmul.f32 %v1176, %v1209
      %1258 = vrot.lane.b32.xlu0 %v181, 120
      %v1259 = vpop.permute.xlu0 %1258
      %1260 = vrot.lane.b32.xlu0 %v182, 120
      %v1261 = vpop.permute.xlu0 %1260
      %1262 = vrot.lane.b32.xlu0 %v183, 120
      %v1263 = vpop.permute.xlu0 %1262
      %1264 = vrot.lane.b32.xlu0 %v184, 120
      %v1265 = vpop.permute.xlu0 %1264
      %1266 = vrot.lane.b32.xlu0 %v185, 120
      %v1267 = vpop.permute.xlu0 %1266
      %1268 = vrot.lane.b32.xlu0 %v186, 120
      %v1269 = vpop.permute.xlu0 %1268
      %1270 = vrot.lane.b32.xlu0 %v187, 120
      %v1271 = vpop.permute.xlu0 %1270
      %1272 = vrot.lane.b32.xlu0 %v188, 120
      %v1273 = vpop.permute.xlu0 %1272
      %1274 = vrot.lane.b32.xlu0 %v189, 120
      %v1275 = vpop.permute.xlu0 %1274
      %1276 = vrot.lane.b32.xlu0 %v190, 120
      %v1277 = vpop.permute.xlu0 %1276
      %1278 = vrot.lane.b32.xlu0 %v191, 120
      %v1279 = vpop.permute.xlu0 %1278
      %1280 = vrot.lane.b32.xlu0 %v192, 120
      %v1281 = vpop.permute.xlu0 %1280
      %1282 = vrot.lane.b32.xlu0 %v193, 120
      %v1283 = vpop.permute.xlu0 %1282
      %1284 = vrot.lane.b32.xlu0 %v194, 120
      %v1285 = vpop.permute.xlu0 %1284
      %1286 = vrot.lane.b32.xlu0 %v195, 120
      %v1287 = vpop.permute.xlu0 %1286
      %1288 = vrot.lane.b32.xlu0 %v196, 120
      %v1289 = vpop.permute.xlu0 %1288
      %1290 = vrot.lane.b32.xlu0 %v197, 88
      %v1291 = vpop.permute.xlu0 %1290
      %1292 = vrot.lane.b32.xlu0 %v198, 88
      %v1293 = vpop.permute.xlu0 %1292
      %1294 = vrot.lane.b32.xlu0 %v199, 88
      %v1295 = vpop.permute.xlu0 %1294
      %1296 = vrot.lane.b32.xlu0 %v200, 88
      %v1297 = vpop.permute.xlu0 %1296
      %1298 = vrot.lane.b32.xlu0 %v201, 88
      %v1299 = vpop.permute.xlu0 %1298
      %1300 = vrot.lane.b32.xlu0 %v202, 88
      %v1301 = vpop.permute.xlu0 %1300
      %1302 = vrot.lane.b32.xlu0 %v203, 88
      %v1303 = vpop.permute.xlu0 %1302
      %1304 = vrot.lane.b32.xlu0 %v204, 88
      %v1305 = vpop.permute.xlu0 %1304
      %1306 = vrot.lane.b32.xlu0 %v205, 88
      %v1307 = vpop.permute.xlu0 %1306
      %1308 = vrot.lane.b32.xlu0 %v206, 88
      %v1309 = vpop.permute.xlu0 %1308
      %1310 = vrot.lane.b32.xlu0 %v207, 88
      %v1311 = vpop.permute.xlu0 %1310
      %1312 = vrot.lane.b32.xlu0 %v208, 88
      %v1313 = vpop.permute.xlu0 %1312
      %1314 = vrot.lane.b32.xlu0 %v209, 88
      %v1315 = vpop.permute.xlu0 %1314
      %1316 = vrot.lane.b32.xlu0 %v210, 88
      %v1317 = vpop.permute.xlu0 %1316
      %1318 = vrot.lane.b32.xlu0 %v211, 88
      %v1319 = vpop.permute.xlu0 %1318
      %1320 = vrot.lane.b32.xlu0 %v212, 88
      %v1321 = vpop.permute.xlu0 %1320
      %v1323 = vsel %vm261, %v1259, 0
      %v1326 = vsel %vm261, %v1261, 0
      %v1329 = vsel %vm261, %v1263, 0
      %v1332 = vsel %vm261, %v1265, 0
      %v1335 = vsel %vm261, %v1267, 0
      %v1338 = vsel %vm261, %v1269, 0
      %v1341 = vsel %vm261, %v1271, 0
      %v1344 = vsel %vm261, %v1273, 0
      %v1347 = vsel %vm261, %v1275, 0
      %v1350 = vsel %vm261, %v1277, 0
      %v1353 = vsel %vm261, %v1279, 0
      %v1356 = vsel %vm261, %v1281, 0
      %v1359 = vsel %vm261, %v1283, 0
      %v1362 = vsel %vm261, %v1285, 0
      %v1365 = vsel %vm261, %v1287, 0
      %v1368 = vsel %vm261, %v1289, 0
      %v1371 = vsel %vm261, %v1291, 0
      %v1374 = vsel %vm261, %v1293, 0
      %v1377 = vsel %vm261, %v1295, 0
      %v1380 = vsel %vm261, %v1297, 0
      %v1383 = vsel %vm261, %v1299, 0
      %v1386 = vsel %vm261, %v1301, 0
      %v1389 = vsel %vm261, %v1303, 0
      %v1392 = vsel %vm261, %v1305, 0
      %v1395 = vsel %vm261, %v1307, 0
      %v1398 = vsel %vm261, %v1309, 0
      %v1401 = vsel %vm261, %v1311, 0
      %v1404 = vsel %vm261, %v1313, 0
      %v1407 = vsel %vm261, %v1315, 0
      %v1410 = vsel %vm261, %v1317, 0
      %v1413 = vsel %vm261, %v1319, 0
      %v1416 = vsel %vm261, %v1321, 0
      %1418 = vmatpush.bf16.xpose.msra.mxu0 %v1392
      %1419 = vmatpush.bf16.xpose.msra.mxu0 %v1389
      %1420 = vmatpush.bf16.xpose.msra.mxu0 %v1386
      %1421 = vmatpush.bf16.xpose.msra.mxu0 %v1383
      %1422 = vmatpush.bf16.xpose.msra.mxu0 %v1380
      %1423 = vmatpush.bf16.xpose.msra.mxu0 %v1377
      %1424 = vmatpush.bf16.xpose.msra.mxu0 %v1374
      %1425 = vmatpush.bf16.xpose.msra.mxu0 %v1371
      %1426 = vmatmul.bf16.gmra.mxu0 %v1323
      %v1427 = vpop.f32.mrf.mxu0
      %v1428 = vadd.f32 0.0, %v1427
      %v1429 = vpop.f32.mrf.mxu0
      %v1430 = vadd.f32 0.0, %v1429
      %1431 = vmatmul.bf16.gmra.mxu0 %v1326
      %v1432 = vpop.f32.mrf.mxu0
      %v1433 = vadd.f32 0.0, %v1432
      %v1434 = vpop.f32.mrf.mxu0
      %v1435 = vadd.f32 0.0, %v1434
      %1436 = vmatmul.bf16.gmra.mxu0 %v1329
      %v1437 = vpop.f32.mrf.mxu0
      %v1438 = vadd.f32 0.0, %v1437
      %v1439 = vpop.f32.mrf.mxu0
      %v1440 = vadd.f32 0.0, %v1439
      %1441 = vmatmul.bf16.gmra.mxu0 %v1332
      %v1442 = vpop.f32.mrf.mxu0
      %v1443 = vadd.f32 0.0, %v1442
      %v1444 = vpop.f32.mrf.mxu0
      %v1445 = vadd.f32 0.0, %v1444
      %1446 = vmatmul.bf16.gmra.mxu0 %v1335
      %v1447 = vpop.f32.mrf.mxu0
      %v1448 = vadd.f32 0.0, %v1447
      %v1449 = vpop.f32.mrf.mxu0
      %v1450 = vadd.f32 0.0, %v1449
      %1451 = vmatmul.bf16.gmra.mxu0 %v1338
      %v1452 = vpop.f32.mrf.mxu0
      %v1453 = vadd.f32 0.0, %v1452
      %v1454 = vpop.f32.mrf.mxu0
      %v1455 = vadd.f32 0.0, %v1454
      %1456 = vmatmul.bf16.gmra.mxu0 %v1341
      %v1457 = vpop.f32.mrf.mxu0
      %v1458 = vadd.f32 0.0, %v1457
      %v1459 = vpop.f32.mrf.mxu0
      %v1460 = vadd.f32 0.0, %v1459
      %1461 = vmatmul.bf16.gmra.mxu0 %v1344
      %v1462 = vpop.f32.mrf.mxu0
      %v1463 = vadd.f32 0.0, %v1462
      %v1464 = vpop.f32.mrf.mxu0
      %v1465 = vadd.f32 0.0, %v1464
      %1466 = vmatmul.bf16.gmra.mxu0 %v1347
      %v1467 = vpop.f32.mrf.mxu0
      %v1468 = vadd.f32 0.0, %v1467
      %v1469 = vpop.f32.mrf.mxu0
      %v1470 = vadd.f32 0.0, %v1469
      %1471 = vmatmul.bf16.gmra.mxu0 %v1350
      %v1472 = vpop.f32.mrf.mxu0
      %v1473 = vadd.f32 0.0, %v1472
      %v1474 = vpop.f32.mrf.mxu0
      %v1475 = vadd.f32 0.0, %v1474
      %1476 = vmatmul.bf16.gmra.mxu0 %v1353
      %v1477 = vpop.f32.mrf.mxu0
      %v1478 = vadd.f32 0.0, %v1477
      %v1479 = vpop.f32.mrf.mxu0
      %v1480 = vadd.f32 0.0, %v1479
      %1481 = vmatmul.bf16.gmra.mxu0 %v1356
      %v1482 = vpop.f32.mrf.mxu0
      %v1483 = vadd.f32 0.0, %v1482
      %v1484 = vpop.f32.mrf.mxu0
      %v1485 = vadd.f32 0.0, %v1484
      %1486 = vmatmul.bf16.gmra.mxu0 %v1359
      %v1487 = vpop.f32.mrf.mxu0
      %v1488 = vadd.f32 0.0, %v1487
      %v1489 = vpop.f32.mrf.mxu0
      %v1490 = vadd.f32 0.0, %v1489
      %1491 = vmatmul.bf16.gmra.mxu0 %v1362
      %v1492 = vpop.f32.mrf.mxu0
      %v1493 = vadd.f32 0.0, %v1492
      %v1494 = vpop.f32.mrf.mxu0
      %v1495 = vadd.f32 0.0, %v1494
      %1496 = vmatmul.bf16.gmra.mxu0 %v1365
      %v1497 = vpop.f32.mrf.mxu0
      %v1498 = vadd.f32 0.0, %v1497
      %v1499 = vpop.f32.mrf.mxu0
      %v1500 = vadd.f32 0.0, %v1499
      %1501 = vmatmul.bf16.gmra.mxu0 %v1368
      %v1502 = vpop.f32.mrf.mxu0
      %v1503 = vadd.f32 0.0, %v1502
      %v1504 = vpop.f32.mrf.mxu0
      %v1505 = vadd.f32 0.0, %v1504
      %1506 = vdwg.mxu0
      %1507 = vmatpush.bf16.xpose.msra.mxu0 %v1416
      %1508 = vmatpush.bf16.xpose.msra.mxu0 %v1413
      %1509 = vmatpush.bf16.xpose.msra.mxu0 %v1410
      %1510 = vmatpush.bf16.xpose.msra.mxu0 %v1407
      %1511 = vmatpush.bf16.xpose.msra.mxu0 %v1404
      %1512 = vmatpush.bf16.xpose.msra.mxu0 %v1401
      %1513 = vmatpush.bf16.xpose.msra.mxu0 %v1398
      %1514 = vmatpush.bf16.xpose.msra.mxu0 %v1395
      %1515 = vmatmul.bf16.gmra.mxu0 %v1323
      %v1516 = vpop.f32.mrf.mxu0
      %v1517 = vadd.f32 0.0, %v1516
      %v1518 = vpop.f32.mrf.mxu0
      %v1519 = vadd.f32 0.0, %v1518
      %1520 = vmatmul.bf16.gmra.mxu0 %v1326
      %v1521 = vpop.f32.mrf.mxu0
      %v1522 = vadd.f32 0.0, %v1521
      %v1523 = vpop.f32.mrf.mxu0
      %v1524 = vadd.f32 0.0, %v1523
      %1525 = vmatmul.bf16.gmra.mxu0 %v1329
      %v1526 = vpop.f32.mrf.mxu0
      %v1527 = vadd.f32 0.0, %v1526
      %v1528 = vpop.f32.mrf.mxu0
      %v1529 = vadd.f32 0.0, %v1528
      %1530 = vmatmul.bf16.gmra.mxu0 %v1332
      %v1531 = vpop.f32.mrf.mxu0
      %v1532 = vadd.f32 0.0, %v1531
      %v1533 = vpop.f32.mrf.mxu0
      %v1534 = vadd.f32 0.0, %v1533
      %1535 = vmatmul.bf16.gmra.mxu0 %v1335
      %v1536 = vpop.f32.mrf.mxu0
      %v1537 = vadd.f32 0.0, %v1536
      %v1538 = vpop.f32.mrf.mxu0
      %v1539 = vadd.f32 0.0, %v1538
      %1540 = vmatmul.bf16.gmra.mxu0 %v1338
      %v1541 = vpop.f32.mrf.mxu0
      %v1542 = vadd.f32 0.0, %v1541
      %v1543 = vpop.f32.mrf.mxu0
      %v1544 = vadd.f32 0.0, %v1543
      %1545 = vmatmul.bf16.gmra.mxu0 %v1341
      %v1546 = vpop.f32.mrf.mxu0
      %v1547 = vadd.f32 0.0, %v1546
      %v1548 = vpop.f32.mrf.mxu0
      %v1549 = vadd.f32 0.0, %v1548
      %1550 = vmatmul.bf16.gmra.mxu0 %v1344
      %v1551 = vpop.f32.mrf.mxu0
      %v1552 = vadd.f32 0.0, %v1551
      %v1553 = vpop.f32.mrf.mxu0
      %v1554 = vadd.f32 0.0, %v1553
      %1555 = vmatmul.bf16.gmra.mxu0 %v1347
      %v1556 = vpop.f32.mrf.mxu0
      %v1557 = vadd.f32 0.0, %v1556
      %v1558 = vpop.f32.mrf.mxu0
      %v1559 = vadd.f32 0.0, %v1558
      %1560 = vmatmul.bf16.gmra.mxu0 %v1350
      %v1561 = vpop.f32.mrf.mxu0
      %v1562 = vadd.f32 0.0, %v1561
      %v1563 = vpop.f32.mrf.mxu0
      %v1564 = vadd.f32 0.0, %v1563
      %1565 = vmatmul.bf16.gmra.mxu0 %v1353
      %v1566 = vpop.f32.mrf.mxu0
      %v1567 = vadd.f32 0.0, %v1566
      %v1568 = vpop.f32.mrf.mxu0
      %v1569 = vadd.f32 0.0, %v1568
      %1570 = vmatmul.bf16.gmra.mxu0 %v1356
      %v1571 = vpop.f32.mrf.mxu0
      %v1572 = vadd.f32 0.0, %v1571
      %v1573 = vpop.f32.mrf.mxu0
      %v1574 = vadd.f32 0.0, %v1573
      %1575 = vmatmul.bf16.gmra.mxu0 %v1359
      %v1576 = vpop.f32.mrf.mxu0
      %v1577 = vadd.f32 0.0, %v1576
      %v1578 = vpop.f32.mrf.mxu0
      %v1579 = vadd.f32 0.0, %v1578
      %1580 = vmatmul.bf16.gmra.mxu0 %v1362
      %v1581 = vpop.f32.mrf.mxu0
      %v1582 = vadd.f32 0.0, %v1581
      %v1583 = vpop.f32.mrf.mxu0
      %v1584 = vadd.f32 0.0, %v1583
      %1585 = vmatmul.bf16.gmra.mxu0 %v1365
      %v1586 = vpop.f32.mrf.mxu0
      %v1587 = vadd.f32 0.0, %v1586
      %v1588 = vpop.f32.mrf.mxu0
      %v1589 = vadd.f32 0.0, %v1588
      %1590 = vmatmul.bf16.gmra.mxu0 %v1368
      %v1591 = vpop.f32.mrf.mxu0
      %v1592 = vadd.f32 0.0, %v1591
      %v1593 = vpop.f32.mrf.mxu0
      %v1594 = vadd.f32 0.0, %v1593
      %1595 = vdwg.mxu0
      %v1596 = vmax.f32 %v1428, %v1517
      %1597 = vmax.xlane.f32.xlu0 %v1596
      %v1598 = vpop.xlane.xlu0 %1597
      %v1599 = vmax.f32 %v1430, %v1519
      %1600 = vmax.xlane.f32.xlu0 %v1599
      %v1601 = vpop.xlane.xlu0 %1600
      %v1602 = vmax.f32 %v1433, %v1522
      %1603 = vmax.xlane.f32.xlu0 %v1602
      %v1604 = vpop.xlane.xlu0 %1603
      %v1605 = vmax.f32 %v1435, %v1524
      %1606 = vmax.xlane.f32.xlu0 %v1605
      %v1607 = vpop.xlane.xlu0 %1606
      %v1608 = vmax.f32 %v1438, %v1527
      %1609 = vmax.xlane.f32.xlu0 %v1608
      %v1610 = vpop.xlane.xlu0 %1609
      %v1611 = vmax.f32 %v1440, %v1529
      %1612 = vmax.xlane.f32.xlu0 %v1611
      %v1613 = vpop.xlane.xlu0 %1612
      %v1614 = vmax.f32 %v1443, %v1532
      %1615 = vmax.xlane.f32.xlu0 %v1614
      %v1616 = vpop.xlane.xlu0 %1615
      %v1617 = vmax.f32 %v1445, %v1534
      %1618 = vmax.xlane.f32.xlu0 %v1617
      %v1619 = vpop.xlane.xlu0 %1618
      %v1620 = vmax.f32 %v1448, %v1537
      %1621 = vmax.xlane.f32.xlu0 %v1620
      %v1622 = vpop.xlane.xlu0 %1621
      %v1623 = vmax.f32 %v1450, %v1539
      %1624 = vmax.xlane.f32.xlu0 %v1623
      %v1625 = vpop.xlane.xlu0 %1624
      %v1626 = vmax.f32 %v1453, %v1542
      %1627 = vmax.xlane.f32.xlu0 %v1626
      %v1628 = vpop.xlane.xlu0 %1627
      %v1629 = vmax.f32 %v1455, %v1544
      %1630 = vmax.xlane.f32.xlu0 %v1629
      %v1631 = vpop.xlane.xlu0 %1630
      %v1632 = vmax.f32 %v1458, %v1547
      %1633 = vmax.xlane.f32.xlu0 %v1632
      %v1634 = vpop.xlane.xlu0 %1633
      %v1635 = vmax.f32 %v1460, %v1549
      %1636 = vmax.xlane.f32.xlu0 %v1635
      %v1637 = vpop.xlane.xlu0 %1636
      %v1638 = vmax.f32 %v1463, %v1552
      %1639 = vmax.xlane.f32.xlu0 %v1638
      %v1640 = vpop.xlane.xlu0 %1639
      %v1641 = vmax.f32 %v1465, %v1554
      %1642 = vmax.xlane.f32.xlu0 %v1641
      %v1643 = vpop.xlane.xlu0 %1642
      %v1644 = vmax.f32 %v1468, %v1557
      %1645 = vmax.xlane.f32.xlu0 %v1644
      %v1646 = vpop.xlane.xlu0 %1645
      %v1647 = vmax.f32 %v1470, %v1559
      %1648 = vmax.xlane.f32.xlu0 %v1647
      %v1649 = vpop.xlane.xlu0 %1648
      %v1650 = vmax.f32 %v1473, %v1562
      %1651 = vmax.xlane.f32.xlu0 %v1650
      %v1652 = vpop.xlane.xlu0 %1651
      %v1653 = vmax.f32 %v1475, %v1564
      %1654 = vmax.xlane.f32.xlu0 %v1653
      %v1655 = vpop.xlane.xlu0 %1654
      %v1656 = vmax.f32 %v1478, %v1567
      %1657 = vmax.xlane.f32.xlu0 %v1656
      %v1658 = vpop.xlane.xlu0 %1657
      %v1659 = vmax.f32 %v1480, %v1569
      %1660 = vmax.xlane.f32.xlu0 %v1659
      %v1661 = vpop.xlane.xlu0 %1660
      %v1662 = vmax.f32 %v1483, %v1572
      %1663 = vmax.xlane.f32.xlu0 %v1662
      %v1664 = vpop.xlane.xlu0 %1663
      %v1665 = vmax.f32 %v1485, %v1574
      %1666 = vmax.xlane.f32.xlu0 %v1665
      %v1667 = vpop.xlane.xlu0 %1666
      %v1668 = vmax.f32 %v1488, %v1577
      %1669 = vmax.xlane.f32.xlu0 %v1668
      %v1670 = vpop.xlane.xlu0 %1669
      %v1671 = vmax.f32 %v1490, %v1579
      %1672 = vmax.xlane.f32.xlu0 %v1671
      %v1673 = vpop.xlane.xlu0 %1672
      %v1674 = vmax.f32 %v1493, %v1582
      %1675 = vmax.xlane.f32.xlu0 %v1674
      %v1676 = vpop.xlane.xlu0 %1675
      %v1677 = vmax.f32 %v1495, %v1584
      %1678 = vmax.xlane.f32.xlu0 %v1677
      %v1679 = vpop.xlane.xlu0 %1678
      %v1680 = vmax.f32 %v1498, %v1587
      %1681 = vmax.xlane.f32.xlu0 %v1680
      %v1682 = vpop.xlane.xlu0 %1681
      %v1683 = vmax.f32 %v1500, %v1589
      %1684 = vmax.xlane.f32.xlu0 %v1683
      %v1685 = vpop.xlane.xlu0 %1684
      %v1686 = vmax.f32 %v1503, %v1592
      %1687 = vmax.xlane.f32.xlu0 %v1686
      %v1688 = vpop.xlane.xlu0 %1687
      %v1689 = vmax.f32 %v1505, %v1594
      %1690 = vmax.xlane.f32.xlu0 %v1689
      %v1691 = vpop.xlane.xlu0 %1690
      %v1692 = vsub.f32 %v1428, %v1598
      %v1693 = vsub.f32 %v1517, %v1598
      %v1694 = vsub.f32 %v1430, %v1601
      %v1695 = vsub.f32 %v1519, %v1601
      %v1696 = vsub.f32 %v1433, %v1604
      %v1697 = vsub.f32 %v1522, %v1604
      %v1698 = vsub.f32 %v1435, %v1607
      %v1699 = vsub.f32 %v1524, %v1607
      %v1700 = vsub.f32 %v1438, %v1610
      %v1701 = vsub.f32 %v1527, %v1610
      %v1702 = vsub.f32 %v1440, %v1613
      %v1703 = vsub.f32 %v1529, %v1613
      %v1704 = vsub.f32 %v1443, %v1616
      %v1705 = vsub.f32 %v1532, %v1616
      %v1706 = vsub.f32 %v1445, %v1619
      %v1707 = vsub.f32 %v1534, %v1619
      %v1708 = vsub.f32 %v1448, %v1622
      %v1709 = vsub.f32 %v1537, %v1622
      %v1710 = vsub.f32 %v1450, %v1625
      %v1711 = vsub.f32 %v1539, %v1625
      %v1712 = vsub.f32 %v1453, %v1628
      %v1713 = vsub.f32 %v1542, %v1628
      %v1714 = vsub.f32 %v1455, %v1631
      %v1715 = vsub.f32 %v1544, %v1631
      %v1716 = vsub.f32 %v1458, %v1634
      %v1717 = vsub.f32 %v1547, %v1634
      %v1718 = vsub.f32 %v1460, %v1637
      %v1719 = vsub.f32 %v1549, %v1637
      %v1720 = vsub.f32 %v1463, %v1640
      %v1721 = vsub.f32 %v1552, %v1640
      %v1722 = vsub.f32 %v1465, %v1643
      %v1723 = vsub.f32 %v1554, %v1643
      %v1724 = vsub.f32 %v1468, %v1646
      %v1725 = vsub.f32 %v1557, %v1646
      %v1726 = vsub.f32 %v1470, %v1649
      %v1727 = vsub.f32 %v1559, %v1649
      %v1728 = vsub.f32 %v1473, %v1652
      %v1729 = vsub.f32 %v1562, %v1652
      %v1730 = vsub.f32 %v1475, %v1655
      %v1731 = vsub.f32 %v1564, %v1655
      %v1732 = vsub.f32 %v1478, %v1658
      %v1733 = vsub.f32 %v1567, %v1658
      %v1734 = vsub.f32 %v1480, %v1661
      %v1735 = vsub.f32 %v1569, %v1661
      %v1736 = vsub.f32 %v1483, %v1664
      %v1737 = vsub.f32 %v1572, %v1664
      %v1738 = vsub.f32 %v1485, %v1667
      %v1739 = vsub.f32 %v1574, %v1667
      %v1740 = vsub.f32 %v1488, %v1670
      %v1741 = vsub.f32 %v1577, %v1670
      %v1742 = vsub.f32 %v1490, %v1673
      %v1743 = vsub.f32 %v1579, %v1673
      %v1744 = vsub.f32 %v1493, %v1676
      %v1745 = vsub.f32 %v1582, %v1676
      %v1746 = vsub.f32 %v1495, %v1679
      %v1747 = vsub.f32 %v1584, %v1679
      %v1748 = vsub.f32 %v1498, %v1682
      %v1749 = vsub.f32 %v1587, %v1682
      %v1750 = vsub.f32 %v1500, %v1685
      %v1751 = vsub.f32 %v1589, %v1685
      %v1752 = vsub.f32 %v1503, %v1688
      %v1753 = vsub.f32 %v1592, %v1688
      %v1754 = vsub.f32 %v1505, %v1691
      %v1755 = vsub.f32 %v1594, %v1691
      %v1756 = vmul.f32 %v1692, 1.442695
      %v1757 = vpow.pop %v1756
      %v1758 = vmul.f32 %v1693, 1.442695
      %v1759 = vpow.pop %v1758
      %v1760 = vmul.f32 %v1694, 1.442695
      %v1761 = vpow.pop %v1760
      %v1762 = vmul.f32 %v1695, 1.442695
      %v1763 = vpow.pop %v1762
      %v1764 = vmul.f32 %v1696, 1.442695
      %v1765 = vpow.pop %v1764
      %v1766 = vmul.f32 %v1697, 1.442695
      %v1767 = vpow.pop %v1766
      %v1768 = vmul.f32 %v1698, 1.442695
      %v1769 = vpow.pop %v1768
      %v1770 = vmul.f32 %v1699, 1.442695
      %v1771 = vpow.pop %v1770
      %v1772 = vmul.f32 %v1700, 1.442695
      %v1773 = vpow.pop %v1772
      %v1774 = vmul.f32 %v1701, 1.442695
      %v1775 = vpow.pop %v1774
      %v1776 = vmul.f32 %v1702, 1.442695
      %v1777 = vpow.pop %v1776
      %v1778 = vmul.f32 %v1703, 1.442695
      %v1779 = vpow.pop %v1778
      %v1780 = vmul.f32 %v1704, 1.442695
      %v1781 = vpow.pop %v1780
      %v1782 = vmul.f32 %v1705, 1.442695
      %v1783 = vpow.pop %v1782
      %v1784 = vmul.f32 %v1706, 1.442695
      %v1785 = vpow.pop %v1784
      %v1786 = vmul.f32 %v1707, 1.442695
      %v1787 = vpow.pop %v1786
      %v1788 = vmul.f32 %v1708, 1.442695
      %v1789 = vpow.pop %v1788
      %v1790 = vmul.f32 %v1709, 1.442695
      %v1791 = vpow.pop %v1790
      %v1792 = vmul.f32 %v1710, 1.442695
      %v1793 = vpow.pop %v1792
      %v1794 = vmul.f32 %v1711, 1.442695
      %v1795 = vpow.pop %v1794
      %v1796 = vmul.f32 %v1712, 1.442695
      %v1797 = vpow.pop %v1796
      %v1798 = vmul.f32 %v1713, 1.442695
      %v1799 = vpow.pop %v1798
      %v1800 = vmul.f32 %v1714, 1.442695
      %v1801 = vpow.pop %v1800
      %v1802 = vmul.f32 %v1715, 1.442695
      %v1803 = vpow.pop %v1802
      %v1804 = vmul.f32 %v1716, 1.442695
      %v1805 = vpow.pop %v1804
      %v1806 = vmul.f32 %v1717, 1.442695
      %v1807 = vpow.pop %v1806
      %v1808 = vmul.f32 %v1718, 1.442695
      %v1809 = vpow.pop %v1808
      %v1810 = vmul.f32 %v1719, 1.442695
      %v1811 = vpow.pop %v1810
      %v1812 = vmul.f32 %v1720, 1.442695
      %v1813 = vpow.pop %v1812
      %v1814 = vmul.f32 %v1721, 1.442695
      %v1815 = vpow.pop %v1814
      %v1816 = vmul.f32 %v1722, 1.442695
      %v1817 = vpow.pop %v1816
      %v1818 = vmul.f32 %v1723, 1.442695
      %v1819 = vpow.pop %v1818
      %v1820 = vmul.f32 %v1724, 1.442695
      %v1821 = vpow.pop %v1820
      %v1822 = vmul.f32 %v1725, 1.442695
      %v1823 = vpow.pop %v1822
      %v1824 = vmul.f32 %v1726, 1.442695
      %v1825 = vpow.pop %v1824
      %v1826 = vmul.f32 %v1727, 1.442695
      %v1827 = vpow.pop %v1826
      %v1828 = vmul.f32 %v1728, 1.442695
      %v1829 = vpow.pop %v1828
      %v1830 = vmul.f32 %v1729, 1.442695
      %v1831 = vpow.pop %v1830
      %v1832 = vmul.f32 %v1730, 1.442695
      %v1833 = vpow.pop %v1832
      %v1834 = vmul.f32 %v1731, 1.442695
      %v1835 = vpow.pop %v1834
      %v1836 = vmul.f32 %v1732, 1.442695
      %v1837 = vpow.pop %v1836
      %v1838 = vmul.f32 %v1733, 1.442695
      %v1839 = vpow.pop %v1838
      %v1840 = vmul.f32 %v1734, 1.442695
      %v1841 = vpow.pop %v1840
      %v1842 = vmul.f32 %v1735, 1.442695
      %v1843 = vpow.pop %v1842
      %v1844 = vmul.f32 %v1736, 1.442695
      %v1845 = vpow.pop %v1844
      %v1846 = vmul.f32 %v1737, 1.442695
      %v1847 = vpow.pop %v1846
      %v1848 = vmul.f32 %v1738, 1.442695
      %v1849 = vpow.pop %v1848
      %v1850 = vmul.f32 %v1739, 1.442695
      %v1851 = vpow.pop %v1850
      %v1852 = vmul.f32 %v1740, 1.442695
      %v1853 = vpow.pop %v1852
      %v1854 = vmul.f32 %v1741, 1.442695
      %v1855 = vpow.pop %v1854
      %v1856 = vmul.f32 %v1742, 1.442695
      %v1857 = vpow.pop %v1856
      %v1858 = vmul.f32 %v1743, 1.442695
      %v1859 = vpow.pop %v1858
      %v1860 = vmul.f32 %v1744, 1.442695
      %v1861 = vpow.pop %v1860
      %v1862 = vmul.f32 %v1745, 1.442695
      %v1863 = vpow.pop %v1862
      %v1864 = vmul.f32 %v1746, 1.442695
      %v1865 = vpow.pop %v1864
      %v1866 = vmul.f32 %v1747, 1.442695
      %v1867 = vpow.pop %v1866
      %v1868 = vmul.f32 %v1748, 1.442695
      %v1869 = vpow.pop %v1868
      %v1870 = vmul.f32 %v1749, 1.442695
      %v1871 = vpow.pop %v1870
      %v1872 = vmul.f32 %v1750, 1.442695
      %v1873 = vpow.pop %v1872
      %v1874 = vmul.f32 %v1751, 1.442695
      %v1875 = vpow.pop %v1874
      %v1876 = vmul.f32 %v1752, 1.442695
      %v1877 = vpow.pop %v1876
      %v1878 = vmul.f32 %v1753, 1.442695
      %v1879 = vpow.pop %v1878
      %v1880 = vmul.f32 %v1754, 1.442695
      %v1881 = vpow.pop %v1880
      %v1882 = vmul.f32 %v1755, 1.442695
      %v1883 = vpow.pop %v1882
      %v1884 = vadd.f32 %v1757, %v1759
      %1885 = vadd.xlane.f32.xlu0 %v1884
      %v1886 = vpop.xlane.xlu0 %1885
      %v1887 = vadd.f32 %v1761, %v1763
      %1888 = vadd.xlane.f32.xlu0 %v1887
      %v1889 = vpop.xlane.xlu0 %1888
      %v1890 = vadd.f32 %v1765, %v1767
      %1891 = vadd.xlane.f32.xlu0 %v1890
      %v1892 = vpop.xlane.xlu0 %1891
      %v1893 = vadd.f32 %v1769, %v1771
      %1894 = vadd.xlane.f32.xlu0 %v1893
      %v1895 = vpop.xlane.xlu0 %1894
      %v1896 = vadd.f32 %v1773, %v1775
      %1897 = vadd.xlane.f32.xlu0 %v1896
      %v1898 = vpop.xlane.xlu0 %1897
      %v1899 = vadd.f32 %v1777, %v1779
      %1900 = vadd.xlane.f32.xlu0 %v1899
      %v1901 = vpop.xlane.xlu0 %1900
      %v1902 = vadd.f32 %v1781, %v1783
      %1903 = vadd.xlane.f32.xlu0 %v1902
      %v1904 = vpop.xlane.xlu0 %1903
      %v1905 = vadd.f32 %v1785, %v1787
      %1906 = vadd.xlane.f32.xlu0 %v1905
      %v1907 = vpop.xlane.xlu0 %1906
      %v1908 = vadd.f32 %v1789, %v1791
      %1909 = vadd.xlane.f32.xlu0 %v1908
      %v1910 = vpop.xlane.xlu0 %1909
      %v1911 = vadd.f32 %v1793, %v1795
      %1912 = vadd.xlane.f32.xlu0 %v1911
      %v1913 = vpop.xlane.xlu0 %1912
      %v1914 = vadd.f32 %v1797, %v1799
      %1915 = vadd.xlane.f32.xlu0 %v1914
      %v1916 = vpop.xlane.xlu0 %1915
      %v1917 = vadd.f32 %v1801, %v1803
      %1918 = vadd.xlane.f32.xlu0 %v1917
      %v1919 = vpop.xlane.xlu0 %1918
      %v1920 = vadd.f32 %v1805, %v1807
      %1921 = vadd.xlane.f32.xlu0 %v1920
      %v1922 = vpop.xlane.xlu0 %1921
      %v1923 = vadd.f32 %v1809, %v1811
      %1924 = vadd.xlane.f32.xlu0 %v1923
      %v1925 = vpop.xlane.xlu0 %1924
      %v1926 = vadd.f32 %v1813, %v1815
      %1927 = vadd.xlane.f32.xlu0 %v1926
      %v1928 = vpop.xlane.xlu0 %1927
      %v1929 = vadd.f32 %v1817, %v1819
      %1930 = vadd.xlane.f32.xlu0 %v1929
      %v1931 = vpop.xlane.xlu0 %1930
      %v1932 = vadd.f32 %v1821, %v1823
      %1933 = vadd.xlane.f32.xlu0 %v1932
      %v1934 = vpop.xlane.xlu0 %1933
      %v1935 = vadd.f32 %v1825, %v1827
      %1936 = vadd.xlane.f32.xlu0 %v1935
      %v1937 = vpop.xlane.xlu0 %1936
      %v1938 = vadd.f32 %v1829, %v1831
      %1939 = vadd.xlane.f32.xlu0 %v1938
      %v1940 = vpop.xlane.xlu0 %1939
      %v1941 = vadd.f32 %v1833, %v1835
      %1942 = vadd.xlane.f32.xlu0 %v1941
      %v1943 = vpop.xlane.xlu0 %1942
      %v1944 = vadd.f32 %v1837, %v1839
      %1945 = vadd.xlane.f32.xlu0 %v1944
      %v1946 = vpop.xlane.xlu0 %1945
      %v1947 = vadd.f32 %v1841, %v1843
      %1948 = vadd.xlane.f32.xlu0 %v1947
      %v1949 = vpop.xlane.xlu0 %1948
      %v1950 = vadd.f32 %v1845, %v1847
      %1951 = vadd.xlane.f32.xlu0 %v1950
      %v1952 = vpop.xlane.xlu0 %1951
      %v1953 = vadd.f32 %v1849, %v1851
      %1954 = vadd.xlane.f32.xlu0 %v1953
      %v1955 = vpop.xlane.xlu0 %1954
      %v1956 = vadd.f32 %v1853, %v1855
      %1957 = vadd.xlane.f32.xlu0 %v1956
      %v1958 = vpop.xlane.xlu0 %1957
      %v1959 = vadd.f32 %v1857, %v1859
      %1960 = vadd.xlane.f32.xlu0 %v1959
      %v1961 = vpop.xlane.xlu0 %1960
      %v1962 = vadd.f32 %v1861, %v1863
      %1963 = vadd.xlane.f32.xlu0 %v1962
      %v1964 = vpop.xlane.xlu0 %1963
      %v1965 = vadd.f32 %v1865, %v1867
      %1966 = vadd.xlane.f32.xlu0 %v1965
      %v1967 = vpop.xlane.xlu0 %1966
      %v1968 = vadd.f32 %v1869, %v1871
      %1969 = vadd.xlane.f32.xlu0 %v1968
      %v1970 = vpop.xlane.xlu0 %1969
      %v1971 = vadd.f32 %v1873, %v1875
      %1972 = vadd.xlane.f32.xlu0 %v1971
      %v1973 = vpop.xlane.xlu0 %1972
      %v1974 = vadd.f32 %v1877, %v1879
      %1975 = vadd.xlane.f32.xlu0 %v1974
      %v1976 = vpop.xlane.xlu0 %1975
      %v1977 = vadd.f32 %v1881, %v1883
      %1978 = vadd.xlane.f32.xlu0 %v1977
      %v1979 = vpop.xlane.xlu0 %1978
      %v1980 = vpack.c.bf16 %v1761, %v1757
      %v1981 = vpack.c.bf16 %v1763, %v1759
      %v1982 = vpack.c.bf16 %v1769, %v1765
      %v1983 = vpack.c.bf16 %v1771, %v1767
      %v1984 = vpack.c.bf16 %v1777, %v1773
      %v1985 = vpack.c.bf16 %v1779, %v1775
      %v1986 = vpack.c.bf16 %v1785, %v1781
      %v1987 = vpack.c.bf16 %v1787, %v1783
      %v1988 = vpack.c.bf16 %v1793, %v1789
      %v1989 = vpack.c.bf16 %v1795, %v1791
      %v1990 = vpack.c.bf16 %v1801, %v1797
      %v1991 = vpack.c.bf16 %v1803, %v1799
      %v1992 = vpack.c.bf16 %v1809, %v1805
      %v1993 = vpack.c.bf16 %v1811, %v1807
      %v1994 = vpack.c.bf16 %v1817, %v1813
      %v1995 = vpack.c.bf16 %v1819, %v1815
      %v1996 = vpack.c.bf16 %v1825, %v1821
      %v1997 = vpack.c.bf16 %v1827, %v1823
      %v1998 = vpack.c.bf16 %v1833, %v1829
      %v1999 = vpack.c.bf16 %v1835, %v1831
      %v2000 = vpack.c.bf16 %v1841, %v1837
      %v2001 = vpack.c.bf16 %v1843, %v1839
      %v2002 = vpack.c.bf16 %v1849, %v1845
      %v2003 = vpack.c.bf16 %v1851, %v1847
      %v2004 = vpack.c.bf16 %v1857, %v1853
      %v2005 = vpack.c.bf16 %v1859, %v1855
      %v2006 = vpack.c.bf16 %v1865, %v1861
      %v2007 = vpack.c.bf16 %v1867, %v1863
      %v2008 = vpack.c.bf16 %v1873, %v1869
      %v2009 = vpack.c.bf16 %v1875, %v1871
      %v2010 = vpack.c.bf16 %v1881, %v1877
      %v2011 = vpack.c.bf16 %v1883, %v1879
      %2012 = vrot.lane.b32.xlu0 %v197, 56
      %v2013 = vpop.permute.xlu0 %2012
      %2014 = vrot.lane.b32.xlu0 %v198, 56
      %v2015 = vpop.permute.xlu0 %2014
      %2016 = vrot.lane.b32.xlu0 %v199, 56
      %v2017 = vpop.permute.xlu0 %2016
      %2018 = vrot.lane.b32.xlu0 %v200, 56
      %v2019 = vpop.permute.xlu0 %2018
      %2020 = vrot.lane.b32.xlu0 %v201, 56
      %v2021 = vpop.permute.xlu0 %2020
      %2022 = vrot.lane.b32.xlu0 %v202, 56
      %v2023 = vpop.permute.xlu0 %2022
      %2024 = vrot.lane.b32.xlu0 %v203, 56
      %v2025 = vpop.permute.xlu0 %2024
      %2026 = vrot.lane.b32.xlu0 %v204, 56
      %v2027 = vpop.permute.xlu0 %2026
      %2028 = vrot.lane.b32.xlu0 %v205, 56
      %v2029 = vpop.permute.xlu0 %2028
      %2030 = vrot.lane.b32.xlu0 %v206, 56
      %v2031 = vpop.permute.xlu0 %2030
      %2032 = vrot.lane.b32.xlu0 %v207, 56
      %v2033 = vpop.permute.xlu0 %2032
      %2034 = vrot.lane.b32.xlu0 %v208, 56
      %v2035 = vpop.permute.xlu0 %2034
      %2036 = vrot.lane.b32.xlu0 %v209, 56
      %v2037 = vpop.permute.xlu0 %2036
      %2038 = vrot.lane.b32.xlu0 %v210, 56
      %v2039 = vpop.permute.xlu0 %2038
      %2040 = vrot.lane.b32.xlu0 %v211, 56
      %v2041 = vpop.permute.xlu0 %2040
      %2042 = vrot.lane.b32.xlu0 %v212, 56
      %v2043 = vpop.permute.xlu0 %2042
      %2060 = vmatpush.bf16.msra.mxu0 %v2027
      %2061 = vmatpush.bf16.msra.mxu0 %v2025
      %2062 = vmatpush.bf16.msra.mxu0 %v2023
      %2063 = vmatpush.bf16.msra.mxu0 %v2021
      %2064 = vmatpush.bf16.msra.mxu0 %v2019
      %2065 = vmatpush.bf16.msra.mxu0 %v2017
      %2066 = vmatpush.bf16.msra.mxu0 %v2015
      %2067 = vmatpush.bf16.msra.mxu0 %v2013
      %2068 = vmatmul.bf16.gmra.mxu0 %v1980
      %v2069 = vpop.f32.mrf.mxu0
      %v2070 = vadd.f32 0.0, %v2069
      %v2071 = vpop.f32.mrf.mxu0
      %v2072 = vadd.f32 0.0, %v2071
      %2073 = vmatmul.bf16.gmra.mxu0 %v1982
      %v2074 = vpop.f32.mrf.mxu0
      %v2075 = vadd.f32 0.0, %v2074
      %v2076 = vpop.f32.mrf.mxu0
      %v2077 = vadd.f32 0.0, %v2076
      %2078 = vmatmul.bf16.gmra.mxu0 %v1984
      %v2079 = vpop.f32.mrf.mxu0
      %v2080 = vadd.f32 0.0, %v2079
      %v2081 = vpop.f32.mrf.mxu0
      %v2082 = vadd.f32 0.0, %v2081
      %2083 = vmatmul.bf16.gmra.mxu0 %v1986
      %v2084 = vpop.f32.mrf.mxu0
      %v2085 = vadd.f32 0.0, %v2084
      %v2086 = vpop.f32.mrf.mxu0
      %v2087 = vadd.f32 0.0, %v2086
      %2088 = vmatmul.bf16.gmra.mxu0 %v1988
      %v2089 = vpop.f32.mrf.mxu0
      %v2090 = vadd.f32 0.0, %v2089
      %v2091 = vpop.f32.mrf.mxu0
      %v2092 = vadd.f32 0.0, %v2091
      %2093 = vmatmul.bf16.gmra.mxu0 %v1990
      %v2094 = vpop.f32.mrf.mxu0
      %v2095 = vadd.f32 0.0, %v2094
      %v2096 = vpop.f32.mrf.mxu0
      %v2097 = vadd.f32 0.0, %v2096
      %2098 = vmatmul.bf16.gmra.mxu0 %v1992
      %v2099 = vpop.f32.mrf.mxu0
      %v2100 = vadd.f32 0.0, %v2099
      %v2101 = vpop.f32.mrf.mxu0
      %v2102 = vadd.f32 0.0, %v2101
      %2103 = vmatmul.bf16.gmra.mxu0 %v1994
      %v2104 = vpop.f32.mrf.mxu0
      %v2105 = vadd.f32 0.0, %v2104
      %v2106 = vpop.f32.mrf.mxu0
      %v2107 = vadd.f32 0.0, %v2106
      %2108 = vmatmul.bf16.gmra.mxu0 %v1996
      %v2109 = vpop.f32.mrf.mxu0
      %v2110 = vadd.f32 0.0, %v2109
      %v2111 = vpop.f32.mrf.mxu0
      %v2112 = vadd.f32 0.0, %v2111
      %2113 = vmatmul.bf16.gmra.mxu0 %v1998
      %v2114 = vpop.f32.mrf.mxu0
      %v2115 = vadd.f32 0.0, %v2114
      %v2116 = vpop.f32.mrf.mxu0
      %v2117 = vadd.f32 0.0, %v2116
      %2118 = vmatmul.bf16.gmra.mxu0 %v2000
      %v2119 = vpop.f32.mrf.mxu0
      %v2120 = vadd.f32 0.0, %v2119
      %v2121 = vpop.f32.mrf.mxu0
      %v2122 = vadd.f32 0.0, %v2121
      %2123 = vmatmul.bf16.gmra.mxu0 %v2002
      %v2124 = vpop.f32.mrf.mxu0
      %v2125 = vadd.f32 0.0, %v2124
      %v2126 = vpop.f32.mrf.mxu0
      %v2127 = vadd.f32 0.0, %v2126
      %2128 = vmatmul.bf16.gmra.mxu0 %v2004
      %v2129 = vpop.f32.mrf.mxu0
      %v2130 = vadd.f32 0.0, %v2129
      %v2131 = vpop.f32.mrf.mxu0
      %v2132 = vadd.f32 0.0, %v2131
      %2133 = vmatmul.bf16.gmra.mxu0 %v2006
      %v2134 = vpop.f32.mrf.mxu0
      %v2135 = vadd.f32 0.0, %v2134
      %v2136 = vpop.f32.mrf.mxu0
      %v2137 = vadd.f32 0.0, %v2136
      %2138 = vmatmul.bf16.gmra.mxu0 %v2008
      %v2139 = vpop.f32.mrf.mxu0
      %v2140 = vadd.f32 0.0, %v2139
      %v2141 = vpop.f32.mrf.mxu0
      %v2142 = vadd.f32 0.0, %v2141
      %2143 = vmatmul.bf16.gmra.mxu0 %v2010
      %v2144 = vpop.f32.mrf.mxu0
      %v2145 = vadd.f32 0.0, %v2144
      %v2146 = vpop.f32.mrf.mxu0
      %v2147 = vadd.f32 0.0, %v2146
      %2148 = vdwg.mxu0
      %2149 = vmatpush.bf16.msra.mxu0 %v2043
      %2150 = vmatpush.bf16.msra.mxu0 %v2041
      %2151 = vmatpush.bf16.msra.mxu0 %v2039
      %2152 = vmatpush.bf16.msra.mxu0 %v2037
      %2153 = vmatpush.bf16.msra.mxu0 %v2035
      %2154 = vmatpush.bf16.msra.mxu0 %v2033
      %2155 = vmatpush.bf16.msra.mxu0 %v2031
      %2156 = vmatpush.bf16.msra.mxu0 %v2029
      %2157 = vmatmul.bf16.gmra.mxu0 %v1981
      %v2158 = vpop.f32.mrf.mxu0
      %v2159 = vadd.f32 %v2070, %v2158
      %v2160 = vpop.f32.mrf.mxu0
      %v2161 = vadd.f32 %v2072, %v2160
      %2162 = vmatmul.bf16.gmra.mxu0 %v1983
      %v2163 = vpop.f32.mrf.mxu0
      %v2164 = vadd.f32 %v2075, %v2163
      %v2165 = vpop.f32.mrf.mxu0
      %v2166 = vadd.f32 %v2077, %v2165
      %2167 = vmatmul.bf16.gmra.mxu0 %v1985
      %v2168 = vpop.f32.mrf.mxu0
      %v2169 = vadd.f32 %v2080, %v2168
      %v2170 = vpop.f32.mrf.mxu0
      %v2171 = vadd.f32 %v2082, %v2170
      %2172 = vmatmul.bf16.gmra.mxu0 %v1987
      %v2173 = vpop.f32.mrf.mxu0
      %v2174 = vadd.f32 %v2085, %v2173
      %v2175 = vpop.f32.mrf.mxu0
      %v2176 = vadd.f32 %v2087, %v2175
      %2177 = vmatmul.bf16.gmra.mxu0 %v1989
      %v2178 = vpop.f32.mrf.mxu0
      %v2179 = vadd.f32 %v2090, %v2178
      %v2180 = vpop.f32.mrf.mxu0
      %v2181 = vadd.f32 %v2092, %v2180
      %2182 = vmatmul.bf16.gmra.mxu0 %v1991
      %v2183 = vpop.f32.mrf.mxu0
      %v2184 = vadd.f32 %v2095, %v2183
      %v2185 = vpop.f32.mrf.mxu0
      %v2186 = vadd.f32 %v2097, %v2185
      %2187 = vmatmul.bf16.gmra.mxu0 %v1993
      %v2188 = vpop.f32.mrf.mxu0
      %v2189 = vadd.f32 %v2100, %v2188
      %v2190 = vpop.f32.mrf.mxu0
      %v2191 = vadd.f32 %v2102, %v2190
      %2192 = vmatmul.bf16.gmra.mxu0 %v1995
      %v2193 = vpop.f32.mrf.mxu0
      %v2194 = vadd.f32 %v2105, %v2193
      %v2195 = vpop.f32.mrf.mxu0
      %v2196 = vadd.f32 %v2107, %v2195
      %2197 = vmatmul.bf16.gmra.mxu0 %v1997
      %v2198 = vpop.f32.mrf.mxu0
      %v2199 = vadd.f32 %v2110, %v2198
      %v2200 = vpop.f32.mrf.mxu0
      %v2201 = vadd.f32 %v2112, %v2200
      %2202 = vmatmul.bf16.gmra.mxu0 %v1999
      %v2203 = vpop.f32.mrf.mxu0
      %v2204 = vadd.f32 %v2115, %v2203
      %v2205 = vpop.f32.mrf.mxu0
      %v2206 = vadd.f32 %v2117, %v2205
      %2207 = vmatmul.bf16.gmra.mxu0 %v2001
      %v2208 = vpop.f32.mrf.mxu0
      %v2209 = vadd.f32 %v2120, %v2208
      %v2210 = vpop.f32.mrf.mxu0
      %v2211 = vadd.f32 %v2122, %v2210
      %2212 = vmatmul.bf16.gmra.mxu0 %v2003
      %v2213 = vpop.f32.mrf.mxu0
      %v2214 = vadd.f32 %v2125, %v2213
      %v2215 = vpop.f32.mrf.mxu0
      %v2216 = vadd.f32 %v2127, %v2215
      %2217 = vmatmul.bf16.gmra.mxu0 %v2005
      %v2218 = vpop.f32.mrf.mxu0
      %v2219 = vadd.f32 %v2130, %v2218
      %v2220 = vpop.f32.mrf.mxu0
      %v2221 = vadd.f32 %v2132, %v2220
      %2222 = vmatmul.bf16.gmra.mxu0 %v2007
      %v2223 = vpop.f32.mrf.mxu0
      %v2224 = vadd.f32 %v2135, %v2223
      %v2225 = vpop.f32.mrf.mxu0
      %v2226 = vadd.f32 %v2137, %v2225
      %2227 = vmatmul.bf16.gmra.mxu0 %v2009
      %v2228 = vpop.f32.mrf.mxu0
      %v2229 = vadd.f32 %v2140, %v2228
      %v2230 = vpop.f32.mrf.mxu0
      %v2231 = vadd.f32 %v2142, %v2230
      %2232 = vmatmul.bf16.gmra.mxu0 %v2011
      %v2233 = vpop.f32.mrf.mxu0
      %v2234 = vadd.f32 %v2145, %v2233
      %v2235 = vpop.f32.mrf.mxu0
      %v2236 = vadd.f32 %v2147, %v2235
      %2237 = vdwg.mxu0
      %v2238 = vrcp.pop %v1886
      %v2239 = vrcp.pop %v1889
      %v2240 = vrcp.pop %v1892
      %v2241 = vrcp.pop %v1895
      %v2242 = vrcp.pop %v1898
      %v2243 = vrcp.pop %v1901
      %v2244 = vrcp.pop %v1904
      %v2245 = vrcp.pop %v1907
      %v2246 = vrcp.pop %v1910
      %v2247 = vrcp.pop %v1913
      %v2248 = vrcp.pop %v1916
      %v2249 = vrcp.pop %v1919
      %v2250 = vrcp.pop %v1922
      %v2251 = vrcp.pop %v1925
      %v2252 = vrcp.pop %v1928
      %v2253 = vrcp.pop %v1931
      %v2254 = vrcp.pop %v1934
      %v2255 = vrcp.pop %v1937
      %v2256 = vrcp.pop %v1940
      %v2257 = vrcp.pop %v1943
      %v2258 = vrcp.pop %v1946
      %v2259 = vrcp.pop %v1949
      %v2260 = vrcp.pop %v1952
      %v2261 = vrcp.pop %v1955
      %v2262 = vrcp.pop %v1958
      %v2263 = vrcp.pop %v1961
      %v2264 = vrcp.pop %v1964
      %v2265 = vrcp.pop %v1967
      %v2266 = vrcp.pop %v1970
      %v2267 = vrcp.pop %v1973
      %v2268 = vrcp.pop %v1976
      %v2269 = vrcp.pop %v1979
      %v2270 = vmul.f32 %v2159, %v2238
      %v2271 = vmul.f32 %v2161, %v2239
      %v2272 = vmul.f32 %v2164, %v2240
      %v2273 = vmul.f32 %v2166, %v2241
      %v2274 = vmul.f32 %v2169, %v2242
      %v2275 = vmul.f32 %v2171, %v2243
      %v2276 = vmul.f32 %v2174, %v2244
      %v2277 = vmul.f32 %v2176, %v2245
      %v2278 = vmul.f32 %v2179, %v2246
      %v2279 = vmul.f32 %v2181, %v2247
      %v2280 = vmul.f32 %v2184, %v2248
      %v2281 = vmul.f32 %v2186, %v2249
      %v2282 = vmul.f32 %v2189, %v2250
      %v2283 = vmul.f32 %v2191, %v2251
      %v2284 = vmul.f32 %v2194, %v2252
      %v2285 = vmul.f32 %v2196, %v2253
      %v2286 = vmul.f32 %v2199, %v2254
      %v2287 = vmul.f32 %v2201, %v2255
      %v2288 = vmul.f32 %v2204, %v2256
      %v2289 = vmul.f32 %v2206, %v2257
      %v2290 = vmul.f32 %v2209, %v2258
      %v2291 = vmul.f32 %v2211, %v2259
      %v2292 = vmul.f32 %v2214, %v2260
      %v2293 = vmul.f32 %v2216, %v2261
      %v2294 = vmul.f32 %v2219, %v2262
      %v2295 = vmul.f32 %v2221, %v2263
      %v2296 = vmul.f32 %v2224, %v2264
      %v2297 = vmul.f32 %v2226, %v2265
      %v2298 = vmul.f32 %v2229, %v2266
      %v2299 = vmul.f32 %v2231, %v2267
      %v2300 = vmul.f32 %v2234, %v2268
      %v2301 = vmul.f32 %v2236, %v2269
      %2302 = vrot.lane.b32.xlu0 %v181, 112
      %v2303 = vpop.permute.xlu0 %2302
      %2304 = vrot.lane.b32.xlu0 %v182, 112
      %v2305 = vpop.permute.xlu0 %2304
      %2306 = vrot.lane.b32.xlu0 %v183, 112
      %v2307 = vpop.permute.xlu0 %2306
      %2308 = vrot.lane.b32.xlu0 %v184, 112
      %v2309 = vpop.permute.xlu0 %2308
      %2310 = vrot.lane.b32.xlu0 %v185, 112
      %v2311 = vpop.permute.xlu0 %2310
      %2312 = vrot.lane.b32.xlu0 %v186, 112
      %v2313 = vpop.permute.xlu0 %2312
      %2314 = vrot.lane.b32.xlu0 %v187, 112
      %v2315 = vpop.permute.xlu0 %2314
      %2316 = vrot.lane.b32.xlu0 %v188, 112
      %v2317 = vpop.permute.xlu0 %2316
      %2318 = vrot.lane.b32.xlu0 %v189, 112
      %v2319 = vpop.permute.xlu0 %2318
      %2320 = vrot.lane.b32.xlu0 %v190, 112
      %v2321 = vpop.permute.xlu0 %2320
      %2322 = vrot.lane.b32.xlu0 %v191, 112
      %v2323 = vpop.permute.xlu0 %2322
      %2324 = vrot.lane.b32.xlu0 %v192, 112
      %v2325 = vpop.permute.xlu0 %2324
      %2326 = vrot.lane.b32.xlu0 %v193, 112
      %v2327 = vpop.permute.xlu0 %2326
      %2328 = vrot.lane.b32.xlu0 %v194, 112
      %v2329 = vpop.permute.xlu0 %2328
      %2330 = vrot.lane.b32.xlu0 %v195, 112
      %v2331 = vpop.permute.xlu0 %2330
      %2332 = vrot.lane.b32.xlu0 %v196, 112
      %v2333 = vpop.permute.xlu0 %2332
      %2334 = vrot.lane.b32.xlu0 %v197, 80
      %v2335 = vpop.permute.xlu0 %2334
      %2336 = vrot.lane.b32.xlu0 %v198, 80
      %v2337 = vpop.permute.xlu0 %2336
      %2338 = vrot.lane.b32.xlu0 %v199, 80
      %v2339 = vpop.permute.xlu0 %2338
      %2340 = vrot.lane.b32.xlu0 %v200, 80
      %v2341 = vpop.permute.xlu0 %2340
      %2342 = vrot.lane.b32.xlu0 %v201, 80
      %v2343 = vpop.permute.xlu0 %2342
      %2344 = vrot.lane.b32.xlu0 %v202, 80
      %v2345 = vpop.permute.xlu0 %2344
      %2346 = vrot.lane.b32.xlu0 %v203, 80
      %v2347 = vpop.permute.xlu0 %2346
      %2348 = vrot.lane.b32.xlu0 %v204, 80
      %v2349 = vpop.permute.xlu0 %2348
      %2350 = vrot.lane.b32.xlu0 %v205, 80
      %v2351 = vpop.permute.xlu0 %2350
      %2352 = vrot.lane.b32.xlu0 %v206, 80
      %v2353 = vpop.permute.xlu0 %2352
      %2354 = vrot.lane.b32.xlu0 %v207, 80
      %v2355 = vpop.permute.xlu0 %2354
      %2356 = vrot.lane.b32.xlu0 %v208, 80
      %v2357 = vpop.permute.xlu0 %2356
      %2358 = vrot.lane.b32.xlu0 %v209, 80
      %v2359 = vpop.permute.xlu0 %2358
      %2360 = vrot.lane.b32.xlu0 %v210, 80
      %v2361 = vpop.permute.xlu0 %2360
      %2362 = vrot.lane.b32.xlu0 %v211, 80
      %v2363 = vpop.permute.xlu0 %2362
      %2364 = vrot.lane.b32.xlu0 %v212, 80
      %v2365 = vpop.permute.xlu0 %2364
      %v2367 = vsel %vm261, %v2303, 0
      %v2370 = vsel %vm261, %v2305, 0
      %v2373 = vsel %vm261, %v2307, 0
      %v2376 = vsel %vm261, %v2309, 0
      %v2379 = vsel %vm261, %v2311, 0
      %v2382 = vsel %vm261, %v2313, 0
      %v2385 = vsel %vm261, %v2315, 0
      %v2388 = vsel %vm261, %v2317, 0
      %v2391 = vsel %vm261, %v2319, 0
      %v2394 = vsel %vm261, %v2321, 0
      %v2397 = vsel %vm261, %v2323, 0
      %v2400 = vsel %vm261, %v2325, 0
      %v2403 = vsel %vm261, %v2327, 0
      %v2406 = vsel %vm261, %v2329, 0
      %v2409 = vsel %vm261, %v2331, 0
      %v2412 = vsel %vm261, %v2333, 0
      %v2415 = vsel %vm261, %v2335, 0
      %v2418 = vsel %vm261, %v2337, 0
      %v2421 = vsel %vm261, %v2339, 0
      %v2424 = vsel %vm261, %v2341, 0
      %v2427 = vsel %vm261, %v2343, 0
      %v2430 = vsel %vm261, %v2345, 0
      %v2433 = vsel %vm261, %v2347, 0
      %v2436 = vsel %vm261, %v2349, 0
      %v2439 = vsel %vm261, %v2351, 0
      %v2442 = vsel %vm261, %v2353, 0
      %v2445 = vsel %vm261, %v2355, 0
      %v2448 = vsel %vm261, %v2357, 0
      %v2451 = vsel %vm261, %v2359, 0
      %v2454 = vsel %vm261, %v2361, 0
      %v2457 = vsel %vm261, %v2363, 0
      %v2460 = vsel %vm261, %v2365, 0
      %2462 = vmatpush.bf16.xpose.msra.mxu0 %v2436
      %2463 = vmatpush.bf16.xpose.msra.mxu0 %v2433
      %2464 = vmatpush.bf16.xpose.msra.mxu0 %v2430
      %2465 = vmatpush.bf16.xpose.msra.mxu0 %v2427
      %2466 = vmatpush.bf16.xpose.msra.mxu0 %v2424
      %2467 = vmatpush.bf16.xpose.msra.mxu0 %v2421
      %2468 = vmatpush.bf16.xpose.msra.mxu0 %v2418
      %2469 = vmatpush.bf16.xpose.msra.mxu0 %v2415
      %2470 = vmatmul.bf16.gmra.mxu0 %v2367
      %v2471 = vpop.f32.mrf.mxu0
      %v2472 = vadd.f32 0.0, %v2471
      %v2473 = vpop.f32.mrf.mxu0
      %v2474 = vadd.f32 0.0, %v2473
      %2475 = vmatmul.bf16.gmra.mxu0 %v2370
      %v2476 = vpop.f32.mrf.mxu0
      %v2477 = vadd.f32 0.0, %v2476
      %v2478 = vpop.f32.mrf.mxu0
      %v2479 = vadd.f32 0.0, %v2478
      %2480 = vmatmul.bf16.gmra.mxu0 %v2373
      %v2481 = vpop.f32.mrf.mxu0
      %v2482 = vadd.f32 0.0, %v2481
      %v2483 = vpop.f32.mrf.mxu0
      %v2484 = vadd.f32 0.0, %v2483
      %2485 = vmatmul.bf16.gmra.mxu0 %v2376
      %v2486 = vpop.f32.mrf.mxu0
      %v2487 = vadd.f32 0.0, %v2486
      %v2488 = vpop.f32.mrf.mxu0
      %v2489 = vadd.f32 0.0, %v2488
      %2490 = vmatmul.bf16.gmra.mxu0 %v2379
      %v2491 = vpop.f32.mrf.mxu0
      %v2492 = vadd.f32 0.0, %v2491
      %v2493 = vpop.f32.mrf.mxu0
      %v2494 = vadd.f32 0.0, %v2493
      %2495 = vmatmul.bf16.gmra.mxu0 %v2382
      %v2496 = vpop.f32.mrf.mxu0
      %v2497 = vadd.f32 0.0, %v2496
      %v2498 = vpop.f32.mrf.mxu0
      %v2499 = vadd.f32 0.0, %v2498
      %2500 = vmatmul.bf16.gmra.mxu0 %v2385
      %v2501 = vpop.f32.mrf.mxu0
      %v2502 = vadd.f32 0.0, %v2501
      %v2503 = vpop.f32.mrf.mxu0
      %v2504 = vadd.f32 0.0, %v2503
      %2505 = vmatmul.bf16.gmra.mxu0 %v2388
      %v2506 = vpop.f32.mrf.mxu0
      %v2507 = vadd.f32 0.0, %v2506
      %v2508 = vpop.f32.mrf.mxu0
      %v2509 = vadd.f32 0.0, %v2508
      %2510 = vmatmul.bf16.gmra.mxu0 %v2391
      %v2511 = vpop.f32.mrf.mxu0
      %v2512 = vadd.f32 0.0, %v2511
      %v2513 = vpop.f32.mrf.mxu0
      %v2514 = vadd.f32 0.0, %v2513
      %2515 = vmatmul.bf16.gmra.mxu0 %v2394
      %v2516 = vpop.f32.mrf.mxu0
      %v2517 = vadd.f32 0.0, %v2516
      %v2518 = vpop.f32.mrf.mxu0
      %v2519 = vadd.f32 0.0, %v2518
      %2520 = vmatmul.bf16.gmra.mxu0 %v2397
      %v2521 = vpop.f32.mrf.mxu0
      %v2522 = vadd.f32 0.0, %v2521
      %v2523 = vpop.f32.mrf.mxu0
      %v2524 = vadd.f32 0.0, %v2523
      %2525 = vmatmul.bf16.gmra.mxu0 %v2400
      %v2526 = vpop.f32.mrf.mxu0
      %v2527 = vadd.f32 0.0, %v2526
      %v2528 = vpop.f32.mrf.mxu0
      %v2529 = vadd.f32 0.0, %v2528
      %2530 = vmatmul.bf16.gmra.mxu0 %v2403
      %v2531 = vpop.f32.mrf.mxu0
      %v2532 = vadd.f32 0.0, %v2531
      %v2533 = vpop.f32.mrf.mxu0
      %v2534 = vadd.f32 0.0, %v2533
      %2535 = vmatmul.bf16.gmra.mxu0 %v2406
      %v2536 = vpop.f32.mrf.mxu0
      %v2537 = vadd.f32 0.0, %v2536
      %v2538 = vpop.f32.mrf.mxu0
      %v2539 = vadd.f32 0.0, %v2538
      %2540 = vmatmul.bf16.gmra.mxu0 %v2409
      %v2541 = vpop.f32.mrf.mxu0
      %v2542 = vadd.f32 0.0, %v2541
      %v2543 = vpop.f32.mrf.mxu0
      %v2544 = vadd.f32 0.0, %v2543
      %2545 = vmatmul.bf16.gmra.mxu0 %v2412
      %v2546 = vpop.f32.mrf.mxu0
      %v2547 = vadd.f32 0.0, %v2546
      %v2548 = vpop.f32.mrf.mxu0
      %v2549 = vadd.f32 0.0, %v2548
      %2550 = vdwg.mxu0
      %2551 = vmatpush.bf16.xpose.msra.mxu0 %v2460
      %2552 = vmatpush.bf16.xpose.msra.mxu0 %v2457
      %2553 = vmatpush.bf16.xpose.msra.mxu0 %v2454
      %2554 = vmatpush.bf16.xpose.msra.mxu0 %v2451
      %2555 = vmatpush.bf16.xpose.msra.mxu0 %v2448
      %2556 = vmatpush.bf16.xpose.msra.mxu0 %v2445
      %2557 = vmatpush.bf16.xpose.msra.mxu0 %v2442
      %2558 = vmatpush.bf16.xpose.msra.mxu0 %v2439
      %2559 = vmatmul.bf16.gmra.mxu0 %v2367
      %v2560 = vpop.f32.mrf.mxu0
      %v2561 = vadd.f32 0.0, %v2560
      %v2562 = vpop.f32.mrf.mxu0
      %v2563 = vadd.f32 0.0, %v2562
      %2564 = vmatmul.bf16.gmra.mxu0 %v2370
      %v2565 = vpop.f32.mrf.mxu0
      %v2566 = vadd.f32 0.0, %v2565
      %v2567 = vpop.f32.mrf.mxu0
      %v2568 = vadd.f32 0.0, %v2567
      %2569 = vmatmul.bf16.gmra.mxu0 %v2373
      %v2570 = vpop.f32.mrf.mxu0
      %v2571 = vadd.f32 0.0, %v2570
      %v2572 = vpop.f32.mrf.mxu0
      %v2573 = vadd.f32 0.0, %v2572
      %2574 = vmatmul.bf16.gmra.mxu0 %v2376
      %v2575 = vpop.f32.mrf.mxu0
      %v2576 = vadd.f32 0.0, %v2575
      %v2577 = vpop.f32.mrf.mxu0
      %v2578 = vadd.f32 0.0, %v2577
      %2579 = vmatmul.bf16.gmra.mxu0 %v2379
      %v2580 = vpop.f32.mrf.mxu0
      %v2581 = vadd.f32 0.0, %v2580
      %v2582 = vpop.f32.mrf.mxu0
      %v2583 = vadd.f32 0.0, %v2582
      %2584 = vmatmul.bf16.gmra.mxu0 %v2382
      %v2585 = vpop.f32.mrf.mxu0
      %v2586 = vadd.f32 0.0, %v2585
      %v2587 = vpop.f32.mrf.mxu0
      %v2588 = vadd.f32 0.0, %v2587
      %2589 = vmatmul.bf16.gmra.mxu0 %v2385
      %v2590 = vpop.f32.mrf.mxu0
      %v2591 = vadd.f32 0.0, %v2590
      %v2592 = vpop.f32.mrf.mxu0
      %v2593 = vadd.f32 0.0, %v2592
      %2594 = vmatmul.bf16.gmra.mxu0 %v2388
      %v2595 = vpop.f32.mrf.mxu0
      %v2596 = vadd.f32 0.0, %v2595
      %v2597 = vpop.f32.mrf.mxu0
      %v2598 = vadd.f32 0.0, %v2597
      %2599 = vmatmul.bf16.gmra.mxu0 %v2391
      %v2600 = vpop.f32.mrf.mxu0
      %v2601 = vadd.f32 0.0, %v2600
      %v2602 = vpop.f32.mrf.mxu0
      %v2603 = vadd.f32 0.0, %v2602
      %2604 = vmatmul.bf16.gmra.mxu0 %v2394
      %v2605 = vpop.f32.mrf.mxu0
      %v2606 = vadd.f32 0.0, %v2605
      %v2607 = vpop.f32.mrf.mxu0
      %v2608 = vadd.f32 0.0, %v2607
      %2609 = vmatmul.bf16.gmra.mxu0 %v2397
      %v2610 = vpop.f32.mrf.mxu0
      %v2611 = vadd.f32 0.0, %v2610
      %v2612 = vpop.f32.mrf.mxu0
      %v2613 = vadd.f32 0.0, %v2612
      %2614 = vmatmul.bf16.gmra.mxu0 %v2400
      %v2615 = vpop.f32.mrf.mxu0
      %v2616 = vadd.f32 0.0, %v2615
      %v2617 = vpop.f32.mrf.mxu0
      %v2618 = vadd.f32 0.0, %v2617
      %2619 = vmatmul.bf16.gmra.mxu0 %v2403
      %v2620 = vpop.f32.mrf.mxu0
      %v2621 = vadd.f32 0.0, %v2620
      %v2622 = vpop.f32.mrf.mxu0
      %v2623 = vadd.f32 0.0, %v2622
      %2624 = vmatmul.bf16.gmra.mxu0 %v2406
      %v2625 = vpop.f32.mrf.mxu0
      %v2626 = vadd.f32 0.0, %v2625
      %v2627 = vpop.f32.mrf.mxu0
      %v2628 = vadd.f32 0.0, %v2627
      %2629 = vmatmul.bf16.gmra.mxu0 %v2409
      %v2630 = vpop.f32.mrf.mxu0
      %v2631 = vadd.f32 0.0, %v2630
      %v2632 = vpop.f32.mrf.mxu0
      %v2633 = vadd.f32 0.0, %v2632
      %2634 = vmatmul.bf16.gmra.mxu0 %v2412
      %v2635 = vpop.f32.mrf.mxu0
      %v2636 = vadd.f32 0.0, %v2635
      %v2637 = vpop.f32.mrf.mxu0
      %v2638 = vadd.f32 0.0, %v2637
      %2639 = vdwg.mxu0
      %v2640 = vmax.f32 %v2472, %v2561
      %2641 = vmax.xlane.f32.xlu0 %v2640
      %v2642 = vpop.xlane.xlu0 %2641
      %v2643 = vmax.f32 %v2474, %v2563
      %2644 = vmax.xlane.f32.xlu0 %v2643
      %v2645 = vpop.xlane.xlu0 %2644
      %v2646 = vmax.f32 %v2477, %v2566
      %2647 = vmax.xlane.f32.xlu0 %v2646
      %v2648 = vpop.xlane.xlu0 %2647
      %v2649 = vmax.f32 %v2479, %v2568
      %2650 = vmax.xlane.f32.xlu0 %v2649
      %v2651 = vpop.xlane.xlu0 %2650
      %v2652 = vmax.f32 %v2482, %v2571
      %2653 = vmax.xlane.f32.xlu0 %v2652
      %v2654 = vpop.xlane.xlu0 %2653
      %v2655 = vmax.f32 %v2484, %v2573
      %2656 = vmax.xlane.f32.xlu0 %v2655
      %v2657 = vpop.xlane.xlu0 %2656
      %v2658 = vmax.f32 %v2487, %v2576
      %2659 = vmax.xlane.f32.xlu0 %v2658
      %v2660 = vpop.xlane.xlu0 %2659
      %v2661 = vmax.f32 %v2489, %v2578
      %2662 = vmax.xlane.f32.xlu0 %v2661
      %v2663 = vpop.xlane.xlu0 %2662
      %v2664 = vmax.f32 %v2492, %v2581
      %2665 = vmax.xlane.f32.xlu0 %v2664
      %v2666 = vpop.xlane.xlu0 %2665
      %v2667 = vmax.f32 %v2494, %v2583
      %2668 = vmax.xlane.f32.xlu0 %v2667
      %v2669 = vpop.xlane.xlu0 %2668
      %v2670 = vmax.f32 %v2497, %v2586
      %2671 = vmax.xlane.f32.xlu0 %v2670
      %v2672 = vpop.xlane.xlu0 %2671
      %v2673 = vmax.f32 %v2499, %v2588
      %2674 = vmax.xlane.f32.xlu0 %v2673
      %v2675 = vpop.xlane.xlu0 %2674
      %v2676 = vmax.f32 %v2502, %v2591
      %2677 = vmax.xlane.f32.xlu0 %v2676
      %v2678 = vpop.xlane.xlu0 %2677
      %v2679 = vmax.f32 %v2504, %v2593
      %2680 = vmax.xlane.f32.xlu0 %v2679
      %v2681 = vpop.xlane.xlu0 %2680
      %v2682 = vmax.f32 %v2507, %v2596
      %2683 = vmax.xlane.f32.xlu0 %v2682
      %v2684 = vpop.xlane.xlu0 %2683
      %v2685 = vmax.f32 %v2509, %v2598
      %2686 = vmax.xlane.f32.xlu0 %v2685
      %v2687 = vpop.xlane.xlu0 %2686
      %v2688 = vmax.f32 %v2512, %v2601
      %2689 = vmax.xlane.f32.xlu0 %v2688
      %v2690 = vpop.xlane.xlu0 %2689
      %v2691 = vmax.f32 %v2514, %v2603
      %2692 = vmax.xlane.f32.xlu0 %v2691
      %v2693 = vpop.xlane.xlu0 %2692
      %v2694 = vmax.f32 %v2517, %v2606
      %2695 = vmax.xlane.f32.xlu0 %v2694
      %v2696 = vpop.xlane.xlu0 %2695
      %v2697 = vmax.f32 %v2519, %v2608
      %2698 = vmax.xlane.f32.xlu0 %v2697
      %v2699 = vpop.xlane.xlu0 %2698
      %v2700 = vmax.f32 %v2522, %v2611
      %2701 = vmax.xlane.f32.xlu0 %v2700
      %v2702 = vpop.xlane.xlu0 %2701
      %v2703 = vmax.f32 %v2524, %v2613
      %2704 = vmax.xlane.f32.xlu0 %v2703
      %v2705 = vpop.xlane.xlu0 %2704
      %v2706 = vmax.f32 %v2527, %v2616
      %2707 = vmax.xlane.f32.xlu0 %v2706
      %v2708 = vpop.xlane.xlu0 %2707
      %v2709 = vmax.f32 %v2529, %v2618
      %2710 = vmax.xlane.f32.xlu0 %v2709
      %v2711 = vpop.xlane.xlu0 %2710
      %v2712 = vmax.f32 %v2532, %v2621
      %2713 = vmax.xlane.f32.xlu0 %v2712
      %v2714 = vpop.xlane.xlu0 %2713
      %v2715 = vmax.f32 %v2534, %v2623
      %2716 = vmax.xlane.f32.xlu0 %v2715
      %v2717 = vpop.xlane.xlu0 %2716
      %v2718 = vmax.f32 %v2537, %v2626
      %2719 = vmax.xlane.f32.xlu0 %v2718
      %v2720 = vpop.xlane.xlu0 %2719
      %v2721 = vmax.f32 %v2539, %v2628
      %2722 = vmax.xlane.f32.xlu0 %v2721
      %v2723 = vpop.xlane.xlu0 %2722
      %v2724 = vmax.f32 %v2542, %v2631
      %2725 = vmax.xlane.f32.xlu0 %v2724
      %v2726 = vpop.xlane.xlu0 %2725
      %v2727 = vmax.f32 %v2544, %v2633
      %2728 = vmax.xlane.f32.xlu0 %v2727
      %v2729 = vpop.xlane.xlu0 %2728
      %v2730 = vmax.f32 %v2547, %v2636
      %2731 = vmax.xlane.f32.xlu0 %v2730
      %v2732 = vpop.xlane.xlu0 %2731
      %v2733 = vmax.f32 %v2549, %v2638
      %2734 = vmax.xlane.f32.xlu0 %v2733
      %v2735 = vpop.xlane.xlu0 %2734
      %v2736 = vsub.f32 %v2472, %v2642
      %v2737 = vsub.f32 %v2561, %v2642
      %v2738 = vsub.f32 %v2474, %v2645
      %v2739 = vsub.f32 %v2563, %v2645
      %v2740 = vsub.f32 %v2477, %v2648
      %v2741 = vsub.f32 %v2566, %v2648
      %v2742 = vsub.f32 %v2479, %v2651
      %v2743 = vsub.f32 %v2568, %v2651
      %v2744 = vsub.f32 %v2482, %v2654
      %v2745 = vsub.f32 %v2571, %v2654
      %v2746 = vsub.f32 %v2484, %v2657
      %v2747 = vsub.f32 %v2573, %v2657
      %v2748 = vsub.f32 %v2487, %v2660
      %v2749 = vsub.f32 %v2576, %v2660
      %v2750 = vsub.f32 %v2489, %v2663
      %v2751 = vsub.f32 %v2578, %v2663
      %v2752 = vsub.f32 %v2492, %v2666
      %v2753 = vsub.f32 %v2581, %v2666
      %v2754 = vsub.f32 %v2494, %v2669
      %v2755 = vsub.f32 %v2583, %v2669
      %v2756 = vsub.f32 %v2497, %v2672
      %v2757 = vsub.f32 %v2586, %v2672
      %v2758 = vsub.f32 %v2499, %v2675
      %v2759 = vsub.f32 %v2588, %v2675
      %v2760 = vsub.f32 %v2502, %v2678
      %v2761 = vsub.f32 %v2591, %v2678
      %v2762 = vsub.f32 %v2504, %v2681
      %v2763 = vsub.f32 %v2593, %v2681
      %v2764 = vsub.f32 %v2507, %v2684
      %v2765 = vsub.f32 %v2596, %v2684
      %v2766 = vsub.f32 %v2509, %v2687
      %v2767 = vsub.f32 %v2598, %v2687
      %v2768 = vsub.f32 %v2512, %v2690
      %v2769 = vsub.f32 %v2601, %v2690
      %v2770 = vsub.f32 %v2514, %v2693
      %v2771 = vsub.f32 %v2603, %v2693
      %v2772 = vsub.f32 %v2517, %v2696
      %v2773 = vsub.f32 %v2606, %v2696
      %v2774 = vsub.f32 %v2519, %v2699
      %v2775 = vsub.f32 %v2608, %v2699
      %v2776 = vsub.f32 %v2522, %v2702
      %v2777 = vsub.f32 %v2611, %v2702
      %v2778 = vsub.f32 %v2524, %v2705
      %v2779 = vsub.f32 %v2613, %v2705
      %v2780 = vsub.f32 %v2527, %v2708
      %v2781 = vsub.f32 %v2616, %v2708
      %v2782 = vsub.f32 %v2529, %v2711
      %v2783 = vsub.f32 %v2618, %v2711
      %v2784 = vsub.f32 %v2532, %v2714
      %v2785 = vsub.f32 %v2621, %v2714
      %v2786 = vsub.f32 %v2534, %v2717
      %v2787 = vsub.f32 %v2623, %v2717
      %v2788 = vsub.f32 %v2537, %v2720
      %v2789 = vsub.f32 %v2626, %v2720
      %v2790 = vsub.f32 %v2539, %v2723
      %v2791 = vsub.f32 %v2628, %v2723
      %v2792 = vsub.f32 %v2542, %v2726
      %v2793 = vsub.f32 %v2631, %v2726
      %v2794 = vsub.f32 %v2544, %v2729
      %v2795 = vsub.f32 %v2633, %v2729
      %v2796 = vsub.f32 %v2547, %v2732
      %v2797 = vsub.f32 %v2636, %v2732
      %v2798 = vsub.f32 %v2549, %v2735
      %v2799 = vsub.f32 %v2638, %v2735
      %v2800 = vmul.f32 %v2736, 1.442695
      %v2801 = vpow.pop %v2800
      %v2802 = vmul.f32 %v2737, 1.442695
      %v2803 = vpow.pop %v2802
      %v2804 = vmul.f32 %v2738, 1.442695
      %v2805 = vpow.pop %v2804
      %v2806 = vmul.f32 %v2739, 1.442695
      %v2807 = vpow.pop %v2806
      %v2808 = vmul.f32 %v2740, 1.442695
      %v2809 = vpow.pop %v2808
      %v2810 = vmul.f32 %v2741, 1.442695
      %v2811 = vpow.pop %v2810
      %v2812 = vmul.f32 %v2742, 1.442695
      %v2813 = vpow.pop %v2812
      %v2814 = vmul.f32 %v2743, 1.442695
      %v2815 = vpow.pop %v2814
      %v2816 = vmul.f32 %v2744, 1.442695
      %v2817 = vpow.pop %v2816
      %v2818 = vmul.f32 %v2745, 1.442695
      %v2819 = vpow.pop %v2818
      %v2820 = vmul.f32 %v2746, 1.442695
      %v2821 = vpow.pop %v2820
      %v2822 = vmul.f32 %v2747, 1.442695
      %v2823 = vpow.pop %v2822
      %v2824 = vmul.f32 %v2748, 1.442695
      %v2825 = vpow.pop %v2824
      %v2826 = vmul.f32 %v2749, 1.442695
      %v2827 = vpow.pop %v2826
      %v2828 = vmul.f32 %v2750, 1.442695
      %v2829 = vpow.pop %v2828
      %v2830 = vmul.f32 %v2751, 1.442695
      %v2831 = vpow.pop %v2830
      %v2832 = vmul.f32 %v2752, 1.442695
      %v2833 = vpow.pop %v2832
      %v2834 = vmul.f32 %v2753, 1.442695
      %v2835 = vpow.pop %v2834
      %v2836 = vmul.f32 %v2754, 1.442695
      %v2837 = vpow.pop %v2836
      %v2838 = vmul.f32 %v2755, 1.442695
      %v2839 = vpow.pop %v2838
      %v2840 = vmul.f32 %v2756, 1.442695
      %v2841 = vpow.pop %v2840
      %v2842 = vmul.f32 %v2757, 1.442695
      %v2843 = vpow.pop %v2842
      %v2844 = vmul.f32 %v2758, 1.442695
      %v2845 = vpow.pop %v2844
      %v2846 = vmul.f32 %v2759, 1.442695
      %v2847 = vpow.pop %v2846
      %v2848 = vmul.f32 %v2760, 1.442695
      %v2849 = vpow.pop %v2848
      %v2850 = vmul.f32 %v2761, 1.442695
      %v2851 = vpow.pop %v2850
      %v2852 = vmul.f32 %v2762, 1.442695
      %v2853 = vpow.pop %v2852
      %v2854 = vmul.f32 %v2763, 1.442695
      %v2855 = vpow.pop %v2854
      %v2856 = vmul.f32 %v2764, 1.442695
      %v2857 = vpow.pop %v2856
      %v2858 = vmul.f32 %v2765, 1.442695
      %v2859 = vpow.pop %v2858
      %v2860 = vmul.f32 %v2766, 1.442695
      %v2861 = vpow.pop %v2860
      %v2862 = vmul.f32 %v2767, 1.442695
      %v2863 = vpow.pop %v2862
      %v2864 = vmul.f32 %v2768, 1.442695
      %v2865 = vpow.pop %v2864
      %v2866 = vmul.f32 %v2769, 1.442695
      %v2867 = vpow.pop %v2866
      %v2868 = vmul.f32 %v2770, 1.442695
      %v2869 = vpow.pop %v2868
      %v2870 = vmul.f32 %v2771, 1.442695
      %v2871 = vpow.pop %v2870
      %v2872 = vmul.f32 %v2772, 1.442695
      %v2873 = vpow.pop %v2872
      %v2874 = vmul.f32 %v2773, 1.442695
      %v2875 = vpow.pop %v2874
      %v2876 = vmul.f32 %v2774, 1.442695
      %v2877 = vpow.pop %v2876
      %v2878 = vmul.f32 %v2775, 1.442695
      %v2879 = vpow.pop %v2878
      %v2880 = vmul.f32 %v2776, 1.442695
      %v2881 = vpow.pop %v2880
      %v2882 = vmul.f32 %v2777, 1.442695
      %v2883 = vpow.pop %v2882
      %v2884 = vmul.f32 %v2778, 1.442695
      %v2885 = vpow.pop %v2884
      %v2886 = vmul.f32 %v2779, 1.442695
      %v2887 = vpow.pop %v2886
      %v2888 = vmul.f32 %v2780, 1.442695
      %v2889 = vpow.pop %v2888
      %v2890 = vmul.f32 %v2781, 1.442695
      %v2891 = vpow.pop %v2890
      %v2892 = vmul.f32 %v2782, 1.442695
      %v2893 = vpow.pop %v2892
      %v2894 = vmul.f32 %v2783, 1.442695
      %v2895 = vpow.pop %v2894
      %v2896 = vmul.f32 %v2784, 1.442695
      %v2897 = vpow.pop %v2896
      %v2898 = vmul.f32 %v2785, 1.442695
      %v2899 = vpow.pop %v2898
      %v2900 = vmul.f32 %v2786, 1.442695
      %v2901 = vpow.pop %v2900
      %v2902 = vmul.f32 %v2787, 1.442695
      %v2903 = vpow.pop %v2902
      %v2904 = vmul.f32 %v2788, 1.442695
      %v2905 = vpow.pop %v2904
      %v2906 = vmul.f32 %v2789, 1.442695
      %v2907 = vpow.pop %v2906
      %v2908 = vmul.f32 %v2790, 1.442695
      %v2909 = vpow.pop %v2908
      %v2910 = vmul.f32 %v2791, 1.442695
      %v2911 = vpow.pop %v2910
      %v2912 = vmul.f32 %v2792, 1.442695
      %v2913 = vpow.pop %v2912
      %v2914 = vmul.f32 %v2793, 1.442695
      %v2915 = vpow.pop %v2914
      %v2916 = vmul.f32 %v2794, 1.442695
      %v2917 = vpow.pop %v2916
      %v2918 = vmul.f32 %v2795, 1.442695
      %v2919 = vpow.pop %v2918
      %v2920 = vmul.f32 %v2796, 1.442695
      %v2921 = vpow.pop %v2920
      %v2922 = vmul.f32 %v2797, 1.442695
      %v2923 = vpow.pop %v2922
      %v2924 = vmul.f32 %v2798, 1.442695
      %v2925 = vpow.pop %v2924
      %v2926 = vmul.f32 %v2799, 1.442695
      %v2927 = vpow.pop %v2926
      %v2928 = vadd.f32 %v2801, %v2803
      %2929 = vadd.xlane.f32.xlu0 %v2928
      %v2930 = vpop.xlane.xlu0 %2929
      %v2931 = vadd.f32 %v2805, %v2807
      %2932 = vadd.xlane.f32.xlu0 %v2931
      %v2933 = vpop.xlane.xlu0 %2932
      %v2934 = vadd.f32 %v2809, %v2811
      %2935 = vadd.xlane.f32.xlu0 %v2934
      %v2936 = vpop.xlane.xlu0 %2935
      %v2937 = vadd.f32 %v2813, %v2815
      %2938 = vadd.xlane.f32.xlu0 %v2937
      %v2939 = vpop.xlane.xlu0 %2938
      %v2940 = vadd.f32 %v2817, %v2819
      %2941 = vadd.xlane.f32.xlu0 %v2940
      %v2942 = vpop.xlane.xlu0 %2941
      %v2943 = vadd.f32 %v2821, %v2823
      %2944 = vadd.xlane.f32.xlu0 %v2943
      %v2945 = vpop.xlane.xlu0 %2944
      %v2946 = vadd.f32 %v2825, %v2827
      %2947 = vadd.xlane.f32.xlu0 %v2946
      %v2948 = vpop.xlane.xlu0 %2947
      %v2949 = vadd.f32 %v2829, %v2831
      %2950 = vadd.xlane.f32.xlu0 %v2949
      %v2951 = vpop.xlane.xlu0 %2950
      %v2952 = vadd.f32 %v2833, %v2835
      %2953 = vadd.xlane.f32.xlu0 %v2952
      %v2954 = vpop.xlane.xlu0 %2953
      %v2955 = vadd.f32 %v2837, %v2839
      %2956 = vadd.xlane.f32.xlu0 %v2955
      %v2957 = vpop.xlane.xlu0 %2956
      %v2958 = vadd.f32 %v2841, %v2843
      %2959 = vadd.xlane.f32.xlu0 %v2958
      %v2960 = vpop.xlane.xlu0 %2959
      %v2961 = vadd.f32 %v2845, %v2847
      %2962 = vadd.xlane.f32.xlu0 %v2961
      %v2963 = vpop.xlane.xlu0 %2962
      %v2964 = vadd.f32 %v2849, %v2851
      %2965 = vadd.xlane.f32.xlu0 %v2964
      %v2966 = vpop.xlane.xlu0 %2965
      %v2967 = vadd.f32 %v2853, %v2855
      %2968 = vadd.xlane.f32.xlu0 %v2967
      %v2969 = vpop.xlane.xlu0 %2968
      %v2970 = vadd.f32 %v2857, %v2859
      %2971 = vadd.xlane.f32.xlu0 %v2970
      %v2972 = vpop.xlane.xlu0 %2971
      %v2973 = vadd.f32 %v2861, %v2863
      %2974 = vadd.xlane.f32.xlu0 %v2973
      %v2975 = vpop.xlane.xlu0 %2974
      %v2976 = vadd.f32 %v2865, %v2867
      %2977 = vadd.xlane.f32.xlu0 %v2976
      %v2978 = vpop.xlane.xlu0 %2977
      %v2979 = vadd.f32 %v2869, %v2871
      %2980 = vadd.xlane.f32.xlu0 %v2979
      %v2981 = vpop.xlane.xlu0 %2980
      %v2982 = vadd.f32 %v2873, %v2875
      %2983 = vadd.xlane.f32.xlu0 %v2982
      %v2984 = vpop.xlane.xlu0 %2983
      %v2985 = vadd.f32 %v2877, %v2879
      %2986 = vadd.xlane.f32.xlu0 %v2985
      %v2987 = vpop.xlane.xlu0 %2986
      %v2988 = vadd.f32 %v2881, %v2883
      %2989 = vadd.xlane.f32.xlu0 %v2988
      %v2990 = vpop.xlane.xlu0 %2989
      %v2991 = vadd.f32 %v2885, %v2887
      %2992 = vadd.xlane.f32.xlu0 %v2991
      %v2993 = vpop.xlane.xlu0 %2992
      %v2994 = vadd.f32 %v2889, %v2891
      %2995 = vadd.xlane.f32.xlu0 %v2994
      %v2996 = vpop.xlane.xlu0 %2995
      %v2997 = vadd.f32 %v2893, %v2895
      %2998 = vadd.xlane.f32.xlu0 %v2997
      %v2999 = vpop.xlane.xlu0 %2998
      %v3000 = vadd.f32 %v2897, %v2899
      %3001 = vadd.xlane.f32.xlu0 %v3000
      %v3002 = vpop.xlane.xlu0 %3001
      %v3003 = vadd.f32 %v2901, %v2903
      %3004 = vadd.xlane.f32.xlu0 %v3003
      %v3005 = vpop.xlane.xlu0 %3004
      %v3006 = vadd.f32 %v2905, %v2907
      %3007 = vadd.xlane.f32.xlu0 %v3006
      %v3008 = vpop.xlane.xlu0 %3007
      %v3009 = vadd.f32 %v2909, %v2911
      %3010 = vadd.xlane.f32.xlu0 %v3009
      %v3011 = vpop.xlane.xlu0 %3010
      %v3012 = vadd.f32 %v2913, %v2915
      %3013 = vadd.xlane.f32.xlu0 %v3012
      %v3014 = vpop.xlane.xlu0 %3013
      %v3015 = vadd.f32 %v2917, %v2919
      %3016 = vadd.xlane.f32.xlu0 %v3015
      %v3017 = vpop.xlane.xlu0 %3016
      %v3018 = vadd.f32 %v2921, %v2923
      %3019 = vadd.xlane.f32.xlu0 %v3018
      %v3020 = vpop.xlane.xlu0 %3019
      %v3021 = vadd.f32 %v2925, %v2927
      %3022 = vadd.xlane.f32.xlu0 %v3021
      %v3023 = vpop.xlane.xlu0 %3022
      %v3024 = vpack.c.bf16 %v2805, %v2801
      %v3025 = vpack.c.bf16 %v2807, %v2803
      %v3026 = vpack.c.bf16 %v2813, %v2809
      %v3027 = vpack.c.bf16 %v2815, %v2811
      %v3028 = vpack.c.bf16 %v2821, %v2817
      %v3029 = vpack.c.bf16 %v2823, %v2819
      %v3030 = vpack.c.bf16 %v2829, %v2825
      %v3031 = vpack.c.bf16 %v2831, %v2827
      %v3032 = vpack.c.bf16 %v2837, %v2833
      %v3033 = vpack.c.bf16 %v2839, %v2835
      %v3034 = vpack.c.bf16 %v2845, %v2841
      %v3035 = vpack.c.bf16 %v2847, %v2843
      %v3036 = vpack.c.bf16 %v2853, %v2849
      %v3037 = vpack.c.bf16 %v2855, %v2851
      %v3038 = vpack.c.bf16 %v2861, %v2857
      %v3039 = vpack.c.bf16 %v2863, %v2859
      %v3040 = vpack.c.bf16 %v2869, %v2865
      %v3041 = vpack.c.bf16 %v2871, %v2867
      %v3042 = vpack.c.bf16 %v2877, %v2873
      %v3043 = vpack.c.bf16 %v2879, %v2875
      %v3044 = vpack.c.bf16 %v2885, %v2881
      %v3045 = vpack.c.bf16 %v2887, %v2883
      %v3046 = vpack.c.bf16 %v2893, %v2889
      %v3047 = vpack.c.bf16 %v2895, %v2891
      %v3048 = vpack.c.bf16 %v2901, %v2897
      %v3049 = vpack.c.bf16 %v2903, %v2899
      %v3050 = vpack.c.bf16 %v2909, %v2905
      %v3051 = vpack.c.bf16 %v2911, %v2907
      %v3052 = vpack.c.bf16 %v2917, %v2913
      %v3053 = vpack.c.bf16 %v2919, %v2915
      %v3054 = vpack.c.bf16 %v2925, %v2921
      %v3055 = vpack.c.bf16 %v2927, %v2923
      %3056 = vrot.lane.b32.xlu0 %v197, 48
      %v3057 = vpop.permute.xlu0 %3056
      %3058 = vrot.lane.b32.xlu0 %v198, 48
      %v3059 = vpop.permute.xlu0 %3058
      %3060 = vrot.lane.b32.xlu0 %v199, 48
      %v3061 = vpop.permute.xlu0 %3060
      %3062 = vrot.lane.b32.xlu0 %v200, 48
      %v3063 = vpop.permute.xlu0 %3062
      %3064 = vrot.lane.b32.xlu0 %v201, 48
      %v3065 = vpop.permute.xlu0 %3064
      %3066 = vrot.lane.b32.xlu0 %v202, 48
      %v3067 = vpop.permute.xlu0 %3066
      %3068 = vrot.lane.b32.xlu0 %v203, 48
      %v3069 = vpop.permute.xlu0 %3068
      %3070 = vrot.lane.b32.xlu0 %v204, 48
      %v3071 = vpop.permute.xlu0 %3070
      %3072 = vrot.lane.b32.xlu0 %v205, 48
      %v3073 = vpop.permute.xlu0 %3072
      %3074 = vrot.lane.b32.xlu0 %v206, 48
      %v3075 = vpop.permute.xlu0 %3074
      %3076 = vrot.lane.b32.xlu0 %v207, 48
      %v3077 = vpop.permute.xlu0 %3076
      %3078 = vrot.lane.b32.xlu0 %v208, 48
      %v3079 = vpop.permute.xlu0 %3078
      %3080 = vrot.lane.b32.xlu0 %v209, 48
      %v3081 = vpop.permute.xlu0 %3080
      %3082 = vrot.lane.b32.xlu0 %v210, 48
      %v3083 = vpop.permute.xlu0 %3082
      %3084 = vrot.lane.b32.xlu0 %v211, 48
      %v3085 = vpop.permute.xlu0 %3084
      %3086 = vrot.lane.b32.xlu0 %v212, 48
      %v3087 = vpop.permute.xlu0 %3086
      %3104 = vmatpush.bf16.msra.mxu0 %v3071
      %3105 = vmatpush.bf16.msra.mxu0 %v3069
      %3106 = vmatpush.bf16.msra.mxu0 %v3067
      %3107 = vmatpush.bf16.msra.mxu0 %v3065
      %3108 = vmatpush.bf16.msra.mxu0 %v3063
      %3109 = vmatpush.bf16.msra.mxu0 %v3061
      %3110 = vmatpush.bf16.msra.mxu0 %v3059
      %3111 = vmatpush.bf16.msra.mxu0 %v3057
      %3112 = vmatmul.bf16.gmra.mxu0 %v3024
      %v3113 = vpop.f32.mrf.mxu0
      %v3114 = vadd.f32 0.0, %v3113
      %v3115 = vpop.f32.mrf.mxu0
      %v3116 = vadd.f32 0.0, %v3115
      %3117 = vmatmul.bf16.gmra.mxu0 %v3026
      %v3118 = vpop.f32.mrf.mxu0
      %v3119 = vadd.f32 0.0, %v3118
      %v3120 = vpop.f32.mrf.mxu0
      %v3121 = vadd.f32 0.0, %v3120
      %3122 = vmatmul.bf16.gmra.mxu0 %v3028
      %v3123 = vpop.f32.mrf.mxu0
      %v3124 = vadd.f32 0.0, %v3123
      %v3125 = vpop.f32.mrf.mxu0
      %v3126 = vadd.f32 0.0, %v3125
      %3127 = vmatmul.bf16.gmra.mxu0 %v3030
      %v3128 = vpop.f32.mrf.mxu0
      %v3129 = vadd.f32 0.0, %v3128
      %v3130 = vpop.f32.mrf.mxu0
      %v3131 = vadd.f32 0.0, %v3130
      %3132 = vmatmul.bf16.gmra.mxu0 %v3032
      %v3133 = vpop.f32.mrf.mxu0
      %v3134 = vadd.f32 0.0, %v3133
      %v3135 = vpop.f32.mrf.mxu0
      %v3136 = vadd.f32 0.0, %v3135
      %3137 = vmatmul.bf16.gmra.mxu0 %v3034
      %v3138 = vpop.f32.mrf.mxu0
      %v3139 = vadd.f32 0.0, %v3138
      %v3140 = vpop.f32.mrf.mxu0
      %v3141 = vadd.f32 0.0, %v3140
      %3142 = vmatmul.bf16.gmra.mxu0 %v3036
      %v3143 = vpop.f32.mrf.mxu0
      %v3144 = vadd.f32 0.0, %v3143
      %v3145 = vpop.f32.mrf.mxu0
      %v3146 = vadd.f32 0.0, %v3145
      %3147 = vmatmul.bf16.gmra.mxu0 %v3038
      %v3148 = vpop.f32.mrf.mxu0
      %v3149 = vadd.f32 0.0, %v3148
      %v3150 = vpop.f32.mrf.mxu0
      %v3151 = vadd.f32 0.0, %v3150
      %3152 = vmatmul.bf16.gmra.mxu0 %v3040
      %v3153 = vpop.f32.mrf.mxu0
      %v3154 = vadd.f32 0.0, %v3153
      %v3155 = vpop.f32.mrf.mxu0
      %v3156 = vadd.f32 0.0, %v3155
      %3157 = vmatmul.bf16.gmra.mxu0 %v3042
      %v3158 = vpop.f32.mrf.mxu0
      %v3159 = vadd.f32 0.0, %v3158
      %v3160 = vpop.f32.mrf.mxu0
      %v3161 = vadd.f32 0.0, %v3160
      %3162 = vmatmul.bf16.gmra.mxu0 %v3044
      %v3163 = vpop.f32.mrf.mxu0
      %v3164 = vadd.f32 0.0, %v3163
      %v3165 = vpop.f32.mrf.mxu0
      %v3166 = vadd.f32 0.0, %v3165
      %3167 = vmatmul.bf16.gmra.mxu0 %v3046
      %v3168 = vpop.f32.mrf.mxu0
      %v3169 = vadd.f32 0.0, %v3168
      %v3170 = vpop.f32.mrf.mxu0
      %v3171 = vadd.f32 0.0, %v3170
      %3172 = vmatmul.bf16.gmra.mxu0 %v3048
      %v3173 = vpop.f32.mrf.mxu0
      %v3174 = vadd.f32 0.0, %v3173
      %v3175 = vpop.f32.mrf.mxu0
      %v3176 = vadd.f32 0.0, %v3175
      %3177 = vmatmul.bf16.gmra.mxu0 %v3050
      %v3178 = vpop.f32.mrf.mxu0
      %v3179 = vadd.f32 0.0, %v3178
      %v3180 = vpop.f32.mrf.mxu0
      %v3181 = vadd.f32 0.0, %v3180
      %3182 = vmatmul.bf16.gmra.mxu0 %v3052
      %v3183 = vpop.f32.mrf.mxu0
      %v3184 = vadd.f32 0.0, %v3183
      %v3185 = vpop.f32.mrf.mxu0
      %v3186 = vadd.f32 0.0, %v3185
      %3187 = vmatmul.bf16.gmra.mxu0 %v3054
      %v3188 = vpop.f32.mrf.mxu0
      %v3189 = vadd.f32 0.0, %v3188
      %v3190 = vpop.f32.mrf.mxu0
      %v3191 = vadd.f32 0.0, %v3190
      %3192 = vdwg.mxu0
      %3193 = vmatpush.bf16.msra.mxu0 %v3087
      %3194 = vmatpush.bf16.msra.mxu0 %v3085
      %3195 = vmatpush.bf16.msra.mxu0 %v3083
      %3196 = vmatpush.bf16.msra.mxu0 %v3081
      %3197 = vmatpush.bf16.msra.mxu0 %v3079
      %3198 = vmatpush.bf16.msra.mxu0 %v3077
      %3199 = vmatpush.bf16.msra.mxu0 %v3075
      %3200 = vmatpush.bf16.msra.mxu0 %v3073
      %3201 = vmatmul.bf16.gmra.mxu0 %v3025
      %v3202 = vpop.f32.mrf.mxu0
      %v3203 = vadd.f32 %v3114, %v3202
      %v3204 = vpop.f32.mrf.mxu0
      %v3205 = vadd.f32 %v3116, %v3204
      %3206 = vmatmul.bf16.gmra.mxu0 %v3027
      %v3207 = vpop.f32.mrf.mxu0
      %v3208 = vadd.f32 %v3119, %v3207
      %v3209 = vpop.f32.mrf.mxu0
      %v3210 = vadd.f32 %v3121, %v3209
      %3211 = vmatmul.bf16.gmra.mxu0 %v3029
      %v3212 = vpop.f32.mrf.mxu0
      %v3213 = vadd.f32 %v3124, %v3212
      %v3214 = vpop.f32.mrf.mxu0
      %v3215 = vadd.f32 %v3126, %v3214
      %3216 = vmatmul.bf16.gmra.mxu0 %v3031
      %v3217 = vpop.f32.mrf.mxu0
      %v3218 = vadd.f32 %v3129, %v3217
      %v3219 = vpop.f32.mrf.mxu0
      %v3220 = vadd.f32 %v3131, %v3219
      %3221 = vmatmul.bf16.gmra.mxu0 %v3033
      %v3222 = vpop.f32.mrf.mxu0
      %v3223 = vadd.f32 %v3134, %v3222
      %v3224 = vpop.f32.mrf.mxu0
      %v3225 = vadd.f32 %v3136, %v3224
      %3226 = vmatmul.bf16.gmra.mxu0 %v3035
      %v3227 = vpop.f32.mrf.mxu0
      %v3228 = vadd.f32 %v3139, %v3227
      %v3229 = vpop.f32.mrf.mxu0
      %v3230 = vadd.f32 %v3141, %v3229
      %3231 = vmatmul.bf16.gmra.mxu0 %v3037
      %v3232 = vpop.f32.mrf.mxu0
      %v3233 = vadd.f32 %v3144, %v3232
      %v3234 = vpop.f32.mrf.mxu0
      %v3235 = vadd.f32 %v3146, %v3234
      %3236 = vmatmul.bf16.gmra.mxu0 %v3039
      %v3237 = vpop.f32.mrf.mxu0
      %v3238 = vadd.f32 %v3149, %v3237
      %v3239 = vpop.f32.mrf.mxu0
      %v3240 = vadd.f32 %v3151, %v3239
      %3241 = vmatmul.bf16.gmra.mxu0 %v3041
      %v3242 = vpop.f32.mrf.mxu0
      %v3243 = vadd.f32 %v3154, %v3242
      %v3244 = vpop.f32.mrf.mxu0
      %v3245 = vadd.f32 %v3156, %v3244
      %3246 = vmatmul.bf16.gmra.mxu0 %v3043
      %v3247 = vpop.f32.mrf.mxu0
      %v3248 = vadd.f32 %v3159, %v3247
      %v3249 = vpop.f32.mrf.mxu0
      %v3250 = vadd.f32 %v3161, %v3249
      %3251 = vmatmul.bf16.gmra.mxu0 %v3045
      %v3252 = vpop.f32.mrf.mxu0
      %v3253 = vadd.f32 %v3164, %v3252
      %v3254 = vpop.f32.mrf.mxu0
      %v3255 = vadd.f32 %v3166, %v3254
      %3256 = vmatmul.bf16.gmra.mxu0 %v3047
      %v3257 = vpop.f32.mrf.mxu0
      %v3258 = vadd.f32 %v3169, %v3257
      %v3259 = vpop.f32.mrf.mxu0
      %v3260 = vadd.f32 %v3171, %v3259
      %3261 = vmatmul.bf16.gmra.mxu0 %v3049
      %v3262 = vpop.f32.mrf.mxu0
      %v3263 = vadd.f32 %v3174, %v3262
      %v3264 = vpop.f32.mrf.mxu0
      %v3265 = vadd.f32 %v3176, %v3264
      %3266 = vmatmul.bf16.gmra.mxu0 %v3051
      %v3267 = vpop.f32.mrf.mxu0
      %v3268 = vadd.f32 %v3179, %v3267
      %v3269 = vpop.f32.mrf.mxu0
      %v3270 = vadd.f32 %v3181, %v3269
      %3271 = vmatmul.bf16.gmra.mxu0 %v3053
      %v3272 = vpop.f32.mrf.mxu0
      %v3273 = vadd.f32 %v3184, %v3272
      %v3274 = vpop.f32.mrf.mxu0
      %v3275 = vadd.f32 %v3186, %v3274
      %3276 = vmatmul.bf16.gmra.mxu0 %v3055
      %v3277 = vpop.f32.mrf.mxu0
      %v3278 = vadd.f32 %v3189, %v3277
      %v3279 = vpop.f32.mrf.mxu0
      %v3280 = vadd.f32 %v3191, %v3279
      %3281 = vdwg.mxu0
      %v3282 = vrcp.pop %v2930
      %v3283 = vrcp.pop %v2933
      %v3284 = vrcp.pop %v2936
      %v3285 = vrcp.pop %v2939
      %v3286 = vrcp.pop %v2942
      %v3287 = vrcp.pop %v2945
      %v3288 = vrcp.pop %v2948
      %v3289 = vrcp.pop %v2951
      %v3290 = vrcp.pop %v2954
      %v3291 = vrcp.pop %v2957
      %v3292 = vrcp.pop %v2960
      %v3293 = vrcp.pop %v2963
      %v3294 = vrcp.pop %v2966
      %v3295 = vrcp.pop %v2969
      %v3296 = vrcp.pop %v2972
      %v3297 = vrcp.pop %v2975
      %v3298 = vrcp.pop %v2978
      %v3299 = vrcp.pop %v2981
      %v3300 = vrcp.pop %v2984
      %v3301 = vrcp.pop %v2987
      %v3302 = vrcp.pop %v2990
      %v3303 = vrcp.pop %v2993
      %v3304 = vrcp.pop %v2996
      %v3305 = vrcp.pop %v2999
      %v3306 = vrcp.pop %v3002
      %v3307 = vrcp.pop %v3005
      %v3308 = vrcp.pop %v3008
      %v3309 = vrcp.pop %v3011
      %v3310 = vrcp.pop %v3014
      %v3311 = vrcp.pop %v3017
      %v3312 = vrcp.pop %v3020
      %v3313 = vrcp.pop %v3023
      %v3314 = vmul.f32 %v3203, %v3282
      %v3315 = vmul.f32 %v3205, %v3283
      %v3316 = vmul.f32 %v3208, %v3284
      %v3317 = vmul.f32 %v3210, %v3285
      %v3318 = vmul.f32 %v3213, %v3286
      %v3319 = vmul.f32 %v3215, %v3287
      %v3320 = vmul.f32 %v3218, %v3288
      %v3321 = vmul.f32 %v3220, %v3289
      %v3322 = vmul.f32 %v3223, %v3290
      %v3323 = vmul.f32 %v3225, %v3291
      %v3324 = vmul.f32 %v3228, %v3292
      %v3325 = vmul.f32 %v3230, %v3293
      %v3326 = vmul.f32 %v3233, %v3294
      %v3327 = vmul.f32 %v3235, %v3295
      %v3328 = vmul.f32 %v3238, %v3296
      %v3329 = vmul.f32 %v3240, %v3297
      %v3330 = vmul.f32 %v3243, %v3298
      %v3331 = vmul.f32 %v3245, %v3299
      %v3332 = vmul.f32 %v3248, %v3300
      %v3333 = vmul.f32 %v3250, %v3301
      %v3334 = vmul.f32 %v3253, %v3302
      %v3335 = vmul.f32 %v3255, %v3303
      %v3336 = vmul.f32 %v3258, %v3304
      %v3337 = vmul.f32 %v3260, %v3305
      %v3338 = vmul.f32 %v3263, %v3306
      %v3339 = vmul.f32 %v3265, %v3307
      %v3340 = vmul.f32 %v3268, %v3308
      %v3341 = vmul.f32 %v3270, %v3309
      %v3342 = vmul.f32 %v3273, %v3310
      %v3343 = vmul.f32 %v3275, %v3311
      %v3344 = vmul.f32 %v3278, %v3312
      %v3345 = vmul.f32 %v3280, %v3313
      %3346 = vrot.lane.b32.xlu0 %v181, 104
      %v3347 = vpop.permute.xlu0 %3346
      %3348 = vrot.lane.b32.xlu0 %v182, 104
      %v3349 = vpop.permute.xlu0 %3348
      %3350 = vrot.lane.b32.xlu0 %v183, 104
      %v3351 = vpop.permute.xlu0 %3350
      %3352 = vrot.lane.b32.xlu0 %v184, 104
      %v3353 = vpop.permute.xlu0 %3352
      %3354 = vrot.lane.b32.xlu0 %v185, 104
      %v3355 = vpop.permute.xlu0 %3354
      %3356 = vrot.lane.b32.xlu0 %v186, 104
      %v3357 = vpop.permute.xlu0 %3356
      %3358 = vrot.lane.b32.xlu0 %v187, 104
      %v3359 = vpop.permute.xlu0 %3358
      %3360 = vrot.lane.b32.xlu0 %v188, 104
      %v3361 = vpop.permute.xlu0 %3360
      %3362 = vrot.lane.b32.xlu0 %v189, 104
      %v3363 = vpop.permute.xlu0 %3362
      %3364 = vrot.lane.b32.xlu0 %v190, 104
      %v3365 = vpop.permute.xlu0 %3364
      %3366 = vrot.lane.b32.xlu0 %v191, 104
      %v3367 = vpop.permute.xlu0 %3366
      %3368 = vrot.lane.b32.xlu0 %v192, 104
      %v3369 = vpop.permute.xlu0 %3368
      %3370 = vrot.lane.b32.xlu0 %v193, 104
      %v3371 = vpop.permute.xlu0 %3370
      %3372 = vrot.lane.b32.xlu0 %v194, 104
      %v3373 = vpop.permute.xlu0 %3372
      %3374 = vrot.lane.b32.xlu0 %v195, 104
      %v3375 = vpop.permute.xlu0 %3374
      %3376 = vrot.lane.b32.xlu0 %v196, 104
      %v3377 = vpop.permute.xlu0 %3376
      %3378 = vrot.lane.b32.xlu0 %v197, 72
      %v3379 = vpop.permute.xlu0 %3378
      %3380 = vrot.lane.b32.xlu0 %v198, 72
      %v3381 = vpop.permute.xlu0 %3380
      %3382 = vrot.lane.b32.xlu0 %v199, 72
      %v3383 = vpop.permute.xlu0 %3382
      %3384 = vrot.lane.b32.xlu0 %v200, 72
      %v3385 = vpop.permute.xlu0 %3384
      %3386 = vrot.lane.b32.xlu0 %v201, 72
      %v3387 = vpop.permute.xlu0 %3386
      %3388 = vrot.lane.b32.xlu0 %v202, 72
      %v3389 = vpop.permute.xlu0 %3388
      %3390 = vrot.lane.b32.xlu0 %v203, 72
      %v3391 = vpop.permute.xlu0 %3390
      %3392 = vrot.lane.b32.xlu0 %v204, 72
      %v3393 = vpop.permute.xlu0 %3392
      %3394 = vrot.lane.b32.xlu0 %v205, 72
      %v3395 = vpop.permute.xlu0 %3394
      %3396 = vrot.lane.b32.xlu0 %v206, 72
      %v3397 = vpop.permute.xlu0 %3396
      %3398 = vrot.lane.b32.xlu0 %v207, 72
      %v3399 = vpop.permute.xlu0 %3398
      %3400 = vrot.lane.b32.xlu0 %v208, 72
      %v3401 = vpop.permute.xlu0 %3400
      %3402 = vrot.lane.b32.xlu0 %v209, 72
      %v3403 = vpop.permute.xlu0 %3402
      %3404 = vrot.lane.b32.xlu0 %v210, 72
      %v3405 = vpop.permute.xlu0 %3404
      %3406 = vrot.lane.b32.xlu0 %v211, 72
      %v3407 = vpop.permute.xlu0 %3406
      %3408 = vrot.lane.b32.xlu0 %v212, 72
      %v3409 = vpop.permute.xlu0 %3408
      %v3411 = vsel %vm261, %v3347, 0
      %v3414 = vsel %vm261, %v3349, 0
      %v3417 = vsel %vm261, %v3351, 0
      %v3420 = vsel %vm261, %v3353, 0
      %v3423 = vsel %vm261, %v3355, 0
      %v3426 = vsel %vm261, %v3357, 0
      %v3429 = vsel %vm261, %v3359, 0
      %v3432 = vsel %vm261, %v3361, 0
      %v3435 = vsel %vm261, %v3363, 0
      %v3438 = vsel %vm261, %v3365, 0
      %v3441 = vsel %vm261, %v3367, 0
      %v3444 = vsel %vm261, %v3369, 0
      %v3447 = vsel %vm261, %v3371, 0
      %v3450 = vsel %vm261, %v3373, 0
      %v3453 = vsel %vm261, %v3375, 0
      %v3456 = vsel %vm261, %v3377, 0
      %v3459 = vsel %vm261, %v3379, 0
      %v3462 = vsel %vm261, %v3381, 0
      %v3465 = vsel %vm261, %v3383, 0
      %v3468 = vsel %vm261, %v3385, 0
      %v3471 = vsel %vm261, %v3387, 0
      %v3474 = vsel %vm261, %v3389, 0
      %v3477 = vsel %vm261, %v3391, 0
      %v3480 = vsel %vm261, %v3393, 0
      %v3483 = vsel %vm261, %v3395, 0
      %v3486 = vsel %vm261, %v3397, 0
      %v3489 = vsel %vm261, %v3399, 0
      %v3492 = vsel %vm261, %v3401, 0
      %v3495 = vsel %vm261, %v3403, 0
      %v3498 = vsel %vm261, %v3405, 0
      %v3501 = vsel %vm261, %v3407, 0
      %v3504 = vsel %vm261, %v3409, 0
      %3506 = vmatpush.bf16.xpose.msra.mxu0 %v3480
      %3507 = vmatpush.bf16.xpose.msra.mxu0 %v3477
      %3508 = vmatpush.bf16.xpose.msra.mxu0 %v3474
      %3509 = vmatpush.bf16.xpose.msra.mxu0 %v3471
      %3510 = vmatpush.bf16.xpose.msra.mxu0 %v3468
      %3511 = vmatpush.bf16.xpose.msra.mxu0 %v3465
      %3512 = vmatpush.bf16.xpose.msra.mxu0 %v3462
      %3513 = vmatpush.bf16.xpose.msra.mxu0 %v3459
      %3514 = vmatmul.bf16.gmra.mxu0 %v3411
      %v3515 = vpop.f32.mrf.mxu0
      %v3516 = vadd.f32 0.0, %v3515
      %v3517 = vpop.f32.mrf.mxu0
      %v3518 = vadd.f32 0.0, %v3517
      %3519 = vmatmul.bf16.gmra.mxu0 %v3414
      %v3520 = vpop.f32.mrf.mxu0
      %v3521 = vadd.f32 0.0, %v3520
      %v3522 = vpop.f32.mrf.mxu0
      %v3523 = vadd.f32 0.0, %v3522
      %3524 = vmatmul.bf16.gmra.mxu0 %v3417
      %v3525 = vpop.f32.mrf.mxu0
      %v3526 = vadd.f32 0.0, %v3525
      %v3527 = vpop.f32.mrf.mxu0
      %v3528 = vadd.f32 0.0, %v3527
      %3529 = vmatmul.bf16.gmra.mxu0 %v3420
      %v3530 = vpop.f32.mrf.mxu0
      %v3531 = vadd.f32 0.0, %v3530
      %v3532 = vpop.f32.mrf.mxu0
      %v3533 = vadd.f32 0.0, %v3532
      %3534 = vmatmul.bf16.gmra.mxu0 %v3423
      %v3535 = vpop.f32.mrf.mxu0
      %v3536 = vadd.f32 0.0, %v3535
      %v3537 = vpop.f32.mrf.mxu0
      %v3538 = vadd.f32 0.0, %v3537
      %3539 = vmatmul.bf16.gmra.mxu0 %v3426
      %v3540 = vpop.f32.mrf.mxu0
      %v3541 = vadd.f32 0.0, %v3540
      %v3542 = vpop.f32.mrf.mxu0
      %v3543 = vadd.f32 0.0, %v3542
      %3544 = vmatmul.bf16.gmra.mxu0 %v3429
      %v3545 = vpop.f32.mrf.mxu0
      %v3546 = vadd.f32 0.0, %v3545
      %v3547 = vpop.f32.mrf.mxu0
      %v3548 = vadd.f32 0.0, %v3547
      %3549 = vmatmul.bf16.gmra.mxu0 %v3432
      %v3550 = vpop.f32.mrf.mxu0
      %v3551 = vadd.f32 0.0, %v3550
      %v3552 = vpop.f32.mrf.mxu0
      %v3553 = vadd.f32 0.0, %v3552
      %3554 = vmatmul.bf16.gmra.mxu0 %v3435
      %v3555 = vpop.f32.mrf.mxu0
      %v3556 = vadd.f32 0.0, %v3555
      %v3557 = vpop.f32.mrf.mxu0
      %v3558 = vadd.f32 0.0, %v3557
      %3559 = vmatmul.bf16.gmra.mxu0 %v3438
      %v3560 = vpop.f32.mrf.mxu0
      %v3561 = vadd.f32 0.0, %v3560
      %v3562 = vpop.f32.mrf.mxu0
      %v3563 = vadd.f32 0.0, %v3562
      %3564 = vmatmul.bf16.gmra.mxu0 %v3441
      %v3565 = vpop.f32.mrf.mxu0
      %v3566 = vadd.f32 0.0, %v3565
      %v3567 = vpop.f32.mrf.mxu0
      %v3568 = vadd.f32 0.0, %v3567
      %3569 = vmatmul.bf16.gmra.mxu0 %v3444
      %v3570 = vpop.f32.mrf.mxu0
      %v3571 = vadd.f32 0.0, %v3570
      %v3572 = vpop.f32.mrf.mxu0
      %v3573 = vadd.f32 0.0, %v3572
      %3574 = vmatmul.bf16.gmra.mxu0 %v3447
      %v3575 = vpop.f32.mrf.mxu0
      %v3576 = vadd.f32 0.0, %v3575
      %v3577 = vpop.f32.mrf.mxu0
      %v3578 = vadd.f32 0.0, %v3577
      %3579 = vmatmul.bf16.gmra.mxu0 %v3450
      %v3580 = vpop.f32.mrf.mxu0
      %v3581 = vadd.f32 0.0, %v3580
      %v3582 = vpop.f32.mrf.mxu0
      %v3583 = vadd.f32 0.0, %v3582
      %3584 = vmatmul.bf16.gmra.mxu0 %v3453
      %v3585 = vpop.f32.mrf.mxu0
      %v3586 = vadd.f32 0.0, %v3585
      %v3587 = vpop.f32.mrf.mxu0
      %v3588 = vadd.f32 0.0, %v3587
      %3589 = vmatmul.bf16.gmra.mxu0 %v3456
      %v3590 = vpop.f32.mrf.mxu0
      %v3591 = vadd.f32 0.0, %v3590
      %v3592 = vpop.f32.mrf.mxu0
      %v3593 = vadd.f32 0.0, %v3592
      %3594 = vdwg.mxu0
      %3595 = vmatpush.bf16.xpose.msra.mxu0 %v3504
      %3596 = vmatpush.bf16.xpose.msra.mxu0 %v3501
      %3597 = vmatpush.bf16.xpose.msra.mxu0 %v3498
      %3598 = vmatpush.bf16.xpose.msra.mxu0 %v3495
      %3599 = vmatpush.bf16.xpose.msra.mxu0 %v3492
      %3600 = vmatpush.bf16.xpose.msra.mxu0 %v3489
      %3601 = vmatpush.bf16.xpose.msra.mxu0 %v3486
      %3602 = vmatpush.bf16.xpose.msra.mxu0 %v3483
      %3603 = vmatmul.bf16.gmra.mxu0 %v3411
      %v3604 = vpop.f32.mrf.mxu0
      %v3605 = vadd.f32 0.0, %v3604
      %v3606 = vpop.f32.mrf.mxu0
      %v3607 = vadd.f32 0.0, %v3606
      %3608 = vmatmul.bf16.gmra.mxu0 %v3414
      %v3609 = vpop.f32.mrf.mxu0
      %v3610 = vadd.f32 0.0, %v3609
      %v3611 = vpop.f32.mrf.mxu0
      %v3612 = vadd.f32 0.0, %v3611
      %3613 = vmatmul.bf16.gmra.mxu0 %v3417
      %v3614 = vpop.f32.mrf.mxu0
      %v3615 = vadd.f32 0.0, %v3614
      %v3616 = vpop.f32.mrf.mxu0
      %v3617 = vadd.f32 0.0, %v3616
      %3618 = vmatmul.bf16.gmra.mxu0 %v3420
      %v3619 = vpop.f32.mrf.mxu0
      %v3620 = vadd.f32 0.0, %v3619
      %v3621 = vpop.f32.mrf.mxu0
      %v3622 = vadd.f32 0.0, %v3621
      %3623 = vmatmul.bf16.gmra.mxu0 %v3423
      %v3624 = vpop.f32.mrf.mxu0
      %v3625 = vadd.f32 0.0, %v3624
      %v3626 = vpop.f32.mrf.mxu0
      %v3627 = vadd.f32 0.0, %v3626
      %3628 = vmatmul.bf16.gmra.mxu0 %v3426
      %v3629 = vpop.f32.mrf.mxu0
      %v3630 = vadd.f32 0.0, %v3629
      %v3631 = vpop.f32.mrf.mxu0
      %v3632 = vadd.f32 0.0, %v3631
      %3633 = vmatmul.bf16.gmra.mxu0 %v3429
      %v3634 = vpop.f32.mrf.mxu0
      %v3635 = vadd.f32 0.0, %v3634
      %v3636 = vpop.f32.mrf.mxu0
      %v3637 = vadd.f32 0.0, %v3636
      %3638 = vmatmul.bf16.gmra.mxu0 %v3432
      %v3639 = vpop.f32.mrf.mxu0
      %v3640 = vadd.f32 0.0, %v3639
      %v3641 = vpop.f32.mrf.mxu0
      %v3642 = vadd.f32 0.0, %v3641
      %3643 = vmatmul.bf16.gmra.mxu0 %v3435
      %v3644 = vpop.f32.mrf.mxu0
      %v3645 = vadd.f32 0.0, %v3644
      %v3646 = vpop.f32.mrf.mxu0
      %v3647 = vadd.f32 0.0, %v3646
      %3648 = vmatmul.bf16.gmra.mxu0 %v3438
      %v3649 = vpop.f32.mrf.mxu0
      %v3650 = vadd.f32 0.0, %v3649
      %v3651 = vpop.f32.mrf.mxu0
      %v3652 = vadd.f32 0.0, %v3651
      %3653 = vmatmul.bf16.gmra.mxu0 %v3441
      %v3654 = vpop.f32.mrf.mxu0
      %v3655 = vadd.f32 0.0, %v3654
      %v3656 = vpop.f32.mrf.mxu0
      %v3657 = vadd.f32 0.0, %v3656
      %3658 = vmatmul.bf16.gmra.mxu0 %v3444
      %v3659 = vpop.f32.mrf.mxu0
      %v3660 = vadd.f32 0.0, %v3659
      %v3661 = vpop.f32.mrf.mxu0
      %v3662 = vadd.f32 0.0, %v3661
      %3663 = vmatmul.bf16.gmra.mxu0 %v3447
      %v3664 = vpop.f32.mrf.mxu0
      %v3665 = vadd.f32 0.0, %v3664
      %v3666 = vpop.f32.mrf.mxu0
      %v3667 = vadd.f32 0.0, %v3666
      %3668 = vmatmul.bf16.gmra.mxu0 %v3450
      %v3669 = vpop.f32.mrf.mxu0
      %v3670 = vadd.f32 0.0, %v3669
      %v3671 = vpop.f32.mrf.mxu0
      %v3672 = vadd.f32 0.0, %v3671
      %3673 = vmatmul.bf16.gmra.mxu0 %v3453
      %v3674 = vpop.f32.mrf.mxu0
      %v3675 = vadd.f32 0.0, %v3674
      %v3676 = vpop.f32.mrf.mxu0
      %v3677 = vadd.f32 0.0, %v3676
      %3678 = vmatmul.bf16.gmra.mxu0 %v3456
      %v3679 = vpop.f32.mrf.mxu0
      %v3680 = vadd.f32 0.0, %v3679
      %v3681 = vpop.f32.mrf.mxu0
      %v3682 = vadd.f32 0.0, %v3681
      %3683 = vdwg.mxu0
      %v3684 = vmax.f32 %v3516, %v3605
      %3685 = vmax.xlane.f32.xlu0 %v3684
      %v3686 = vpop.xlane.xlu0 %3685
      %v3687 = vmax.f32 %v3518, %v3607
      %3688 = vmax.xlane.f32.xlu0 %v3687
      %v3689 = vpop.xlane.xlu0 %3688
      %v3690 = vmax.f32 %v3521, %v3610
      %3691 = vmax.xlane.f32.xlu0 %v3690
      %v3692 = vpop.xlane.xlu0 %3691
      %v3693 = vmax.f32 %v3523, %v3612
      %3694 = vmax.xlane.f32.xlu0 %v3693
      %v3695 = vpop.xlane.xlu0 %3694
      %v3696 = vmax.f32 %v3526, %v3615
      %3697 = vmax.xlane.f32.xlu0 %v3696
      %v3698 = vpop.xlane.xlu0 %3697
      %v3699 = vmax.f32 %v3528, %v3617
      %3700 = vmax.xlane.f32.xlu0 %v3699
      %v3701 = vpop.xlane.xlu0 %3700
      %v3702 = vmax.f32 %v3531, %v3620
      %3703 = vmax.xlane.f32.xlu0 %v3702
      %v3704 = vpop.xlane.xlu0 %3703
      %v3705 = vmax.f32 %v3533, %v3622
      %3706 = vmax.xlane.f32.xlu0 %v3705
      %v3707 = vpop.xlane.xlu0 %3706
      %v3708 = vmax.f32 %v3536, %v3625
      %3709 = vmax.xlane.f32.xlu0 %v3708
      %v3710 = vpop.xlane.xlu0 %3709
      %v3711 = vmax.f32 %v3538, %v3627
      %3712 = vmax.xlane.f32.xlu0 %v3711
      %v3713 = vpop.xlane.xlu0 %3712
      %v3714 = vmax.f32 %v3541, %v3630
      %3715 = vmax.xlane.f32.xlu0 %v3714
      %v3716 = vpop.xlane.xlu0 %3715
      %v3717 = vmax.f32 %v3543, %v3632
      %3718 = vmax.xlane.f32.xlu0 %v3717
      %v3719 = vpop.xlane.xlu0 %3718
      %v3720 = vmax.f32 %v3546, %v3635
      %3721 = vmax.xlane.f32.xlu0 %v3720
      %v3722 = vpop.xlane.xlu0 %3721
      %v3723 = vmax.f32 %v3548, %v3637
      %3724 = vmax.xlane.f32.xlu0 %v3723
      %v3725 = vpop.xlane.xlu0 %3724
      %v3726 = vmax.f32 %v3551, %v3640
      %3727 = vmax.xlane.f32.xlu0 %v3726
      %v3728 = vpop.xlane.xlu0 %3727
      %v3729 = vmax.f32 %v3553, %v3642
      %3730 = vmax.xlane.f32.xlu0 %v3729
      %v3731 = vpop.xlane.xlu0 %3730
      %v3732 = vmax.f32 %v3556, %v3645
      %3733 = vmax.xlane.f32.xlu0 %v3732
      %v3734 = vpop.xlane.xlu0 %3733
      %v3735 = vmax.f32 %v3558, %v3647
      %3736 = vmax.xlane.f32.xlu0 %v3735
      %v3737 = vpop.xlane.xlu0 %3736
      %v3738 = vmax.f32 %v3561, %v3650
      %3739 = vmax.xlane.f32.xlu0 %v3738
      %v3740 = vpop.xlane.xlu0 %3739
      %v3741 = vmax.f32 %v3563, %v3652
      %3742 = vmax.xlane.f32.xlu0 %v3741
      %v3743 = vpop.xlane.xlu0 %3742
      %v3744 = vmax.f32 %v3566, %v3655
      %3745 = vmax.xlane.f32.xlu0 %v3744
      %v3746 = vpop.xlane.xlu0 %3745
      %v3747 = vmax.f32 %v3568, %v3657
      %3748 = vmax.xlane.f32.xlu0 %v3747
      %v3749 = vpop.xlane.xlu0 %3748
      %v3750 = vmax.f32 %v3571, %v3660
      %3751 = vmax.xlane.f32.xlu0 %v3750
      %v3752 = vpop.xlane.xlu0 %3751
      %v3753 = vmax.f32 %v3573, %v3662
      %3754 = vmax.xlane.f32.xlu0 %v3753
      %v3755 = vpop.xlane.xlu0 %3754
      %v3756 = vmax.f32 %v3576, %v3665
      %3757 = vmax.xlane.f32.xlu0 %v3756
      %v3758 = vpop.xlane.xlu0 %3757
      %v3759 = vmax.f32 %v3578, %v3667
      %3760 = vmax.xlane.f32.xlu0 %v3759
      %v3761 = vpop.xlane.xlu0 %3760
      %v3762 = vmax.f32 %v3581, %v3670
      %3763 = vmax.xlane.f32.xlu0 %v3762
      %v3764 = vpop.xlane.xlu0 %3763
      %v3765 = vmax.f32 %v3583, %v3672
      %3766 = vmax.xlane.f32.xlu0 %v3765
      %v3767 = vpop.xlane.xlu0 %3766
      %v3768 = vmax.f32 %v3586, %v3675
      %3769 = vmax.xlane.f32.xlu0 %v3768
      %v3770 = vpop.xlane.xlu0 %3769
      %v3771 = vmax.f32 %v3588, %v3677
      %3772 = vmax.xlane.f32.xlu0 %v3771
      %v3773 = vpop.xlane.xlu0 %3772
      %v3774 = vmax.f32 %v3591, %v3680
      %3775 = vmax.xlane.f32.xlu0 %v3774
      %v3776 = vpop.xlane.xlu0 %3775
      %v3777 = vmax.f32 %v3593, %v3682
      %3778 = vmax.xlane.f32.xlu0 %v3777
      %v3779 = vpop.xlane.xlu0 %3778
      %v3780 = vsub.f32 %v3516, %v3686
      %v3781 = vsub.f32 %v3605, %v3686
      %v3782 = vsub.f32 %v3518, %v3689
      %v3783 = vsub.f32 %v3607, %v3689
      %v3784 = vsub.f32 %v3521, %v3692
      %v3785 = vsub.f32 %v3610, %v3692
      %v3786 = vsub.f32 %v3523, %v3695
      %v3787 = vsub.f32 %v3612, %v3695
      %v3788 = vsub.f32 %v3526, %v3698
      %v3789 = vsub.f32 %v3615, %v3698
      %v3790 = vsub.f32 %v3528, %v3701
      %v3791 = vsub.f32 %v3617, %v3701
      %v3792 = vsub.f32 %v3531, %v3704
      %v3793 = vsub.f32 %v3620, %v3704
      %v3794 = vsub.f32 %v3533, %v3707
      %v3795 = vsub.f32 %v3622, %v3707
      %v3796 = vsub.f32 %v3536, %v3710
      %v3797 = vsub.f32 %v3625, %v3710
      %v3798 = vsub.f32 %v3538, %v3713
      %v3799 = vsub.f32 %v3627, %v3713
      %v3800 = vsub.f32 %v3541, %v3716
      %v3801 = vsub.f32 %v3630, %v3716
      %v3802 = vsub.f32 %v3543, %v3719
      %v3803 = vsub.f32 %v3632, %v3719
      %v3804 = vsub.f32 %v3546, %v3722
      %v3805 = vsub.f32 %v3635, %v3722
      %v3806 = vsub.f32 %v3548, %v3725
      %v3807 = vsub.f32 %v3637, %v3725
      %v3808 = vsub.f32 %v3551, %v3728
      %v3809 = vsub.f32 %v3640, %v3728
      %v3810 = vsub.f32 %v3553, %v3731
      %v3811 = vsub.f32 %v3642, %v3731
      %v3812 = vsub.f32 %v3556, %v3734
      %v3813 = vsub.f32 %v3645, %v3734
      %v3814 = vsub.f32 %v3558, %v3737
      %v3815 = vsub.f32 %v3647, %v3737
      %v3816 = vsub.f32 %v3561, %v3740
      %v3817 = vsub.f32 %v3650, %v3740
      %v3818 = vsub.f32 %v3563, %v3743
      %v3819 = vsub.f32 %v3652, %v3743
      %v3820 = vsub.f32 %v3566, %v3746
      %v3821 = vsub.f32 %v3655, %v3746
      %v3822 = vsub.f32 %v3568, %v3749
      %v3823 = vsub.f32 %v3657, %v3749
      %v3824 = vsub.f32 %v3571, %v3752
      %v3825 = vsub.f32 %v3660, %v3752
      %v3826 = vsub.f32 %v3573, %v3755
      %v3827 = vsub.f32 %v3662, %v3755
      %v3828 = vsub.f32 %v3576, %v3758
      %v3829 = vsub.f32 %v3665, %v3758
      %v3830 = vsub.f32 %v3578, %v3761
      %v3831 = vsub.f32 %v3667, %v3761
      %v3832 = vsub.f32 %v3581, %v3764
      %v3833 = vsub.f32 %v3670, %v3764
      %v3834 = vsub.f32 %v3583, %v3767
      %v3835 = vsub.f32 %v3672, %v3767
      %v3836 = vsub.f32 %v3586, %v3770
      %v3837 = vsub.f32 %v3675, %v3770
      %v3838 = vsub.f32 %v3588, %v3773
      %v3839 = vsub.f32 %v3677, %v3773
      %v3840 = vsub.f32 %v3591, %v3776
      %v3841 = vsub.f32 %v3680, %v3776
      %v3842 = vsub.f32 %v3593, %v3779
      %v3843 = vsub.f32 %v3682, %v3779
      %v3844 = vmul.f32 %v3780, 1.442695
      %v3845 = vpow.pop %v3844
      %v3846 = vmul.f32 %v3781, 1.442695
      %v3847 = vpow.pop %v3846
      %v3848 = vmul.f32 %v3782, 1.442695
      %v3849 = vpow.pop %v3848
      %v3850 = vmul.f32 %v3783, 1.442695
      %v3851 = vpow.pop %v3850
      %v3852 = vmul.f32 %v3784, 1.442695
      %v3853 = vpow.pop %v3852
      %v3854 = vmul.f32 %v3785, 1.442695
      %v3855 = vpow.pop %v3854
      %v3856 = vmul.f32 %v3786, 1.442695
      %v3857 = vpow.pop %v3856
      %v3858 = vmul.f32 %v3787, 1.442695
      %v3859 = vpow.pop %v3858
      %v3860 = vmul.f32 %v3788, 1.442695
      %v3861 = vpow.pop %v3860
      %v3862 = vmul.f32 %v3789, 1.442695
      %v3863 = vpow.pop %v3862
      %v3864 = vmul.f32 %v3790, 1.442695
      %v3865 = vpow.pop %v3864
      %v3866 = vmul.f32 %v3791, 1.442695
      %v3867 = vpow.pop %v3866
      %v3868 = vmul.f32 %v3792, 1.442695
      %v3869 = vpow.pop %v3868
      %v3870 = vmul.f32 %v3793, 1.442695
      %v3871 = vpow.pop %v3870
      %v3872 = vmul.f32 %v3794, 1.442695
      %v3873 = vpow.pop %v3872
      %v3874 = vmul.f32 %v3795, 1.442695
      %v3875 = vpow.pop %v3874
      %v3876 = vmul.f32 %v3796, 1.442695
      %v3877 = vpow.pop %v3876
      %v3878 = vmul.f32 %v3797, 1.442695
      %v3879 = vpow.pop %v3878
      %v3880 = vmul.f32 %v3798, 1.442695
      %v3881 = vpow.pop %v3880
      %v3882 = vmul.f32 %v3799, 1.442695
      %v3883 = vpow.pop %v3882
      %v3884 = vmul.f32 %v3800, 1.442695
      %v3885 = vpow.pop %v3884
      %v3886 = vmul.f32 %v3801, 1.442695
      %v3887 = vpow.pop %v3886
      %v3888 = vmul.f32 %v3802, 1.442695
      %v3889 = vpow.pop %v3888
      %v3890 = vmul.f32 %v3803, 1.442695
      %v3891 = vpow.pop %v3890
      %v3892 = vmul.f32 %v3804, 1.442695
      %v3893 = vpow.pop %v3892
      %v3894 = vmul.f32 %v3805, 1.442695
      %v3895 = vpow.pop %v3894
      %v3896 = vmul.f32 %v3806, 1.442695
      %v3897 = vpow.pop %v3896
      %v3898 = vmul.f32 %v3807, 1.442695
      %v3899 = vpow.pop %v3898
      %v3900 = vmul.f32 %v3808, 1.442695
      %v3901 = vpow.pop %v3900
      %v3902 = vmul.f32 %v3809, 1.442695
      %v3903 = vpow.pop %v3902
      %v3904 = vmul.f32 %v3810, 1.442695
      %v3905 = vpow.pop %v3904
      %v3906 = vmul.f32 %v3811, 1.442695
      %v3907 = vpow.pop %v3906
      %v3908 = vmul.f32 %v3812, 1.442695
      %v3909 = vpow.pop %v3908
      %v3910 = vmul.f32 %v3813, 1.442695
      %v3911 = vpow.pop %v3910
      %v3912 = vmul.f32 %v3814, 1.442695
      %v3913 = vpow.pop %v3912
      %v3914 = vmul.f32 %v3815, 1.442695
      %v3915 = vpow.pop %v3914
      %v3916 = vmul.f32 %v3816, 1.442695
      %v3917 = vpow.pop %v3916
      %v3918 = vmul.f32 %v3817, 1.442695
      %v3919 = vpow.pop %v3918
      %v3920 = vmul.f32 %v3818, 1.442695
      %v3921 = vpow.pop %v3920
      %v3922 = vmul.f32 %v3819, 1.442695
      %v3923 = vpow.pop %v3922
      %v3924 = vmul.f32 %v3820, 1.442695
      %v3925 = vpow.pop %v3924
      %v3926 = vmul.f32 %v3821, 1.442695
      %v3927 = vpow.pop %v3926
      %v3928 = vmul.f32 %v3822, 1.442695
      %v3929 = vpow.pop %v3928
      %v3930 = vmul.f32 %v3823, 1.442695
      %v3931 = vpow.pop %v3930
      %v3932 = vmul.f32 %v3824, 1.442695
      %v3933 = vpow.pop %v3932
      %v3934 = vmul.f32 %v3825, 1.442695
      %v3935 = vpow.pop %v3934
      %v3936 = vmul.f32 %v3826, 1.442695
      %v3937 = vpow.pop %v3936
      %v3938 = vmul.f32 %v3827, 1.442695
      %v3939 = vpow.pop %v3938
      %v3940 = vmul.f32 %v3828, 1.442695
      %v3941 = vpow.pop %v3940
      %v3942 = vmul.f32 %v3829, 1.442695
      %v3943 = vpow.pop %v3942
      %v3944 = vmul.f32 %v3830, 1.442695
      %v3945 = vpow.pop %v3944
      %v3946 = vmul.f32 %v3831, 1.442695
      %v3947 = vpow.pop %v3946
      %v3948 = vmul.f32 %v3832, 1.442695
      %v3949 = vpow.pop %v3948
      %v3950 = vmul.f32 %v3833, 1.442695
      %v3951 = vpow.pop %v3950
      %v3952 = vmul.f32 %v3834, 1.442695
      %v3953 = vpow.pop %v3952
      %v3954 = vmul.f32 %v3835, 1.442695
      %v3955 = vpow.pop %v3954
      %v3956 = vmul.f32 %v3836, 1.442695
      %v3957 = vpow.pop %v3956
      %v3958 = vmul.f32 %v3837, 1.442695
      %v3959 = vpow.pop %v3958
      %v3960 = vmul.f32 %v3838, 1.442695
      %v3961 = vpow.pop %v3960
      %v3962 = vmul.f32 %v3839, 1.442695
      %v3963 = vpow.pop %v3962
      %v3964 = vmul.f32 %v3840, 1.442695
      %v3965 = vpow.pop %v3964
      %v3966 = vmul.f32 %v3841, 1.442695
      %v3967 = vpow.pop %v3966
      %v3968 = vmul.f32 %v3842, 1.442695
      %v3969 = vpow.pop %v3968
      %v3970 = vmul.f32 %v3843, 1.442695
      %v3971 = vpow.pop %v3970
      %v3972 = vadd.f32 %v3845, %v3847
      %3973 = vadd.xlane.f32.xlu0 %v3972
      %v3974 = vpop.xlane.xlu0 %3973
      %v3975 = vadd.f32 %v3849, %v3851
      %3976 = vadd.xlane.f32.xlu0 %v3975
      %v3977 = vpop.xlane.xlu0 %3976
      %v3978 = vadd.f32 %v3853, %v3855
      %3979 = vadd.xlane.f32.xlu0 %v3978
      %v3980 = vpop.xlane.xlu0 %3979
      %v3981 = vadd.f32 %v3857, %v3859
      %3982 = vadd.xlane.f32.xlu0 %v3981
      %v3983 = vpop.xlane.xlu0 %3982
      %v3984 = vadd.f32 %v3861, %v3863
      %3985 = vadd.xlane.f32.xlu0 %v3984
      %v3986 = vpop.xlane.xlu0 %3985
      %v3987 = vadd.f32 %v3865, %v3867
      %3988 = vadd.xlane.f32.xlu0 %v3987
      %v3989 = vpop.xlane.xlu0 %3988
      %v3990 = vadd.f32 %v3869, %v3871
      %3991 = vadd.xlane.f32.xlu0 %v3990
      %v3992 = vpop.xlane.xlu0 %3991
      %v3993 = vadd.f32 %v3873, %v3875
      %3994 = vadd.xlane.f32.xlu0 %v3993
      %v3995 = vpop.xlane.xlu0 %3994
      %v3996 = vadd.f32 %v3877, %v3879
      %3997 = vadd.xlane.f32.xlu0 %v3996
      %v3998 = vpop.xlane.xlu0 %3997
      %v3999 = vadd.f32 %v3881, %v3883
      %4000 = vadd.xlane.f32.xlu0 %v3999
      %v4001 = vpop.xlane.xlu0 %4000
      %v4002 = vadd.f32 %v3885, %v3887
      %4003 = vadd.xlane.f32.xlu0 %v4002
      %v4004 = vpop.xlane.xlu0 %4003
      %v4005 = vadd.f32 %v3889, %v3891
      %4006 = vadd.xlane.f32.xlu0 %v4005
      %v4007 = vpop.xlane.xlu0 %4006
      %v4008 = vadd.f32 %v3893, %v3895
      %4009 = vadd.xlane.f32.xlu0 %v4008
      %v4010 = vpop.xlane.xlu0 %4009
      %v4011 = vadd.f32 %v3897, %v3899
      %4012 = vadd.xlane.f32.xlu0 %v4011
      %v4013 = vpop.xlane.xlu0 %4012
      %v4014 = vadd.f32 %v3901, %v3903
      %4015 = vadd.xlane.f32.xlu0 %v4014
      %v4016 = vpop.xlane.xlu0 %4015
      %v4017 = vadd.f32 %v3905, %v3907
      %4018 = vadd.xlane.f32.xlu0 %v4017
      %v4019 = vpop.xlane.xlu0 %4018
      %v4020 = vadd.f32 %v3909, %v3911
      %4021 = vadd.xlane.f32.xlu0 %v4020
      %v4022 = vpop.xlane.xlu0 %4021
      %v4023 = vadd.f32 %v3913, %v3915
      %4024 = vadd.xlane.f32.xlu0 %v4023
      %v4025 = vpop.xlane.xlu0 %4024
      %v4026 = vadd.f32 %v3917, %v3919
      %4027 = vadd.xlane.f32.xlu0 %v4026
      %v4028 = vpop.xlane.xlu0 %4027
      %v4029 = vadd.f32 %v3921, %v3923
      %4030 = vadd.xlane.f32.xlu0 %v4029
      %v4031 = vpop.xlane.xlu0 %4030
      %v4032 = vadd.f32 %v3925, %v3927
      %4033 = vadd.xlane.f32.xlu0 %v4032
      %v4034 = vpop.xlane.xlu0 %4033
      %v4035 = vadd.f32 %v3929, %v3931
      %4036 = vadd.xlane.f32.xlu0 %v4035
      %v4037 = vpop.xlane.xlu0 %4036
      %v4038 = vadd.f32 %v3933, %v3935
      %4039 = vadd.xlane.f32.xlu0 %v4038
      %v4040 = vpop.xlane.xlu0 %4039
      %v4041 = vadd.f32 %v3937, %v3939
      %4042 = vadd.xlane.f32.xlu0 %v4041
      %v4043 = vpop.xlane.xlu0 %4042
      %v4044 = vadd.f32 %v3941, %v3943
      %4045 = vadd.xlane.f32.xlu0 %v4044
      %v4046 = vpop.xlane.xlu0 %4045
      %v4047 = vadd.f32 %v3945, %v3947
      %4048 = vadd.xlane.f32.xlu0 %v4047
      %v4049 = vpop.xlane.xlu0 %4048
      %v4050 = vadd.f32 %v3949, %v3951
      %4051 = vadd.xlane.f32.xlu0 %v4050
      %v4052 = vpop.xlane.xlu0 %4051
      %v4053 = vadd.f32 %v3953, %v3955
      %4054 = vadd.xlane.f32.xlu0 %v4053
      %v4055 = vpop.xlane.xlu0 %4054
      %v4056 = vadd.f32 %v3957, %v3959
      %4057 = vadd.xlane.f32.xlu0 %v4056
      %v4058 = vpop.xlane.xlu0 %4057
      %v4059 = vadd.f32 %v3961, %v3963
      %4060 = vadd.xlane.f32.xlu0 %v4059
      %v4061 = vpop.xlane.xlu0 %4060
      %v4062 = vadd.f32 %v3965, %v3967
      %4063 = vadd.xlane.f32.xlu0 %v4062
      %v4064 = vpop.xlane.xlu0 %4063
      %v4065 = vadd.f32 %v3969, %v3971
      %4066 = vadd.xlane.f32.xlu0 %v4065
      %v4067 = vpop.xlane.xlu0 %4066
      %v4068 = vpack.c.bf16 %v3849, %v3845
      %v4069 = vpack.c.bf16 %v3851, %v3847
      %v4070 = vpack.c.bf16 %v3857, %v3853
      %v4071 = vpack.c.bf16 %v3859, %v3855
      %v4072 = vpack.c.bf16 %v3865, %v3861
      %v4073 = vpack.c.bf16 %v3867, %v3863
      %v4074 = vpack.c.bf16 %v3873, %v3869
      %v4075 = vpack.c.bf16 %v3875, %v3871
      %v4076 = vpack.c.bf16 %v3881, %v3877
      %v4077 = vpack.c.bf16 %v3883, %v3879
      %v4078 = vpack.c.bf16 %v3889, %v3885
      %v4079 = vpack.c.bf16 %v3891, %v3887
      %v4080 = vpack.c.bf16 %v3897, %v3893
      %v4081 = vpack.c.bf16 %v3899, %v3895
      %v4082 = vpack.c.bf16 %v3905, %v3901
      %v4083 = vpack.c.bf16 %v3907, %v3903
      %v4084 = vpack.c.bf16 %v3913, %v3909
      %v4085 = vpack.c.bf16 %v3915, %v3911
      %v4086 = vpack.c.bf16 %v3921, %v3917
      %v4087 = vpack.c.bf16 %v3923, %v3919
      %v4088 = vpack.c.bf16 %v3929, %v3925
      %v4089 = vpack.c.bf16 %v3931, %v3927
      %v4090 = vpack.c.bf16 %v3937, %v3933
      %v4091 = vpack.c.bf16 %v3939, %v3935
      %v4092 = vpack.c.bf16 %v3945, %v3941
      %v4093 = vpack.c.bf16 %v3947, %v3943
      %v4094 = vpack.c.bf16 %v3953, %v3949
      %v4095 = vpack.c.bf16 %v3955, %v3951
      %v4096 = vpack.c.bf16 %v3961, %v3957
      %v4097 = vpack.c.bf16 %v3963, %v3959
      %v4098 = vpack.c.bf16 %v3969, %v3965
      %v4099 = vpack.c.bf16 %v3971, %v3967
      %4100 = vrot.lane.b32.xlu0 %v197, 40
      %v4101 = vpop.permute.xlu0 %4100
      %4102 = vrot.lane.b32.xlu0 %v198, 40
      %v4103 = vpop.permute.xlu0 %4102
      %4104 = vrot.lane.b32.xlu0 %v199, 40
      %v4105 = vpop.permute.xlu0 %4104
      %4106 = vrot.lane.b32.xlu0 %v200, 40
      %v4107 = vpop.permute.xlu0 %4106
      %4108 = vrot.lane.b32.xlu0 %v201, 40
      %v4109 = vpop.permute.xlu0 %4108
      %4110 = vrot.lane.b32.xlu0 %v202, 40
      %v4111 = vpop.permute.xlu0 %4110
      %4112 = vrot.lane.b32.xlu0 %v203, 40
      %v4113 = vpop.permute.xlu0 %4112
      %4114 = vrot.lane.b32.xlu0 %v204, 40
      %v4115 = vpop.permute.xlu0 %4114
      %4116 = vrot.lane.b32.xlu0 %v205, 40
      %v4117 = vpop.permute.xlu0 %4116
      %4118 = vrot.lane.b32.xlu0 %v206, 40
      %v4119 = vpop.permute.xlu0 %4118
      %4120 = vrot.lane.b32.xlu0 %v207, 40
      %v4121 = vpop.permute.xlu0 %4120
      %4122 = vrot.lane.b32.xlu0 %v208, 40
      %v4123 = vpop.permute.xlu0 %4122
      %4124 = vrot.lane.b32.xlu0 %v209, 40
      %v4125 = vpop.permute.xlu0 %4124
      %4126 = vrot.lane.b32.xlu0 %v210, 40
      %v4127 = vpop.permute.xlu0 %4126
      %4128 = vrot.lane.b32.xlu0 %v211, 40
      %v4129 = vpop.permute.xlu0 %4128
      %4130 = vrot.lane.b32.xlu0 %v212, 40
      %v4131 = vpop.permute.xlu0 %4130
      %4148 = vmatpush.bf16.msra.mxu0 %v4115
      %4149 = vmatpush.bf16.msra.mxu0 %v4113
      %4150 = vmatpush.bf16.msra.mxu0 %v4111
      %4151 = vmatpush.bf16.msra.mxu0 %v4109
      %4152 = vmatpush.bf16.msra.mxu0 %v4107
      %4153 = vmatpush.bf16.msra.mxu0 %v4105
      %4154 = vmatpush.bf16.msra.mxu0 %v4103
      %4155 = vmatpush.bf16.msra.mxu0 %v4101
      %4156 = vmatmul.bf16.gmra.mxu0 %v4068
      %v4157 = vpop.f32.mrf.mxu0
      %v4158 = vadd.f32 0.0, %v4157
      %v4159 = vpop.f32.mrf.mxu0
      %v4160 = vadd.f32 0.0, %v4159
      %4161 = vmatmul.bf16.gmra.mxu0 %v4070
      %v4162 = vpop.f32.mrf.mxu0
      %v4163 = vadd.f32 0.0, %v4162
      %v4164 = vpop.f32.mrf.mxu0
      %v4165 = vadd.f32 0.0, %v4164
      %4166 = vmatmul.bf16.gmra.mxu0 %v4072
      %v4167 = vpop.f32.mrf.mxu0
      %v4168 = vadd.f32 0.0, %v4167
      %v4169 = vpop.f32.mrf.mxu0
      %v4170 = vadd.f32 0.0, %v4169
      %4171 = vmatmul.bf16.gmra.mxu0 %v4074
      %v4172 = vpop.f32.mrf.mxu0
      %v4173 = vadd.f32 0.0, %v4172
      %v4174 = vpop.f32.mrf.mxu0
      %v4175 = vadd.f32 0.0, %v4174
      %4176 = vmatmul.bf16.gmra.mxu0 %v4076
      %v4177 = vpop.f32.mrf.mxu0
      %v4178 = vadd.f32 0.0, %v4177
      %v4179 = vpop.f32.mrf.mxu0
      %v4180 = vadd.f32 0.0, %v4179
      %4181 = vmatmul.bf16.gmra.mxu0 %v4078
      %v4182 = vpop.f32.mrf.mxu0
      %v4183 = vadd.f32 0.0, %v4182
      %v4184 = vpop.f32.mrf.mxu0
      %v4185 = vadd.f32 0.0, %v4184
      %4186 = vmatmul.bf16.gmra.mxu0 %v4080
      %v4187 = vpop.f32.mrf.mxu0
      %v4188 = vadd.f32 0.0, %v4187
      %v4189 = vpop.f32.mrf.mxu0
      %v4190 = vadd.f32 0.0, %v4189
      %4191 = vmatmul.bf16.gmra.mxu0 %v4082
      %v4192 = vpop.f32.mrf.mxu0
      %v4193 = vadd.f32 0.0, %v4192
      %v4194 = vpop.f32.mrf.mxu0
      %v4195 = vadd.f32 0.0, %v4194
      %4196 = vmatmul.bf16.gmra.mxu0 %v4084
      %v4197 = vpop.f32.mrf.mxu0
      %v4198 = vadd.f32 0.0, %v4197
      %v4199 = vpop.f32.mrf.mxu0
      %v4200 = vadd.f32 0.0, %v4199
      %4201 = vmatmul.bf16.gmra.mxu0 %v4086
      %v4202 = vpop.f32.mrf.mxu0
      %v4203 = vadd.f32 0.0, %v4202
      %v4204 = vpop.f32.mrf.mxu0
      %v4205 = vadd.f32 0.0, %v4204
      %4206 = vmatmul.bf16.gmra.mxu0 %v4088
      %v4207 = vpop.f32.mrf.mxu0
      %v4208 = vadd.f32 0.0, %v4207
      %v4209 = vpop.f32.mrf.mxu0
      %v4210 = vadd.f32 0.0, %v4209
      %4211 = vmatmul.bf16.gmra.mxu0 %v4090
      %v4212 = vpop.f32.mrf.mxu0
      %v4213 = vadd.f32 0.0, %v4212
      %v4214 = vpop.f32.mrf.mxu0
      %v4215 = vadd.f32 0.0, %v4214
      %4216 = vmatmul.bf16.gmra.mxu0 %v4092
      %v4217 = vpop.f32.mrf.mxu0
      %v4218 = vadd.f32 0.0, %v4217
      %v4219 = vpop.f32.mrf.mxu0
      %v4220 = vadd.f32 0.0, %v4219
      %4221 = vmatmul.bf16.gmra.mxu0 %v4094
      %v4222 = vpop.f32.mrf.mxu0
      %v4223 = vadd.f32 0.0, %v4222
      %v4224 = vpop.f32.mrf.mxu0
      %v4225 = vadd.f32 0.0, %v4224
      %4226 = vmatmul.bf16.gmra.mxu0 %v4096
      %v4227 = vpop.f32.mrf.mxu0
      %v4228 = vadd.f32 0.0, %v4227
      %v4229 = vpop.f32.mrf.mxu0
      %v4230 = vadd.f32 0.0, %v4229
      %4231 = vmatmul.bf16.gmra.mxu0 %v4098
      %v4232 = vpop.f32.mrf.mxu0
      %v4233 = vadd.f32 0.0, %v4232
      %v4234 = vpop.f32.mrf.mxu0
      %v4235 = vadd.f32 0.0, %v4234
      %4236 = vdwg.mxu0
      %4237 = vmatpush.bf16.msra.mxu0 %v4131
      %4238 = vmatpush.bf16.msra.mxu0 %v4129
      %4239 = vmatpush.bf16.msra.mxu0 %v4127
      %4240 = vmatpush.bf16.msra.mxu0 %v4125
      %4241 = vmatpush.bf16.msra.mxu0 %v4123
      %4242 = vmatpush.bf16.msra.mxu0 %v4121
      %4243 = vmatpush.bf16.msra.mxu0 %v4119
      %4244 = vmatpush.bf16.msra.mxu0 %v4117
      %4245 = vmatmul.bf16.gmra.mxu0 %v4069
      %v4246 = vpop.f32.mrf.mxu0
      %v4247 = vadd.f32 %v4158, %v4246
      %v4248 = vpop.f32.mrf.mxu0
      %v4249 = vadd.f32 %v4160, %v4248
      %4250 = vmatmul.bf16.gmra.mxu0 %v4071
      %v4251 = vpop.f32.mrf.mxu0
      %v4252 = vadd.f32 %v4163, %v4251
      %v4253 = vpop.f32.mrf.mxu0
      %v4254 = vadd.f32 %v4165, %v4253
      %4255 = vmatmul.bf16.gmra.mxu0 %v4073
      %v4256 = vpop.f32.mrf.mxu0
      %v4257 = vadd.f32 %v4168, %v4256
      %v4258 = vpop.f32.mrf.mxu0
      %v4259 = vadd.f32 %v4170, %v4258
      %4260 = vmatmul.bf16.gmra.mxu0 %v4075
      %v4261 = vpop.f32.mrf.mxu0
      %v4262 = vadd.f32 %v4173, %v4261
      %v4263 = vpop.f32.mrf.mxu0
      %v4264 = vadd.f32 %v4175, %v4263
      %4265 = vmatmul.bf16.gmra.mxu0 %v4077
      %v4266 = vpop.f32.mrf.mxu0
      %v4267 = vadd.f32 %v4178, %v4266
      %v4268 = vpop.f32.mrf.mxu0
      %v4269 = vadd.f32 %v4180, %v4268
      %4270 = vmatmul.bf16.gmra.mxu0 %v4079
      %v4271 = vpop.f32.mrf.mxu0
      %v4272 = vadd.f32 %v4183, %v4271
      %v4273 = vpop.f32.mrf.mxu0
      %v4274 = vadd.f32 %v4185, %v4273
      %4275 = vmatmul.bf16.gmra.mxu0 %v4081
      %v4276 = vpop.f32.mrf.mxu0
      %v4277 = vadd.f32 %v4188, %v4276
      %v4278 = vpop.f32.mrf.mxu0
      %v4279 = vadd.f32 %v4190, %v4278
      %4280 = vmatmul.bf16.gmra.mxu0 %v4083
      %v4281 = vpop.f32.mrf.mxu0
      %v4282 = vadd.f32 %v4193, %v4281
      %v4283 = vpop.f32.mrf.mxu0
      %v4284 = vadd.f32 %v4195, %v4283
      %4285 = vmatmul.bf16.gmra.mxu0 %v4085
      %v4286 = vpop.f32.mrf.mxu0
      %v4287 = vadd.f32 %v4198, %v4286
      %v4288 = vpop.f32.mrf.mxu0
      %v4289 = vadd.f32 %v4200, %v4288
      %4290 = vmatmul.bf16.gmra.mxu0 %v4087
      %v4291 = vpop.f32.mrf.mxu0
      %v4292 = vadd.f32 %v4203, %v4291
      %v4293 = vpop.f32.mrf.mxu0
      %v4294 = vadd.f32 %v4205, %v4293
      %4295 = vmatmul.bf16.gmra.mxu0 %v4089
      %v4296 = vpop.f32.mrf.mxu0
      %v4297 = vadd.f32 %v4208, %v4296
      %v4298 = vpop.f32.mrf.mxu0
      %v4299 = vadd.f32 %v4210, %v4298
      %4300 = vmatmul.bf16.gmra.mxu0 %v4091
      %v4301 = vpop.f32.mrf.mxu0
      %v4302 = vadd.f32 %v4213, %v4301
      %v4303 = vpop.f32.mrf.mxu0
      %v4304 = vadd.f32 %v4215, %v4303
      %4305 = vmatmul.bf16.gmra.mxu0 %v4093
      %v4306 = vpop.f32.mrf.mxu0
      %v4307 = vadd.f32 %v4218, %v4306
      %v4308 = vpop.f32.mrf.mxu0
      %v4309 = vadd.f32 %v4220, %v4308
      %4310 = vmatmul.bf16.gmra.mxu0 %v4095
      %v4311 = vpop.f32.mrf.mxu0
      %v4312 = vadd.f32 %v4223, %v4311
      %v4313 = vpop.f32.mrf.mxu0
      %v4314 = vadd.f32 %v4225, %v4313
      %4315 = vmatmul.bf16.gmra.mxu0 %v4097
      %v4316 = vpop.f32.mrf.mxu0
      %v4317 = vadd.f32 %v4228, %v4316
      %v4318 = vpop.f32.mrf.mxu0
      %v4319 = vadd.f32 %v4230, %v4318
      %4320 = vmatmul.bf16.gmra.mxu0 %v4099
      %v4321 = vpop.f32.mrf.mxu0
      %v4322 = vadd.f32 %v4233, %v4321
      %v4323 = vpop.f32.mrf.mxu0
      %v4324 = vadd.f32 %v4235, %v4323
      %4325 = vdwg.mxu0
      %v4326 = vrcp.pop %v3974
      %v4327 = vrcp.pop %v3977
      %v4328 = vrcp.pop %v3980
      %v4329 = vrcp.pop %v3983
      %v4330 = vrcp.pop %v3986
      %v4331 = vrcp.pop %v3989
      %v4332 = vrcp.pop %v3992
      %v4333 = vrcp.pop %v3995
      %v4334 = vrcp.pop %v3998
      %v4335 = vrcp.pop %v4001
      %v4336 = vrcp.pop %v4004
      %v4337 = vrcp.pop %v4007
      %v4338 = vrcp.pop %v4010
      %v4339 = vrcp.pop %v4013
      %v4340 = vrcp.pop %v4016
      %v4341 = vrcp.pop %v4019
      %v4342 = vrcp.pop %v4022
      %v4343 = vrcp.pop %v4025
      %v4344 = vrcp.pop %v4028
      %v4345 = vrcp.pop %v4031
      %v4346 = vrcp.pop %v4034
      %v4347 = vrcp.pop %v4037
      %v4348 = vrcp.pop %v4040
      %v4349 = vrcp.pop %v4043
      %v4350 = vrcp.pop %v4046
      %v4351 = vrcp.pop %v4049
      %v4352 = vrcp.pop %v4052
      %v4353 = vrcp.pop %v4055
      %v4354 = vrcp.pop %v4058
      %v4355 = vrcp.pop %v4061
      %v4356 = vrcp.pop %v4064
      %v4357 = vrcp.pop %v4067
      %v4358 = vmul.f32 %v4247, %v4326
      %v4359 = vmul.f32 %v4249, %v4327
      %v4360 = vmul.f32 %v4252, %v4328
      %v4361 = vmul.f32 %v4254, %v4329
      %v4362 = vmul.f32 %v4257, %v4330
      %v4363 = vmul.f32 %v4259, %v4331
      %v4364 = vmul.f32 %v4262, %v4332
      %v4365 = vmul.f32 %v4264, %v4333
      %v4366 = vmul.f32 %v4267, %v4334
      %v4367 = vmul.f32 %v4269, %v4335
      %v4368 = vmul.f32 %v4272, %v4336
      %v4369 = vmul.f32 %v4274, %v4337
      %v4370 = vmul.f32 %v4277, %v4338
      %v4371 = vmul.f32 %v4279, %v4339
      %v4372 = vmul.f32 %v4282, %v4340
      %v4373 = vmul.f32 %v4284, %v4341
      %v4374 = vmul.f32 %v4287, %v4342
      %v4375 = vmul.f32 %v4289, %v4343
      %v4376 = vmul.f32 %v4292, %v4344
      %v4377 = vmul.f32 %v4294, %v4345
      %v4378 = vmul.f32 %v4297, %v4346
      %v4379 = vmul.f32 %v4299, %v4347
      %v4380 = vmul.f32 %v4302, %v4348
      %v4381 = vmul.f32 %v4304, %v4349
      %v4382 = vmul.f32 %v4307, %v4350
      %v4383 = vmul.f32 %v4309, %v4351
      %v4384 = vmul.f32 %v4312, %v4352
      %v4385 = vmul.f32 %v4314, %v4353
      %v4386 = vmul.f32 %v4317, %v4354
      %v4387 = vmul.f32 %v4319, %v4355
      %v4388 = vmul.f32 %v4322, %v4356
      %v4389 = vmul.f32 %v4324, %v4357
      %4422 = vrot.lane.b32.xlu0 %v2270, 8
      %v4423 = vpop.permute.xlu0 %4422
      %4424 = vrot.lane.b32.xlu0 %v2271, 8
      %v4425 = vpop.permute.xlu0 %4424
      %4426 = vrot.lane.b32.xlu0 %v2272, 8
      %v4427 = vpop.permute.xlu0 %4426
      %4428 = vrot.lane.b32.xlu0 %v2273, 8
      %v4429 = vpop.permute.xlu0 %4428
      %4430 = vrot.lane.b32.xlu0 %v2274, 8
      %v4431 = vpop.permute.xlu0 %4430
      %4432 = vrot.lane.b32.xlu0 %v2275, 8
      %v4433 = vpop.permute.xlu0 %4432
      %4434 = vrot.lane.b32.xlu0 %v2276, 8
      %v4435 = vpop.permute.xlu0 %4434
      %4436 = vrot.lane.b32.xlu0 %v2277, 8
      %v4437 = vpop.permute.xlu0 %4436
      %4438 = vrot.lane.b32.xlu0 %v2278, 8
      %v4439 = vpop.permute.xlu0 %4438
      %4440 = vrot.lane.b32.xlu0 %v2279, 8
      %v4441 = vpop.permute.xlu0 %4440
      %4442 = vrot.lane.b32.xlu0 %v2280, 8
      %v4443 = vpop.permute.xlu0 %4442
      %4444 = vrot.lane.b32.xlu0 %v2281, 8
      %v4445 = vpop.permute.xlu0 %4444
      %4446 = vrot.lane.b32.xlu0 %v2282, 8
      %v4447 = vpop.permute.xlu0 %4446
      %4448 = vrot.lane.b32.xlu0 %v2283, 8
      %v4449 = vpop.permute.xlu0 %4448
      %4450 = vrot.lane.b32.xlu0 %v2284, 8
      %v4451 = vpop.permute.xlu0 %4450
      %4452 = vrot.lane.b32.xlu0 %v2285, 8
      %v4453 = vpop.permute.xlu0 %4452
      %4454 = vrot.lane.b32.xlu0 %v2286, 8
      %v4455 = vpop.permute.xlu0 %4454
      %4456 = vrot.lane.b32.xlu0 %v2287, 8
      %v4457 = vpop.permute.xlu0 %4456
      %4458 = vrot.lane.b32.xlu0 %v2288, 8
      %v4459 = vpop.permute.xlu0 %4458
      %4460 = vrot.lane.b32.xlu0 %v2289, 8
      %v4461 = vpop.permute.xlu0 %4460
      %4462 = vrot.lane.b32.xlu0 %v2290, 8
      %v4463 = vpop.permute.xlu0 %4462
      %4464 = vrot.lane.b32.xlu0 %v2291, 8
      %v4465 = vpop.permute.xlu0 %4464
      %4466 = vrot.lane.b32.xlu0 %v2292, 8
      %v4467 = vpop.permute.xlu0 %4466
      %4468 = vrot.lane.b32.xlu0 %v2293, 8
      %v4469 = vpop.permute.xlu0 %4468
      %4470 = vrot.lane.b32.xlu0 %v2294, 8
      %v4471 = vpop.permute.xlu0 %4470
      %4472 = vrot.lane.b32.xlu0 %v2295, 8
      %v4473 = vpop.permute.xlu0 %4472
      %4474 = vrot.lane.b32.xlu0 %v2296, 8
      %v4475 = vpop.permute.xlu0 %4474
      %4476 = vrot.lane.b32.xlu0 %v2297, 8
      %v4477 = vpop.permute.xlu0 %4476
      %4478 = vrot.lane.b32.xlu0 %v2298, 8
      %v4479 = vpop.permute.xlu0 %4478
      %4480 = vrot.lane.b32.xlu0 %v2299, 8
      %v4481 = vpop.permute.xlu0 %4480
      %4482 = vrot.lane.b32.xlu0 %v2300, 8
      %v4483 = vpop.permute.xlu0 %4482
      %4484 = vrot.lane.b32.xlu0 %v2301, 8
      %v4485 = vpop.permute.xlu0 %4484
      %4550 = vrot.lane.b32.xlu0 %v3314, 16
      %v4551 = vpop.permute.xlu0 %4550
      %4552 = vrot.lane.b32.xlu0 %v3315, 16
      %v4553 = vpop.permute.xlu0 %4552
      %4554 = vrot.lane.b32.xlu0 %v3316, 16
      %v4555 = vpop.permute.xlu0 %4554
      %4556 = vrot.lane.b32.xlu0 %v3317, 16
      %v4557 = vpop.permute.xlu0 %4556
      %4558 = vrot.lane.b32.xlu0 %v3318, 16
      %v4559 = vpop.permute.xlu0 %4558
      %4560 = vrot.lane.b32.xlu0 %v3319, 16
      %v4561 = vpop.permute.xlu0 %4560
      %4562 = vrot.lane.b32.xlu0 %v3320, 16
      %v4563 = vpop.permute.xlu0 %4562
      %4564 = vrot.lane.b32.xlu0 %v3321, 16
      %v4565 = vpop.permute.xlu0 %4564
      %4566 = vrot.lane.b32.xlu0 %v3322, 16
      %v4567 = vpop.permute.xlu0 %4566
      %4568 = vrot.lane.b32.xlu0 %v3323, 16
      %v4569 = vpop.permute.xlu0 %4568
      %4570 = vrot.lane.b32.xlu0 %v3324, 16
      %v4571 = vpop.permute.xlu0 %4570
      %4572 = vrot.lane.b32.xlu0 %v3325, 16
      %v4573 = vpop.permute.xlu0 %4572
      %4574 = vrot.lane.b32.xlu0 %v3326, 16
      %v4575 = vpop.permute.xlu0 %4574
      %4576 = vrot.lane.b32.xlu0 %v3327, 16
      %v4577 = vpop.permute.xlu0 %4576
      %4578 = vrot.lane.b32.xlu0 %v3328, 16
      %v4579 = vpop.permute.xlu0 %4578
      %4580 = vrot.lane.b32.xlu0 %v3329, 16
      %v4581 = vpop.permute.xlu0 %4580
      %4582 = vrot.lane.b32.xlu0 %v3330, 16
      %v4583 = vpop.permute.xlu0 %4582
      %4584 = vrot.lane.b32.xlu0 %v3331, 16
      %v4585 = vpop.permute.xlu0 %4584
      %4586 = vrot.lane.b32.xlu0 %v3332, 16
      %v4587 = vpop.permute.xlu0 %4586
      %4588 = vrot.lane.b32.xlu0 %v3333, 16
      %v4589 = vpop.permute.xlu0 %4588
      %4590 = vrot.lane.b32.xlu0 %v3334, 16
      %v4591 = vpop.permute.xlu0 %4590
      %4592 = vrot.lane.b32.xlu0 %v3335, 16
      %v4593 = vpop.permute.xlu0 %4592
      %4594 = vrot.lane.b32.xlu0 %v3336, 16
      %v4595 = vpop.permute.xlu0 %4594
      %4596 = vrot.lane.b32.xlu0 %v3337, 16
      %v4597 = vpop.permute.xlu0 %4596
      %4598 = vrot.lane.b32.xlu0 %v3338, 16
      %v4599 = vpop.permute.xlu0 %4598
      %4600 = vrot.lane.b32.xlu0 %v3339, 16
      %v4601 = vpop.permute.xlu0 %4600
      %4602 = vrot.lane.b32.xlu0 %v3340, 16
      %v4603 = vpop.permute.xlu0 %4602
      %4604 = vrot.lane.b32.xlu0 %v3341, 16
      %v4605 = vpop.permute.xlu0 %4604
      %4606 = vrot.lane.b32.xlu0 %v3342, 16
      %v4607 = vpop.permute.xlu0 %4606
      %4608 = vrot.lane.b32.xlu0 %v3343, 16
      %v4609 = vpop.permute.xlu0 %4608
      %4610 = vrot.lane.b32.xlu0 %v3344, 16
      %v4611 = vpop.permute.xlu0 %4610
      %4612 = vrot.lane.b32.xlu0 %v3345, 16
      %v4613 = vpop.permute.xlu0 %4612
      %4678 = vrot.lane.b32.xlu0 %v4358, 24
      %v4679 = vpop.permute.xlu0 %4678
      %4680 = vrot.lane.b32.xlu0 %v4359, 24
      %v4681 = vpop.permute.xlu0 %4680
      %4682 = vrot.lane.b32.xlu0 %v4360, 24
      %v4683 = vpop.permute.xlu0 %4682
      %4684 = vrot.lane.b32.xlu0 %v4361, 24
      %v4685 = vpop.permute.xlu0 %4684
      %4686 = vrot.lane.b32.xlu0 %v4362, 24
      %v4687 = vpop.permute.xlu0 %4686
      %4688 = vrot.lane.b32.xlu0 %v4363, 24
      %v4689 = vpop.permute.xlu0 %4688
      %4690 = vrot.lane.b32.xlu0 %v4364, 24
      %v4691 = vpop.permute.xlu0 %4690
      %4692 = vrot.lane.b32.xlu0 %v4365, 24
      %v4693 = vpop.permute.xlu0 %4692
      %4694 = vrot.lane.b32.xlu0 %v4366, 24
      %v4695 = vpop.permute.xlu0 %4694
      %4696 = vrot.lane.b32.xlu0 %v4367, 24
      %v4697 = vpop.permute.xlu0 %4696
      %4698 = vrot.lane.b32.xlu0 %v4368, 24
      %v4699 = vpop.permute.xlu0 %4698
      %4700 = vrot.lane.b32.xlu0 %v4369, 24
      %v4701 = vpop.permute.xlu0 %4700
      %4702 = vrot.lane.b32.xlu0 %v4370, 24
      %v4703 = vpop.permute.xlu0 %4702
      %4704 = vrot.lane.b32.xlu0 %v4371, 24
      %v4705 = vpop.permute.xlu0 %4704
      %4706 = vrot.lane.b32.xlu0 %v4372, 24
      %v4707 = vpop.permute.xlu0 %4706
      %4708 = vrot.lane.b32.xlu0 %v4373, 24
      %v4709 = vpop.permute.xlu0 %4708
      %4710 = vrot.lane.b32.xlu0 %v4374, 24
      %v4711 = vpop.permute.xlu0 %4710
      %4712 = vrot.lane.b32.xlu0 %v4375, 24
      %v4713 = vpop.permute.xlu0 %4712
      %4714 = vrot.lane.b32.xlu0 %v4376, 24
      %v4715 = vpop.permute.xlu0 %4714
      %4716 = vrot.lane.b32.xlu0 %v4377, 24
      %v4717 = vpop.permute.xlu0 %4716
      %4718 = vrot.lane.b32.xlu0 %v4378, 24
      %v4719 = vpop.permute.xlu0 %4718
      %4720 = vrot.lane.b32.xlu0 %v4379, 24
      %v4721 = vpop.permute.xlu0 %4720
      %4722 = vrot.lane.b32.xlu0 %v4380, 24
      %v4723 = vpop.permute.xlu0 %4722
      %4724 = vrot.lane.b32.xlu0 %v4381, 24
      %v4725 = vpop.permute.xlu0 %4724
      %4726 = vrot.lane.b32.xlu0 %v4382, 24
      %v4727 = vpop.permute.xlu0 %4726
      %4728 = vrot.lane.b32.xlu0 %v4383, 24
      %v4729 = vpop.permute.xlu0 %4728
      %4730 = vrot.lane.b32.xlu0 %v4384, 24
      %v4731 = vpop.permute.xlu0 %4730
      %4732 = vrot.lane.b32.xlu0 %v4385, 24
      %v4733 = vpop.permute.xlu0 %4732
      %4734 = vrot.lane.b32.xlu0 %v4386, 24
      %v4735 = vpop.permute.xlu0 %4734
      %4736 = vrot.lane.b32.xlu0 %v4387, 24
      %v4737 = vpop.permute.xlu0 %4736
      %4738 = vrot.lane.b32.xlu0 %v4388, 24
      %v4739 = vpop.permute.xlu0 %4738
      %4740 = vrot.lane.b32.xlu0 %v4389, 24
      %v4741 = vpop.permute.xlu0 %4740
      %v4774 = vsel %vm261, %v1210, %v4423
      %v4775 = vsel %vm261, %v1211, %v4425
      %v4776 = vsel %vm261, %v1212, %v4427
      %v4777 = vsel %vm261, %v1213, %v4429
      %v4778 = vsel %vm261, %v1214, %v4431
      %v4779 = vsel %vm261, %v1215, %v4433
      %v4780 = vsel %vm261, %v1216, %v4435
      %v4781 = vsel %vm261, %v1217, %v4437
      %v4782 = vsel %vm261, %v1218, %v4439
      %v4783 = vsel %vm261, %v1219, %v4441
      %v4784 = vsel %vm261, %v1220, %v4443
      %v4785 = vsel %vm261, %v1221, %v4445
      %v4786 = vsel %vm261, %v1222, %v4447
      %v4787 = vsel %vm261, %v1223, %v4449
      %v4788 = vsel %vm261, %v1224, %v4451
      %v4789 = vsel %vm261, %v1225, %v4453
      %v4790 = vsel %vm261, %v1226, %v4455
      %v4791 = vsel %vm261, %v1227, %v4457
      %v4792 = vsel %vm261, %v1228, %v4459
      %v4793 = vsel %vm261, %v1229, %v4461
      %v4794 = vsel %vm261, %v1230, %v4463
      %v4795 = vsel %vm261, %v1231, %v4465
      %v4796 = vsel %vm261, %v1232, %v4467
      %v4797 = vsel %vm261, %v1233, %v4469
      %v4798 = vsel %vm261, %v1234, %v4471
      %v4799 = vsel %vm261, %v1235, %v4473
      %v4800 = vsel %vm261, %v1236, %v4475
      %v4801 = vsel %vm261, %v1237, %v4477
      %v4802 = vsel %vm261, %v1238, %v4479
      %v4803 = vsel %vm261, %v1239, %v4481
      %v4804 = vsel %vm261, %v1240, %v4483
      %v4805 = vsel %vm261, %v1241, %v4485
      %vm4806 = vcmask 130048
      %v4807 = vsel %vm4806, %v4774, %v4551
      %v4808 = vsel %vm4806, %v4775, %v4553
      %v4809 = vsel %vm4806, %v4776, %v4555
      %v4810 = vsel %vm4806, %v4777, %v4557
      %v4811 = vsel %vm4806, %v4778, %v4559
      %v4812 = vsel %vm4806, %v4779, %v4561
      %v4813 = vsel %vm4806, %v4780, %v4563
      %v4814 = vsel %vm4806, %v4781, %v4565
      %v4815 = vsel %vm4806, %v4782, %v4567
      %v4816 = vsel %vm4806, %v4783, %v4569
      %v4817 = vsel %vm4806, %v4784, %v4571
      %v4818 = vsel %vm4806, %v4785, %v4573
      %v4819 = vsel %vm4806, %v4786, %v4575
      %v4820 = vsel %vm4806, %v4787, %v4577
      %v4821 = vsel %vm4806, %v4788, %v4579
      %v4822 = vsel %vm4806, %v4789, %v4581
      %v4823 = vsel %vm4806, %v4790, %v4583
      %v4824 = vsel %vm4806, %v4791, %v4585
      %v4825 = vsel %vm4806, %v4792, %v4587
      %v4826 = vsel %vm4806, %v4793, %v4589
      %v4827 = vsel %vm4806, %v4794, %v4591
      %v4828 = vsel %vm4806, %v4795, %v4593
      %v4829 = vsel %vm4806, %v4796, %v4595
      %v4830 = vsel %vm4806, %v4797, %v4597
      %v4831 = vsel %vm4806, %v4798, %v4599
      %v4832 = vsel %vm4806, %v4799, %v4601
      %v4833 = vsel %vm4806, %v4800, %v4603
      %v4834 = vsel %vm4806, %v4801, %v4605
      %v4835 = vsel %vm4806, %v4802, %v4607
      %v4836 = vsel %vm4806, %v4803, %v4609
      %v4837 = vsel %vm4806, %v4804, %v4611
      %v4838 = vsel %vm4806, %v4805, %v4613
      %vm4839 = vcmask 195584
      %v4840 = vsel %vm4839, %v4807, %v4679
      %v4841 = vsel %vm4839, %v4808, %v4681
      %v4842 = vsel %vm4839, %v4809, %v4683
      %v4843 = vsel %vm4839, %v4810, %v4685
      %v4844 = vsel %vm4839, %v4811, %v4687
      %v4845 = vsel %vm4839, %v4812, %v4689
      %v4846 = vsel %vm4839, %v4813, %v4691
      %v4847 = vsel %vm4839, %v4814, %v4693
      %v4848 = vsel %vm4839, %v4815, %v4695
      %v4849 = vsel %vm4839, %v4816, %v4697
      %v4850 = vsel %vm4839, %v4817, %v4699
      %v4851 = vsel %vm4839, %v4818, %v4701
      %v4852 = vsel %vm4839, %v4819, %v4703
      %v4853 = vsel %vm4839, %v4820, %v4705
      %v4854 = vsel %vm4839, %v4821, %v4707
      %v4855 = vsel %vm4839, %v4822, %v4709
      %v4856 = vsel %vm4839, %v4823, %v4711
      %v4857 = vsel %vm4839, %v4824, %v4713
      %v4858 = vsel %vm4839, %v4825, %v4715
      %v4859 = vsel %vm4839, %v4826, %v4717
      %v4860 = vsel %vm4839, %v4827, %v4719
      %v4861 = vsel %vm4839, %v4828, %v4721
      %v4862 = vsel %vm4839, %v4829, %v4723
      %v4863 = vsel %vm4839, %v4830, %v4725
      %v4864 = vsel %vm4839, %v4831, %v4727
      %v4865 = vsel %vm4839, %v4832, %v4729
      %v4866 = vsel %vm4839, %v4833, %v4731
      %v4867 = vsel %vm4839, %v4834, %v4733
      %v4868 = vsel %vm4839, %v4835, %v4735
      %v4869 = vsel %vm4839, %v4836, %v4737
      %v4870 = vsel %vm4839, %v4837, %v4739
      %v4871 = vsel %vm4839, %v4838, %v4741
      %vm4872 = vcmask 261120
      %v4873 = vsel %vm4872, %v4840, 0.0
      %v4874 = vsel %vm4872, %v4841, 0.0
      %v4875 = vsel %vm4872, %v4842, 0.0
      %v4876 = vsel %vm4872, %v4843, 0.0
      %v4877 = vsel %vm4872, %v4844, 0.0
      %v4878 = vsel %vm4872, %v4845, 0.0
      %v4879 = vsel %vm4872, %v4846, 0.0
      %v4880 = vsel %vm4872, %v4847, 0.0
      %v4881 = vsel %vm4872, %v4848, 0.0
      %v4882 = vsel %vm4872, %v4849, 0.0
      %v4883 = vsel %vm4872, %v4850, 0.0
      %v4884 = vsel %vm4872, %v4851, 0.0
      %v4885 = vsel %vm4872, %v4852, 0.0
      %v4886 = vsel %vm4872, %v4853, 0.0
      %v4887 = vsel %vm4872, %v4854, 0.0
      %v4888 = vsel %vm4872, %v4855, 0.0
      %v4889 = vsel %vm4872, %v4856, 0.0
      %v4890 = vsel %vm4872, %v4857, 0.0
      %v4891 = vsel %vm4872, %v4858, 0.0
      %v4892 = vsel %vm4872, %v4859, 0.0
      %v4893 = vsel %vm4872, %v4860, 0.0
      %v4894 = vsel %vm4872, %v4861, 0.0
      %v4895 = vsel %vm4872, %v4862, 0.0
      %v4896 = vsel %vm4872, %v4863, 0.0
      %v4897 = vsel %vm4872, %v4864, 0.0
      %v4898 = vsel %vm4872, %v4865, 0.0
      %v4899 = vsel %vm4872, %v4866, 0.0
      %v4900 = vsel %vm4872, %v4867, 0.0
      %v4901 = vsel %vm4872, %v4868, 0.0
      %v4902 = vsel %vm4872, %v4869, 0.0
      %v4903 = vsel %vm4872, %v4870, 0.0
      %v4904 = vsel %vm4872, %v4871, 0.0
      %4905 = vst [vmem:[%s116] sm:$0xff] %v4873
      %4906 = vst [vmem:[%s116 + $0x8] sm:$0xff] %v4874
      %4907 = vst [vmem:[%s116 + $0x10] sm:$0xff] %v4875
      %4908 = vst [vmem:[%s116 + $0x18] sm:$0xff] %v4876
      %4909 = vst [vmem:[%s116 + $0x20] sm:$0xff] %v4877
      %4910 = vst [vmem:[%s116 + $0x28] sm:$0xff] %v4878
      %4911 = vst [vmem:[%s116 + $0x30] sm:$0xff] %v4879
      %4912 = vst [vmem:[%s116 + $0x38] sm:$0xff] %v4880
      %4913 = vst [vmem:[%s116 + $0x40] sm:$0xff] %v4881
      %4914 = vst [vmem:[%s116 + $0x48] sm:$0xff] %v4882
      %4915 = vst [vmem:[%s116 + $0x50] sm:$0xff] %v4883
      %4916 = vst [vmem:[%s116 + $0x58] sm:$0xff] %v4884
      %4917 = vst [vmem:[%s116 + $0x60] sm:$0xff] %v4885
      %4918 = vst [vmem:[%s116 + $0x68] sm:$0xff] %v4886
      %4919 = vst [vmem:[%s116 + $0x70] sm:$0xff] %v4887
      %4920 = vst [vmem:[%s116 + $0x78] sm:$0xff] %v4888
      %4921 = vst [vmem:[%s116 + $0x80] sm:$0xff] %v4889
      %4922 = vst [vmem:[%s116 + $0x88] sm:$0xff] %v4890
      %4923 = vst [vmem:[%s116 + $0x90] sm:$0xff] %v4891
      %4924 = vst [vmem:[%s116 + $0x98] sm:$0xff] %v4892
      %4925 = vst [vmem:[%s116 + $0xa0] sm:$0xff] %v4893
      %4926 = vst [vmem:[%s116 + $0xa8] sm:$0xff] %v4894
      %4927 = vst [vmem:[%s116 + $0xb0] sm:$0xff] %v4895
      %4928 = vst [vmem:[%s116 + $0xb8] sm:$0xff] %v4896
      %4929 = vst [vmem:[%s116 + $0xc0] sm:$0xff] %v4897
      %4930 = vst [vmem:[%s116 + $0xc8] sm:$0xff] %v4898
      %4931 = vst [vmem:[%s116 + $0xd0] sm:$0xff] %v4899
      %4932 = vst [vmem:[%s116 + $0xd8] sm:$0xff] %v4900
      %4933 = vst [vmem:[%s116 + $0xe0] sm:$0xff] %v4901
      %4934 = vst [vmem:[%s116 + $0xe8] sm:$0xff] %v4902
      %4935 = vst [vmem:[%s116 + $0xf0] sm:$0xff] %v4903
      %4936 = vst [vmem:[%s116 + $0xf8] sm:$0xff] %v4904
      %p4937 = scmp.lt.s32.totalorder %s12, 1
      %s4938 = scalar_select %p4937, %s12, 1
      %s4939 = smul.addr %s4938, 32
      %s4940 = smul.addr %s4939, 8
      %s4941 = scalar_lea.vmem %s1, %s4940
      // Predicated region
      $region25: #{transformer_block_forward.13} parent=23 // pred_check
        %p4942 = pneg %p56
      $region26: #{transformer_block_forward.13} parent=23 // pred_check_branch
        %4944 = sbr.rel (%p4942) target = $region28
      $region27: #{transformer_block_forward.13} parent=23 // pred_region
        _
      $region28: #{transformer_block_forward.13} parent=23 // pred_fallthru
        _
    $region24: #{transformer_block_forward.13} parent=5 // pred_fallthru
      _
    %p4945 = scmp.le.s32.totalorder 2, %s7
    // Predicated region
    $region29: #{transformer_block_forward.13} parent=5 // pred_check
      %p4946 = pneg %p4945
    $region30: #{transformer_block_forward.13} parent=5 // pred_check_branch
      %4948 = sbr.rel (%p4946) target = $region32
    $region31: #{transformer_block_forward.13} parent=5 // pred_region
      %s4949 = ssub.s32 %s7, 2
      // Predicated region
      $region33: #{transformer_block_forward.13} parent=31 // pred_check
        %p4950 = pneg %p62
      $region34: #{transformer_block_forward.13} parent=31 // pred_check_branch
        %4952 = sbr.rel (%p4950) target = $region36
      $region35: #{transformer_block_forward.13} parent=31 // pred_region
        %p4953 = scmp.lt.s32.totalorder %s13, 1
        %s4954 = scalar_select %p4953, %s13, 1
        %s4955 = smul.addr %s4954, 32
        %s4956 = smul.addr %s4955, 8
        %s4957 = scalar_lea.vmem %s1, %s4956
      $region36: #{transformer_block_forward.13} parent=31 // pred_fallthru
        _
    $region32: #{transformer_block_forward.13} parent=5 // pred_fallthru
      _
  $region6: #{transformer_block_forward.13} parent=0 // loop_footer
    %s11 = sadd.s32 1, %s7
  $region7: #{transformer_block_forward.13} parent=0 // loop_footer_branch
    %6 = sbr.rel target = $region3
  $region8: #{transformer_block_forward.13} parent=0 // loop_exit
    _

</llo_original>
